<compile_context>
chip_gen: v5e
topology: v5e:2x2
jax: 0.10.0
libtpu: 0.0.40
codegen_flags: <defaults>
</compile_context>

<pallas_src>
import numpy as np
import jax
import jax.numpy as jnp
from jax.experimental import pallas as pl
from jax.experimental.pallas import tpu as pltpu

EPS = 1e-5      # torch BatchNorm2d default eps
LANE = 128      # TPU lane width


# ----------------------------------------------------------------------------
# Parameters (same layer list as the torch module; DCGAN-style init)
# ----------------------------------------------------------------------------
def init_params(key, size_fm=8, size_z=16, channel_size=3):
    fm = size_fm
    layers = []
    down = [(size_z + 11, fm * 4), (fm * 4, fm * 8), (fm * 8, fm * 16)]
    for cin, cout in down:                                    # Conv2d OIHW
        key, kw, kg, kb = jax.random.split(key, 4)
        layers.append(dict(
            kind="conv", stride=2, pad=1,
            w=0.02 * jax.random.normal(kw, (cout, cin, 2, 2), jnp.float32),
            gamma=1.0 + 0.1 * jax.random.normal(kg, (cout,), jnp.float32),
            beta=0.1 * jax.random.normal(kb, (cout,), jnp.float32)))
    up = [(fm * 16, fm * 8, 1, 0), (fm * 8, fm * 4, 1, 0),
          (fm * 4, fm * 2, 1, 0), (fm * 2, fm, 2, 1), (fm, channel_size, 2, 1)]
    for idx, (cin, cout, s, p) in enumerate(up):              # ConvTranspose2d IOHW
        key, kw, kg, kb = jax.random.split(key, 4)
        last = idx == len(up) - 1
        layers.append(dict(
            kind="convT", stride=s, pad=p,
            w=0.02 * jax.random.normal(kw, (cin, cout, 2, 2), jnp.float32),
            gamma=None if last else 1.0 + 0.1 * jax.random.normal(kg, (cout,), jnp.float32),
            beta=None if last else 0.1 * jax.random.normal(kb, (cout,), jnp.float32)))
    return layers


# ----------------------------------------------------------------------------
# Input featurisation (model boundary, NCHW)
# ----------------------------------------------------------------------------
def build_input(noise, action):
    sin_cos = jnp.concatenate([jnp.sin(action[:, 3:]), jnp.cos(action[:, 3:])], axis=-1)
    act = jnp.concatenate([action[:, :3], sin_cos], axis=-1)            # (B, 11)
    B, _, H, W = noise.shape
    act_map = jnp.broadcast_to(act[:, :, None, None], (B, act.shape[1], H, W))
    return jnp.concatenate([noise, act_map], axis=1).astype(jnp.float32)


# ----------------------------------------------------------------------------
# Static per-layer geometry + constant operands
# ----------------------------------------------------------------------------
def _layer_geometry(params, N, H, W):
    cfgs = []
    h, w = H, W
    for layer in params:
        k, s, p = layer["kind"], layer["stride"], layer["pad"]
        if k == "conv":
            cout, cin = layer["w"].shape[0], layer["w"].shape[1]
            oh, ow = (h + 2 * p - 2) // s + 1, (w + 2 * p - 2) // s + 1
        else:
            cin, cout = layer["w"].shape[0], layer["w"].shape[1]
            oh, ow = (h - 1) * s - 2 * p + 2, (w - 1) * s - 2 * p + 2
        cfgs.append(dict(kind=k, stride=s, pad=p, H=h, W=w, OH=oh, OW=ow,
                         cin=cin, cout=cout, bn=layer["gamma"] is not None))
        h, w = oh, ow
    return cfgs


def _build_gather(cfg, N):
    # (4, N*OH*OW, N*H*W) 0/1 selection matrices: one per kernel tap.  Each row
    # selects the single input pixel feeding that output pixel for that tap
    # (all-zero row <=> the tap falls in the implicit zero padding).
    H, W, OH, OW = cfg["H"], cfg["W"], cfg["OH"], cfg["OW"]
    s, p = cfg["stride"], cfg["pad"]
    G = np.zeros((4, N * OH * OW, N * H * W), np.float32)
    for kh in range(2):
        for kw in range(2):
            t = 2 * kh + kw
            for oh in range(OH):
                for ow in range(OW):
                    if cfg["kind"] == "conv":
                        i, j = s * oh + kh - p, s * ow + kw - p
                    else:  # transposed conv: o = s*i - p + k  =>  i = (o + p - k)/s
                        ni, nj = oh + p - kh, ow + p - kw
                        if ni % s or nj % s:
                            continue
                        i, j = ni // s, nj // s
                    if 0 <= i < H and 0 <= j < W:
                        for n in range(N):
                            G[t, (n * OH + oh) * OW + ow, (n * H + i) * W + j] = 1.0
    return G


def _pack_tap_weights(layer, lanes):
    # Per-tap (Cin, Cout) matrices, zero-padded to (lanes, lanes), bf16.
    w = layer["w"]
    taps = []
    for kh in range(2):
        for kw in range(2):
            m = w[:, :, kh, kw].T if layer["kind"] == "conv" else w[:, :, kh, kw]
            cin, cout = m.shape
            taps.append(jnp.zeros((lanes, lanes), jnp.float32).at[:cin, :cout].set(m))
    return jnp.stack(taps).astype(jnp.bfloat16)        # (4, lanes, lanes)


# ----------------------------------------------------------------------------
# The fused Pallas kernel: all 8 layers, VMEM resident
# ----------------------------------------------------------------------------
def _make_fused_kernel(cfgs):
    n_layers = len(cfgs)

    def kernel(x_ref, w_ref, gam_ref, bet_ref, *rest):
        g_refs, out_ref = rest[:n_layers], rest[n_layers]

        x = x_ref[...]                                  # (M0, lanes) f32 rows x channels
        bn_idx = 0
        for li, cfg in enumerate(cfgs):
            g_ref = g_refs[li]
            acc = None
            for t in range(4):
                # spatial gather for this tap: exact 0/1 selection matmul on the MXU
                gx = jnp.dot(g_ref[t], x, preferred_element_type=jnp.float32)
                # dense per-tap GEMM: bf16 operands, f32 accumulation, lane-dense
                yt = jnp.dot(gx.astype(jnp.bfloat16), w_ref[li, t],
                             preferred_element_type=jnp.float32)
                acc = yt if acc is None else acc + yt
            if cfg["bn"]:
                # training-mode BatchNorm folded into one scale/shift (all f32)
                mean = jnp.mean(acc, axis=0, keepdims=True)
                var = jnp.mean(jnp.square(acc - mean), axis=0, keepdims=True)
                scale = gam_ref[bn_idx] * jax.lax.rsqrt(var + EPS)      # (1, lanes)
                shift = bet_ref[bn_idx] - mean * scale
                bn_idx += 1
                x = jnp.maximum(acc * scale + shift, 0.0)               # ReLU, stays f32
            else:
                out_ref[...] = jnp.tanh(acc)            # final layer: Tanh, f32, lane dense

    return kernel


def _full_spec(shape):
    nd = len(shape)
    return pl.BlockSpec(tuple(int(d) for d in shape), lambda i, _nd=nd: (0,) * _nd)


def generator_forward_pallas(noise, action, params):
    x_nchw = build_input(noise, action)                 # (N, C0, H, W)
    N, C0, H, W = x_nchw.shape
    cfgs = _layer_geometry(params, N, H, W)

    max_ch = max(max(c["cin"] for c in cfgs), max(c["cout"] for c in cfgs))
    lanes = LANE * int(np.ceil(max(max_ch, C0) / LANE))
    # TODO(synk): for big size_fm, pad each layer to its own multiple of 128
    #             instead of one global lane width.

    # ---- input boundary: NCHW -> (rows, channels), zero-pad channels --------
    x_rows = x_nchw.transpose(0, 2, 3, 1).reshape(N * H * W, C0)
    x_rows = jnp.pad(x_rows, ((0, 0), (0, lanes - C0))).astype(jnp.float32)

    # ---- constant operands ---------------------------------------------------
    w_all = jnp.stack([_pack_tap_weights(l, lanes) for l in params])    # (L,4,lanes,lanes) bf16
    g_mats = [jnp.asarray(_build_gather(c, N), jnp.float32) for c in cfgs]
    bn_layers = [l for l in params if l["gamma"] is not None]
    gammas = jnp.stack([jnp.pad(l["gamma"], (0, lanes - l["gamma"].shape[0]))
                        for l in bn_layers])[:, None, :].astype(jnp.float32)
    betas = jnp.stack([jnp.pad(l["beta"], (0, lanes - l["beta"].shape[0]))
                       for l in bn_layers])[:, None, :].astype(jnp.float32)

    last = cfgs[-1]
    m_out = N * last["OH"] * last["OW"]

    operands = [x_rows, w_all, gammas, betas] + g_mats
    out_rows = pl.pallas_call(
        _make_fused_kernel(cfgs),
        out_shape=jax.ShapeDtypeStruct((m_out, lanes), jnp.float32),
        grid=(1,),
        in_specs=[_full_spec(a.shape) for a in operands],
        out_specs=_full_spec((m_out, lanes)),
        compiler_params=pltpu.CompilerParams(
            dimension_semantics=("arbitrary",),
            vmem_limit_bytes=32 * 1024 * 1024),
    )(*operands)

    # ---- output boundary: (rows, channels) -> NCHW ---------------------------
    out = out_rows[:, :last["cout"]]
    return out.reshape(N, last["OH"], last["OW"], last["cout"]).transpose(0, 3, 1, 2)


# ----------------------------------------------------------------------------
# Pure-JAX reference (lax convolutions, f32, HIGHEST precision)
# ----------------------------------------------------------------------------
def reference_forward(noise, action, params):
    x = build_input(noise, action)
    for layer in params:
        w, g, b = layer["w"], layer["gamma"], layer["beta"]
        s, p = layer["stride"], layer["pad"]
        if layer["kind"] == "conv":
            y = jax.lax.conv_general_dilated(
                x, w, (s, s), ((p, p), (p, p)),
                dimension_numbers=("NCHW", "OIHW", "NCHW"),
                precision=jax.lax.Precision.HIGHEST)
        else:
            w_eq = jnp.flip(w, (2, 3)).transpose(1, 0, 2, 3)
            pe = 2 - 1 - p
            y = jax.lax.conv_general_dilated(
                x, w_eq, (1, 1), ((pe, pe), (pe, pe)), lhs_dilation=(s, s),
                dimension_numbers=("NCHW", "OIHW", "NCHW"),
                precision=jax.lax.Precision.HIGHEST)
        if g is not None:
            mean = jnp.mean(y, axis=(0, 2, 3), keepdims=True)
            var = jnp.mean(jnp.square(y - mean), axis=(0, 2, 3), keepdims=True)
            yn = (y - mean) * jax.lax.rsqrt(var + EPS)
            x = jnp.maximum(yn * g[None, :, None, None] + b[None, :, None, None], 0.0)
        else:
            x = jnp.tanh(y)
    return x


if __name__ == "__main__":
    key = jax.random.PRNGKey(0)
    k_noise, k_act, k_params = jax.random.split(key, 3)

    B, size_z, H, W = 2, 16, 4, 4
    size_fm, channel_size = 8, 3

    noise = jax.random.normal(k_noise, (B, size_z, H, W), jnp.float32)
    action = jax.random.normal(k_act, (B, 7), jnp.float32)      # 3 + 4 angles -> 11 features
    params = init_params(k_params, size_fm=size_fm, size_z=size_z,
                         channel_size=channel_size)

    fwd = jax.jit(lambda n, a: generator_forward_pallas(n, a, params))
    out = jax.block_until_ready(fwd(noise, action))

    # spatial trace: 4 -> 3 -> 2 -> 2 (down), 2 -> 3 -> 4 -> 5 -> 8 -> 14 (up)
    assert out.shape == (B, channel_size, 14, 14), out.shape

    ref = jax.block_until_ready(reference_forward(noise, action, params))
    np.testing.assert_allclose(np.asarray(out), np.asarray(ref), rtol=2e-2, atol=2e-2)
    assert bool(jnp.all(jnp.isfinite(out)))
    print("KERNEL_OK")
</pallas_src>

<mosaic_0001>
module attributes {stable_mosaic.version = 11 : i64} {
  func.func @kernel(%arg0: i32, %arg1: memref<32x128xf32, #tpu.memory_space<vmem>>, %arg2: memref<8x4x128x128xbf16, #tpu.memory_space<vmem>>, %arg3: memref<7x1x128xf32, #tpu.memory_space<vmem>>, %arg4: memref<7x1x128xf32, #tpu.memory_space<vmem>>, %arg5: memref<4x18x32xf32, #tpu.memory_space<vmem>>, %arg6: memref<4x8x18xf32, #tpu.memory_space<vmem>>, %arg7: memref<4x8x8xf32, #tpu.memory_space<vmem>>, %arg8: memref<4x18x8xf32, #tpu.memory_space<vmem>>, %arg9: memref<4x32x18xf32, #tpu.memory_space<vmem>>, %arg10: memref<4x50x32xf32, #tpu.memory_space<vmem>>, %arg11: memref<4x128x50xf32, #tpu.memory_space<vmem>>, %arg12: memref<4x392x128xf32, #tpu.memory_space<vmem>>, %arg13: memref<392x128xf32, #tpu.memory_space<vmem>>) attributes {dimension_semantics = [#tpu.dimension_semantics<arbitrary>], iteration_bounds = array<i64: 1>, scalar_prefetch = 0 : i64, scratch_operands = 0 : i64, tpu.core_type = #tpu.core_type<tc>, window_params = [{pipeline_mode = #tpu.pipeline_mode<synchronous>, transform_indices = @transform_0, window_bounds = array<i64: 32, 128>}, {pipeline_mode = #tpu.pipeline_mode<synchronous>, transform_indices = @transform_1, window_bounds = array<i64: 8, 4, 128, 128>}, {pipeline_mode = #tpu.pipeline_mode<synchronous>, transform_indices = @transform_2, window_bounds = array<i64: 7, 1, 128>}, {pipeline_mode = #tpu.pipeline_mode<synchronous>, transform_indices = @transform_3, window_bounds = array<i64: 7, 1, 128>}, {pipeline_mode = #tpu.pipeline_mode<synchronous>, transform_indices = @transform_4, window_bounds = array<i64: 4, 18, 32>}, {pipeline_mode = #tpu.pipeline_mode<synchronous>, transform_indices = @transform_5, window_bounds = array<i64: 4, 8, 18>}, {pipeline_mode = #tpu.pipeline_mode<synchronous>, transform_indices = @transform_6, window_bounds = array<i64: 4, 8, 8>}, {pipeline_mode = #tpu.pipeline_mode<synchronous>, transform_indices = @transform_7, window_bounds = array<i64: 4, 18, 8>}, {pipeline_mode = #tpu.pipeline_mode<synchronous>, transform_indices = @transform_8, window_bounds = array<i64: 4, 32, 18>}, {pipeline_mode = #tpu.pipeline_mode<synchronous>, transform_indices = @transform_9, window_bounds = array<i64: 4, 50, 32>}, {pipeline_mode = #tpu.pipeline_mode<synchronous>, transform_indices = @transform_10, window_bounds = array<i64: 4, 128, 50>}, {pipeline_mode = #tpu.pipeline_mode<synchronous>, transform_indices = @transform_11, window_bounds = array<i64: 4, 392, 128>}, {pipeline_mode = #tpu.pipeline_mode<synchronous>, transform_indices = @transform_12, window_bounds = array<i64: 392, 128>}]} {
    %c0 = arith.constant 0 : index
    %c0_0 = arith.constant 0 : index
    %0 = vector.load %arg1[%c0, %c0_0] : memref<32x128xf32, #tpu.memory_space<vmem>>, vector<32x128xf32>
    %c0_1 = arith.constant 0 : index
    %c0_2 = arith.constant 0 : index
    %c0_3 = arith.constant 0 : index
    %1 = vector.load %arg5[%c0_1, %c0_2, %c0_3] : memref<4x18x32xf32, #tpu.memory_space<vmem>>, vector<1x18x32xf32>
    %2 = vector.shape_cast %1 : vector<1x18x32xf32> to vector<18x32xf32>
    %cst = arith.constant dense<0.000000e+00> : vector<18x128xf32>
    %3 = tpu.matmul %2, %0, %cst {dimension_numbers = #tpu.dot_dimension_numbers<[1], [0], [0], [1], [0, 0, 1, 1], [], []>} : vector<18x32xf32>, vector<32x128xf32>, vector<18x128xf32> -> vector<18x128xf32>
    %4 = arith.truncf %3 : vector<18x128xf32> to vector<18x128xbf16>
    %c0_4 = arith.constant 0 : index
    %c0_5 = arith.constant 0 : index
    %c0_6 = arith.constant 0 : index
    %c0_7 = arith.constant 0 : index
    %5 = vector.load %arg2[%c0_4, %c0_5, %c0_6, %c0_7] : memref<8x4x128x128xbf16, #tpu.memory_space<vmem>>, vector<1x1x128x128xbf16>
    %6 = vector.shape_cast %5 : vector<1x1x128x128xbf16> to vector<128x128xbf16>
    %cst_8 = arith.constant dense<0.000000e+00> : vector<18x128xf32>
    %7 = tpu.matmul %4, %6, %cst_8 {dimension_numbers = #tpu.dot_dimension_numbers<[1], [0], [0], [1], [0, 0, 1, 1], [], []>} : vector<18x128xbf16>, vector<128x128xbf16>, vector<18x128xf32> -> vector<18x128xf32>
    %c1 = arith.constant 1 : index
    %c0_9 = arith.constant 0 : index
    %c0_10 = arith.constant 0 : index
    %8 = vector.load %arg5[%c1, %c0_9, %c0_10] : memref<4x18x32xf32, #tpu.memory_space<vmem>>, vector<1x18x32xf32>
    %9 = vector.shape_cast %8 : vector<1x18x32xf32> to vector<18x32xf32>
    %cst_11 = arith.constant dense<0.000000e+00> : vector<18x128xf32>
    %10 = tpu.matmul %9, %0, %cst_11 {dimension_numbers = #tpu.dot_dimension_numbers<[1], [0], [0], [1], [0, 0, 1, 1], [], []>} : vector<18x32xf32>, vector<32x128xf32>, vector<18x128xf32> -> vector<18x128xf32>
    %11 = arith.truncf %10 : vector<18x128xf32> to vector<18x128xbf16>
    %c0_12 = arith.constant 0 : index
    %c1_13 = arith.constant 1 : index
    %c0_14 = arith.constant 0 : index
    %c0_15 = arith.constant 0 : index
    %12 = vector.load %arg2[%c0_12, %c1_13, %c0_14, %c0_15] : memref<8x4x128x128xbf16, #tpu.memory_space<vmem>>, vector<1x1x128x128xbf16>
    %13 = vector.shape_cast %12 : vector<1x1x128x128xbf16> to vector<128x128xbf16>
    %cst_16 = arith.constant dense<0.000000e+00> : vector<18x128xf32>
    %14 = tpu.matmul %11, %13, %cst_16 {dimension_numbers = #tpu.dot_dimension_numbers<[1], [0], [0], [1], [0, 0, 1, 1], [], []>} : vector<18x128xbf16>, vector<128x128xbf16>, vector<18x128xf32> -> vector<18x128xf32>
    %15 = arith.addf %7, %14 : vector<18x128xf32>
    %c2 = arith.constant 2 : index
    %c0_17 = arith.constant 0 : index
    %c0_18 = arith.constant 0 : index
    %16 = vector.load %arg5[%c2, %c0_17, %c0_18] : memref<4x18x32xf32, #tpu.memory_space<vmem>>, vector<1x18x32xf32>
    %17 = vector.shape_cast %16 : vector<1x18x32xf32> to vector<18x32xf32>
    %cst_19 = arith.constant dense<0.000000e+00> : vector<18x128xf32>
    %18 = tpu.matmul %17, %0, %cst_19 {dimension_numbers = #tpu.dot_dimension_numbers<[1], [0], [0], [1], [0, 0, 1, 1], [], []>} : vector<18x32xf32>, vector<32x128xf32>, vector<18x128xf32> -> vector<18x128xf32>
    %19 = arith.truncf %18 : vector<18x128xf32> to vector<18x128xbf16>
    %c0_20 = arith.constant 0 : index
    %c2_21 = arith.constant 2 : index
    %c0_22 = arith.constant 0 : index
    %c0_23 = arith.constant 0 : index
    %20 = vector.load %arg2[%c0_20, %c2_21, %c0_22, %c0_23] : memref<8x4x128x128xbf16, #tpu.memory_space<vmem>>, vector<1x1x128x128xbf16>
    %21 = vector.shape_cast %20 : vector<1x1x128x128xbf16> to vector<128x128xbf16>
    %cst_24 = arith.constant dense<0.000000e+00> : vector<18x128xf32>
    %22 = tpu.matmul %19, %21, %cst_24 {dimension_numbers = #tpu.dot_dimension_numbers<[1], [0], [0], [1], [0, 0, 1, 1], [], []>} : vector<18x128xbf16>, vector<128x128xbf16>, vector<18x128xf32> -> vector<18x128xf32>
    %23 = arith.addf %15, %22 : vector<18x128xf32>
    %c3 = arith.constant 3 : index
    %c0_25 = arith.constant 0 : index
    %c0_26 = arith.constant 0 : index
    %24 = vector.load %arg5[%c3, %c0_25, %c0_26] : memref<4x18x32xf32, #tpu.memory_space<vmem>>, vector<1x18x32xf32>
    %25 = vector.shape_cast %24 : vector<1x18x32xf32> to vector<18x32xf32>
    %cst_27 = arith.constant dense<0.000000e+00> : vector<18x128xf32>
    %26 = tpu.matmul %25, %0, %cst_27 {dimension_numbers = #tpu.dot_dimension_numbers<[1], [0], [0], [1], [0, 0, 1, 1], [], []>} : vector<18x32xf32>, vector<32x128xf32>, vector<18x128xf32> -> vector<18x128xf32>
    %27 = arith.truncf %26 : vector<18x128xf32> to vector<18x128xbf16>
    %c0_28 = arith.constant 0 : index
    %c3_29 = arith.constant 3 : index
    %c0_30 = arith.constant 0 : index
    %c0_31 = arith.constant 0 : index
    %28 = vector.load %arg2[%c0_28, %c3_29, %c0_30, %c0_31] : memref<8x4x128x128xbf16, #tpu.memory_space<vmem>>, vector<1x1x128x128xbf16>
    %29 = vector.shape_cast %28 : vector<1x1x128x128xbf16> to vector<128x128xbf16>
    %cst_32 = arith.constant dense<0.000000e+00> : vector<18x128xf32>
    %30 = tpu.matmul %27, %29, %cst_32 {dimension_numbers = #tpu.dot_dimension_numbers<[1], [0], [0], [1], [0, 0, 1, 1], [], []>} : vector<18x128xbf16>, vector<128x128xbf16>, vector<18x128xf32> -> vector<18x128xf32>
    %31 = arith.addf %23, %30 : vector<18x128xf32>
    %cst_33 = arith.constant dense<0.000000e+00> : vector<128xf32>
    %32 = vector.multi_reduction <add>, %31, %cst_33 [0] : vector<18x128xf32> to vector<128xf32>
    %33 = vector.shape_cast %32 : vector<128xf32> to vector<1x128xf32>
    %cst_34 = arith.constant 1.800000e+01 : f32
    %34 = vector.broadcast %cst_34 : f32 to vector<1x128xf32>
    %35 = arith.divf %33, %34 : vector<1x128xf32>
    %36 = vector.broadcast %35 : vector<1x128xf32> to vector<18x128xf32>
    %37 = arith.subf %31, %36 : vector<18x128xf32>
    %38 = arith.mulf %37, %37 : vector<18x128xf32>
    %cst_35 = arith.constant dense<0.000000e+00> : vector<128xf32>
    %39 = vector.multi_reduction <add>, %38, %cst_35 [0] : vector<18x128xf32> to vector<128xf32>
    %40 = vector.shape_cast %39 : vector<128xf32> to vector<1x128xf32>
    %cst_36 = arith.constant 1.800000e+01 : f32
    %41 = vector.broadcast %cst_36 : f32 to vector<1x128xf32>
    %42 = arith.divf %40, %41 : vector<1x128xf32>
    %c0_37 = arith.constant 0 : index
    %c0_38 = arith.constant 0 : index
    %c0_39 = arith.constant 0 : index
    %43 = vector.load %arg3[%c0_37, %c0_38, %c0_39] : memref<7x1x128xf32, #tpu.memory_space<vmem>>, vector<1x1x128xf32>
    %44 = vector.shape_cast %43 : vector<1x1x128xf32> to vector<1x128xf32>
    %cst_40 = arith.constant 9.99999974E-6 : f32
    %45 = vector.broadcast %cst_40 : f32 to vector<1x128xf32>
    %46 = arith.addf %42, %45 : vector<1x128xf32>
    %47 = math.rsqrt %46 : vector<1x128xf32>
    %48 = arith.mulf %44, %47 : vector<1x128xf32>
    %c0_41 = arith.constant 0 : index
    %c0_42 = arith.constant 0 : index
    %c0_43 = arith.constant 0 : index
    %49 = vector.load %arg4[%c0_41, %c0_42, %c0_43] : memref<7x1x128xf32, #tpu.memory_space<vmem>>, vector<1x1x128xf32>
    %50 = vector.shape_cast %49 : vector<1x1x128xf32> to vector<1x128xf32>
    %51 = arith.mulf %35, %48 : vector<1x128xf32>
    %52 = arith.subf %50, %51 : vector<1x128xf32>
    %53 = vector.broadcast %48 : vector<1x128xf32> to vector<18x128xf32>
    %54 = arith.mulf %31, %53 : vector<18x128xf32>
    %55 = vector.broadcast %52 : vector<1x128xf32> to vector<18x128xf32>
    %56 = arith.addf %54, %55 : vector<18x128xf32>
    %cst_44 = arith.constant 0.000000e+00 : f32
    %57 = vector.broadcast %cst_44 : f32 to vector<18x128xf32>
    %58 = arith.maximumf %56, %57 : vector<18x128xf32>
    %c0_45 = arith.constant 0 : index
    %c0_46 = arith.constant 0 : index
    %c0_47 = arith.constant 0 : index
    %59 = vector.load %arg6[%c0_45, %c0_46, %c0_47] : memref<4x8x18xf32, #tpu.memory_space<vmem>>, vector<1x8x18xf32>
    %60 = vector.shape_cast %59 : vector<1x8x18xf32> to vector<8x18xf32>
    %cst_48 = arith.constant dense<0.000000e+00> : vector<8x128xf32>
    %61 = tpu.matmul %60, %58, %cst_48 {dimension_numbers = #tpu.dot_dimension_numbers<[1], [0], [0], [1], [0, 0, 1, 1], [], []>} : vector<8x18xf32>, vector<18x128xf32>, vector<8x128xf32> -> vector<8x128xf32>
    %62 = arith.truncf %61 : vector<8x128xf32> to vector<8x128xbf16>
    %c1_49 = arith.constant 1 : index
    %c0_50 = arith.constant 0 : index
    %c0_51 = arith.constant 0 : index
    %c0_52 = arith.constant 0 : index
    %63 = vector.load %arg2[%c1_49, %c0_50, %c0_51, %c0_52] : memref<8x4x128x128xbf16, #tpu.memory_space<vmem>>, vector<1x1x128x128xbf16>
    %64 = vector.shape_cast %63 : vector<1x1x128x128xbf16> to vector<128x128xbf16>
    %cst_53 = arith.constant dense<0.000000e+00> : vector<8x128xf32>
    %65 = tpu.matmul %62, %64, %cst_53 {dimension_numbers = #tpu.dot_dimension_numbers<[1], [0], [0], [1], [0, 0, 1, 1], [], []>} : vector<8x128xbf16>, vector<128x128xbf16>, vector<8x128xf32> -> vector<8x128xf32>
    %c1_54 = arith.constant 1 : index
    %c0_55 = arith.constant 0 : index
    %c0_56 = arith.constant 0 : index
    %66 = vector.load %arg6[%c1_54, %c0_55, %c0_56] : memref<4x8x18xf32, #tpu.memory_space<vmem>>, vector<1x8x18xf32>
    %67 = vector.shape_cast %66 : vector<1x8x18xf32> to vector<8x18xf32>
    %cst_57 = arith.constant dense<0.000000e+00> : vector<8x128xf32>
    %68 = tpu.matmul %67, %58, %cst_57 {dimension_numbers = #tpu.dot_dimension_numbers<[1], [0], [0], [1], [0, 0, 1, 1], [], []>} : vector<8x18xf32>, vector<18x128xf32>, vector<8x128xf32> -> vector<8x128xf32>
    %69 = arith.truncf %68 : vector<8x128xf32> to vector<8x128xbf16>
    %c1_58 = arith.constant 1 : index
    %c1_59 = arith.constant 1 : index
    %c0_60 = arith.constant 0 : index
    %c0_61 = arith.constant 0 : index
    %70 = vector.load %arg2[%c1_58, %c1_59, %c0_60, %c0_61] : memref<8x4x128x128xbf16, #tpu.memory_space<vmem>>, vector<1x1x128x128xbf16>
    %71 = vector.shape_cast %70 : vector<1x1x128x128xbf16> to vector<128x128xbf16>
    %cst_62 = arith.constant dense<0.000000e+00> : vector<8x128xf32>
    %72 = tpu.matmul %69, %71, %cst_62 {dimension_numbers = #tpu.dot_dimension_numbers<[1], [0], [0], [1], [0, 0, 1, 1], [], []>} : vector<8x128xbf16>, vector<128x128xbf16>, vector<8x128xf32> -> vector<8x128xf32>
    %73 = arith.addf %65, %72 : vector<8x128xf32>
    %c2_63 = arith.constant 2 : index
    %c0_64 = arith.constant 0 : index
    %c0_65 = arith.constant 0 : index
    %74 = vector.load %arg6[%c2_63, %c0_64, %c0_65] : memref<4x8x18xf32, #tpu.memory_space<vmem>>, vector<1x8x18xf32>
    %75 = vector.shape_cast %74 : vector<1x8x18xf32> to vector<8x18xf32>
    %cst_66 = arith.constant dense<0.000000e+00> : vector<8x128xf32>
    %76 = tpu.matmul %75, %58, %cst_66 {dimension_numbers = #tpu.dot_dimension_numbers<[1], [0], [0], [1], [0, 0, 1, 1], [], []>} : vector<8x18xf32>, vector<18x128xf32>, vector<8x128xf32> -> vector<8x128xf32>
    %77 = arith.truncf %76 : vector<8x128xf32> to vector<8x128xbf16>
    %c1_67 = arith.constant 1 : index
    %c2_68 = arith.constant 2 : index
    %c0_69 = arith.constant 0 : index
    %c0_70 = arith.constant 0 : index
    %78 = vector.load %arg2[%c1_67, %c2_68, %c0_69, %c0_70] : memref<8x4x128x128xbf16, #tpu.memory_space<vmem>>, vector<1x1x128x128xbf16>
    %79 = vector.shape_cast %78 : vector<1x1x128x128xbf16> to vector<128x128xbf16>
    %cst_71 = arith.constant dense<0.000000e+00> : vector<8x128xf32>
    %80 = tpu.matmul %77, %79, %cst_71 {dimension_numbers = #tpu.dot_dimension_numbers<[1], [0], [0], [1], [0, 0, 1, 1], [], []>} : vector<8x128xbf16>, vector<128x128xbf16>, vector<8x128xf32> -> vector<8x128xf32>
    %81 = arith.addf %73, %80 : vector<8x128xf32>
    %c3_72 = arith.constant 3 : index
    %c0_73 = arith.constant 0 : index
    %c0_74 = arith.constant 0 : index
    %82 = vector.load %arg6[%c3_72, %c0_73, %c0_74] : memref<4x8x18xf32, #tpu.memory_space<vmem>>, vector<1x8x18xf32>
    %83 = vector.shape_cast %82 : vector<1x8x18xf32> to vector<8x18xf32>
    %cst_75 = arith.constant dense<0.000000e+00> : vector<8x128xf32>
    %84 = tpu.matmul %83, %58, %cst_75 {dimension_numbers = #tpu.dot_dimension_numbers<[1], [0], [0], [1], [0, 0, 1, 1], [], []>} : vector<8x18xf32>, vector<18x128xf32>, vector<8x128xf32> -> vector<8x128xf32>
    %85 = arith.truncf %84 : vector<8x128xf32> to vector<8x128xbf16>
    %c1_76 = arith.constant 1 : index
    %c3_77 = arith.constant 3 : index
    %c0_78 = arith.constant 0 : index
    %c0_79 = arith.constant 0 : index
    %86 = vector.load %arg2[%c1_76, %c3_77, %c0_78, %c0_79] : memref<8x4x128x128xbf16, #tpu.memory_space<vmem>>, vector<1x1x128x128xbf16>
    %87 = vector.shape_cast %86 : vector<1x1x128x128xbf16> to vector<128x128xbf16>
    %cst_80 = arith.constant dense<0.000000e+00> : vector<8x128xf32>
    %88 = tpu.matmul %85, %87, %cst_80 {dimension_numbers = #tpu.dot_dimension_numbers<[1], [0], [0], [1], [0, 0, 1, 1], [], []>} : vector<8x128xbf16>, vector<128x128xbf16>, vector<8x128xf32> -> vector<8x128xf32>
    %89 = arith.addf %81, %88 : vector<8x128xf32>
    %cst_81 = arith.constant dense<0.000000e+00> : vector<128xf32>
    %90 = vector.multi_reduction <add>, %89, %cst_81 [0] : vector<8x128xf32> to vector<128xf32>
    %91 = vector.shape_cast %90 : vector<128xf32> to vector<1x128xf32>
    %cst_82 = arith.constant 8.000000e+00 : f32
    %92 = vector.broadcast %cst_82 : f32 to vector<1x128xf32>
    %93 = arith.divf %91, %92 : vector<1x128xf32>
    %94 = vector.broadcast %93 : vector<1x128xf32> to vector<8x128xf32>
    %95 = arith.subf %89, %94 : vector<8x128xf32>
    %96 = arith.mulf %95, %95 : vector<8x128xf32>
    %cst_83 = arith.constant dense<0.000000e+00> : vector<128xf32>
    %97 = vector.multi_reduction <add>, %96, %cst_83 [0] : vector<8x128xf32> to vector<128xf32>
    %98 = vector.shape_cast %97 : vector<128xf32> to vector<1x128xf32>
    %cst_84 = arith.constant 8.000000e+00 : f32
    %99 = vector.broadcast %cst_84 : f32 to vector<1x128xf32>
    %100 = arith.divf %98, %99 : vector<1x128xf32>
    %c1_85 = arith.constant 1 : index
    %c0_86 = arith.constant 0 : index
    %c0_87 = arith.constant 0 : index
    %101 = vector.load %arg3[%c1_85, %c0_86, %c0_87] : memref<7x1x128xf32, #tpu.memory_space<vmem>>, vector<1x1x128xf32>
    %102 = vector.shape_cast %101 : vector<1x1x128xf32> to vector<1x128xf32>
    %cst_88 = arith.constant 9.99999974E-6 : f32
    %103 = vector.broadcast %cst_88 : f32 to vector<1x128xf32>
    %104 = arith.addf %100, %103 : vector<1x128xf32>
    %105 = math.rsqrt %104 : vector<1x128xf32>
    %106 = arith.mulf %102, %105 : vector<1x128xf32>
    %c1_89 = arith.constant 1 : index
    %c0_90 = arith.constant 0 : index
    %c0_91 = arith.constant 0 : index
    %107 = vector.load %arg4[%c1_89, %c0_90, %c0_91] : memref<7x1x128xf32, #tpu.memory_space<vmem>>, vector<1x1x128xf32>
    %108 = vector.shape_cast %107 : vector<1x1x128xf32> to vector<1x128xf32>
    %109 = arith.mulf %93, %106 : vector<1x128xf32>
    %110 = arith.subf %108, %109 : vector<1x128xf32>
    %111 = vector.broadcast %106 : vector<1x128xf32> to vector<8x128xf32>
    %112 = arith.mulf %89, %111 : vector<8x128xf32>
    %113 = vector.broadcast %110 : vector<1x128xf32> to vector<8x128xf32>
    %114 = arith.addf %112, %113 : vector<8x128xf32>
    %cst_92 = arith.constant 0.000000e+00 : f32
    %115 = vector.broadcast %cst_92 : f32 to vector<8x128xf32>
    %116 = arith.maximumf %114, %115 : vector<8x128xf32>
    %c0_93 = arith.constant 0 : index
    %c0_94 = arith.constant 0 : index
    %c0_95 = arith.constant 0 : index
    %117 = vector.load %arg7[%c0_93, %c0_94, %c0_95] : memref<4x8x8xf32, #tpu.memory_space<vmem>>, vector<1x8x8xf32>
    %118 = vector.shape_cast %117 : vector<1x8x8xf32> to vector<8x8xf32>
    %cst_96 = arith.constant dense<0.000000e+00> : vector<8x128xf32>
    %119 = tpu.matmul %118, %116, %cst_96 {dimension_numbers = #tpu.dot_dimension_numbers<[1], [0], [0], [1], [0, 0, 1, 1], [], []>} : vector<8x8xf32>, vector<8x128xf32>, vector<8x128xf32> -> vector<8x128xf32>
    %120 = arith.truncf %119 : vector<8x128xf32> to vector<8x128xbf16>
    %c2_97 = arith.constant 2 : index
    %c0_98 = arith.constant 0 : index
    %c0_99 = arith.constant 0 : index
    %c0_100 = arith.constant 0 : index
    %121 = vector.load %arg2[%c2_97, %c0_98, %c0_99, %c0_100] : memref<8x4x128x128xbf16, #tpu.memory_space<vmem>>, vector<1x1x128x128xbf16>
    %122 = vector.shape_cast %121 : vector<1x1x128x128xbf16> to vector<128x128xbf16>
    %cst_101 = arith.constant dense<0.000000e+00> : vector<8x128xf32>
    %123 = tpu.matmul %120, %122, %cst_101 {dimension_numbers = #tpu.dot_dimension_numbers<[1], [0], [0], [1], [0, 0, 1, 1], [], []>} : vector<8x128xbf16>, vector<128x128xbf16>, vector<8x128xf32> -> vector<8x128xf32>
    %c1_102 = arith.constant 1 : index
    %c0_103 = arith.constant 0 : index
    %c0_104 = arith.constant 0 : index
    %124 = vector.load %arg7[%c1_102, %c0_103, %c0_104] : memref<4x8x8xf32, #tpu.memory_space<vmem>>, vector<1x8x8xf32>
    %125 = vector.shape_cast %124 : vector<1x8x8xf32> to vector<8x8xf32>
    %cst_105 = arith.constant dense<0.000000e+00> : vector<8x128xf32>
    %126 = tpu.matmul %125, %116, %cst_105 {dimension_numbers = #tpu.dot_dimension_numbers<[1], [0], [0], [1], [0, 0, 1, 1], [], []>} : vector<8x8xf32>, vector<8x128xf32>, vector<8x128xf32> -> vector<8x128xf32>
    %127 = arith.truncf %126 : vector<8x128xf32> to vector<8x128xbf16>
    %c2_106 = arith.constant 2 : index
    %c1_107 = arith.constant 1 : index
    %c0_108 = arith.constant 0 : index
    %c0_109 = arith.constant 0 : index
    %128 = vector.load %arg2[%c2_106, %c1_107, %c0_108, %c0_109] : memref<8x4x128x128xbf16, #tpu.memory_space<vmem>>, vector<1x1x128x128xbf16>
    %129 = vector.shape_cast %128 : vector<1x1x128x128xbf16> to vector<128x128xbf16>
    %cst_110 = arith.constant dense<0.000000e+00> : vector<8x128xf32>
    %130 = tpu.matmul %127, %129, %cst_110 {dimension_numbers = #tpu.dot_dimension_numbers<[1], [0], [0], [1], [0, 0, 1, 1], [], []>} : vector<8x128xbf16>, vector<128x128xbf16>, vector<8x128xf32> -> vector<8x128xf32>
    %131 = arith.addf %123, %130 : vector<8x128xf32>
    %c2_111 = arith.constant 2 : index
    %c0_112 = arith.constant 0 : index
    %c0_113 = arith.constant 0 : index
    %132 = vector.load %arg7[%c2_111, %c0_112, %c0_113] : memref<4x8x8xf32, #tpu.memory_space<vmem>>, vector<1x8x8xf32>
    %133 = vector.shape_cast %132 : vector<1x8x8xf32> to vector<8x8xf32>
    %cst_114 = arith.constant dense<0.000000e+00> : vector<8x128xf32>
    %134 = tpu.matmul %133, %116, %cst_114 {dimension_numbers = #tpu.dot_dimension_numbers<[1], [0], [0], [1], [0, 0, 1, 1], [], []>} : vector<8x8xf32>, vector<8x128xf32>, vector<8x128xf32> -> vector<8x128xf32>
    %135 = arith.truncf %134 : vector<8x128xf32> to vector<8x128xbf16>
    %c2_115 = arith.constant 2 : index
    %c2_116 = arith.constant 2 : index
    %c0_117 = arith.constant 0 : index
    %c0_118 = arith.constant 0 : index
    %136 = vector.load %arg2[%c2_115, %c2_116, %c0_117, %c0_118] : memref<8x4x128x128xbf16, #tpu.memory_space<vmem>>, vector<1x1x128x128xbf16>
    %137 = vector.shape_cast %136 : vector<1x1x128x128xbf16> to vector<128x128xbf16>
    %cst_119 = arith.constant dense<0.000000e+00> : vector<8x128xf32>
    %138 = tpu.matmul %135, %137, %cst_119 {dimension_numbers = #tpu.dot_dimension_numbers<[1], [0], [0], [1], [0, 0, 1, 1], [], []>} : vector<8x128xbf16>, vector<128x128xbf16>, vector<8x128xf32> -> vector<8x128xf32>
    %139 = arith.addf %131, %138 : vector<8x128xf32>
    %c3_120 = arith.constant 3 : index
    %c0_121 = arith.constant 0 : index
    %c0_122 = arith.constant 0 : index
    %140 = vector.load %arg7[%c3_120, %c0_121, %c0_122] : memref<4x8x8xf32, #tpu.memory_space<vmem>>, vector<1x8x8xf32>
    %141 = vector.shape_cast %140 : vector<1x8x8xf32> to vector<8x8xf32>
    %cst_123 = arith.constant dense<0.000000e+00> : vector<8x128xf32>
    %142 = tpu.matmul %141, %116, %cst_123 {dimension_numbers = #tpu.dot_dimension_numbers<[1], [0], [0], [1], [0, 0, 1, 1], [], []>} : vector<8x8xf32>, vector<8x128xf32>, vector<8x128xf32> -> vector<8x128xf32>
    %143 = arith.truncf %142 : vector<8x128xf32> to vector<8x128xbf16>
    %c2_124 = arith.constant 2 : index
    %c3_125 = arith.constant 3 : index
    %c0_126 = arith.constant 0 : index
    %c0_127 = arith.constant 0 : index
    %144 = vector.load %arg2[%c2_124, %c3_125, %c0_126, %c0_127] : memref<8x4x128x128xbf16, #tpu.memory_space<vmem>>, vector<1x1x128x128xbf16>
    %145 = vector.shape_cast %144 : vector<1x1x128x128xbf16> to vector<128x128xbf16>
    %cst_128 = arith.constant dense<0.000000e+00> : vector<8x128xf32>
    %146 = tpu.matmul %143, %145, %cst_128 {dimension_numbers = #tpu.dot_dimension_numbers<[1], [0], [0], [1], [0, 0, 1, 1], [], []>} : vector<8x128xbf16>, vector<128x128xbf16>, vector<8x128xf32> -> vector<8x128xf32>
    %147 = arith.addf %139, %146 : vector<8x128xf32>
    %cst_129 = arith.constant dense<0.000000e+00> : vector<128xf32>
    %148 = vector.multi_reduction <add>, %147, %cst_129 [0] : vector<8x128xf32> to vector<128xf32>
    %149 = vector.shape_cast %148 : vector<128xf32> to vector<1x128xf32>
    %cst_130 = arith.constant 8.000000e+00 : f32
    %150 = vector.broadcast %cst_130 : f32 to vector<1x128xf32>
    %151 = arith.divf %149, %150 : vector<1x128xf32>
    %152 = vector.broadcast %151 : vector<1x128xf32> to vector<8x128xf32>
    %153 = arith.subf %147, %152 : vector<8x128xf32>
    %154 = arith.mulf %153, %153 : vector<8x128xf32>
    %cst_131 = arith.constant dense<0.000000e+00> : vector<128xf32>
    %155 = vector.multi_reduction <add>, %154, %cst_131 [0] : vector<8x128xf32> to vector<128xf32>
    %156 = vector.shape_cast %155 : vector<128xf32> to vector<1x128xf32>
    %cst_132 = arith.constant 8.000000e+00 : f32
    %157 = vector.broadcast %cst_132 : f32 to vector<1x128xf32>
    %158 = arith.divf %156, %157 : vector<1x128xf32>
    %c2_133 = arith.constant 2 : index
    %c0_134 = arith.constant 0 : index
    %c0_135 = arith.constant 0 : index
    %159 = vector.load %arg3[%c2_133, %c0_134, %c0_135] : memref<7x1x128xf32, #tpu.memory_space<vmem>>, vector<1x1x128xf32>
    %160 = vector.shape_cast %159 : vector<1x1x128xf32> to vector<1x128xf32>
    %cst_136 = arith.constant 9.99999974E-6 : f32
    %161 = vector.broadcast %cst_136 : f32 to vector<1x128xf32>
    %162 = arith.addf %158, %161 : vector<1x128xf32>
    %163 = math.rsqrt %162 : vector<1x128xf32>
    %164 = arith.mulf %160, %163 : vector<1x128xf32>
    %c2_137 = arith.constant 2 : index
    %c0_138 = arith.constant 0 : index
    %c0_139 = arith.constant 0 : index
    %165 = vector.load %arg4[%c2_137, %c0_138, %c0_139] : memref<7x1x128xf32, #tpu.memory_space<vmem>>, vector<1x1x128xf32>
    %166 = vector.shape_cast %165 : vector<1x1x128xf32> to vector<1x128xf32>
    %167 = arith.mulf %151, %164 : vector<1x128xf32>
    %168 = arith.subf %166, %167 : vector<1x128xf32>
    %169 = vector.broadcast %164 : vector<1x128xf32> to vector<8x128xf32>
    %170 = arith.mulf %147, %169 : vector<8x128xf32>
    %171 = vector.broadcast %168 : vector<1x128xf32> to vector<8x128xf32>
    %172 = arith.addf %170, %171 : vector<8x128xf32>
    %cst_140 = arith.constant 0.000000e+00 : f32
    %173 = vector.broadcast %cst_140 : f32 to vector<8x128xf32>
    %174 = arith.maximumf %172, %173 : vector<8x128xf32>
    %c0_141 = arith.constant 0 : index
    %c0_142 = arith.constant 0 : index
    %c0_143 = arith.constant 0 : index
    %175 = vector.load %arg8[%c0_141, %c0_142, %c0_143] : memref<4x18x8xf32, #tpu.memory_space<vmem>>, vector<1x18x8xf32>
    %176 = vector.shape_cast %175 : vector<1x18x8xf32> to vector<18x8xf32>
    %cst_144 = arith.constant dense<0.000000e+00> : vector<18x128xf32>
    %177 = tpu.matmul %176, %174, %cst_144 {dimension_numbers = #tpu.dot_dimension_numbers<[1], [0], [0], [1], [0, 0, 1, 1], [], []>} : vector<18x8xf32>, vector<8x128xf32>, vector<18x128xf32> -> vector<18x128xf32>
    %178 = arith.truncf %177 : vector<18x128xf32> to vector<18x128xbf16>
    %c3_145 = arith.constant 3 : index
    %c0_146 = arith.constant 0 : index
    %c0_147 = arith.constant 0 : index
    %c0_148 = arith.constant 0 : index
    %179 = vector.load %arg2[%c3_145, %c0_146, %c0_147, %c0_148] : memref<8x4x128x128xbf16, #tpu.memory_space<vmem>>, vector<1x1x128x128xbf16>
    %180 = vector.shape_cast %179 : vector<1x1x128x128xbf16> to vector<128x128xbf16>
    %cst_149 = arith.constant dense<0.000000e+00> : vector<18x128xf32>
    %181 = tpu.matmul %178, %180, %cst_149 {dimension_numbers = #tpu.dot_dimension_numbers<[1], [0], [0], [1], [0, 0, 1, 1], [], []>} : vector<18x128xbf16>, vector<128x128xbf16>, vector<18x128xf32> -> vector<18x128xf32>
    %c1_150 = arith.constant 1 : index
    %c0_151 = arith.constant 0 : index
    %c0_152 = arith.constant 0 : index
    %182 = vector.load %arg8[%c1_150, %c0_151, %c0_152] : memref<4x18x8xf32, #tpu.memory_space<vmem>>, vector<1x18x8xf32>
    %183 = vector.shape_cast %182 : vector<1x18x8xf32> to vector<18x8xf32>
    %cst_153 = arith.constant dense<0.000000e+00> : vector<18x128xf32>
    %184 = tpu.matmul %183, %174, %cst_153 {dimension_numbers = #tpu.dot_dimension_numbers<[1], [0], [0], [1], [0, 0, 1, 1], [], []>} : vector<18x8xf32>, vector<8x128xf32>, vector<18x128xf32> -> vector<18x128xf32>
    %185 = arith.truncf %184 : vector<18x128xf32> to vector<18x128xbf16>
    %c3_154 = arith.constant 3 : index
    %c1_155 = arith.constant 1 : index
    %c0_156 = arith.constant 0 : index
    %c0_157 = arith.constant 0 : index
    %186 = vector.load %arg2[%c3_154, %c1_155, %c0_156, %c0_157] : memref<8x4x128x128xbf16, #tpu.memory_space<vmem>>, vector<1x1x128x128xbf16>
    %187 = vector.shape_cast %186 : vector<1x1x128x128xbf16> to vector<128x128xbf16>
    %cst_158 = arith.constant dense<0.000000e+00> : vector<18x128xf32>
    %188 = tpu.matmul %185, %187, %cst_158 {dimension_numbers = #tpu.dot_dimension_numbers<[1], [0], [0], [1], [0, 0, 1, 1], [], []>} : vector<18x128xbf16>, vector<128x128xbf16>, vector<18x128xf32> -> vector<18x128xf32>
    %189 = arith.addf %181, %188 : vector<18x128xf32>
    %c2_159 = arith.constant 2 : index
    %c0_160 = arith.constant 0 : index
    %c0_161 = arith.constant 0 : index
    %190 = vector.load %arg8[%c2_159, %c0_160, %c0_161] : memref<4x18x8xf32, #tpu.memory_space<vmem>>, vector<1x18x8xf32>
    %191 = vector.shape_cast %190 : vector<1x18x8xf32> to vector<18x8xf32>
    %cst_162 = arith.constant dense<0.000000e+00> : vector<18x128xf32>
    %192 = tpu.matmul %191, %174, %cst_162 {dimension_numbers = #tpu.dot_dimension_numbers<[1], [0], [0], [1], [0, 0, 1, 1], [], []>} : vector<18x8xf32>, vector<8x128xf32>, vector<18x128xf32> -> vector<18x128xf32>
    %193 = arith.truncf %192 : vector<18x128xf32> to vector<18x128xbf16>
    %c3_163 = arith.constant 3 : index
    %c2_164 = arith.constant 2 : index
    %c0_165 = arith.constant 0 : index
    %c0_166 = arith.constant 0 : index
    %194 = vector.load %arg2[%c3_163, %c2_164, %c0_165, %c0_166] : memref<8x4x128x128xbf16, #tpu.memory_space<vmem>>, vector<1x1x128x128xbf16>
    %195 = vector.shape_cast %194 : vector<1x1x128x128xbf16> to vector<128x128xbf16>
    %cst_167 = arith.constant dense<0.000000e+00> : vector<18x128xf32>
    %196 = tpu.matmul %193, %195, %cst_167 {dimension_numbers = #tpu.dot_dimension_numbers<[1], [0], [0], [1], [0, 0, 1, 1], [], []>} : vector<18x128xbf16>, vector<128x128xbf16>, vector<18x128xf32> -> vector<18x128xf32>
    %197 = arith.addf %189, %196 : vector<18x128xf32>
    %c3_168 = arith.constant 3 : index
    %c0_169 = arith.constant 0 : index
    %c0_170 = arith.constant 0 : index
    %198 = vector.load %arg8[%c3_168, %c0_169, %c0_170] : memref<4x18x8xf32, #tpu.memory_space<vmem>>, vector<1x18x8xf32>
    %199 = vector.shape_cast %198 : vector<1x18x8xf32> to vector<18x8xf32>
    %cst_171 = arith.constant dense<0.000000e+00> : vector<18x128xf32>
    %200 = tpu.matmul %199, %174, %cst_171 {dimension_numbers = #tpu.dot_dimension_numbers<[1], [0], [0], [1], [0, 0, 1, 1], [], []>} : vector<18x8xf32>, vector<8x128xf32>, vector<18x128xf32> -> vector<18x128xf32>
    %201 = arith.truncf %200 : vector<18x128xf32> to vector<18x128xbf16>
    %c3_172 = arith.constant 3 : index
    %c3_173 = arith.constant 3 : index
    %c0_174 = arith.constant 0 : index
    %c0_175 = arith.constant 0 : index
    %202 = vector.load %arg2[%c3_172, %c3_173, %c0_174, %c0_175] : memref<8x4x128x128xbf16, #tpu.memory_space<vmem>>, vector<1x1x128x128xbf16>
    %203 = vector.shape_cast %202 : vector<1x1x128x128xbf16> to vector<128x128xbf16>
    %cst_176 = arith.constant dense<0.000000e+00> : vector<18x128xf32>
    %204 = tpu.matmul %201, %203, %cst_176 {dimension_numbers = #tpu.dot_dimension_numbers<[1], [0], [0], [1], [0, 0, 1, 1], [], []>} : vector<18x128xbf16>, vector<128x128xbf16>, vector<18x128xf32> -> vector<18x128xf32>
    %205 = arith.addf %197, %204 : vector<18x128xf32>
    %cst_177 = arith.constant dense<0.000000e+00> : vector<128xf32>
    %206 = vector.multi_reduction <add>, %205, %cst_177 [0] : vector<18x128xf32> to vector<128xf32>
    %207 = vector.shape_cast %206 : vector<128xf32> to vector<1x128xf32>
    %cst_178 = arith.constant 1.800000e+01 : f32
    %208 = vector.broadcast %cst_178 : f32 to vector<1x128xf32>
    %209 = arith.divf %207, %208 : vector<1x128xf32>
    %210 = vector.broadcast %209 : vector<1x128xf32> to vector<18x128xf32>
    %211 = arith.subf %205, %210 : vector<18x128xf32>
    %212 = arith.mulf %211, %211 : vector<18x128xf32>
    %cst_179 = arith.constant dense<0.000000e+00> : vector<128xf32>
    %213 = vector.multi_reduction <add>, %212, %cst_179 [0] : vector<18x128xf32> to vector<128xf32>
    %214 = vector.shape_cast %213 : vector<128xf32> to vector<1x128xf32>
    %cst_180 = arith.constant 1.800000e+01 : f32
    %215 = vector.broadcast %cst_180 : f32 to vector<1x128xf32>
    %216 = arith.divf %214, %215 : vector<1x128xf32>
    %c3_181 = arith.constant 3 : index
    %c0_182 = arith.constant 0 : index
    %c0_183 = arith.constant 0 : index
    %217 = vector.load %arg3[%c3_181, %c0_182, %c0_183] : memref<7x1x128xf32, #tpu.memory_space<vmem>>, vector<1x1x128xf32>
    %218 = vector.shape_cast %217 : vector<1x1x128xf32> to vector<1x128xf32>
    %cst_184 = arith.constant 9.99999974E-6 : f32
    %219 = vector.broadcast %cst_184 : f32 to vector<1x128xf32>
    %220 = arith.addf %216, %219 : vector<1x128xf32>
    %221 = math.rsqrt %220 : vector<1x128xf32>
    %222 = arith.mulf %218, %221 : vector<1x128xf32>
    %c3_185 = arith.constant 3 : index
    %c0_186 = arith.constant 0 : index
    %c0_187 = arith.constant 0 : index
    %223 = vector.load %arg4[%c3_185, %c0_186, %c0_187] : memref<7x1x128xf32, #tpu.memory_space<vmem>>, vector<1x1x128xf32>
    %224 = vector.shape_cast %223 : vector<1x1x128xf32> to vector<1x128xf32>
    %225 = arith.mulf %209, %222 : vector<1x128xf32>
    %226 = arith.subf %224, %225 : vector<1x128xf32>
    %227 = vector.broadcast %222 : vector<1x128xf32> to vector<18x128xf32>
    %228 = arith.mulf %205, %227 : vector<18x128xf32>
    %229 = vector.broadcast %226 : vector<1x128xf32> to vector<18x128xf32>
    %230 = arith.addf %228, %229 : vector<18x128xf32>
    %cst_188 = arith.constant 0.000000e+00 : f32
    %231 = vector.broadcast %cst_188 : f32 to vector<18x128xf32>
    %232 = arith.maximumf %230, %231 : vector<18x128xf32>
    %c0_189 = arith.constant 0 : index
    %c0_190 = arith.constant 0 : index
    %c0_191 = arith.constant 0 : index
    %233 = vector.load %arg9[%c0_189, %c0_190, %c0_191] : memref<4x32x18xf32, #tpu.memory_space<vmem>>, vector<1x32x18xf32>
    %234 = vector.shape_cast %233 : vector<1x32x18xf32> to vector<32x18xf32>
    %cst_192 = arith.constant dense<0.000000e+00> : vector<32x128xf32>
    %235 = tpu.matmul %234, %232, %cst_192 {dimension_numbers = #tpu.dot_dimension_numbers<[1], [0], [0], [1], [0, 0, 1, 1], [], []>} : vector<32x18xf32>, vector<18x128xf32>, vector<32x128xf32> -> vector<32x128xf32>
    %236 = arith.truncf %235 : vector<32x128xf32> to vector<32x128xbf16>
    %c4 = arith.constant 4 : index
    %c0_193 = arith.constant 0 : index
    %c0_194 = arith.constant 0 : index
    %c0_195 = arith.constant 0 : index
    %237 = vector.load %arg2[%c4, %c0_193, %c0_194, %c0_195] : memref<8x4x128x128xbf16, #tpu.memory_space<vmem>>, vector<1x1x128x128xbf16>
    %238 = vector.shape_cast %237 : vector<1x1x128x128xbf16> to vector<128x128xbf16>
    %cst_196 = arith.constant dense<0.000000e+00> : vector<32x128xf32>
    %239 = tpu.matmul %236, %238, %cst_196 {dimension_numbers = #tpu.dot_dimension_numbers<[1], [0], [0], [1], [0, 0, 1, 1], [], []>} : vector<32x128xbf16>, vector<128x128xbf16>, vector<32x128xf32> -> vector<32x128xf32>
    %c1_197 = arith.constant 1 : index
    %c0_198 = arith.constant 0 : index
    %c0_199 = arith.constant 0 : index
    %240 = vector.load %arg9[%c1_197, %c0_198, %c0_199] : memref<4x32x18xf32, #tpu.memory_space<vmem>>, vector<1x32x18xf32>
    %241 = vector.shape_cast %240 : vector<1x32x18xf32> to vector<32x18xf32>
    %cst_200 = arith.constant dense<0.000000e+00> : vector<32x128xf32>
    %242 = tpu.matmul %241, %232, %cst_200 {dimension_numbers = #tpu.dot_dimension_numbers<[1], [0], [0], [1], [0, 0, 1, 1], [], []>} : vector<32x18xf32>, vector<18x128xf32>, vector<32x128xf32> -> vector<32x128xf32>
    %243 = arith.truncf %242 : vector<32x128xf32> to vector<32x128xbf16>
    %c4_201 = arith.constant 4 : index
    %c1_202 = arith.constant 1 : index
    %c0_203 = arith.constant 0 : index
    %c0_204 = arith.constant 0 : index
    %244 = vector.load %arg2[%c4_201, %c1_202, %c0_203, %c0_204] : memref<8x4x128x128xbf16, #tpu.memory_space<vmem>>, vector<1x1x128x128xbf16>
    %245 = vector.shape_cast %244 : vector<1x1x128x128xbf16> to vector<128x128xbf16>
    %cst_205 = arith.constant dense<0.000000e+00> : vector<32x128xf32>
    %246 = tpu.matmul %243, %245, %cst_205 {dimension_numbers = #tpu.dot_dimension_numbers<[1], [0], [0], [1], [0, 0, 1, 1], [], []>} : vector<32x128xbf16>, vector<128x128xbf16>, vector<32x128xf32> -> vector<32x128xf32>
    %247 = arith.addf %239, %246 : vector<32x128xf32>
    %c2_206 = arith.constant 2 : index
    %c0_207 = arith.constant 0 : index
    %c0_208 = arith.constant 0 : index
    %248 = vector.load %arg9[%c2_206, %c0_207, %c0_208] : memref<4x32x18xf32, #tpu.memory_space<vmem>>, vector<1x32x18xf32>
    %249 = vector.shape_cast %248 : vector<1x32x18xf32> to vector<32x18xf32>
    %cst_209 = arith.constant dense<0.000000e+00> : vector<32x128xf32>
    %250 = tpu.matmul %249, %232, %cst_209 {dimension_numbers = #tpu.dot_dimension_numbers<[1], [0], [0], [1], [0, 0, 1, 1], [], []>} : vector<32x18xf32>, vector<18x128xf32>, vector<32x128xf32> -> vector<32x128xf32>
    %251 = arith.truncf %250 : vector<32x128xf32> to vector<32x128xbf16>
    %c4_210 = arith.constant 4 : index
    %c2_211 = arith.constant 2 : index
    %c0_212 = arith.constant 0 : index
    %c0_213 = arith.constant 0 : index
    %252 = vector.load %arg2[%c4_210, %c2_211, %c0_212, %c0_213] : memref<8x4x128x128xbf16, #tpu.memory_space<vmem>>, vector<1x1x128x128xbf16>
    %253 = vector.shape_cast %252 : vector<1x1x128x128xbf16> to vector<128x128xbf16>
    %cst_214 = arith.constant dense<0.000000e+00> : vector<32x128xf32>
    %254 = tpu.matmul %251, %253, %cst_214 {dimension_numbers = #tpu.dot_dimension_numbers<[1], [0], [0], [1], [0, 0, 1, 1], [], []>} : vector<32x128xbf16>, vector<128x128xbf16>, vector<32x128xf32> -> vector<32x128xf32>
    %255 = arith.addf %247, %254 : vector<32x128xf32>
    %c3_215 = arith.constant 3 : index
    %c0_216 = arith.constant 0 : index
    %c0_217 = arith.constant 0 : index
    %256 = vector.load %arg9[%c3_215, %c0_216, %c0_217] : memref<4x32x18xf32, #tpu.memory_space<vmem>>, vector<1x32x18xf32>
    %257 = vector.shape_cast %256 : vector<1x32x18xf32> to vector<32x18xf32>
    %cst_218 = arith.constant dense<0.000000e+00> : vector<32x128xf32>
    %258 = tpu.matmul %257, %232, %cst_218 {dimension_numbers = #tpu.dot_dimension_numbers<[1], [0], [0], [1], [0, 0, 1, 1], [], []>} : vector<32x18xf32>, vector<18x128xf32>, vector<32x128xf32> -> vector<32x128xf32>
    %259 = arith.truncf %258 : vector<32x128xf32> to vector<32x128xbf16>
    %c4_219 = arith.constant 4 : index
    %c3_220 = arith.constant 3 : index
    %c0_221 = arith.constant 0 : index
    %c0_222 = arith.constant 0 : index
    %260 = vector.load %arg2[%c4_219, %c3_220, %c0_221, %c0_222] : memref<8x4x128x128xbf16, #tpu.memory_space<vmem>>, vector<1x1x128x128xbf16>
    %261 = vector.shape_cast %260 : vector<1x1x128x128xbf16> to vector<128x128xbf16>
    %cst_223 = arith.constant dense<0.000000e+00> : vector<32x128xf32>
    %262 = tpu.matmul %259, %261, %cst_223 {dimension_numbers = #tpu.dot_dimension_numbers<[1], [0], [0], [1], [0, 0, 1, 1], [], []>} : vector<32x128xbf16>, vector<128x128xbf16>, vector<32x128xf32> -> vector<32x128xf32>
    %263 = arith.addf %255, %262 : vector<32x128xf32>
    %cst_224 = arith.constant dense<0.000000e+00> : vector<128xf32>
    %264 = vector.multi_reduction <add>, %263, %cst_224 [0] : vector<32x128xf32> to vector<128xf32>
    %265 = vector.shape_cast %264 : vector<128xf32> to vector<1x128xf32>
    %cst_225 = arith.constant 3.200000e+01 : f32
    %266 = vector.broadcast %cst_225 : f32 to vector<1x128xf32>
    %267 = arith.divf %265, %266 : vector<1x128xf32>
    %268 = vector.broadcast %267 : vector<1x128xf32> to vector<32x128xf32>
    %269 = arith.subf %263, %268 : vector<32x128xf32>
    %270 = arith.mulf %269, %269 : vector<32x128xf32>
    %cst_226 = arith.constant dense<0.000000e+00> : vector<128xf32>
    %271 = vector.multi_reduction <add>, %270, %cst_226 [0] : vector<32x128xf32> to vector<128xf32>
    %272 = vector.shape_cast %271 : vector<128xf32> to vector<1x128xf32>
    %cst_227 = arith.constant 3.200000e+01 : f32
    %273 = vector.broadcast %cst_227 : f32 to vector<1x128xf32>
    %274 = arith.divf %272, %273 : vector<1x128xf32>
    %c4_228 = arith.constant 4 : index
    %c0_229 = arith.constant 0 : index
    %c0_230 = arith.constant 0 : index
    %275 = vector.load %arg3[%c4_228, %c0_229, %c0_230] : memref<7x1x128xf32, #tpu.memory_space<vmem>>, vector<1x1x128xf32>
    %276 = vector.shape_cast %275 : vector<1x1x128xf32> to vector<1x128xf32>
    %cst_231 = arith.constant 9.99999974E-6 : f32
    %277 = vector.broadcast %cst_231 : f32 to vector<1x128xf32>
    %278 = arith.addf %274, %277 : vector<1x128xf32>
    %279 = math.rsqrt %278 : vector<1x128xf32>
    %280 = arith.mulf %276, %279 : vector<1x128xf32>
    %c4_232 = arith.constant 4 : index
    %c0_233 = arith.constant 0 : index
    %c0_234 = arith.constant 0 : index
    %281 = vector.load %arg4[%c4_232, %c0_233, %c0_234] : memref<7x1x128xf32, #tpu.memory_space<vmem>>, vector<1x1x128xf32>
    %282 = vector.shape_cast %281 : vector<1x1x128xf32> to vector<1x128xf32>
    %283 = arith.mulf %267, %280 : vector<1x128xf32>
    %284 = arith.subf %282, %283 : vector<1x128xf32>
    %285 = vector.broadcast %280 : vector<1x128xf32> to vector<32x128xf32>
    %286 = arith.mulf %263, %285 : vector<32x128xf32>
    %287 = vector.broadcast %284 : vector<1x128xf32> to vector<32x128xf32>
    %288 = arith.addf %286, %287 : vector<32x128xf32>
    %cst_235 = arith.constant 0.000000e+00 : f32
    %289 = vector.broadcast %cst_235 : f32 to vector<32x128xf32>
    %290 = arith.maximumf %288, %289 : vector<32x128xf32>
    %c0_236 = arith.constant 0 : index
    %c0_237 = arith.constant 0 : index
    %c0_238 = arith.constant 0 : index
    %291 = vector.load %arg10[%c0_236, %c0_237, %c0_238] : memref<4x50x32xf32, #tpu.memory_space<vmem>>, vector<1x50x32xf32>
    %292 = vector.shape_cast %291 : vector<1x50x32xf32> to vector<50x32xf32>
    %cst_239 = arith.constant dense<0.000000e+00> : vector<50x128xf32>
    %293 = tpu.matmul %292, %290, %cst_239 {dimension_numbers = #tpu.dot_dimension_numbers<[1], [0], [0], [1], [0, 0, 1, 1], [], []>} : vector<50x32xf32>, vector<32x128xf32>, vector<50x128xf32> -> vector<50x128xf32>
    %294 = arith.truncf %293 : vector<50x128xf32> to vector<50x128xbf16>
    %c5 = arith.constant 5 : index
    %c0_240 = arith.constant 0 : index
    %c0_241 = arith.constant 0 : index
    %c0_242 = arith.constant 0 : index
    %295 = vector.load %arg2[%c5, %c0_240, %c0_241, %c0_242] : memref<8x4x128x128xbf16, #tpu.memory_space<vmem>>, vector<1x1x128x128xbf16>
    %296 = vector.shape_cast %295 : vector<1x1x128x128xbf16> to vector<128x128xbf16>
    %cst_243 = arith.constant dense<0.000000e+00> : vector<50x128xf32>
    %297 = tpu.matmul %294, %296, %cst_243 {dimension_numbers = #tpu.dot_dimension_numbers<[1], [0], [0], [1], [0, 0, 1, 1], [], []>} : vector<50x128xbf16>, vector<128x128xbf16>, vector<50x128xf32> -> vector<50x128xf32>
    %c1_244 = arith.constant 1 : index
    %c0_245 = arith.constant 0 : index
    %c0_246 = arith.constant 0 : index
    %298 = vector.load %arg10[%c1_244, %c0_245, %c0_246] : memref<4x50x32xf32, #tpu.memory_space<vmem>>, vector<1x50x32xf32>
    %299 = vector.shape_cast %298 : vector<1x50x32xf32> to vector<50x32xf32>
    %cst_247 = arith.constant dense<0.000000e+00> : vector<50x128xf32>
    %300 = tpu.matmul %299, %290, %cst_247 {dimension_numbers = #tpu.dot_dimension_numbers<[1], [0], [0], [1], [0, 0, 1, 1], [], []>} : vector<50x32xf32>, vector<32x128xf32>, vector<50x128xf32> -> vector<50x128xf32>
    %301 = arith.truncf %300 : vector<50x128xf32> to vector<50x128xbf16>
    %c5_248 = arith.constant 5 : index
    %c1_249 = arith.constant 1 : index
    %c0_250 = arith.constant 0 : index
    %c0_251 = arith.constant 0 : index
    %302 = vector.load %arg2[%c5_248, %c1_249, %c0_250, %c0_251] : memref<8x4x128x128xbf16, #tpu.memory_space<vmem>>, vector<1x1x128x128xbf16>
    %303 = vector.shape_cast %302 : vector<1x1x128x128xbf16> to vector<128x128xbf16>
    %cst_252 = arith.constant dense<0.000000e+00> : vector<50x128xf32>
    %304 = tpu.matmul %301, %303, %cst_252 {dimension_numbers = #tpu.dot_dimension_numbers<[1], [0], [0], [1], [0, 0, 1, 1], [], []>} : vector<50x128xbf16>, vector<128x128xbf16>, vector<50x128xf32> -> vector<50x128xf32>
    %305 = arith.addf %297, %304 : vector<50x128xf32>
    %c2_253 = arith.constant 2 : index
    %c0_254 = arith.constant 0 : index
    %c0_255 = arith.constant 0 : index
    %306 = vector.load %arg10[%c2_253, %c0_254, %c0_255] : memref<4x50x32xf32, #tpu.memory_space<vmem>>, vector<1x50x32xf32>
    %307 = vector.shape_cast %306 : vector<1x50x32xf32> to vector<50x32xf32>
    %cst_256 = arith.constant dense<0.000000e+00> : vector<50x128xf32>
    %308 = tpu.matmul %307, %290, %cst_256 {dimension_numbers = #tpu.dot_dimension_numbers<[1], [0], [0], [1], [0, 0, 1, 1], [], []>} : vector<50x32xf32>, vector<32x128xf32>, vector<50x128xf32> -> vector<50x128xf32>
    %309 = arith.truncf %308 : vector<50x128xf32> to vector<50x128xbf16>
    %c5_257 = arith.constant 5 : index
    %c2_258 = arith.constant 2 : index
    %c0_259 = arith.constant 0 : index
    %c0_260 = arith.constant 0 : index
    %310 = vector.load %arg2[%c5_257, %c2_258, %c0_259, %c0_260] : memref<8x4x128x128xbf16, #tpu.memory_space<vmem>>, vector<1x1x128x128xbf16>
    %311 = vector.shape_cast %310 : vector<1x1x128x128xbf16> to vector<128x128xbf16>
    %cst_261 = arith.constant dense<0.000000e+00> : vector<50x128xf32>
    %312 = tpu.matmul %309, %311, %cst_261 {dimension_numbers = #tpu.dot_dimension_numbers<[1], [0], [0], [1], [0, 0, 1, 1], [], []>} : vector<50x128xbf16>, vector<128x128xbf16>, vector<50x128xf32> -> vector<50x128xf32>
    %313 = arith.addf %305, %312 : vector<50x128xf32>
    %c3_262 = arith.constant 3 : index
    %c0_263 = arith.constant 0 : index
    %c0_264 = arith.constant 0 : index
    %314 = vector.load %arg10[%c3_262, %c0_263, %c0_264] : memref<4x50x32xf32, #tpu.memory_space<vmem>>, vector<1x50x32xf32>
    %315 = vector.shape_cast %314 : vector<1x50x32xf32> to vector<50x32xf32>
    %cst_265 = arith.constant dense<0.000000e+00> : vector<50x128xf32>
    %316 = tpu.matmul %315, %290, %cst_265 {dimension_numbers = #tpu.dot_dimension_numbers<[1], [0], [0], [1], [0, 0, 1, 1], [], []>} : vector<50x32xf32>, vector<32x128xf32>, vector<50x128xf32> -> vector<50x128xf32>
    %317 = arith.truncf %316 : vector<50x128xf32> to vector<50x128xbf16>
    %c5_266 = arith.constant 5 : index
    %c3_267 = arith.constant 3 : index
    %c0_268 = arith.constant 0 : index
    %c0_269 = arith.constant 0 : index
    %318 = vector.load %arg2[%c5_266, %c3_267, %c0_268, %c0_269] : memref<8x4x128x128xbf16, #tpu.memory_space<vmem>>, vector<1x1x128x128xbf16>
    %319 = vector.shape_cast %318 : vector<1x1x128x128xbf16> to vector<128x128xbf16>
    %cst_270 = arith.constant dense<0.000000e+00> : vector<50x128xf32>
    %320 = tpu.matmul %317, %319, %cst_270 {dimension_numbers = #tpu.dot_dimension_numbers<[1], [0], [0], [1], [0, 0, 1, 1], [], []>} : vector<50x128xbf16>, vector<128x128xbf16>, vector<50x128xf32> -> vector<50x128xf32>
    %321 = arith.addf %313, %320 : vector<50x128xf32>
    %cst_271 = arith.constant dense<0.000000e+00> : vector<128xf32>
    %322 = vector.multi_reduction <add>, %321, %cst_271 [0] : vector<50x128xf32> to vector<128xf32>
    %323 = vector.shape_cast %322 : vector<128xf32> to vector<1x128xf32>
    %cst_272 = arith.constant 5.000000e+01 : f32
    %324 = vector.broadcast %cst_272 : f32 to vector<1x128xf32>
    %325 = arith.divf %323, %324 : vector<1x128xf32>
    %326 = vector.broadcast %325 : vector<1x128xf32> to vector<50x128xf32>
    %327 = arith.subf %321, %326 : vector<50x128xf32>
    %328 = arith.mulf %327, %327 : vector<50x128xf32>
    %cst_273 = arith.constant dense<0.000000e+00> : vector<128xf32>
    %329 = vector.multi_reduction <add>, %328, %cst_273 [0] : vector<50x128xf32> to vector<128xf32>
    %330 = vector.shape_cast %329 : vector<128xf32> to vector<1x128xf32>
    %cst_274 = arith.constant 5.000000e+01 : f32
    %331 = vector.broadcast %cst_274 : f32 to vector<1x128xf32>
    %332 = arith.divf %330, %331 : vector<1x128xf32>
    %c5_275 = arith.constant 5 : index
    %c0_276 = arith.constant 0 : index
    %c0_277 = arith.constant 0 : index
    %333 = vector.load %arg3[%c5_275, %c0_276, %c0_277] : memref<7x1x128xf32, #tpu.memory_space<vmem>>, vector<1x1x128xf32>
    %334 = vector.shape_cast %333 : vector<1x1x128xf32> to vector<1x128xf32>
    %cst_278 = arith.constant 9.99999974E-6 : f32
    %335 = vector.broadcast %cst_278 : f32 to vector<1x128xf32>
    %336 = arith.addf %332, %335 : vector<1x128xf32>
    %337 = math.rsqrt %336 : vector<1x128xf32>
    %338 = arith.mulf %334, %337 : vector<1x128xf32>
    %c5_279 = arith.constant 5 : index
    %c0_280 = arith.constant 0 : index
    %c0_281 = arith.constant 0 : index
    %339 = vector.load %arg4[%c5_279, %c0_280, %c0_281] : memref<7x1x128xf32, #tpu.memory_space<vmem>>, vector<1x1x128xf32>
    %340 = vector.shape_cast %339 : vector<1x1x128xf32> to vector<1x128xf32>
    %341 = arith.mulf %325, %338 : vector<1x128xf32>
    %342 = arith.subf %340, %341 : vector<1x128xf32>
    %343 = vector.broadcast %338 : vector<1x128xf32> to vector<50x128xf32>
    %344 = arith.mulf %321, %343 : vector<50x128xf32>
    %345 = vector.broadcast %342 : vector<1x128xf32> to vector<50x128xf32>
    %346 = arith.addf %344, %345 : vector<50x128xf32>
    %cst_282 = arith.constant 0.000000e+00 : f32
    %347 = vector.broadcast %cst_282 : f32 to vector<50x128xf32>
    %348 = arith.maximumf %346, %347 : vector<50x128xf32>
    %c0_283 = arith.constant 0 : index
    %c0_284 = arith.constant 0 : index
    %c0_285 = arith.constant 0 : index
    %349 = vector.load %arg11[%c0_283, %c0_284, %c0_285] : memref<4x128x50xf32, #tpu.memory_space<vmem>>, vector<1x128x50xf32>
    %350 = vector.shape_cast %349 : vector<1x128x50xf32> to vector<128x50xf32>
    %cst_286 = arith.constant dense<0.000000e+00> : vector<128x128xf32>
    %351 = tpu.matmul %350, %348, %cst_286 {dimension_numbers = #tpu.dot_dimension_numbers<[1], [0], [0], [1], [0, 0, 1, 1], [], []>} : vector<128x50xf32>, vector<50x128xf32>, vector<128x128xf32> -> vector<128x128xf32>
    %352 = arith.truncf %351 : vector<128x128xf32> to vector<128x128xbf16>
    %c6 = arith.constant 6 : index
    %c0_287 = arith.constant 0 : index
    %c0_288 = arith.constant 0 : index
    %c0_289 = arith.constant 0 : index
    %353 = vector.load %arg2[%c6, %c0_287, %c0_288, %c0_289] : memref<8x4x128x128xbf16, #tpu.memory_space<vmem>>, vector<1x1x128x128xbf16>
    %354 = vector.shape_cast %353 : vector<1x1x128x128xbf16> to vector<128x128xbf16>
    %cst_290 = arith.constant dense<0.000000e+00> : vector<128x128xf32>
    %355 = tpu.matmul %352, %354, %cst_290 {dimension_numbers = #tpu.dot_dimension_numbers<[1], [0], [0], [1], [0, 0, 1, 1], [], []>} : vector<128x128xbf16>, vector<128x128xbf16>, vector<128x128xf32> -> vector<128x128xf32>
    %c1_291 = arith.constant 1 : index
    %c0_292 = arith.constant 0 : index
    %c0_293 = arith.constant 0 : index
    %356 = vector.load %arg11[%c1_291, %c0_292, %c0_293] : memref<4x128x50xf32, #tpu.memory_space<vmem>>, vector<1x128x50xf32>
    %357 = vector.shape_cast %356 : vector<1x128x50xf32> to vector<128x50xf32>
    %cst_294 = arith.constant dense<0.000000e+00> : vector<128x128xf32>
    %358 = tpu.matmul %357, %348, %cst_294 {dimension_numbers = #tpu.dot_dimension_numbers<[1], [0], [0], [1], [0, 0, 1, 1], [], []>} : vector<128x50xf32>, vector<50x128xf32>, vector<128x128xf32> -> vector<128x128xf32>
    %359 = arith.truncf %358 : vector<128x128xf32> to vector<128x128xbf16>
    %c6_295 = arith.constant 6 : index
    %c1_296 = arith.constant 1 : index
    %c0_297 = arith.constant 0 : index
    %c0_298 = arith.constant 0 : index
    %360 = vector.load %arg2[%c6_295, %c1_296, %c0_297, %c0_298] : memref<8x4x128x128xbf16, #tpu.memory_space<vmem>>, vector<1x1x128x128xbf16>
    %361 = vector.shape_cast %360 : vector<1x1x128x128xbf16> to vector<128x128xbf16>
    %cst_299 = arith.constant dense<0.000000e+00> : vector<128x128xf32>
    %362 = tpu.matmul %359, %361, %cst_299 {dimension_numbers = #tpu.dot_dimension_numbers<[1], [0], [0], [1], [0, 0, 1, 1], [], []>} : vector<128x128xbf16>, vector<128x128xbf16>, vector<128x128xf32> -> vector<128x128xf32>
    %363 = arith.addf %355, %362 : vector<128x128xf32>
    %c2_300 = arith.constant 2 : index
    %c0_301 = arith.constant 0 : index
    %c0_302 = arith.constant 0 : index
    %364 = vector.load %arg11[%c2_300, %c0_301, %c0_302] : memref<4x128x50xf32, #tpu.memory_space<vmem>>, vector<1x128x50xf32>
    %365 = vector.shape_cast %364 : vector<1x128x50xf32> to vector<128x50xf32>
    %cst_303 = arith.constant dense<0.000000e+00> : vector<128x128xf32>
    %366 = tpu.matmul %365, %348, %cst_303 {dimension_numbers = #tpu.dot_dimension_numbers<[1], [0], [0], [1], [0, 0, 1, 1], [], []>} : vector<128x50xf32>, vector<50x128xf32>, vector<128x128xf32> -> vector<128x128xf32>
    %367 = arith.truncf %366 : vector<128x128xf32> to vector<128x128xbf16>
    %c6_304 = arith.constant 6 : index
    %c2_305 = arith.constant 2 : index
    %c0_306 = arith.constant 0 : index
    %c0_307 = arith.constant 0 : index
    %368 = vector.load %arg2[%c6_304, %c2_305, %c0_306, %c0_307] : memref<8x4x128x128xbf16, #tpu.memory_space<vmem>>, vector<1x1x128x128xbf16>
    %369 = vector.shape_cast %368 : vector<1x1x128x128xbf16> to vector<128x128xbf16>
    %cst_308 = arith.constant dense<0.000000e+00> : vector<128x128xf32>
    %370 = tpu.matmul %367, %369, %cst_308 {dimension_numbers = #tpu.dot_dimension_numbers<[1], [0], [0], [1], [0, 0, 1, 1], [], []>} : vector<128x128xbf16>, vector<128x128xbf16>, vector<128x128xf32> -> vector<128x128xf32>
    %371 = arith.addf %363, %370 : vector<128x128xf32>
    %c3_309 = arith.constant 3 : index
    %c0_310 = arith.constant 0 : index
    %c0_311 = arith.constant 0 : index
    %372 = vector.load %arg11[%c3_309, %c0_310, %c0_311] : memref<4x128x50xf32, #tpu.memory_space<vmem>>, vector<1x128x50xf32>
    %373 = vector.shape_cast %372 : vector<1x128x50xf32> to vector<128x50xf32>
    %cst_312 = arith.constant dense<0.000000e+00> : vector<128x128xf32>
    %374 = tpu.matmul %373, %348, %cst_312 {dimension_numbers = #tpu.dot_dimension_numbers<[1], [0], [0], [1], [0, 0, 1, 1], [], []>} : vector<128x50xf32>, vector<50x128xf32>, vector<128x128xf32> -> vector<128x128xf32>
    %375 = arith.truncf %374 : vector<128x128xf32> to vector<128x128xbf16>
    %c6_313 = arith.constant 6 : index
    %c3_314 = arith.constant 3 : index
    %c0_315 = arith.constant 0 : index
    %c0_316 = arith.constant 0 : index
    %376 = vector.load %arg2[%c6_313, %c3_314, %c0_315, %c0_316] : memref<8x4x128x128xbf16, #tpu.memory_space<vmem>>, vector<1x1x128x128xbf16>
    %377 = vector.shape_cast %376 : vector<1x1x128x128xbf16> to vector<128x128xbf16>
    %cst_317 = arith.constant dense<0.000000e+00> : vector<128x128xf32>
    %378 = tpu.matmul %375, %377, %cst_317 {dimension_numbers = #tpu.dot_dimension_numbers<[1], [0], [0], [1], [0, 0, 1, 1], [], []>} : vector<128x128xbf16>, vector<128x128xbf16>, vector<128x128xf32> -> vector<128x128xf32>
    %379 = arith.addf %371, %378 : vector<128x128xf32>
    %cst_318 = arith.constant dense<0.000000e+00> : vector<128xf32>
    %380 = vector.multi_reduction <add>, %379, %cst_318 [0] : vector<128x128xf32> to vector<128xf32>
    %381 = vector.shape_cast %380 : vector<128xf32> to vector<1x128xf32>
    %cst_319 = arith.constant 1.280000e+02 : f32
    %382 = vector.broadcast %cst_319 : f32 to vector<1x128xf32>
    %383 = arith.divf %381, %382 : vector<1x128xf32>
    %384 = vector.broadcast %383 : vector<1x128xf32> to vector<128x128xf32>
    %385 = arith.subf %379, %384 : vector<128x128xf32>
    %386 = arith.mulf %385, %385 : vector<128x128xf32>
    %cst_320 = arith.constant dense<0.000000e+00> : vector<128xf32>
    %387 = vector.multi_reduction <add>, %386, %cst_320 [0] : vector<128x128xf32> to vector<128xf32>
    %388 = vector.shape_cast %387 : vector<128xf32> to vector<1x128xf32>
    %cst_321 = arith.constant 1.280000e+02 : f32
    %389 = vector.broadcast %cst_321 : f32 to vector<1x128xf32>
    %390 = arith.divf %388, %389 : vector<1x128xf32>
    %c6_322 = arith.constant 6 : index
    %c0_323 = arith.constant 0 : index
    %c0_324 = arith.constant 0 : index
    %391 = vector.load %arg3[%c6_322, %c0_323, %c0_324] : memref<7x1x128xf32, #tpu.memory_space<vmem>>, vector<1x1x128xf32>
    %392 = vector.shape_cast %391 : vector<1x1x128xf32> to vector<1x128xf32>
    %cst_325 = arith.constant 9.99999974E-6 : f32
    %393 = vector.broadcast %cst_325 : f32 to vector<1x128xf32>
    %394 = arith.addf %390, %393 : vector<1x128xf32>
    %395 = math.rsqrt %394 : vector<1x128xf32>
    %396 = arith.mulf %392, %395 : vector<1x128xf32>
    %c6_326 = arith.constant 6 : index
    %c0_327 = arith.constant 0 : index
    %c0_328 = arith.constant 0 : index
    %397 = vector.load %arg4[%c6_326, %c0_327, %c0_328] : memref<7x1x128xf32, #tpu.memory_space<vmem>>, vector<1x1x128xf32>
    %398 = vector.shape_cast %397 : vector<1x1x128xf32> to vector<1x128xf32>
    %399 = arith.mulf %383, %396 : vector<1x128xf32>
    %400 = arith.subf %398, %399 : vector<1x128xf32>
    %401 = vector.broadcast %396 : vector<1x128xf32> to vector<128x128xf32>
    %402 = arith.mulf %379, %401 : vector<128x128xf32>
    %403 = vector.broadcast %400 : vector<1x128xf32> to vector<128x128xf32>
    %404 = arith.addf %402, %403 : vector<128x128xf32>
    %cst_329 = arith.constant 0.000000e+00 : f32
    %405 = vector.broadcast %cst_329 : f32 to vector<128x128xf32>
    %406 = arith.maximumf %404, %405 : vector<128x128xf32>
    %c0_330 = arith.constant 0 : index
    %c0_331 = arith.constant 0 : index
    %c0_332 = arith.constant 0 : index
    %407 = vector.load %arg12[%c0_330, %c0_331, %c0_332] : memref<4x392x128xf32, #tpu.memory_space<vmem>>, vector<1x392x128xf32>
    %408 = vector.shape_cast %407 : vector<1x392x128xf32> to vector<392x128xf32>
    %cst_333 = arith.constant dense<0.000000e+00> : vector<392x128xf32>
    %409 = tpu.matmul %408, %406, %cst_333 {dimension_numbers = #tpu.dot_dimension_numbers<[1], [0], [0], [1], [0, 0, 1, 1], [], []>} : vector<392x128xf32>, vector<128x128xf32>, vector<392x128xf32> -> vector<392x128xf32>
    %410 = arith.truncf %409 : vector<392x128xf32> to vector<392x128xbf16>
    %c7 = arith.constant 7 : index
    %c0_334 = arith.constant 0 : index
    %c0_335 = arith.constant 0 : index
    %c0_336 = arith.constant 0 : index
    %411 = vector.load %arg2[%c7, %c0_334, %c0_335, %c0_336] : memref<8x4x128x128xbf16, #tpu.memory_space<vmem>>, vector<1x1x128x128xbf16>
    %412 = vector.shape_cast %411 : vector<1x1x128x128xbf16> to vector<128x128xbf16>
    %cst_337 = arith.constant dense<0.000000e+00> : vector<392x128xf32>
    %413 = tpu.matmul %410, %412, %cst_337 {dimension_numbers = #tpu.dot_dimension_numbers<[1], [0], [0], [1], [0, 0, 1, 1], [], []>} : vector<392x128xbf16>, vector<128x128xbf16>, vector<392x128xf32> -> vector<392x128xf32>
    %c1_338 = arith.constant 1 : index
    %c0_339 = arith.constant 0 : index
    %c0_340 = arith.constant 0 : index
    %414 = vector.load %arg12[%c1_338, %c0_339, %c0_340] : memref<4x392x128xf32, #tpu.memory_space<vmem>>, vector<1x392x128xf32>
    %415 = vector.shape_cast %414 : vector<1x392x128xf32> to vector<392x128xf32>
    %cst_341 = arith.constant dense<0.000000e+00> : vector<392x128xf32>
    %416 = tpu.matmul %415, %406, %cst_341 {dimension_numbers = #tpu.dot_dimension_numbers<[1], [0], [0], [1], [0, 0, 1, 1], [], []>} : vector<392x128xf32>, vector<128x128xf32>, vector<392x128xf32> -> vector<392x128xf32>
    %417 = arith.truncf %416 : vector<392x128xf32> to vector<392x128xbf16>
    %c7_342 = arith.constant 7 : index
    %c1_343 = arith.constant 1 : index
    %c0_344 = arith.constant 0 : index
    %c0_345 = arith.constant 0 : index
    %418 = vector.load %arg2[%c7_342, %c1_343, %c0_344, %c0_345] : memref<8x4x128x128xbf16, #tpu.memory_space<vmem>>, vector<1x1x128x128xbf16>
    %419 = vector.shape_cast %418 : vector<1x1x128x128xbf16> to vector<128x128xbf16>
    %cst_346 = arith.constant dense<0.000000e+00> : vector<392x128xf32>
    %420 = tpu.matmul %417, %419, %cst_346 {dimension_numbers = #tpu.dot_dimension_numbers<[1], [0], [0], [1], [0, 0, 1, 1], [], []>} : vector<392x128xbf16>, vector<128x128xbf16>, vector<392x128xf32> -> vector<392x128xf32>
    %421 = arith.addf %413, %420 : vector<392x128xf32>
    %c2_347 = arith.constant 2 : index
    %c0_348 = arith.constant 0 : index
    %c0_349 = arith.constant 0 : index
    %422 = vector.load %arg12[%c2_347, %c0_348, %c0_349] : memref<4x392x128xf32, #tpu.memory_space<vmem>>, vector<1x392x128xf32>
    %423 = vector.shape_cast %422 : vector<1x392x128xf32> to vector<392x128xf32>
    %cst_350 = arith.constant dense<0.000000e+00> : vector<392x128xf32>
    %424 = tpu.matmul %423, %406, %cst_350 {dimension_numbers = #tpu.dot_dimension_numbers<[1], [0], [0], [1], [0, 0, 1, 1], [], []>} : vector<392x128xf32>, vector<128x128xf32>, vector<392x128xf32> -> vector<392x128xf32>
    %425 = arith.truncf %424 : vector<392x128xf32> to vector<392x128xbf16>
    %c7_351 = arith.constant 7 : index
    %c2_352 = arith.constant 2 : index
    %c0_353 = arith.constant 0 : index
    %c0_354 = arith.constant 0 : index
    %426 = vector.load %arg2[%c7_351, %c2_352, %c0_353, %c0_354] : memref<8x4x128x128xbf16, #tpu.memory_space<vmem>>, vector<1x1x128x128xbf16>
    %427 = vector.shape_cast %426 : vector<1x1x128x128xbf16> to vector<128x128xbf16>
    %cst_355 = arith.constant dense<0.000000e+00> : vector<392x128xf32>
    %428 = tpu.matmul %425, %427, %cst_355 {dimension_numbers = #tpu.dot_dimension_numbers<[1], [0], [0], [1], [0, 0, 1, 1], [], []>} : vector<392x128xbf16>, vector<128x128xbf16>, vector<392x128xf32> -> vector<392x128xf32>
    %429 = arith.addf %421, %428 : vector<392x128xf32>
    %c3_356 = arith.constant 3 : index
    %c0_357 = arith.constant 0 : index
    %c0_358 = arith.constant 0 : index
    %430 = vector.load %arg12[%c3_356, %c0_357, %c0_358] : memref<4x392x128xf32, #tpu.memory_space<vmem>>, vector<1x392x128xf32>
    %431 = vector.shape_cast %430 : vector<1x392x128xf32> to vector<392x128xf32>
    %cst_359 = arith.constant dense<0.000000e+00> : vector<392x128xf32>
    %432 = tpu.matmul %431, %406, %cst_359 {dimension_numbers = #tpu.dot_dimension_numbers<[1], [0], [0], [1], [0, 0, 1, 1], [], []>} : vector<392x128xf32>, vector<128x128xf32>, vector<392x128xf32> -> vector<392x128xf32>
    %433 = arith.truncf %432 : vector<392x128xf32> to vector<392x128xbf16>
    %c7_360 = arith.constant 7 : index
    %c3_361 = arith.constant 3 : index
    %c0_362 = arith.constant 0 : index
    %c0_363 = arith.constant 0 : index
    %434 = vector.load %arg2[%c7_360, %c3_361, %c0_362, %c0_363] : memref<8x4x128x128xbf16, #tpu.memory_space<vmem>>, vector<1x1x128x128xbf16>
    %435 = vector.shape_cast %434 : vector<1x1x128x128xbf16> to vector<128x128xbf16>
    %cst_364 = arith.constant dense<0.000000e+00> : vector<392x128xf32>
    %436 = tpu.matmul %433, %435, %cst_364 {dimension_numbers = #tpu.dot_dimension_numbers<[1], [0], [0], [1], [0, 0, 1, 1], [], []>} : vector<392x128xbf16>, vector<128x128xbf16>, vector<392x128xf32> -> vector<392x128xf32>
    %437 = arith.addf %429, %436 : vector<392x128xf32>
    %438 = math.tanh %437 : vector<392x128xf32>
    %c0_365 = arith.constant 0 : index
    %c0_366 = arith.constant 0 : index
    %439 = vector.load %arg13[%c0_365, %c0_366] : memref<392x128xf32, #tpu.memory_space<vmem>>, vector<392x128xf32>
    tpu.vector_store %arg13[%c0_365, %c0_366], %438 {strides = array<i32>} : memref<392x128xf32, #tpu.memory_space<vmem>>, vector<392x128xf32>,
    return
  }
  func.func @transform_0(%arg0: i32) -> (i32, i32) {
    %c0_i32 = arith.constant 0 : i32
    %c0_i32_0 = arith.constant 0 : i32
    %c0_i32_1 = arith.constant 0 : i32
    return %c0_i32, %c0_i32_0 : i32, i32
  }
  func.func @transform_1(%arg0: i32) -> (i32, i32, i32, i32) {
    %c0_i32 = arith.constant 0 : i32
    %c0_i32_0 = arith.constant 0 : i32
    %c0_i32_1 = arith.constant 0 : i32
    %c0_i32_2 = arith.constant 0 : i32
    %c0_i32_3 = arith.constant 0 : i32
    return %c0_i32, %c0_i32_0, %c0_i32_1, %c0_i32_2 : i32, i32, i32, i32
  }
  func.func @transform_2(%arg0: i32) -> (i32, i32, i32) {
    %c0_i32 = arith.constant 0 : i32
    %c0_i32_0 = arith.constant 0 : i32
    %c0_i32_1 = arith.constant 0 : i32
    %c0_i32_2 = arith.constant 0 : i32
    return %c0_i32, %c0_i32_0, %c0_i32_1 : i32, i32, i32
  }
  func.func @transform_3(%arg0: i32) -> (i32, i32, i32) {
    %c0_i32 = arith.constant 0 : i32
    %c0_i32_0 = arith.constant 0 : i32
    %c0_i32_1 = arith.constant 0 : i32
    %c0_i32_2 = arith.constant 0 : i32
    return %c0_i32, %c0_i32_0, %c0_i32_1 : i32, i32, i32
  }
  func.func @transform_4(%arg0: i32) -> (i32, i32, i32) {
    %c0_i32 = arith.constant 0 : i32
    %c0_i32_0 = arith.constant 0 : i32
    %c0_i32_1 = arith.constant 0 : i32
    %c0_i32_2 = arith.constant 0 : i32
    return %c0_i32, %c0_i32_0, %c0_i32_1 : i32, i32, i32
  }
  func.func @transform_5(%arg0: i32) -> (i32, i32, i32) {
    %c0_i32 = arith.constant 0 : i32
    %c0_i32_0 = arith.constant 0 : i32
    %c0_i32_1 = arith.constant 0 : i32
    %c0_i32_2 = arith.constant 0 : i32
    return %c0_i32, %c0_i32_0, %c0_i32_1 : i32, i32, i32
  }
  func.func @transform_6(%arg0: i32) -> (i32, i32, i32) {
    %c0_i32 = arith.constant 0 : i32
    %c0_i32_0 = arith.constant 0 : i32
    %c0_i32_1 = arith.constant 0 : i32
    %c0_i32_2 = arith.constant 0 : i32
    return %c0_i32, %c0_i32_0, %c0_i32_1 : i32, i32, i32
  }
  func.func @transform_7(%arg0: i32) -> (i32, i32, i32) {
    %c0_i32 = arith.constant 0 : i32
    %c0_i32_0 = arith.constant 0 : i32
    %c0_i32_1 = arith.constant 0 : i32
    %c0_i32_2 = arith.constant 0 : i32
    return %c0_i32, %c0_i32_0, %c0_i32_1 : i32, i32, i32
  }
  func.func @transform_8(%arg0: i32) -> (i32, i32, i32) {
    %c0_i32 = arith.constant 0 : i32
    %c0_i32_0 = arith.constant 0 : i32
    %c0_i32_1 = arith.constant 0 : i32
    %c0_i32_2 = arith.constant 0 : i32
    return %c0_i32, %c0_i32_0, %c0_i32_1 : i32, i32, i32
  }
  func.func @transform_9(%arg0: i32) -> (i32, i32, i32) {
    %c0_i32 = arith.constant 0 : i32
    %c0_i32_0 = arith.constant 0 : i32
    %c0_i32_1 = arith.constant 0 : i32
    %c0_i32_2 = arith.constant 0 : i32
    return %c0_i32, %c0_i32_0, %c0_i32_1 : i32, i32, i32
  }
  func.func @transform_10(%arg0: i32) -> (i32, i32, i32) {
    %c0_i32 = arith.constant 0 : i32
    %c0_i32_0 = arith.constant 0 : i32
    %c0_i32_1 = arith.constant 0 : i32
    %c0_i32_2 = arith.constant 0 : i32
    return %c0_i32, %c0_i32_0, %c0_i32_1 : i32, i32, i32
  }
  func.func @transform_11(%arg0: i32) -> (i32, i32, i32) {
    %c0_i32 = arith.constant 0 : i32
    %c0_i32_0 = arith.constant 0 : i32
    %c0_i32_1 = arith.constant 0 : i32
    %c0_i32_2 = arith.constant 0 : i32
    return %c0_i32, %c0_i32_0, %c0_i32_1 : i32, i32, i32
  }
  func.func @transform_12(%arg0: i32) -> (i32, i32) {
    %c0_i32 = arith.constant 0 : i32
    %c0_i32_0 = arith.constant 0 : i32
    %c0_i32_1 = arith.constant 0 : i32
    return %c0_i32, %c0_i32_0 : i32, i32
  }
}

</mosaic_0001>

<llo_original>
// kernel: _lambda_.1
$region0: #{_lambda_.1}
  #allocation0 [shape = 'u32[]', space=smem, size = 0x4, offset = 0x4, fixed_abs, tag = 'smem constant byte address 0x4 - core index']
  #allocation1 [shape = 'u32[72,128]{1,0:T(1,128)}', space=vmem, size = 0x9000, scoped, tag = 'internal scratch']
  %s0 = inlined_call_operand.vmem [shape: f32[32,128], index: 0, kind: input, shape index: {}]
  %s1 = inlined_call_operand.vmem [shape: bf16[8,4,128,128], index: 1, kind: input, shape index: {}]
  %s2 = inlined_call_operand.vmem [shape: f32[7,1,128], index: 2, kind: input, shape index: {}]
  %s3 = inlined_call_operand.vmem [shape: f32[7,1,128], index: 3, kind: input, shape index: {}]
  %s4 = inlined_call_operand.vmem [shape: f32[4,18,32], index: 4, kind: input, shape index: {}]
  %s5 = inlined_call_operand.vmem [shape: f32[4,8,18], index: 5, kind: input, shape index: {}]
  %s6 = inlined_call_operand.vmem [shape: f32[4,8,8], index: 6, kind: input, shape index: {}]
  %s7 = inlined_call_operand.vmem [shape: f32[4,18,8], index: 7, kind: input, shape index: {}]
  %s8 = inlined_call_operand.vmem [shape: f32[4,32,18], index: 8, kind: input, shape index: {}]
  %s9 = inlined_call_operand.vmem [shape: f32[4,50,32], index: 9, kind: input, shape index: {}]
  %s10 = inlined_call_operand.vmem [shape: f32[4,128,50], index: 10, kind: input, shape index: {}]
  %s11 = inlined_call_operand.hbm [shape: f32[4,392,128], index: 11, kind: input, shape index: {}]
  %s12 = inlined_call_operand.vmem [shape: f32[392,128], index: 12, kind: output, shape index: {}]
  %s13 = sld [smem:[#allocation0]]
  $region62: #{_lambda_.1} parent=0
    _
  %s15 = ssub.s32 1, %s13
  %s16 = scalar_select 0, %s15, %s13
  $region1: #{_lambda_.1} parent=0
    #allocation2 [shape = 'u8[802816]{0}', space=vmem, size = 0xc4000, scoped, tag = 'input window, operand 11, single buffered']
    #allocation3 [shape = 's32[1]{0}', space=sflag, size = 0x4, scoped, tag = 'scoped memory for _lambda_.1']
    %17 = vsyncpa [#allocation3], 0
    // Predicated region
    $region2: #{_lambda_.1} parent=1 // pred_check
      _
    $region3: #{_lambda_.1} parent=1 // pred_check_branch
      %19 = sbr.rel (0) target = $region5
    $region4: #{_lambda_.1} parent=1 // pred_region
      _
    $region5: #{_lambda_.1} parent=1 // pred_fallthru
      _
    // Predicated region
    $region6: #{_lambda_.1} parent=1 // pred_check
      _
    $region7: #{_lambda_.1} parent=1 // pred_check_branch
      %21 = sbr.rel (0) target = $region9
    $region8: #{_lambda_.1} parent=1 // pred_region
      _
    $region9: #{_lambda_.1} parent=1 // pred_fallthru
      _
    // Predicated region
    $region10: #{_lambda_.1} parent=1 // pred_check
      _
    $region11: #{_lambda_.1} parent=1 // pred_check_branch
      %23 = sbr.rel (0) target = $region13
    $region12: #{_lambda_.1} parent=1 // pred_region
      _
    $region13: #{_lambda_.1} parent=1 // pred_fallthru
      _
    // Predicated region
    $region14: #{_lambda_.1} parent=1 // pred_check
      _
    $region15: #{_lambda_.1} parent=1 // pred_check_branch
      %25 = sbr.rel (0) target = $region17
    $region16: #{_lambda_.1} parent=1 // pred_region
      _
    $region17: #{_lambda_.1} parent=1 // pred_fallthru
      _
    // Predicated region
    $region18: #{_lambda_.1} parent=1 // pred_check
      _
    $region19: #{_lambda_.1} parent=1 // pred_check_branch
      %27 = sbr.rel (0) target = $region21
    $region20: #{_lambda_.1} parent=1 // pred_region
      _
    $region21: #{_lambda_.1} parent=1 // pred_fallthru
      _
    // Predicated region
    $region22: #{_lambda_.1} parent=1 // pred_check
      _
    $region23: #{_lambda_.1} parent=1 // pred_check_branch
      %29 = sbr.rel (0) target = $region25
    $region24: #{_lambda_.1} parent=1 // pred_region
      _
    $region25: #{_lambda_.1} parent=1 // pred_fallthru
      _
    // Predicated region
    $region26: #{_lambda_.1} parent=1 // pred_check
      _
    $region27: #{_lambda_.1} parent=1 // pred_check_branch
      %31 = sbr.rel (0) target = $region29
    $region28: #{_lambda_.1} parent=1 // pred_region
      _
    $region29: #{_lambda_.1} parent=1 // pred_fallthru
      _
    // Predicated region
    $region30: #{_lambda_.1} parent=1 // pred_check
      _
    $region31: #{_lambda_.1} parent=1 // pred_check_branch
      %33 = sbr.rel (0) target = $region33
    $region32: #{_lambda_.1} parent=1 // pred_region
      _
    $region33: #{_lambda_.1} parent=1 // pred_fallthru
      _
    // Predicated region
    $region34: #{_lambda_.1} parent=1 // pred_check
      _
    $region35: #{_lambda_.1} parent=1 // pred_check_branch
      %35 = sbr.rel (0) target = $region37
    $region36: #{_lambda_.1} parent=1 // pred_region
      _
    $region37: #{_lambda_.1} parent=1 // pred_fallthru
      _
    // Predicated region
    $region38: #{_lambda_.1} parent=1 // pred_check
      _
    $region39: #{_lambda_.1} parent=1 // pred_check_branch
      %37 = sbr.rel (0) target = $region41
    $region40: #{_lambda_.1} parent=1 // pred_region
      _
    $region41: #{_lambda_.1} parent=1 // pred_fallthru
      _
    // Predicated region
    $region42: #{_lambda_.1} parent=1 // pred_check
      _
    $region43: #{_lambda_.1} parent=1 // pred_check_branch
      %39 = sbr.rel (0) target = $region45
    $region44: #{_lambda_.1} parent=1 // pred_region
      _
    $region45: #{_lambda_.1} parent=1 // pred_fallthru
      _
    // Predicated region
    $region46: #{_lambda_.1} parent=1 // pred_check
      _
    $region47: #{_lambda_.1} parent=1 // pred_check_branch
      %41 = sbr.rel (0) target = $region49
    $region48: #{_lambda_.1} parent=1 // pred_region
      %43 = vsyncadd [#allocation3], 0
      %s44 = sshll.u32 %s11, 4
      %s45 = int_to_ptr.hbm [resolvable:$true] %s44
      %s46 = sshll.u32 [#allocation2], 4
      %s47 = int_to_ptr.vmem [resolvable:$true] %s46
      %52 = dma.hbm_to_vmem [thread:$0]  %s45, 25088, %s47, [#allocation3], 128, 128, 8
    $region49: #{_lambda_.1} parent=1 // pred_fallthru
      _
    // Predicated region
    $region50: #{_lambda_.1} parent=1 // pred_check
      _
    $region51: #{_lambda_.1} parent=1 // pred_check_branch
      %54 = sbr.rel (0) target = $region53
    $region52: #{_lambda_.1} parent=1 // pred_region
      %56 = dma.done [#allocation3], 25088
    $region53: #{_lambda_.1} parent=1 // pred_fallthru
      _
    %v57 = vld [vmem:[%s0] sm:$0xff]
    %v58 = vld [vmem:[%s0 + $0x8] sm:$0xff]
    %v59 = vld [vmem:[%s0 + $0x10] sm:$0xff]
    %v60 = vld [vmem:[%s0 + $0x18] sm:$0xff]
    %v61 = vld [vmem:[%s4] sm:$0xff]
    %v62 = vld [vmem:[%s4 + $0x8] sm:$0xff]
    %v63 = vld [vmem:[%s4 + $0x10] sm:$0x3]
    %vm64 = vcmask 261120
    %v66 = vsel %vm64, %v61, 0
    %v69 = vsel %vm64, %v62, 0
    %v72 = vsel %vm64, %v63, 0
    %74 = vmatpush.msra.mxu0 0.0
    %75 = vmatpush.msra.mxu0 0.0
    %76 = vmatpush.msra.mxu0 0.0
    %77 = vmatpush.msra.mxu0 0.0
    %78 = vmatpush.msra.mxu0 0.0
    %79 = vmatpush.msra.mxu0 0.0
    %80 = vmatpush.msra.mxu0 0.0
    %81 = vmatpush.msra.mxu0 0.0
    %82 = vmatpush.msra.mxu0 0.0
    %83 = vmatpush.msra.mxu0 0.0
    %84 = vmatpush.msra.mxu0 0.0
    %85 = vmatpush.msra.mxu0 0.0
    %86 = vmatpush.msra.mxu0 %v60
    %87 = vmatpush.msra.mxu0 %v59
    %88 = vmatpush.msra.mxu0 %v58
    %89 = vmatpush.msra.mxu0 %v57
    %90 = vmatmul.f32.gmra.mxu0 %v66
    %v91 = vpop.f32.mrf.mxu0
    %v92 = vadd.f32 0.0, %v91
    %93 = vmatmul.f32.gmra.mxu0 %v69
    %v94 = vpop.f32.mrf.mxu0
    %v95 = vadd.f32 0.0, %v94
    %96 = vmatmul.f32.gmra.mxu0 %v72
    %v97 = vpop.f32.mrf.mxu0
    %v98 = vadd.f32 0.0, %v97
    %99 = vdwg.mxu0
    %v100 = vpack.c.bf16 %v95, %v92
    %v101 = vpack.c.bf16 %v98, %v98
    %v102 = vld [vmem:[%s1] sm:$0xf]
    %v103 = vld [vmem:[%s1 + $0x4] sm:$0xf]
    %v104 = vld [vmem:[%s1 + $0x8] sm:$0xf]
    %v105 = vld [vmem:[%s1 + $0xc] sm:$0xf]
    %v106 = vld [vmem:[%s1 + $0x10] sm:$0xf]
    %v107 = vld [vmem:[%s1 + $0x14] sm:$0xf]
    %v108 = vld [vmem:[%s1 + $0x18] sm:$0xf]
    %v109 = vld [vmem:[%s1 + $0x1c] sm:$0xf]
    %v110 = vld [vmem:[%s1 + $0x20] sm:$0xf]
    %v111 = vld [vmem:[%s1 + $0x24] sm:$0xf]
    %v112 = vld [vmem:[%s1 + $0x28] sm:$0xf]
    %v113 = vld [vmem:[%s1 + $0x2c] sm:$0xf]
    %v114 = vld [vmem:[%s1 + $0x30] sm:$0xf]
    %v115 = vld [vmem:[%s1 + $0x34] sm:$0xf]
    %v116 = vld [vmem:[%s1 + $0x38] sm:$0xf]
    %v117 = vld [vmem:[%s1 + $0x3c] sm:$0xf]
    %s118 = scalar_lea.vmem %s4, 24
    %v119 = vld [vmem:[%s118] sm:$0xff]
    %v120 = vld [vmem:[%s118 + $0x8] sm:$0xff]
    %v121 = vld [vmem:[%s118 + $0x10] sm:$0x3]
    %v123 = vsel %vm64, %v119, 0
    %v126 = vsel %vm64, %v120, 0
    %v129 = vsel %vm64, %v121, 0
    %131 = vmatpush.msra.mxu0 0.0
    %132 = vmatpush.msra.mxu0 0.0
    %133 = vmatpush.msra.mxu0 0.0
    %134 = vmatpush.msra.mxu0 0.0
    %135 = vmatpush.msra.mxu0 0.0
    %136 = vmatpush.msra.mxu0 0.0
    %137 = vmatpush.msra.mxu0 0.0
    %138 = vmatpush.msra.mxu0 0.0
    %139 = vmatpush.msra.mxu0 0.0
    %140 = vmatpush.msra.mxu0 0.0
    %141 = vmatpush.msra.mxu0 0.0
    %142 = vmatpush.msra.mxu0 0.0
    %143 = vmatpush.msra.mxu0 %v60
    %144 = vmatpush.msra.mxu0 %v59
    %145 = vmatpush.msra.mxu0 %v58
    %146 = vmatpush.msra.mxu0 %v57
    %147 = vmatmul.f32.gmra.mxu0 %v123
    %v148 = vpop.f32.mrf.mxu0
    %v149 = vadd.f32 0.0, %v148
    %150 = vmatmul.f32.gmra.mxu0 %v126
    %v151 = vpop.f32.mrf.mxu0
    %v152 = vadd.f32 0.0, %v151
    %153 = vmatmul.f32.gmra.mxu0 %v129
    %v154 = vpop.f32.mrf.mxu0
    %v155 = vadd.f32 0.0, %v154
    %156 = vdwg.mxu0
    %v157 = vpack.c.bf16 %v152, %v149
    %v158 = vpack.c.bf16 %v155, %v155
    %s159 = scalar_lea.vmem %s1, 64
    %v160 = vld [vmem:[%s159] sm:$0xf]
    %v161 = vld [vmem:[%s159 + $0x4] sm:$0xf]
    %v162 = vld [vmem:[%s159 + $0x8] sm:$0xf]
    %v163 = vld [vmem:[%s159 + $0xc] sm:$0xf]
    %v164 = vld [vmem:[%s159 + $0x10] sm:$0xf]
    %v165 = vld [vmem:[%s159 + $0x14] sm:$0xf]
    %v166 = vld [vmem:[%s159 + $0x18] sm:$0xf]
    %v167 = vld [vmem:[%s159 + $0x1c] sm:$0xf]
    %v168 = vld [vmem:[%s159 + $0x20] sm:$0xf]
    %v169 = vld [vmem:[%s159 + $0x24] sm:$0xf]
    %v170 = vld [vmem:[%s159 + $0x28] sm:$0xf]
    %v171 = vld [vmem:[%s159 + $0x2c] sm:$0xf]
    %v172 = vld [vmem:[%s159 + $0x30] sm:$0xf]
    %v173 = vld [vmem:[%s159 + $0x34] sm:$0xf]
    %v174 = vld [vmem:[%s159 + $0x38] sm:$0xf]
    %v175 = vld [vmem:[%s159 + $0x3c] sm:$0xf]
    %v192 = vunpack.c.l.b16 %v160
    %v193 = vunpack.c.l.b16 %v161
    %v194 = vunpack.c.l.b16 %v162
    %v195 = vunpack.c.l.b16 %v163
    %v196 = vunpack.c.l.b16 %v164
    %v197 = vunpack.c.l.b16 %v165
    %v198 = vunpack.c.l.b16 %v166
    %v199 = vunpack.c.l.b16 %v167
    %v200 = vunpack.c.l.b16 %v168
    %v201 = vunpack.c.l.b16 %v169
    %v202 = vunpack.c.l.b16 %v170
    %v203 = vunpack.c.l.b16 %v171
    %v204 = vunpack.c.l.b16 %v172
    %v205 = vunpack.c.l.b16 %v173
    %v206 = vunpack.c.l.b16 %v174
    %v207 = vunpack.c.l.b16 %v175
    %v208 = vpack.c.b16 %v193, %v192
    %v209 = vpack.c.b16 %v195, %v194
    %v210 = vpack.c.b16 %v197, %v196
    %v211 = vpack.c.b16 %v199, %v198
    %v212 = vpack.c.b16 %v201, %v200
    %v213 = vpack.c.b16 %v203, %v202
    %v214 = vpack.c.b16 %v205, %v204
    %v215 = vpack.c.b16 %v207, %v206
    %224 = vmatpush.bf16.msra.mxu0 %v215
    %225 = vmatpush.bf16.msra.mxu0 %v214
    %226 = vmatpush.bf16.msra.mxu0 %v213
    %227 = vmatpush.bf16.msra.mxu0 %v212
    %228 = vmatpush.bf16.msra.mxu0 %v211
    %229 = vmatpush.bf16.msra.mxu0 %v210
    %230 = vmatpush.bf16.msra.mxu0 %v209
    %231 = vmatpush.bf16.msra.mxu0 %v208
    %232 = vmatmul.bf16.gmra.mxu0 %v157
    %v233 = vpop.f32.mrf.mxu0
    %v234 = vadd.f32 0.0, %v233
    %v235 = vpop.f32.mrf.mxu0
    %v236 = vadd.f32 0.0, %v235
    %237 = vmatmul.bf16.gmra.mxu0 %v158
    %v238 = vpop.f32.mrf.mxu0
    %v239 = vadd.f32 0.0, %v238
    %v240 = vpop.f32.mrf.mxu0
    %241 = vdwg.mxu0
    %v258 = vunpack.c.l.b16 %v102
    %v259 = vunpack.c.l.b16 %v103
    %v260 = vunpack.c.l.b16 %v104
    %v261 = vunpack.c.l.b16 %v105
    %v262 = vunpack.c.l.b16 %v106
    %v263 = vunpack.c.l.b16 %v107
    %v264 = vunpack.c.l.b16 %v108
    %v265 = vunpack.c.l.b16 %v109
    %v266 = vunpack.c.l.b16 %v110
    %v267 = vunpack.c.l.b16 %v111
    %v268 = vunpack.c.l.b16 %v112
    %v269 = vunpack.c.l.b16 %v113
    %v270 = vunpack.c.l.b16 %v114
    %v271 = vunpack.c.l.b16 %v115
    %v272 = vunpack.c.l.b16 %v116
    %v273 = vunpack.c.l.b16 %v117
    %v274 = vpack.c.b16 %v259, %v258
    %v275 = vpack.c.b16 %v261, %v260
    %v276 = vpack.c.b16 %v263, %v262
    %v277 = vpack.c.b16 %v265, %v264
    %v278 = vpack.c.b16 %v267, %v266
    %v279 = vpack.c.b16 %v269, %v268
    %v280 = vpack.c.b16 %v271, %v270
    %v281 = vpack.c.b16 %v273, %v272
    %290 = vmatpush.bf16.msra.mxu0 %v281
    %291 = vmatpush.bf16.msra.mxu0 %v280
    %292 = vmatpush.bf16.msra.mxu0 %v279
    %293 = vmatpush.bf16.msra.mxu0 %v278
    %294 = vmatpush.bf16.msra.mxu0 %v277
    %295 = vmatpush.bf16.msra.mxu0 %v276
    %296 = vmatpush.bf16.msra.mxu0 %v275
    %297 = vmatpush.bf16.msra.mxu0 %v274
    %298 = vmatmul.bf16.gmra.mxu0 %v100
    %v299 = vpop.f32.mrf.mxu0
    %v300 = vadd.f32 %v234, %v299
    %v301 = vpop.f32.mrf.mxu0
    %v302 = vadd.f32 %v236, %v301
    %303 = vmatmul.bf16.gmra.mxu0 %v101
    %v304 = vpop.f32.mrf.mxu0
    %v305 = vadd.f32 %v239, %v304
    %v306 = vpop.f32.mrf.mxu0
    %307 = vdwg.mxu0
    %s308 = scalar_lea.vmem %s4, 48
    %v309 = vld [vmem:[%s308] sm:$0xff]
    %v310 = vld [vmem:[%s308 + $0x8] sm:$0xff]
    %v311 = vld [vmem:[%s308 + $0x10] sm:$0x3]
    %v313 = vsel %vm64, %v309, 0
    %v316 = vsel %vm64, %v310, 0
    %v319 = vsel %vm64, %v311, 0
    %321 = vmatpush.msra.mxu0 0.0
    %322 = vmatpush.msra.mxu0 0.0
    %323 = vmatpush.msra.mxu0 0.0
    %324 = vmatpush.msra.mxu0 0.0
    %325 = vmatpush.msra.mxu0 0.0
    %326 = vmatpush.msra.mxu0 0.0
    %327 = vmatpush.msra.mxu0 0.0
    %328 = vmatpush.msra.mxu0 0.0
    %329 = vmatpush.msra.mxu0 0.0
    %330 = vmatpush.msra.mxu0 0.0
    %331 = vmatpush.msra.mxu0 0.0
    %332 = vmatpush.msra.mxu0 0.0
    %333 = vmatpush.msra.mxu0 %v60
    %334 = vmatpush.msra.mxu0 %v59
    %335 = vmatpush.msra.mxu0 %v58
    %336 = vmatpush.msra.mxu0 %v57
    %337 = vmatmul.f32.gmra.mxu0 %v313
    %v338 = vpop.f32.mrf.mxu0
    %v339 = vadd.f32 0.0, %v338
    %340 = vmatmul.f32.gmra.mxu0 %v316
    %v341 = vpop.f32.mrf.mxu0
    %v342 = vadd.f32 0.0, %v341
    %343 = vmatmul.f32.gmra.mxu0 %v319
    %v344 = vpop.f32.mrf.mxu0
    %v345 = vadd.f32 0.0, %v344
    %346 = vdwg.mxu0
    %v347 = vpack.c.bf16 %v342, %v339
    %v348 = vpack.c.bf16 %v345, %v345
    %s349 = scalar_lea.vmem %s1, 128
    %v350 = vld [vmem:[%s349] sm:$0xf]
    %v351 = vld [vmem:[%s349 + $0x4] sm:$0xf]
    %v352 = vld [vmem:[%s349 + $0x8] sm:$0xf]
    %v353 = vld [vmem:[%s349 + $0xc] sm:$0xf]
    %v354 = vld [vmem:[%s349 + $0x10] sm:$0xf]
    %v355 = vld [vmem:[%s349 + $0x14] sm:$0xf]
    %v356 = vld [vmem:[%s349 + $0x18] sm:$0xf]
    %v357 = vld [vmem:[%s349 + $0x1c] sm:$0xf]
    %v358 = vld [vmem:[%s349 + $0x20] sm:$0xf]
    %v359 = vld [vmem:[%s349 + $0x24] sm:$0xf]
    %v360 = vld [vmem:[%s349 + $0x28] sm:$0xf]
    %v361 = vld [vmem:[%s349 + $0x2c] sm:$0xf]
    %v362 = vld [vmem:[%s349 + $0x30] sm:$0xf]
    %v363 = vld [vmem:[%s349 + $0x34] sm:$0xf]
    %v364 = vld [vmem:[%s349 + $0x38] sm:$0xf]
    %v365 = vld [vmem:[%s349 + $0x3c] sm:$0xf]
    %v382 = vunpack.c.l.b16 %v350
    %v383 = vunpack.c.l.b16 %v351
    %v384 = vunpack.c.l.b16 %v352
    %v385 = vunpack.c.l.b16 %v353
    %v386 = vunpack.c.l.b16 %v354
    %v387 = vunpack.c.l.b16 %v355
    %v388 = vunpack.c.l.b16 %v356
    %v389 = vunpack.c.l.b16 %v357
    %v390 = vunpack.c.l.b16 %v358
    %v391 = vunpack.c.l.b16 %v359
    %v392 = vunpack.c.l.b16 %v360
    %v393 = vunpack.c.l.b16 %v361
    %v394 = vunpack.c.l.b16 %v362
    %v395 = vunpack.c.l.b16 %v363
    %v396 = vunpack.c.l.b16 %v364
    %v397 = vunpack.c.l.b16 %v365
    %v398 = vpack.c.b16 %v383, %v382
    %v399 = vpack.c.b16 %v385, %v384
    %v400 = vpack.c.b16 %v387, %v386
    %v401 = vpack.c.b16 %v389, %v388
    %v402 = vpack.c.b16 %v391, %v390
    %v403 = vpack.c.b16 %v393, %v392
    %v404 = vpack.c.b16 %v395, %v394
    %v405 = vpack.c.b16 %v397, %v396
    %414 = vmatpush.bf16.msra.mxu0 %v405
    %415 = vmatpush.bf16.msra.mxu0 %v404
    %416 = vmatpush.bf16.msra.mxu0 %v403
    %417 = vmatpush.bf16.msra.mxu0 %v402
    %418 = vmatpush.bf16.msra.mxu0 %v401
    %419 = vmatpush.bf16.msra.mxu0 %v400
    %420 = vmatpush.bf16.msra.mxu0 %v399
    %421 = vmatpush.bf16.msra.mxu0 %v398
    %422 = vmatmul.bf16.gmra.mxu0 %v347
    %v423 = vpop.f32.mrf.mxu0
    %v424 = vadd.f32 0.0, %v423
    %v425 = vpop.f32.mrf.mxu0
    %v426 = vadd.f32 0.0, %v425
    %427 = vmatmul.bf16.gmra.mxu0 %v348
    %v428 = vpop.f32.mrf.mxu0
    %v429 = vadd.f32 0.0, %v428
    %v430 = vpop.f32.mrf.mxu0
    %431 = vdwg.mxu0
    %v432 = vadd.f32 %v300, %v424
    %v433 = vadd.f32 %v302, %v426
    %v434 = vadd.f32 %v305, %v429
    %s435 = scalar_lea.vmem %s4, 72
    %v436 = vld [vmem:[%s435] sm:$0xff]
    %v437 = vld [vmem:[%s435 + $0x8] sm:$0xff]
    %v438 = vld [vmem:[%s435 + $0x10] sm:$0x3]
    %v440 = vsel %vm64, %v436, 0
    %v443 = vsel %vm64, %v437, 0
    %v446 = vsel %vm64, %v438, 0
    %448 = vmatpush.msra.mxu0 0.0
    %449 = vmatpush.msra.mxu0 0.0
    %450 = vmatpush.msra.mxu0 0.0
    %451 = vmatpush.msra.mxu0 0.0
    %452 = vmatpush.msra.mxu0 0.0
    %453 = vmatpush.msra.mxu0 0.0
    %454 = vmatpush.msra.mxu0 0.0
    %455 = vmatpush.msra.mxu0 0.0
    %456 = vmatpush.msra.mxu0 0.0
    %457 = vmatpush.msra.mxu0 0.0
    %458 = vmatpush.msra.mxu0 0.0
    %459 = vmatpush.msra.mxu0 0.0
    %460 = vmatpush.msra.mxu0 %v60
    %461 = vmatpush.msra.mxu0 %v59
    %462 = vmatpush.msra.mxu0 %v58
    %463 = vmatpush.msra.mxu0 %v57
    %464 = vmatmul.f32.gmra.mxu0 %v440
    %v465 = vpop.f32.mrf.mxu0
    %v466 = vadd.f32 0.0, %v465
    %467 = vmatmul.f32.gmra.mxu0 %v443
    %v468 = vpop.f32.mrf.mxu0
    %v469 = vadd.f32 0.0, %v468
    %470 = vmatmul.f32.gmra.mxu0 %v446
    %v471 = vpop.f32.mrf.mxu0
    %v472 = vadd.f32 0.0, %v471
    %473 = vdwg.mxu0
    %v474 = vpack.c.bf16 %v469, %v466
    %v475 = vpack.c.bf16 %v472, %v472
    %s476 = scalar_lea.vmem %s1, 192
    %v477 = vld [vmem:[%s476] sm:$0xf]
    %v478 = vld [vmem:[%s476 + $0x4] sm:$0xf]
    %v479 = vld [vmem:[%s476 + $0x8] sm:$0xf]
    %v480 = vld [vmem:[%s476 + $0xc] sm:$0xf]
    %v481 = vld [vmem:[%s476 + $0x10] sm:$0xf]
    %v482 = vld [vmem:[%s476 + $0x14] sm:$0xf]
    %v483 = vld [vmem:[%s476 + $0x18] sm:$0xf]
    %v484 = vld [vmem:[%s476 + $0x1c] sm:$0xf]
    %v485 = vld [vmem:[%s476 + $0x20] sm:$0xf]
    %v486 = vld [vmem:[%s476 + $0x24] sm:$0xf]
    %v487 = vld [vmem:[%s476 + $0x28] sm:$0xf]
    %v488 = vld [vmem:[%s476 + $0x2c] sm:$0xf]
    %v489 = vld [vmem:[%s476 + $0x30] sm:$0xf]
    %v490 = vld [vmem:[%s476 + $0x34] sm:$0xf]
    %v491 = vld [vmem:[%s476 + $0x38] sm:$0xf]
    %v492 = vld [vmem:[%s476 + $0x3c] sm:$0xf]
    %v509 = vunpack.c.l.b16 %v477
    %v510 = vunpack.c.l.b16 %v478
    %v511 = vunpack.c.l.b16 %v479
    %v512 = vunpack.c.l.b16 %v480
    %v513 = vunpack.c.l.b16 %v481
    %v514 = vunpack.c.l.b16 %v482
    %v515 = vunpack.c.l.b16 %v483
    %v516 = vunpack.c.l.b16 %v484
    %v517 = vunpack.c.l.b16 %v485
    %v518 = vunpack.c.l.b16 %v486
    %v519 = vunpack.c.l.b16 %v487
    %v520 = vunpack.c.l.b16 %v488
    %v521 = vunpack.c.l.b16 %v489
    %v522 = vunpack.c.l.b16 %v490
    %v523 = vunpack.c.l.b16 %v491
    %v524 = vunpack.c.l.b16 %v492
    %v525 = vpack.c.b16 %v510, %v509
    %v526 = vpack.c.b16 %v512, %v511
    %v527 = vpack.c.b16 %v514, %v513
    %v528 = vpack.c.b16 %v516, %v515
    %v529 = vpack.c.b16 %v518, %v517
    %v530 = vpack.c.b16 %v520, %v519
    %v531 = vpack.c.b16 %v522, %v521
    %v532 = vpack.c.b16 %v524, %v523
    %541 = vmatpush.bf16.msra.mxu0 %v532
    %542 = vmatpush.bf16.msra.mxu0 %v531
    %543 = vmatpush.bf16.msra.mxu0 %v530
    %544 = vmatpush.bf16.msra.mxu0 %v529
    %545 = vmatpush.bf16.msra.mxu0 %v528
    %546 = vmatpush.bf16.msra.mxu0 %v527
    %547 = vmatpush.bf16.msra.mxu0 %v526
    %548 = vmatpush.bf16.msra.mxu0 %v525
    %549 = vmatmul.bf16.gmra.mxu0 %v474
    %v550 = vpop.f32.mrf.mxu0
    %v551 = vadd.f32 0.0, %v550
    %v552 = vpop.f32.mrf.mxu0
    %v553 = vadd.f32 0.0, %v552
    %554 = vmatmul.bf16.gmra.mxu0 %v475
    %v555 = vpop.f32.mrf.mxu0
    %v556 = vadd.f32 0.0, %v555
    %v557 = vpop.f32.mrf.mxu0
    %558 = vdwg.mxu0
    %v559 = vadd.f32 %v432, %v551
    %v560 = vadd.f32 %v433, %v553
    %v561 = vadd.f32 %v434, %v556
    %v562 = vadd.f32 %v559, %v560
    %vm563 = vcmask 1041408
    %v564 = vsel %vm563, %v561, 0.0
    %v565 = vadd.f32 %v562, %v564
    %v566 = vrot.slane %v565, 4
    %v567 = vadd.f32 %v565, %v566
    %v568 = vrot.slane %v567, 2
    %v569 = vadd.f32 %v567, %v568
    %v570 = vrot.slane %v569, 1
    %v571 = vadd.f32 %v569, %v570
    %v572 = vrcp.pop 18.0
    %v573 = vmul.f32 18.0, %v572
    %v574 = vsub.f32 1.0, %v573
    %v575 = vmul.f32 %v572, %v574
    %v576 = vadd.f32 %v572, %v575
    %vm577 = vweird.f32 %v572
    %v578 = vsel %vm577, %v572, %v576
    %v579 = vmul.f32 %v571, %v578
    %v580 = vsub.f32 %v559, %v579
    %v581 = vsub.f32 %v560, %v579
    %v582 = vsub.f32 %v561, %v579
    %v583 = vmul.f32 %v580, %v580
    %v584 = vmul.f32 %v581, %v581
    %v585 = vmul.f32 %v582, %v582
    %v586 = vadd.f32 %v583, %v584
    %v587 = vsel %vm563, %v585, 0.0
    %v588 = vadd.f32 %v586, %v587
    %v589 = vrot.slane %v588, 4
    %v590 = vadd.f32 %v588, %v589
    %v591 = vrot.slane %v590, 2
    %v592 = vadd.f32 %v590, %v591
    %v593 = vrot.slane %v592, 1
    %v594 = vadd.f32 %v592, %v593
    %v595 = vmul.f32 %v594, %v578
    %v596 = vld [vmem:[%s2] sm:$0x1]
    %v597 = vadd.f32 %v595, 1e-05
    %v598 = vrsqrt.pop %v597
    %v599 = vmul.f32 %v598, %v597
    %v600 = vmul.f32 %v599, %v598
    %v601 = vmul.f32 0.5, %v600
    %v602 = vsub.f32 1.5, %v601
    %v603 = vmul.f32 %v598, %v602
    %vm604 = vweird.f32 %v597
    %vm605 = vweird.f32 %v598
    %vm606 = vmor %vm604, %vm605
    %v607 = vsel %vm606, %v598, %v603
    %v608 = vmul.f32 %v596, %v607
    %v609 = vld [vmem:[%s3] sm:$0x1]
    %v610 = vmul.f32 %v579, %v608
    %v611 = vsub.f32 %v609, %v610
    %v613 = vperm.slane %v608, 0
    %v615 = vmul.f32 %v559, %v613
    %v616 = vmul.f32 %v560, %v613
    %v617 = vmul.f32 %v561, %v613
    %v619 = vperm.slane %v611, 0
    %v621 = vadd.f32 %v615, %v619
    %v622 = vadd.f32 %v616, %v619
    %v623 = vadd.f32 %v617, %v619
    %v624 = vmax.f32 %v621, 0.0
    %v625 = vmax.f32 %v622, 0.0
    %v626 = vmax.f32 %v623, 0.0
    %v627 = vld [vmem:[%s5] sm:$0xff]
    %vm628 = vcmask 146432
    %v630 = vsel %vm628, %v627, 0
    %v633 = vsel %vm563, %v626, 0
    %635 = vmatpush.msra.mxu0 0.0
    %636 = vmatpush.msra.mxu0 0.0
    %637 = vmatpush.msra.mxu0 0.0
    %638 = vmatpush.msra.mxu0 0.0
    %639 = vmatpush.msra.mxu0 0.0
    %640 = vmatpush.msra.mxu0 0.0
    %641 = vmatpush.msra.mxu0 0.0
    %642 = vmatpush.msra.mxu0 0.0
    %643 = vmatpush.msra.mxu0 0.0
    %644 = vmatpush.msra.mxu0 0.0
    %645 = vmatpush.msra.mxu0 0.0
    %646 = vmatpush.msra.mxu0 0.0
    %647 = vmatpush.msra.mxu0 0.0
    %648 = vmatpush.msra.mxu0 %v633
    %649 = vmatpush.msra.mxu0 %v625
    %650 = vmatpush.msra.mxu0 %v624
    %651 = vmatmul.f32.gmra.mxu0 %v630
    %v652 = vpop.f32.mrf.mxu0
    %v653 = vadd.f32 0.0, %v652
    %654 = vdwg.mxu0
    %v655 = vpack.c.bf16 %v653, %v653
    %s656 = scalar_lea.vmem %s1, 256
    %v657 = vld [vmem:[%s656] sm:$0xf]
    %v658 = vld [vmem:[%s656 + $0x4] sm:$0xf]
    %v659 = vld [vmem:[%s656 + $0x8] sm:$0xf]
    %v660 = vld [vmem:[%s656 + $0xc] sm:$0xf]
    %v661 = vld [vmem:[%s656 + $0x10] sm:$0xf]
    %v662 = vld [vmem:[%s656 + $0x14] sm:$0xf]
    %v663 = vld [vmem:[%s656 + $0x18] sm:$0xf]
    %v664 = vld [vmem:[%s656 + $0x1c] sm:$0xf]
    %v665 = vld [vmem:[%s656 + $0x20] sm:$0xf]
    %v666 = vld [vmem:[%s656 + $0x24] sm:$0xf]
    %v667 = vld [vmem:[%s656 + $0x28] sm:$0xf]
    %v668 = vld [vmem:[%s656 + $0x2c] sm:$0xf]
    %v669 = vld [vmem:[%s656 + $0x30] sm:$0xf]
    %v670 = vld [vmem:[%s656 + $0x34] sm:$0xf]
    %v671 = vld [vmem:[%s656 + $0x38] sm:$0xf]
    %v672 = vld [vmem:[%s656 + $0x3c] sm:$0xf]
    %s673 = scalar_lea.vmem %s5, 8
    %v674 = vld [vmem:[%s673] sm:$0xff]
    %v676 = vsel %vm628, %v674, 0
    %678 = vmatpush.msra.mxu0 0.0
    %679 = vmatpush.msra.mxu0 0.0
    %680 = vmatpush.msra.mxu0 0.0
    %681 = vmatpush.msra.mxu0 0.0
    %682 = vmatpush.msra.mxu0 0.0
    %683 = vmatpush.msra.mxu0 0.0
    %684 = vmatpush.msra.mxu0 0.0
    %685 = vmatpush.msra.mxu0 0.0
    %686 = vmatpush.msra.mxu0 0.0
    %687 = vmatpush.msra.mxu0 0.0
    %688 = vmatpush.msra.mxu0 0.0
    %689 = vmatpush.msra.mxu0 0.0
    %690 = vmatpush.msra.mxu0 0.0
    %691 = vmatpush.msra.mxu0 %v633
    %692 = vmatpush.msra.mxu0 %v625
    %693 = vmatpush.msra.mxu0 %v624
    %694 = vmatmul.f32.gmra.mxu0 %v676
    %v695 = vpop.f32.mrf.mxu0
    %v696 = vadd.f32 0.0, %v695
    %697 = vdwg.mxu0
    %v698 = vpack.c.bf16 %v696, %v696
    %s699 = scalar_lea.vmem %s1, 320
    %v700 = vld [vmem:[%s699] sm:$0xf]
    %v701 = vld [vmem:[%s699 + $0x4] sm:$0xf]
    %v702 = vld [vmem:[%s699 + $0x8] sm:$0xf]
    %v703 = vld [vmem:[%s699 + $0xc] sm:$0xf]
    %v704 = vld [vmem:[%s699 + $0x10] sm:$0xf]
    %v705 = vld [vmem:[%s699 + $0x14] sm:$0xf]
    %v706 = vld [vmem:[%s699 + $0x18] sm:$0xf]
    %v707 = vld [vmem:[%s699 + $0x1c] sm:$0xf]
    %v708 = vld [vmem:[%s699 + $0x20] sm:$0xf]
    %v709 = vld [vmem:[%s699 + $0x24] sm:$0xf]
    %v710 = vld [vmem:[%s699 + $0x28] sm:$0xf]
    %v711 = vld [vmem:[%s699 + $0x2c] sm:$0xf]
    %v712 = vld [vmem:[%s699 + $0x30] sm:$0xf]
    %v713 = vld [vmem:[%s699 + $0x34] sm:$0xf]
    %v714 = vld [vmem:[%s699 + $0x38] sm:$0xf]
    %v715 = vld [vmem:[%s699 + $0x3c] sm:$0xf]
    %v732 = vunpack.c.l.b16 %v700
    %v733 = vunpack.c.l.b16 %v701
    %v734 = vunpack.c.l.b16 %v702
    %v735 = vunpack.c.l.b16 %v703
    %v736 = vunpack.c.l.b16 %v704
    %v737 = vunpack.c.l.b16 %v705
    %v738 = vunpack.c.l.b16 %v706
    %v739 = vunpack.c.l.b16 %v707
    %v740 = vunpack.c.l.b16 %v708
    %v741 = vunpack.c.l.b16 %v709
    %v742 = vunpack.c.l.b16 %v710
    %v743 = vunpack.c.l.b16 %v711
    %v744 = vunpack.c.l.b16 %v712
    %v745 = vunpack.c.l.b16 %v713
    %v746 = vunpack.c.l.b16 %v714
    %v747 = vunpack.c.l.b16 %v715
    %v748 = vpack.c.b16 %v733, %v732
    %v749 = vpack.c.b16 %v735, %v734
    %v750 = vpack.c.b16 %v737, %v736
    %v751 = vpack.c.b16 %v739, %v738
    %v752 = vpack.c.b16 %v741, %v740
    %v753 = vpack.c.b16 %v743, %v742
    %v754 = vpack.c.b16 %v745, %v744
    %v755 = vpack.c.b16 %v747, %v746
    %764 = vmatpush.bf16.msra.mxu0 %v755
    %765 = vmatpush.bf16.msra.mxu0 %v754
    %766 = vmatpush.bf16.msra.mxu0 %v753
    %767 = vmatpush.bf16.msra.mxu0 %v752
    %768 = vmatpush.bf16.msra.mxu0 %v751
    %769 = vmatpush.bf16.msra.mxu0 %v750
    %770 = vmatpush.bf16.msra.mxu0 %v749
    %771 = vmatpush.bf16.msra.mxu0 %v748
    %772 = vmatmul.bf16.gmra.mxu0 %v698
    %v773 = vpop.f32.mrf.mxu0
    %v774 = vadd.f32 0.0, %v773
    %v775 = vpop.f32.mrf.mxu0
    %776 = vdwg.mxu0
    %v793 = vunpack.c.l.b16 %v657
    %v794 = vunpack.c.l.b16 %v658
    %v795 = vunpack.c.l.b16 %v659
    %v796 = vunpack.c.l.b16 %v660
    %v797 = vunpack.c.l.b16 %v661
    %v798 = vunpack.c.l.b16 %v662
    %v799 = vunpack.c.l.b16 %v663
    %v800 = vunpack.c.l.b16 %v664
    %v801 = vunpack.c.l.b16 %v665
    %v802 = vunpack.c.l.b16 %v666
    %v803 = vunpack.c.l.b16 %v667
    %v804 = vunpack.c.l.b16 %v668
    %v805 = vunpack.c.l.b16 %v669
    %v806 = vunpack.c.l.b16 %v670
    %v807 = vunpack.c.l.b16 %v671
    %v808 = vunpack.c.l.b16 %v672
    %v809 = vpack.c.b16 %v794, %v793
    %v810 = vpack.c.b16 %v796, %v795
    %v811 = vpack.c.b16 %v798, %v797
    %v812 = vpack.c.b16 %v800, %v799
    %v813 = vpack.c.b16 %v802, %v801
    %v814 = vpack.c.b16 %v804, %v803
    %v815 = vpack.c.b16 %v806, %v805
    %v816 = vpack.c.b16 %v808, %v807
    %825 = vmatpush.bf16.msra.mxu0 %v816
    %826 = vmatpush.bf16.msra.mxu0 %v815
    %827 = vmatpush.bf16.msra.mxu0 %v814
    %828 = vmatpush.bf16.msra.mxu0 %v813
    %829 = vmatpush.bf16.msra.mxu0 %v812
    %830 = vmatpush.bf16.msra.mxu0 %v811
    %831 = vmatpush.bf16.msra.mxu0 %v810
    %832 = vmatpush.bf16.msra.mxu0 %v809
    %833 = vmatmul.bf16.gmra.mxu0 %v655
    %v834 = vpop.f32.mrf.mxu0
    %v835 = vadd.f32 %v774, %v834
    %v836 = vpop.f32.mrf.mxu0
    %837 = vdwg.mxu0
    %s838 = scalar_lea.vmem %s5, 16
    %v839 = vld [vmem:[%s838] sm:$0xff]
    %v841 = vsel %vm628, %v839, 0
    %843 = vmatpush.msra.mxu0 0.0
    %844 = vmatpush.msra.mxu0 0.0
    %845 = vmatpush.msra.mxu0 0.0
    %846 = vmatpush.msra.mxu0 0.0
    %847 = vmatpush.msra.mxu0 0.0
    %848 = vmatpush.msra.mxu0 0.0
    %849 = vmatpush.msra.mxu0 0.0
    %850 = vmatpush.msra.mxu0 0.0
    %851 = vmatpush.msra.mxu0 0.0
    %852 = vmatpush.msra.mxu0 0.0
    %853 = vmatpush.msra.mxu0 0.0
    %854 = vmatpush.msra.mxu0 0.0
    %855 = vmatpush.msra.mxu0 0.0
    %856 = vmatpush.msra.mxu0 %v633
    %857 = vmatpush.msra.mxu0 %v625
    %858 = vmatpush.msra.mxu0 %v624
    %859 = vmatmul.f32.gmra.mxu0 %v841
    %v860 = vpop.f32.mrf.mxu0
    %v861 = vadd.f32 0.0, %v860
    %862 = vdwg.mxu0
    %v863 = vpack.c.bf16 %v861, %v861
    %s864 = scalar_lea.vmem %s1, 384
    %v865 = vld [vmem:[%s864] sm:$0xf]
    %v866 = vld [vmem:[%s864 + $0x4] sm:$0xf]
    %v867 = vld [vmem:[%s864 + $0x8] sm:$0xf]
    %v868 = vld [vmem:[%s864 + $0xc] sm:$0xf]
    %v869 = vld [vmem:[%s864 + $0x10] sm:$0xf]
    %v870 = vld [vmem:[%s864 + $0x14] sm:$0xf]
    %v871 = vld [vmem:[%s864 + $0x18] sm:$0xf]
    %v872 = vld [vmem:[%s864 + $0x1c] sm:$0xf]
    %v873 = vld [vmem:[%s864 + $0x20] sm:$0xf]
    %v874 = vld [vmem:[%s864 + $0x24] sm:$0xf]
    %v875 = vld [vmem:[%s864 + $0x28] sm:$0xf]
    %v876 = vld [vmem:[%s864 + $0x2c] sm:$0xf]
    %v877 = vld [vmem:[%s864 + $0x30] sm:$0xf]
    %v878 = vld [vmem:[%s864 + $0x34] sm:$0xf]
    %v879 = vld [vmem:[%s864 + $0x38] sm:$0xf]
    %v880 = vld [vmem:[%s864 + $0x3c] sm:$0xf]
    %v897 = vunpack.c.l.b16 %v865
    %v898 = vunpack.c.l.b16 %v866
    %v899 = vunpack.c.l.b16 %v867
    %v900 = vunpack.c.l.b16 %v868
    %v901 = vunpack.c.l.b16 %v869
    %v902 = vunpack.c.l.b16 %v870
    %v903 = vunpack.c.l.b16 %v871
    %v904 = vunpack.c.l.b16 %v872
    %v905 = vunpack.c.l.b16 %v873
    %v906 = vunpack.c.l.b16 %v874
    %v907 = vunpack.c.l.b16 %v875
    %v908 = vunpack.c.l.b16 %v876
    %v909 = vunpack.c.l.b16 %v877
    %v910 = vunpack.c.l.b16 %v878
    %v911 = vunpack.c.l.b16 %v879
    %v912 = vunpack.c.l.b16 %v880
    %v913 = vpack.c.b16 %v898, %v897
    %v914 = vpack.c.b16 %v900, %v899
    %v915 = vpack.c.b16 %v902, %v901
    %v916 = vpack.c.b16 %v904, %v903
    %v917 = vpack.c.b16 %v906, %v905
    %v918 = vpack.c.b16 %v908, %v907
    %v919 = vpack.c.b16 %v910, %v909
    %v920 = vpack.c.b16 %v912, %v911
    %929 = vmatpush.bf16.msra.mxu0 %v920
    %930 = vmatpush.bf16.msra.mxu0 %v919
    %931 = vmatpush.bf16.msra.mxu0 %v918
    %932 = vmatpush.bf16.msra.mxu0 %v917
    %933 = vmatpush.bf16.msra.mxu0 %v916
    %934 = vmatpush.bf16.msra.mxu0 %v915
    %935 = vmatpush.bf16.msra.mxu0 %v914
    %936 = vmatpush.bf16.msra.mxu0 %v913
    %937 = vmatmul.bf16.gmra.mxu0 %v863
    %v938 = vpop.f32.mrf.mxu0
    %v939 = vadd.f32 0.0, %v938
    %v940 = vpop.f32.mrf.mxu0
    %941 = vdwg.mxu0
    %v942 = vadd.f32 %v835, %v939
    %s943 = scalar_lea.vmem %s5, 24
    %v944 = vld [vmem:[%s943] sm:$0xff]
    %v946 = vsel %vm628, %v944, 0
    %948 = vmatpush.msra.mxu0 0.0
    %949 = vmatpush.msra.mxu0 0.0
    %950 = vmatpush.msra.mxu0 0.0
    %951 = vmatpush.msra.mxu0 0.0
    %952 = vmatpush.msra.mxu0 0.0
    %953 = vmatpush.msra.mxu0 0.0
    %954 = vmatpush.msra.mxu0 0.0
    %955 = vmatpush.msra.mxu0 0.0
    %956 = vmatpush.msra.mxu0 0.0
    %957 = vmatpush.msra.mxu0 0.0
    %958 = vmatpush.msra.mxu0 0.0
    %959 = vmatpush.msra.mxu0 0.0
    %960 = vmatpush.msra.mxu0 0.0
    %961 = vmatpush.msra.mxu0 %v633
    %962 = vmatpush.msra.mxu0 %v625
    %963 = vmatpush.msra.mxu0 %v624
    %964 = vmatmul.f32.gmra.mxu0 %v946
    %v965 = vpop.f32.mrf.mxu0
    %v966 = vadd.f32 0.0, %v965
    %967 = vdwg.mxu0
    %v968 = vpack.c.bf16 %v966, %v966
    %s969 = scalar_lea.vmem %s1, 448
    %v970 = vld [vmem:[%s969] sm:$0xf]
    %v971 = vld [vmem:[%s969 + $0x4] sm:$0xf]
    %v972 = vld [vmem:[%s969 + $0x8] sm:$0xf]
    %v973 = vld [vmem:[%s969 + $0xc] sm:$0xf]
    %v974 = vld [vmem:[%s969 + $0x10] sm:$0xf]
    %v975 = vld [vmem:[%s969 + $0x14] sm:$0xf]
    %v976 = vld [vmem:[%s969 + $0x18] sm:$0xf]
    %v977 = vld [vmem:[%s969 + $0x1c] sm:$0xf]
    %v978 = vld [vmem:[%s969 + $0x20] sm:$0xf]
    %v979 = vld [vmem:[%s969 + $0x24] sm:$0xf]
    %v980 = vld [vmem:[%s969 + $0x28] sm:$0xf]
    %v981 = vld [vmem:[%s969 + $0x2c] sm:$0xf]
    %v982 = vld [vmem:[%s969 + $0x30] sm:$0xf]
    %v983 = vld [vmem:[%s969 + $0x34] sm:$0xf]
    %v984 = vld [vmem:[%s969 + $0x38] sm:$0xf]
    %v985 = vld [vmem:[%s969 + $0x3c] sm:$0xf]
    %v1002 = vunpack.c.l.b16 %v970
    %v1003 = vunpack.c.l.b16 %v971
    %v1004 = vunpack.c.l.b16 %v972
    %v1005 = vunpack.c.l.b16 %v973
    %v1006 = vunpack.c.l.b16 %v974
    %v1007 = vunpack.c.l.b16 %v975
    %v1008 = vunpack.c.l.b16 %v976
    %v1009 = vunpack.c.l.b16 %v977
    %v1010 = vunpack.c.l.b16 %v978
    %v1011 = vunpack.c.l.b16 %v979
    %v1012 = vunpack.c.l.b16 %v980
    %v1013 = vunpack.c.l.b16 %v981
    %v1014 = vunpack.c.l.b16 %v982
    %v1015 = vunpack.c.l.b16 %v983
    %v1016 = vunpack.c.l.b16 %v984
    %v1017 = vunpack.c.l.b16 %v985
    %v1018 = vpack.c.b16 %v1003, %v1002
    %v1019 = vpack.c.b16 %v1005, %v1004
    %v1020 = vpack.c.b16 %v1007, %v1006
    %v1021 = vpack.c.b16 %v1009, %v1008
    %v1022 = vpack.c.b16 %v1011, %v1010
    %v1023 = vpack.c.b16 %v1013, %v1012
    %v1024 = vpack.c.b16 %v1015, %v1014
    %v1025 = vpack.c.b16 %v1017, %v1016
    %1034 = vmatpush.bf16.msra.mxu0 %v1025
    %1035 = vmatpush.bf16.msra.mxu0 %v1024
    %1036 = vmatpush.bf16.msra.mxu0 %v1023
    %1037 = vmatpush.bf16.msra.mxu0 %v1022
    %1038 = vmatpush.bf16.msra.mxu0 %v1021
    %1039 = vmatpush.bf16.msra.mxu0 %v1020
    %1040 = vmatpush.bf16.msra.mxu0 %v1019
    %1041 = vmatpush.bf16.msra.mxu0 %v1018
    %1042 = vmatmul.bf16.gmra.mxu0 %v968
    %v1043 = vpop.f32.mrf.mxu0
    %v1044 = vadd.f32 0.0, %v1043
    %v1045 = vpop.f32.mrf.mxu0
    %1046 = vdwg.mxu0
    %v1047 = vadd.f32 %v942, %v1044
    %v1048 = vrot.slane %v1047, 4
    %v1049 = vadd.f32 %v1047, %v1048
    %v1050 = vrot.slane %v1049, 2
    %v1051 = vadd.f32 %v1049, %v1050
    %v1052 = vrot.slane %v1051, 1
    %v1053 = vadd.f32 %v1051, %v1052
    %v1054 = vrcp.pop 8.0
    %v1055 = vmul.f32 8.0, %v1054
    %v1056 = vsub.f32 1.0, %v1055
    %v1057 = vmul.f32 %v1054, %v1056
    %v1058 = vadd.f32 %v1054, %v1057
    %vm1059 = vweird.f32 %v1054
    %v1060 = vsel %vm1059, %v1054, %v1058
    %v1061 = vmul.f32 %v1053, %v1060
    %v1062 = vsub.f32 %v1047, %v1061
    %v1063 = vmul.f32 %v1062, %v1062
    %v1064 = vrot.slane %v1063, 4
    %v1065 = vadd.f32 %v1063, %v1064
    %v1066 = vrot.slane %v1065, 2
    %v1067 = vadd.f32 %v1065, %v1066
    %v1068 = vrot.slane %v1067, 1
    %v1069 = vadd.f32 %v1067, %v1068
    %v1070 = vmul.f32 %v1069, %v1060
    %s1071 = scalar_lea.vmem %s2, 1
    %v1072 = vld [vmem:[%s1071] sm:$0x1]
    %v1073 = vadd.f32 %v1070, 1e-05
    %v1074 = vrsqrt.pop %v1073
    %v1075 = vmul.f32 %v1074, %v1073
    %v1076 = vmul.f32 %v1075, %v1074
    %v1077 = vmul.f32 0.5, %v1076
    %v1078 = vsub.f32 1.5, %v1077
    %v1079 = vmul.f32 %v1074, %v1078
    %vm1080 = vweird.f32 %v1073
    %vm1081 = vweird.f32 %v1074
    %vm1082 = vmor %vm1080, %vm1081
    %v1083 = vsel %vm1082, %v1074, %v1079
    %v1084 = vmul.f32 %v1072, %v1083
    %s1085 = scalar_lea.vmem %s3, 1
    %v1086 = vld [vmem:[%s1085] sm:$0x1]
    %v1087 = vmul.f32 %v1061, %v1084
    %v1088 = vsub.f32 %v1086, %v1087
    %v1090 = vperm.slane %v1084, 0
    %v1092 = vmul.f32 %v1047, %v1090
    %v1094 = vperm.slane %v1088, 0
    %v1096 = vadd.f32 %v1092, %v1094
    %v1097 = vmax.f32 %v1096, 0.0
    %v1098 = vld [vmem:[%s6] sm:$0xff]
    %vm1099 = vcmask 64512
    %v1101 = vsel %vm1099, %v1098, 0
    %1103 = vmatpush.msra.mxu0 0.0
    %1104 = vmatpush.msra.mxu0 0.0
    %1105 = vmatpush.msra.mxu0 0.0
    %1106 = vmatpush.msra.mxu0 0.0
    %1107 = vmatpush.msra.mxu0 0.0
    %1108 = vmatpush.msra.mxu0 0.0
    %1109 = vmatpush.msra.mxu0 0.0
    %1110 = vmatpush.msra.mxu0 0.0
    %1111 = vmatpush.msra.mxu0 0.0
    %1112 = vmatpush.msra.mxu0 0.0
    %1113 = vmatpush.msra.mxu0 0.0
    %1114 = vmatpush.msra.mxu0 0.0
    %1115 = vmatpush.msra.mxu0 0.0
    %1116 = vmatpush.msra.mxu0 0.0
    %1117 = vmatpush.msra.mxu0 0.0
    %1118 = vmatpush.msra.mxu0 %v1097
    %1119 = vmatmul.f32.gmra.mxu0 %v1101
    %v1120 = vpop.f32.mrf.mxu0
    %v1121 = vadd.f32 0.0, %v1120
    %1122 = vdwg.mxu0
    %v1123 = vpack.c.bf16 %v1121, %v1121
    %s1124 = scalar_lea.vmem %s1, 512
    %v1125 = vld [vmem:[%s1124] sm:$0xf]
    %v1126 = vld [vmem:[%s1124 + $0x4] sm:$0xf]
    %v1127 = vld [vmem:[%s1124 + $0x8] sm:$0xf]
    %v1128 = vld [vmem:[%s1124 + $0xc] sm:$0xf]
    %v1129 = vld [vmem:[%s1124 + $0x10] sm:$0xf]
    %v1130 = vld [vmem:[%s1124 + $0x14] sm:$0xf]
    %v1131 = vld [vmem:[%s1124 + $0x18] sm:$0xf]
    %v1132 = vld [vmem:[%s1124 + $0x1c] sm:$0xf]
    %v1133 = vld [vmem:[%s1124 + $0x20] sm:$0xf]
    %v1134 = vld [vmem:[%s1124 + $0x24] sm:$0xf]
    %v1135 = vld [vmem:[%s1124 + $0x28] sm:$0xf]
    %v1136 = vld [vmem:[%s1124 + $0x2c] sm:$0xf]
    %v1137 = vld [vmem:[%s1124 + $0x30] sm:$0xf]
    %v1138 = vld [vmem:[%s1124 + $0x34] sm:$0xf]
    %v1139 = vld [vmem:[%s1124 + $0x38] sm:$0xf]
    %v1140 = vld [vmem:[%s1124 + $0x3c] sm:$0xf]
    %s1141 = scalar_lea.vmem %s6, 8
    %v1142 = vld [vmem:[%s1141] sm:$0xff]
    %v1144 = vsel %vm1099, %v1142, 0
    %1146 = vmatpush.msra.mxu0 0.0
    %1147 = vmatpush.msra.mxu0 0.0
    %1148 = vmatpush.msra.mxu0 0.0
    %1149 = vmatpush.msra.mxu0 0.0
    %1150 = vmatpush.msra.mxu0 0.0
    %1151 = vmatpush.msra.mxu0 0.0
    %1152 = vmatpush.msra.mxu0 0.0
    %1153 = vmatpush.msra.mxu0 0.0
    %1154 = vmatpush.msra.mxu0 0.0
    %1155 = vmatpush.msra.mxu0 0.0
    %1156 = vmatpush.msra.mxu0 0.0
    %1157 = vmatpush.msra.mxu0 0.0
    %1158 = vmatpush.msra.mxu0 0.0
    %1159 = vmatpush.msra.mxu0 0.0
    %1160 = vmatpush.msra.mxu0 0.0
    %1161 = vmatpush.msra.mxu0 %v1097
    %1162 = vmatmul.f32.gmra.mxu0 %v1144
    %v1163 = vpop.f32.mrf.mxu0
    %v1164 = vadd.f32 0.0, %v1163
    %1165 = vdwg.mxu0
    %v1166 = vpack.c.bf16 %v1164, %v1164
    %s1167 = scalar_lea.vmem %s1, 576
    %v1168 = vld [vmem:[%s1167] sm:$0xf]
    %v1169 = vld [vmem:[%s1167 + $0x4] sm:$0xf]
    %v1170 = vld [vmem:[%s1167 + $0x8] sm:$0xf]
    %v1171 = vld [vmem:[%s1167 + $0xc] sm:$0xf]
    %v1172 = vld [vmem:[%s1167 + $0x10] sm:$0xf]
    %v1173 = vld [vmem:[%s1167 + $0x14] sm:$0xf]
    %v1174 = vld [vmem:[%s1167 + $0x18] sm:$0xf]
    %v1175 = vld [vmem:[%s1167 + $0x1c] sm:$0xf]
    %v1176 = vld [vmem:[%s1167 + $0x20] sm:$0xf]
    %v1177 = vld [vmem:[%s1167 + $0x24] sm:$0xf]
    %v1178 = vld [vmem:[%s1167 + $0x28] sm:$0xf]
    %v1179 = vld [vmem:[%s1167 + $0x2c] sm:$0xf]
    %v1180 = vld [vmem:[%s1167 + $0x30] sm:$0xf]
    %v1181 = vld [vmem:[%s1167 + $0x34] sm:$0xf]
    %v1182 = vld [vmem:[%s1167 + $0x38] sm:$0xf]
    %v1183 = vld [vmem:[%s1167 + $0x3c] sm:$0xf]
    %v1200 = vunpack.c.l.b16 %v1168
    %v1201 = vunpack.c.l.b16 %v1169
    %v1202 = vunpack.c.l.b16 %v1170
    %v1203 = vunpack.c.l.b16 %v1171
    %v1204 = vunpack.c.l.b16 %v1172
    %v1205 = vunpack.c.l.b16 %v1173
    %v1206 = vunpack.c.l.b16 %v1174
    %v1207 = vunpack.c.l.b16 %v1175
    %v1208 = vunpack.c.l.b16 %v1176
    %v1209 = vunpack.c.l.b16 %v1177
    %v1210 = vunpack.c.l.b16 %v1178
    %v1211 = vunpack.c.l.b16 %v1179
    %v1212 = vunpack.c.l.b16 %v1180
    %v1213 = vunpack.c.l.b16 %v1181
    %v1214 = vunpack.c.l.b16 %v1182
    %v1215 = vunpack.c.l.b16 %v1183
    %v1216 = vpack.c.b16 %v1201, %v1200
    %v1217 = vpack.c.b16 %v1203, %v1202
    %v1218 = vpack.c.b16 %v1205, %v1204
    %v1219 = vpack.c.b16 %v1207, %v1206
    %v1220 = vpack.c.b16 %v1209, %v1208
    %v1221 = vpack.c.b16 %v1211, %v1210
    %v1222 = vpack.c.b16 %v1213, %v1212
    %v1223 = vpack.c.b16 %v1215, %v1214
    %1232 = vmatpush.bf16.msra.mxu0 %v1223
    %1233 = vmatpush.bf16.msra.mxu0 %v1222
    %1234 = vmatpush.bf16.msra.mxu0 %v1221
    %1235 = vmatpush.bf16.msra.mxu0 %v1220
    %1236 = vmatpush.bf16.msra.mxu0 %v1219
    %1237 = vmatpush.bf16.msra.mxu0 %v1218
    %1238 = vmatpush.bf16.msra.mxu0 %v1217
    %1239 = vmatpush.bf16.msra.mxu0 %v1216
    %1240 = vmatmul.bf16.gmra.mxu0 %v1166
    %v1241 = vpop.f32.mrf.mxu0
    %v1242 = vadd.f32 0.0, %v1241
    %v1243 = vpop.f32.mrf.mxu0
    %1244 = vdwg.mxu0
    %v1261 = vunpack.c.l.b16 %v1125
    %v1262 = vunpack.c.l.b16 %v1126
    %v1263 = vunpack.c.l.b16 %v1127
    %v1264 = vunpack.c.l.b16 %v1128
    %v1265 = vunpack.c.l.b16 %v1129
    %v1266 = vunpack.c.l.b16 %v1130
    %v1267 = vunpack.c.l.b16 %v1131
    %v1268 = vunpack.c.l.b16 %v1132
    %v1269 = vunpack.c.l.b16 %v1133
    %v1270 = vunpack.c.l.b16 %v1134
    %v1271 = vunpack.c.l.b16 %v1135
    %v1272 = vunpack.c.l.b16 %v1136
    %v1273 = vunpack.c.l.b16 %v1137
    %v1274 = vunpack.c.l.b16 %v1138
    %v1275 = vunpack.c.l.b16 %v1139
    %v1276 = vunpack.c.l.b16 %v1140
    %v1277 = vpack.c.b16 %v1262, %v1261
    %v1278 = vpack.c.b16 %v1264, %v1263
    %v1279 = vpack.c.b16 %v1266, %v1265
    %v1280 = vpack.c.b16 %v1268, %v1267
    %v1281 = vpack.c.b16 %v1270, %v1269
    %v1282 = vpack.c.b16 %v1272, %v1271
    %v1283 = vpack.c.b16 %v1274, %v1273
    %v1284 = vpack.c.b16 %v1276, %v1275
    %1293 = vmatpush.bf16.msra.mxu0 %v1284
    %1294 = vmatpush.bf16.msra.mxu0 %v1283
    %1295 = vmatpush.bf16.msra.mxu0 %v1282
    %1296 = vmatpush.bf16.msra.mxu0 %v1281
    %1297 = vmatpush.bf16.msra.mxu0 %v1280
    %1298 = vmatpush.bf16.msra.mxu0 %v1279
    %1299 = vmatpush.bf16.msra.mxu0 %v1278
    %1300 = vmatpush.bf16.msra.mxu0 %v1277
    %1301 = vmatmul.bf16.gmra.mxu0 %v1123
    %v1302 = vpop.f32.mrf.mxu0
    %v1303 = vadd.f32 %v1242, %v1302
    %v1304 = vpop.f32.mrf.mxu0
    %1305 = vdwg.mxu0
    %s1306 = scalar_lea.vmem %s6, 16
    %v1307 = vld [vmem:[%s1306] sm:$0xff]
    %v1309 = vsel %vm1099, %v1307, 0
    %1311 = vmatpush.msra.mxu0 0.0
    %1312 = vmatpush.msra.mxu0 0.0
    %1313 = vmatpush.msra.mxu0 0.0
    %1314 = vmatpush.msra.mxu0 0.0
    %1315 = vmatpush.msra.mxu0 0.0
    %1316 = vmatpush.msra.mxu0 0.0
    %1317 = vmatpush.msra.mxu0 0.0
    %1318 = vmatpush.msra.mxu0 0.0
    %1319 = vmatpush.msra.mxu0 0.0
    %1320 = vmatpush.msra.mxu0 0.0
    %1321 = vmatpush.msra.mxu0 0.0
    %1322 = vmatpush.msra.mxu0 0.0
    %1323 = vmatpush.msra.mxu0 0.0
    %1324 = vmatpush.msra.mxu0 0.0
    %1325 = vmatpush.msra.mxu0 0.0
    %1326 = vmatpush.msra.mxu0 %v1097
    %1327 = vmatmul.f32.gmra.mxu0 %v1309
    %v1328 = vpop.f32.mrf.mxu0
    %v1329 = vadd.f32 0.0, %v1328
    %1330 = vdwg.mxu0
    %v1331 = vpack.c.bf16 %v1329, %v1329
    %s1332 = scalar_lea.vmem %s1, 640
    %v1333 = vld [vmem:[%s1332] sm:$0xf]
    %v1334 = vld [vmem:[%s1332 + $0x4] sm:$0xf]
    %v1335 = vld [vmem:[%s1332 + $0x8] sm:$0xf]
    %v1336 = vld [vmem:[%s1332 + $0xc] sm:$0xf]
    %v1337 = vld [vmem:[%s1332 + $0x10] sm:$0xf]
    %v1338 = vld [vmem:[%s1332 + $0x14] sm:$0xf]
    %v1339 = vld [vmem:[%s1332 + $0x18] sm:$0xf]
    %v1340 = vld [vmem:[%s1332 + $0x1c] sm:$0xf]
    %v1341 = vld [vmem:[%s1332 + $0x20] sm:$0xf]
    %v1342 = vld [vmem:[%s1332 + $0x24] sm:$0xf]
    %v1343 = vld [vmem:[%s1332 + $0x28] sm:$0xf]
    %v1344 = vld [vmem:[%s1332 + $0x2c] sm:$0xf]
    %v1345 = vld [vmem:[%s1332 + $0x30] sm:$0xf]
    %v1346 = vld [vmem:[%s1332 + $0x34] sm:$0xf]
    %v1347 = vld [vmem:[%s1332 + $0x38] sm:$0xf]
    %v1348 = vld [vmem:[%s1332 + $0x3c] sm:$0xf]
    %v1365 = vunpack.c.l.b16 %v1333
    %v1366 = vunpack.c.l.b16 %v1334
    %v1367 = vunpack.c.l.b16 %v1335
    %v1368 = vunpack.c.l.b16 %v1336
    %v1369 = vunpack.c.l.b16 %v1337
    %v1370 = vunpack.c.l.b16 %v1338
    %v1371 = vunpack.c.l.b16 %v1339
    %v1372 = vunpack.c.l.b16 %v1340
    %v1373 = vunpack.c.l.b16 %v1341
    %v1374 = vunpack.c.l.b16 %v1342
    %v1375 = vunpack.c.l.b16 %v1343
    %v1376 = vunpack.c.l.b16 %v1344
    %v1377 = vunpack.c.l.b16 %v1345
    %v1378 = vunpack.c.l.b16 %v1346
    %v1379 = vunpack.c.l.b16 %v1347
    %v1380 = vunpack.c.l.b16 %v1348
    %v1381 = vpack.c.b16 %v1366, %v1365
    %v1382 = vpack.c.b16 %v1368, %v1367
    %v1383 = vpack.c.b16 %v1370, %v1369
    %v1384 = vpack.c.b16 %v1372, %v1371
    %v1385 = vpack.c.b16 %v1374, %v1373
    %v1386 = vpack.c.b16 %v1376, %v1375
    %v1387 = vpack.c.b16 %v1378, %v1377
    %v1388 = vpack.c.b16 %v1380, %v1379
    %1397 = vmatpush.bf16.msra.mxu0 %v1388
    %1398 = vmatpush.bf16.msra.mxu0 %v1387
    %1399 = vmatpush.bf16.msra.mxu0 %v1386
    %1400 = vmatpush.bf16.msra.mxu0 %v1385
    %1401 = vmatpush.bf16.msra.mxu0 %v1384
    %1402 = vmatpush.bf16.msra.mxu0 %v1383
    %1403 = vmatpush.bf16.msra.mxu0 %v1382
    %1404 = vmatpush.bf16.msra.mxu0 %v1381
    %1405 = vmatmul.bf16.gmra.mxu0 %v1331
    %v1406 = vpop.f32.mrf.mxu0
    %v1407 = vadd.f32 0.0, %v1406
    %v1408 = vpop.f32.mrf.mxu0
    %1409 = vdwg.mxu0
    %v1410 = vadd.f32 %v1303, %v1407
    %s1411 = scalar_lea.vmem %s6, 24
    %v1412 = vld [vmem:[%s1411] sm:$0xff]
    %v1414 = vsel %vm1099, %v1412, 0
    %1416 = vmatpush.msra.mxu0 0.0
    %1417 = vmatpush.msra.mxu0 0.0
    %1418 = vmatpush.msra.mxu0 0.0
    %1419 = vmatpush.msra.mxu0 0.0
    %1420 = vmatpush.msra.mxu0 0.0
    %1421 = vmatpush.msra.mxu0 0.0
    %1422 = vmatpush.msra.mxu0 0.0
    %1423 = vmatpush.msra.mxu0 0.0
    %1424 = vmatpush.msra.mxu0 0.0
    %1425 = vmatpush.msra.mxu0 0.0
    %1426 = vmatpush.msra.mxu0 0.0
    %1427 = vmatpush.msra.mxu0 0.0
    %1428 = vmatpush.msra.mxu0 0.0
    %1429 = vmatpush.msra.mxu0 0.0
    %1430 = vmatpush.msra.mxu0 0.0
    %1431 = vmatpush.msra.mxu0 %v1097
    %1432 = vmatmul.f32.gmra.mxu0 %v1414
    %v1433 = vpop.f32.mrf.mxu0
    %v1434 = vadd.f32 0.0, %v1433
    %1435 = vdwg.mxu0
    %v1436 = vpack.c.bf16 %v1434, %v1434
    %s1437 = scalar_lea.vmem %s1, 704
    %v1438 = vld [vmem:[%s1437] sm:$0xf]
    %v1439 = vld [vmem:[%s1437 + $0x4] sm:$0xf]
    %v1440 = vld [vmem:[%s1437 + $0x8] sm:$0xf]
    %v1441 = vld [vmem:[%s1437 + $0xc] sm:$0xf]
    %v1442 = vld [vmem:[%s1437 + $0x10] sm:$0xf]
    %v1443 = vld [vmem:[%s1437 + $0x14] sm:$0xf]
    %v1444 = vld [vmem:[%s1437 + $0x18] sm:$0xf]
    %v1445 = vld [vmem:[%s1437 + $0x1c] sm:$0xf]
    %v1446 = vld [vmem:[%s1437 + $0x20] sm:$0xf]
    %v1447 = vld [vmem:[%s1437 + $0x24] sm:$0xf]
    %v1448 = vld [vmem:[%s1437 + $0x28] sm:$0xf]
    %v1449 = vld [vmem:[%s1437 + $0x2c] sm:$0xf]
    %v1450 = vld [vmem:[%s1437 + $0x30] sm:$0xf]
    %v1451 = vld [vmem:[%s1437 + $0x34] sm:$0xf]
    %v1452 = vld [vmem:[%s1437 + $0x38] sm:$0xf]
    %v1453 = vld [vmem:[%s1437 + $0x3c] sm:$0xf]
    %v1470 = vunpack.c.l.b16 %v1438
    %v1471 = vunpack.c.l.b16 %v1439
    %v1472 = vunpack.c.l.b16 %v1440
    %v1473 = vunpack.c.l.b16 %v1441
    %v1474 = vunpack.c.l.b16 %v1442
    %v1475 = vunpack.c.l.b16 %v1443
    %v1476 = vunpack.c.l.b16 %v1444
    %v1477 = vunpack.c.l.b16 %v1445
    %v1478 = vunpack.c.l.b16 %v1446
    %v1479 = vunpack.c.l.b16 %v1447
    %v1480 = vunpack.c.l.b16 %v1448
    %v1481 = vunpack.c.l.b16 %v1449
    %v1482 = vunpack.c.l.b16 %v1450
    %v1483 = vunpack.c.l.b16 %v1451
    %v1484 = vunpack.c.l.b16 %v1452
    %v1485 = vunpack.c.l.b16 %v1453
    %v1486 = vpack.c.b16 %v1471, %v1470
    %v1487 = vpack.c.b16 %v1473, %v1472
    %v1488 = vpack.c.b16 %v1475, %v1474
    %v1489 = vpack.c.b16 %v1477, %v1476
    %v1490 = vpack.c.b16 %v1479, %v1478
    %v1491 = vpack.c.b16 %v1481, %v1480
    %v1492 = vpack.c.b16 %v1483, %v1482
    %v1493 = vpack.c.b16 %v1485, %v1484
    %1502 = vmatpush.bf16.msra.mxu0 %v1493
    %1503 = vmatpush.bf16.msra.mxu0 %v1492
    %1504 = vmatpush.bf16.msra.mxu0 %v1491
    %1505 = vmatpush.bf16.msra.mxu0 %v1490
    %1506 = vmatpush.bf16.msra.mxu0 %v1489
    %1507 = vmatpush.bf16.msra.mxu0 %v1488
    %1508 = vmatpush.bf16.msra.mxu0 %v1487
    %1509 = vmatpush.bf16.msra.mxu0 %v1486
    %1510 = vmatmul.bf16.gmra.mxu0 %v1436
    %v1511 = vpop.f32.mrf.mxu0
    %v1512 = vadd.f32 0.0, %v1511
    %v1513 = vpop.f32.mrf.mxu0
    %1514 = vdwg.mxu0
    %v1515 = vadd.f32 %v1410, %v1512
    %v1516 = vrot.slane %v1515, 4
    %v1517 = vadd.f32 %v1515, %v1516
    %v1518 = vrot.slane %v1517, 2
    %v1519 = vadd.f32 %v1517, %v1518
    %v1520 = vrot.slane %v1519, 1
    %v1521 = vadd.f32 %v1519, %v1520
    %v1522 = vmul.f32 %v1521, %v1060
    %v1523 = vsub.f32 %v1515, %v1522
    %v1524 = vmul.f32 %v1523, %v1523
    %v1525 = vrot.slane %v1524, 4
    %v1526 = vadd.f32 %v1524, %v1525
    %v1527 = vrot.slane %v1526, 2
    %v1528 = vadd.f32 %v1526, %v1527
    %v1529 = vrot.slane %v1528, 1
    %v1530 = vadd.f32 %v1528, %v1529
    %v1531 = vmul.f32 %v1530, %v1060
    %s1532 = scalar_lea.vmem %s2, 2
    %v1533 = vld [vmem:[%s1532] sm:$0x1]
    %v1534 = vadd.f32 %v1531, 1e-05
    %v1535 = vrsqrt.pop %v1534
    %v1536 = vmul.f32 %v1535, %v1534
    %v1537 = vmul.f32 %v1536, %v1535
    %v1538 = vmul.f32 0.5, %v1537
    %v1539 = vsub.f32 1.5, %v1538
    %v1540 = vmul.f32 %v1535, %v1539
    %vm1541 = vweird.f32 %v1534
    %vm1542 = vweird.f32 %v1535
    %vm1543 = vmor %vm1541, %vm1542
    %v1544 = vsel %vm1543, %v1535, %v1540
    %v1545 = vmul.f32 %v1533, %v1544
    %s1546 = scalar_lea.vmem %s3, 2
    %v1547 = vld [vmem:[%s1546] sm:$0x1]
    %v1548 = vmul.f32 %v1522, %v1545
    %v1549 = vsub.f32 %v1547, %v1548
    %v1551 = vperm.slane %v1545, 0
    %v1553 = vmul.f32 %v1515, %v1551
    %v1555 = vperm.slane %v1549, 0
    %v1557 = vadd.f32 %v1553, %v1555
    %v1558 = vmax.f32 %v1557, 0.0
    %v1559 = vld [vmem:[%s7] sm:$0xff]
    %v1560 = vld [vmem:[%s7 + $0x8] sm:$0xff]
    %v1561 = vld [vmem:[%s7 + $0x10] sm:$0x3]
    %v1563 = vsel %vm1099, %v1559, 0
    %v1566 = vsel %vm1099, %v1560, 0
    %v1569 = vsel %vm1099, %v1561, 0
    %1571 = vmatpush.msra.mxu0 0.0
    %1572 = vmatpush.msra.mxu0 0.0
    %1573 = vmatpush.msra.mxu0 0.0
    %1574 = vmatpush.msra.mxu0 0.0
    %1575 = vmatpush.msra.mxu0 0.0
    %1576 = vmatpush.msra.mxu0 0.0
    %1577 = vmatpush.msra.mxu0 0.0
    %1578 = vmatpush.msra.mxu0 0.0
    %1579 = vmatpush.msra.mxu0 0.0
    %1580 = vmatpush.msra.mxu0 0.0
    %1581 = vmatpush.msra.mxu0 0.0
    %1582 = vmatpush.msra.mxu0 0.0
    %1583 = vmatpush.msra.mxu0 0.0
    %1584 = vmatpush.msra.mxu0 0.0
    %1585 = vmatpush.msra.mxu0 0.0
    %1586 = vmatpush.msra.mxu0 %v1558
    %1587 = vmatmul.f32.gmra.mxu0 %v1563
    %v1588 = vpop.f32.mrf.mxu0
    %v1589 = vadd.f32 0.0, %v1588
    %1590 = vmatmul.f32.gmra.mxu0 %v1566
    %v1591 = vpop.f32.mrf.mxu0
    %v1592 = vadd.f32 0.0, %v1591
    %1593 = vmatmul.f32.gmra.mxu0 %v1569
    %v1594 = vpop.f32.mrf.mxu0
    %v1595 = vadd.f32 0.0, %v1594
    %1596 = vdwg.mxu0
    %v1597 = vpack.c.bf16 %v1592, %v1589
    %v1598 = vpack.c.bf16 %v1595, %v1595
    %s1599 = scalar_lea.vmem %s1, 768
    %v1600 = vld [vmem:[%s1599] sm:$0xf]
    %v1601 = vld [vmem:[%s1599 + $0x4] sm:$0xf]
    %v1602 = vld [vmem:[%s1599 + $0x8] sm:$0xf]
    %v1603 = vld [vmem:[%s1599 + $0xc] sm:$0xf]
    %v1604 = vld [vmem:[%s1599 + $0x10] sm:$0xf]
    %v1605 = vld [vmem:[%s1599 + $0x14] sm:$0xf]
    %v1606 = vld [vmem:[%s1599 + $0x18] sm:$0xf]
    %v1607 = vld [vmem:[%s1599 + $0x1c] sm:$0xf]
    %v1608 = vld [vmem:[%s1599 + $0x20] sm:$0xf]
    %v1609 = vld [vmem:[%s1599 + $0x24] sm:$0xf]
    %v1610 = vld [vmem:[%s1599 + $0x28] sm:$0xf]
    %v1611 = vld [vmem:[%s1599 + $0x2c] sm:$0xf]
    %v1612 = vld [vmem:[%s1599 + $0x30] sm:$0xf]
    %v1613 = vld [vmem:[%s1599 + $0x34] sm:$0xf]
    %v1614 = vld [vmem:[%s1599 + $0x38] sm:$0xf]
    %v1615 = vld [vmem:[%s1599 + $0x3c] sm:$0xf]
    %s1616 = scalar_lea.vmem %s7, 24
    %v1617 = vld [vmem:[%s1616] sm:$0xff]
    %v1618 = vld [vmem:[%s1616 + $0x8] sm:$0xff]
    %v1619 = vld [vmem:[%s1616 + $0x10] sm:$0x3]
    %v1621 = vsel %vm1099, %v1617, 0
    %v1624 = vsel %vm1099, %v1618, 0
    %v1627 = vsel %vm1099, %v1619, 0
    %1629 = vmatpush.msra.mxu0 0.0
    %1630 = vmatpush.msra.mxu0 0.0
    %1631 = vmatpush.msra.mxu0 0.0
    %1632 = vmatpush.msra.mxu0 0.0
    %1633 = vmatpush.msra.mxu0 0.0
    %1634 = vmatpush.msra.mxu0 0.0
    %1635 = vmatpush.msra.mxu0 0.0
    %1636 = vmatpush.msra.mxu0 0.0
    %1637 = vmatpush.msra.mxu0 0.0
    %1638 = vmatpush.msra.mxu0 0.0
    %1639 = vmatpush.msra.mxu0 0.0
    %1640 = vmatpush.msra.mxu0 0.0
    %1641 = vmatpush.msra.mxu0 0.0
    %1642 = vmatpush.msra.mxu0 0.0
    %1643 = vmatpush.msra.mxu0 0.0
    %1644 = vmatpush.msra.mxu0 %v1558
    %1645 = vmatmul.f32.gmra.mxu0 %v1621
    %v1646 = vpop.f32.mrf.mxu0
    %v1647 = vadd.f32 0.0, %v1646
    %1648 = vmatmul.f32.gmra.mxu0 %v1624
    %v1649 = vpop.f32.mrf.mxu0
    %v1650 = vadd.f32 0.0, %v1649
    %1651 = vmatmul.f32.gmra.mxu0 %v1627
    %v1652 = vpop.f32.mrf.mxu0
    %v1653 = vadd.f32 0.0, %v1652
    %1654 = vdwg.mxu0
    %v1655 = vpack.c.bf16 %v1650, %v1647
    %v1656 = vpack.c.bf16 %v1653, %v1653
    %s1657 = scalar_lea.vmem %s1, 832
    %v1658 = vld [vmem:[%s1657] sm:$0xf]
    %v1659 = vld [vmem:[%s1657 + $0x4] sm:$0xf]
    %v1660 = vld [vmem:[%s1657 + $0x8] sm:$0xf]
    %v1661 = vld [vmem:[%s1657 + $0xc] sm:$0xf]
    %v1662 = vld [vmem:[%s1657 + $0x10] sm:$0xf]
    %v1663 = vld [vmem:[%s1657 + $0x14] sm:$0xf]
    %v1664 = vld [vmem:[%s1657 + $0x18] sm:$0xf]
    %v1665 = vld [vmem:[%s1657 + $0x1c] sm:$0xf]
    %v1666 = vld [vmem:[%s1657 + $0x20] sm:$0xf]
    %v1667 = vld [vmem:[%s1657 + $0x24] sm:$0xf]
    %v1668 = vld [vmem:[%s1657 + $0x28] sm:$0xf]
    %v1669 = vld [vmem:[%s1657 + $0x2c] sm:$0xf]
    %v1670 = vld [vmem:[%s1657 + $0x30] sm:$0xf]
    %v1671 = vld [vmem:[%s1657 + $0x34] sm:$0xf]
    %v1672 = vld [vmem:[%s1657 + $0x38] sm:$0xf]
    %v1673 = vld [vmem:[%s1657 + $0x3c] sm:$0xf]
    %v1690 = vunpack.c.l.b16 %v1658
    %v1691 = vunpack.c.l.b16 %v1659
    %v1692 = vunpack.c.l.b16 %v1660
    %v1693 = vunpack.c.l.b16 %v1661
    %v1694 = vunpack.c.l.b16 %v1662
    %v1695 = vunpack.c.l.b16 %v1663
    %v1696 = vunpack.c.l.b16 %v1664
    %v1697 = vunpack.c.l.b16 %v1665
    %v1698 = vunpack.c.l.b16 %v1666
    %v1699 = vunpack.c.l.b16 %v1667
    %v1700 = vunpack.c.l.b16 %v1668
    %v1701 = vunpack.c.l.b16 %v1669
    %v1702 = vunpack.c.l.b16 %v1670
    %v1703 = vunpack.c.l.b16 %v1671
    %v1704 = vunpack.c.l.b16 %v1672
    %v1705 = vunpack.c.l.b16 %v1673
    %v1706 = vpack.c.b16 %v1691, %v1690
    %v1707 = vpack.c.b16 %v1693, %v1692
    %v1708 = vpack.c.b16 %v1695, %v1694
    %v1709 = vpack.c.b16 %v1697, %v1696
    %v1710 = vpack.c.b16 %v1699, %v1698
    %v1711 = vpack.c.b16 %v1701, %v1700
    %v1712 = vpack.c.b16 %v1703, %v1702
    %v1713 = vpack.c.b16 %v1705, %v1704
    %1722 = vmatpush.bf16.msra.mxu0 %v1713
    %1723 = vmatpush.bf16.msra.mxu0 %v1712
    %1724 = vmatpush.bf16.msra.mxu0 %v1711
    %1725 = vmatpush.bf16.msra.mxu0 %v1710
    %1726 = vmatpush.bf16.msra.mxu0 %v1709
    %1727 = vmatpush.bf16.msra.mxu0 %v1708
    %1728 = vmatpush.bf16.msra.mxu0 %v1707
    %1729 = vmatpush.bf16.msra.mxu0 %v1706
    %1730 = vmatmul.bf16.gmra.mxu0 %v1655
    %v1731 = vpop.f32.mrf.mxu0
    %v1732 = vadd.f32 0.0, %v1731
    %v1733 = vpop.f32.mrf.mxu0
    %v1734 = vadd.f32 0.0, %v1733
    %1735 = vmatmul.bf16.gmra.mxu0 %v1656
    %v1736 = vpop.f32.mrf.mxu0
    %v1737 = vadd.f32 0.0, %v1736
    %v1738 = vpop.f32.mrf.mxu0
    %1739 = vdwg.mxu0
    %v1756 = vunpack.c.l.b16 %v1600
    %v1757 = vunpack.c.l.b16 %v1601
    %v1758 = vunpack.c.l.b16 %v1602
    %v1759 = vunpack.c.l.b16 %v1603
    %v1760 = vunpack.c.l.b16 %v1604
    %v1761 = vunpack.c.l.b16 %v1605
    %v1762 = vunpack.c.l.b16 %v1606
    %v1763 = vunpack.c.l.b16 %v1607
    %v1764 = vunpack.c.l.b16 %v1608
    %v1765 = vunpack.c.l.b16 %v1609
    %v1766 = vunpack.c.l.b16 %v1610
    %v1767 = vunpack.c.l.b16 %v1611
    %v1768 = vunpack.c.l.b16 %v1612
    %v1769 = vunpack.c.l.b16 %v1613
    %v1770 = vunpack.c.l.b16 %v1614
    %v1771 = vunpack.c.l.b16 %v1615
    %v1772 = vpack.c.b16 %v1757, %v1756
    %v1773 = vpack.c.b16 %v1759, %v1758
    %v1774 = vpack.c.b16 %v1761, %v1760
    %v1775 = vpack.c.b16 %v1763, %v1762
    %v1776 = vpack.c.b16 %v1765, %v1764
    %v1777 = vpack.c.b16 %v1767, %v1766
    %v1778 = vpack.c.b16 %v1769, %v1768
    %v1779 = vpack.c.b16 %v1771, %v1770
    %1788 = vmatpush.bf16.msra.mxu0 %v1779
    %1789 = vmatpush.bf16.msra.mxu0 %v1778
    %1790 = vmatpush.bf16.msra.mxu0 %v1777
    %1791 = vmatpush.bf16.msra.mxu0 %v1776
    %1792 = vmatpush.bf16.msra.mxu0 %v1775
    %1793 = vmatpush.bf16.msra.mxu0 %v1774
    %1794 = vmatpush.bf16.msra.mxu0 %v1773
    %1795 = vmatpush.bf16.msra.mxu0 %v1772
    %1796 = vmatmul.bf16.gmra.mxu0 %v1597
    %v1797 = vpop.f32.mrf.mxu0
    %v1798 = vadd.f32 %v1732, %v1797
    %v1799 = vpop.f32.mrf.mxu0
    %v1800 = vadd.f32 %v1734, %v1799
    %1801 = vmatmul.bf16.gmra.mxu0 %v1598
    %v1802 = vpop.f32.mrf.mxu0
    %v1803 = vadd.f32 %v1737, %v1802
    %v1804 = vpop.f32.mrf.mxu0
    %1805 = vdwg.mxu0
    %s1806 = scalar_lea.vmem %s7, 48
    %v1807 = vld [vmem:[%s1806] sm:$0xff]
    %v1808 = vld [vmem:[%s1806 + $0x8] sm:$0xff]
    %v1809 = vld [vmem:[%s1806 + $0x10] sm:$0x3]
    %v1811 = vsel %vm1099, %v1807, 0
    %v1814 = vsel %vm1099, %v1808, 0
    %v1817 = vsel %vm1099, %v1809, 0
    %1819 = vmatpush.msra.mxu0 0.0
    %1820 = vmatpush.msra.mxu0 0.0
    %1821 = vmatpush.msra.mxu0 0.0
    %1822 = vmatpush.msra.mxu0 0.0
    %1823 = vmatpush.msra.mxu0 0.0
    %1824 = vmatpush.msra.mxu0 0.0
    %1825 = vmatpush.msra.mxu0 0.0
    %1826 = vmatpush.msra.mxu0 0.0
    %1827 = vmatpush.msra.mxu0 0.0
    %1828 = vmatpush.msra.mxu0 0.0
    %1829 = vmatpush.msra.mxu0 0.0
    %1830 = vmatpush.msra.mxu0 0.0
    %1831 = vmatpush.msra.mxu0 0.0
    %1832 = vmatpush.msra.mxu0 0.0
    %1833 = vmatpush.msra.mxu0 0.0
    %1834 = vmatpush.msra.mxu0 %v1558
    %1835 = vmatmul.f32.gmra.mxu0 %v1811
    %v1836 = vpop.f32.mrf.mxu0
    %v1837 = vadd.f32 0.0, %v1836
    %1838 = vmatmul.f32.gmra.mxu0 %v1814
    %v1839 = vpop.f32.mrf.mxu0
    %v1840 = vadd.f32 0.0, %v1839
    %1841 = vmatmul.f32.gmra.mxu0 %v1817
    %v1842 = vpop.f32.mrf.mxu0
    %v1843 = vadd.f32 0.0, %v1842
    %1844 = vdwg.mxu0
    %v1845 = vpack.c.bf16 %v1840, %v1837
    %v1846 = vpack.c.bf16 %v1843, %v1843
    %s1847 = scalar_lea.vmem %s1, 896
    %v1848 = vld [vmem:[%s1847] sm:$0xf]
    %v1849 = vld [vmem:[%s1847 + $0x4] sm:$0xf]
    %v1850 = vld [vmem:[%s1847 + $0x8] sm:$0xf]
    %v1851 = vld [vmem:[%s1847 + $0xc] sm:$0xf]
    %v1852 = vld [vmem:[%s1847 + $0x10] sm:$0xf]
    %v1853 = vld [vmem:[%s1847 + $0x14] sm:$0xf]
    %v1854 = vld [vmem:[%s1847 + $0x18] sm:$0xf]
    %v1855 = vld [vmem:[%s1847 + $0x1c] sm:$0xf]
    %v1856 = vld [vmem:[%s1847 + $0x20] sm:$0xf]
    %v1857 = vld [vmem:[%s1847 + $0x24] sm:$0xf]
    %v1858 = vld [vmem:[%s1847 + $0x28] sm:$0xf]
    %v1859 = vld [vmem:[%s1847 + $0x2c] sm:$0xf]
    %v1860 = vld [vmem:[%s1847 + $0x30] sm:$0xf]
    %v1861 = vld [vmem:[%s1847 + $0x34] sm:$0xf]
    %v1862 = vld [vmem:[%s1847 + $0x38] sm:$0xf]
    %v1863 = vld [vmem:[%s1847 + $0x3c] sm:$0xf]
    %v1880 = vunpack.c.l.b16 %v1848
    %v1881 = vunpack.c.l.b16 %v1849
    %v1882 = vunpack.c.l.b16 %v1850
    %v1883 = vunpack.c.l.b16 %v1851
    %v1884 = vunpack.c.l.b16 %v1852
    %v1885 = vunpack.c.l.b16 %v1853
    %v1886 = vunpack.c.l.b16 %v1854
    %v1887 = vunpack.c.l.b16 %v1855
    %v1888 = vunpack.c.l.b16 %v1856
    %v1889 = vunpack.c.l.b16 %v1857
    %v1890 = vunpack.c.l.b16 %v1858
    %v1891 = vunpack.c.l.b16 %v1859
    %v1892 = vunpack.c.l.b16 %v1860
    %v1893 = vunpack.c.l.b16 %v1861
    %v1894 = vunpack.c.l.b16 %v1862
    %v1895 = vunpack.c.l.b16 %v1863
    %v1896 = vpack.c.b16 %v1881, %v1880
    %v1897 = vpack.c.b16 %v1883, %v1882
    %v1898 = vpack.c.b16 %v1885, %v1884
    %v1899 = vpack.c.b16 %v1887, %v1886
    %v1900 = vpack.c.b16 %v1889, %v1888
    %v1901 = vpack.c.b16 %v1891, %v1890
    %v1902 = vpack.c.b16 %v1893, %v1892
    %v1903 = vpack.c.b16 %v1895, %v1894
    %1912 = vmatpush.bf16.msra.mxu0 %v1903
    %1913 = vmatpush.bf16.msra.mxu0 %v1902
    %1914 = vmatpush.bf16.msra.mxu0 %v1901
    %1915 = vmatpush.bf16.msra.mxu0 %v1900
    %1916 = vmatpush.bf16.msra.mxu0 %v1899
    %1917 = vmatpush.bf16.msra.mxu0 %v1898
    %1918 = vmatpush.bf16.msra.mxu0 %v1897
    %1919 = vmatpush.bf16.msra.mxu0 %v1896
    %1920 = vmatmul.bf16.gmra.mxu0 %v1845
    %v1921 = vpop.f32.mrf.mxu0
    %v1922 = vadd.f32 0.0, %v1921
    %v1923 = vpop.f32.mrf.mxu0
    %v1924 = vadd.f32 0.0, %v1923
    %1925 = vmatmul.bf16.gmra.mxu0 %v1846
    %v1926 = vpop.f32.mrf.mxu0
    %v1927 = vadd.f32 0.0, %v1926
    %v1928 = vpop.f32.mrf.mxu0
    %1929 = vdwg.mxu0
    %v1930 = vadd.f32 %v1798, %v1922
    %v1931 = vadd.f32 %v1800, %v1924
    %v1932 = vadd.f32 %v1803, %v1927
    %s1933 = scalar_lea.vmem %s7, 72
    %v1934 = vld [vmem:[%s1933] sm:$0xff]
    %v1935 = vld [vmem:[%s1933 + $0x8] sm:$0xff]
    %v1936 = vld [vmem:[%s1933 + $0x10] sm:$0x3]
    %v1938 = vsel %vm1099, %v1934, 0
    %v1941 = vsel %vm1099, %v1935, 0
    %v1944 = vsel %vm1099, %v1936, 0
    %1946 = vmatpush.msra.mxu0 0.0
    %1947 = vmatpush.msra.mxu0 0.0
    %1948 = vmatpush.msra.mxu0 0.0
    %1949 = vmatpush.msra.mxu0 0.0
    %1950 = vmatpush.msra.mxu0 0.0
    %1951 = vmatpush.msra.mxu0 0.0
    %1952 = vmatpush.msra.mxu0 0.0
    %1953 = vmatpush.msra.mxu0 0.0
    %1954 = vmatpush.msra.mxu0 0.0
    %1955 = vmatpush.msra.mxu0 0.0
    %1956 = vmatpush.msra.mxu0 0.0
    %1957 = vmatpush.msra.mxu0 0.0
    %1958 = vmatpush.msra.mxu0 0.0
    %1959 = vmatpush.msra.mxu0 0.0
    %1960 = vmatpush.msra.mxu0 0.0
    %1961 = vmatpush.msra.mxu0 %v1558
    %1962 = vmatmul.f32.gmra.mxu0 %v1938
    %v1963 = vpop.f32.mrf.mxu0
    %v1964 = vadd.f32 0.0, %v1963
    %1965 = vmatmul.f32.gmra.mxu0 %v1941
    %v1966 = vpop.f32.mrf.mxu0
    %v1967 = vadd.f32 0.0, %v1966
    %1968 = vmatmul.f32.gmra.mxu0 %v1944
    %v1969 = vpop.f32.mrf.mxu0
    %v1970 = vadd.f32 0.0, %v1969
    %1971 = vdwg.mxu0
    %v1972 = vpack.c.bf16 %v1967, %v1964
    %v1973 = vpack.c.bf16 %v1970, %v1970
    %s1974 = scalar_lea.vmem %s1, 960
    %v1975 = vld [vmem:[%s1974] sm:$0xf]
    %v1976 = vld [vmem:[%s1974 + $0x4] sm:$0xf]
    %v1977 = vld [vmem:[%s1974 + $0x8] sm:$0xf]
    %v1978 = vld [vmem:[%s1974 + $0xc] sm:$0xf]
    %v1979 = vld [vmem:[%s1974 + $0x10] sm:$0xf]
    %v1980 = vld [vmem:[%s1974 + $0x14] sm:$0xf]
    %v1981 = vld [vmem:[%s1974 + $0x18] sm:$0xf]
    %v1982 = vld [vmem:[%s1974 + $0x1c] sm:$0xf]
    %v1983 = vld [vmem:[%s1974 + $0x20] sm:$0xf]
    %v1984 = vld [vmem:[%s1974 + $0x24] sm:$0xf]
    %v1985 = vld [vmem:[%s1974 + $0x28] sm:$0xf]
    %v1986 = vld [vmem:[%s1974 + $0x2c] sm:$0xf]
    %v1987 = vld [vmem:[%s1974 + $0x30] sm:$0xf]
    %v1988 = vld [vmem:[%s1974 + $0x34] sm:$0xf]
    %v1989 = vld [vmem:[%s1974 + $0x38] sm:$0xf]
    %v1990 = vld [vmem:[%s1974 + $0x3c] sm:$0xf]
    %v2007 = vunpack.c.l.b16 %v1975
    %v2008 = vunpack.c.l.b16 %v1976
    %v2009 = vunpack.c.l.b16 %v1977
    %v2010 = vunpack.c.l.b16 %v1978
    %v2011 = vunpack.c.l.b16 %v1979
    %v2012 = vunpack.c.l.b16 %v1980
    %v2013 = vunpack.c.l.b16 %v1981
    %v2014 = vunpack.c.l.b16 %v1982
    %v2015 = vunpack.c.l.b16 %v1983
    %v2016 = vunpack.c.l.b16 %v1984
    %v2017 = vunpack.c.l.b16 %v1985
    %v2018 = vunpack.c.l.b16 %v1986
    %v2019 = vunpack.c.l.b16 %v1987
    %v2020 = vunpack.c.l.b16 %v1988
    %v2021 = vunpack.c.l.b16 %v1989
    %v2022 = vunpack.c.l.b16 %v1990
    %v2023 = vpack.c.b16 %v2008, %v2007
    %v2024 = vpack.c.b16 %v2010, %v2009
    %v2025 = vpack.c.b16 %v2012, %v2011
    %v2026 = vpack.c.b16 %v2014, %v2013
    %v2027 = vpack.c.b16 %v2016, %v2015
    %v2028 = vpack.c.b16 %v2018, %v2017
    %v2029 = vpack.c.b16 %v2020, %v2019
    %v2030 = vpack.c.b16 %v2022, %v2021
    %2039 = vmatpush.bf16.msra.mxu0 %v2030
    %2040 = vmatpush.bf16.msra.mxu0 %v2029
    %2041 = vmatpush.bf16.msra.mxu0 %v2028
    %2042 = vmatpush.bf16.msra.mxu0 %v2027
    %2043 = vmatpush.bf16.msra.mxu0 %v2026
    %2044 = vmatpush.bf16.msra.mxu0 %v2025
    %2045 = vmatpush.bf16.msra.mxu0 %v2024
    %2046 = vmatpush.bf16.msra.mxu0 %v2023
    %2047 = vmatmul.bf16.gmra.mxu0 %v1972
    %v2048 = vpop.f32.mrf.mxu0
    %v2049 = vadd.f32 0.0, %v2048
    %v2050 = vpop.f32.mrf.mxu0
    %v2051 = vadd.f32 0.0, %v2050
    %2052 = vmatmul.bf16.gmra.mxu0 %v1973
    %v2053 = vpop.f32.mrf.mxu0
    %v2054 = vadd.f32 0.0, %v2053
    %v2055 = vpop.f32.mrf.mxu0
    %2056 = vdwg.mxu0
    %v2057 = vadd.f32 %v1930, %v2049
    %v2058 = vadd.f32 %v1931, %v2051
    %v2059 = vadd.f32 %v1932, %v2054
    %v2060 = vadd.f32 %v2057, %v2058
    %v2061 = vsel %vm563, %v2059, 0.0
    %v2062 = vadd.f32 %v2060, %v2061
    %v2063 = vrot.slane %v2062, 4
    %v2064 = vadd.f32 %v2062, %v2063
    %v2065 = vrot.slane %v2064, 2
    %v2066 = vadd.f32 %v2064, %v2065
    %v2067 = vrot.slane %v2066, 1
    %v2068 = vadd.f32 %v2066, %v2067
    %v2069 = vmul.f32 %v2068, %v578
    %v2070 = vsub.f32 %v2057, %v2069
    %v2071 = vsub.f32 %v2058, %v2069
    %v2072 = vsub.f32 %v2059, %v2069
    %v2073 = vmul.f32 %v2070, %v2070
    %v2074 = vmul.f32 %v2071, %v2071
    %v2075 = vmul.f32 %v2072, %v2072
    %v2076 = vadd.f32 %v2073, %v2074
    %v2077 = vsel %vm563, %v2075, 0.0
    %v2078 = vadd.f32 %v2076, %v2077
    %v2079 = vrot.slane %v2078, 4
    %v2080 = vadd.f32 %v2078, %v2079
    %v2081 = vrot.slane %v2080, 2
    %v2082 = vadd.f32 %v2080, %v2081
    %v2083 = vrot.slane %v2082, 1
    %v2084 = vadd.f32 %v2082, %v2083
    %v2085 = vmul.f32 %v2084, %v578
    %s2086 = scalar_lea.vmem %s2, 3
    %v2087 = vld [vmem:[%s2086] sm:$0x1]
    %v2088 = vadd.f32 %v2085, 1e-05
    %v2089 = vrsqrt.pop %v2088
    %v2090 = vmul.f32 %v2089, %v2088
    %v2091 = vmul.f32 %v2090, %v2089
    %v2092 = vmul.f32 0.5, %v2091
    %v2093 = vsub.f32 1.5, %v2092
    %v2094 = vmul.f32 %v2089, %v2093
    %vm2095 = vweird.f32 %v2088
    %vm2096 = vweird.f32 %v2089
    %vm2097 = vmor %vm2095, %vm2096
    %v2098 = vsel %vm2097, %v2089, %v2094
    %v2099 = vmul.f32 %v2087, %v2098
    %s2100 = scalar_lea.vmem %s3, 3
    %v2101 = vld [vmem:[%s2100] sm:$0x1]
    %v2102 = vmul.f32 %v2069, %v2099
    %v2103 = vsub.f32 %v2101, %v2102
    %v2105 = vperm.slane %v2099, 0
    %v2107 = vmul.f32 %v2057, %v2105
    %v2108 = vmul.f32 %v2058, %v2105
    %v2109 = vmul.f32 %v2059, %v2105
    %v2111 = vperm.slane %v2103, 0
    %v2113 = vadd.f32 %v2107, %v2111
    %v2114 = vadd.f32 %v2108, %v2111
    %v2115 = vadd.f32 %v2109, %v2111
    %v2116 = vmax.f32 %v2113, 0.0
    %v2117 = vmax.f32 %v2114, 0.0
    %v2118 = vmax.f32 %v2115, 0.0
    %v2119 = vld [vmem:[%s8] sm:$0xff]
    %v2120 = vld [vmem:[%s8 + $0x8] sm:$0xff]
    %v2121 = vld [vmem:[%s8 + $0x10] sm:$0xff]
    %v2122 = vld [vmem:[%s8 + $0x18] sm:$0xff]
    %v2124 = vsel %vm628, %v2119, 0
    %v2127 = vsel %vm628, %v2120, 0
    %v2130 = vsel %vm628, %v2121, 0
    %v2133 = vsel %vm628, %v2122, 0
    %v2136 = vsel %vm563, %v2118, 0
    %2138 = vmatpush.msra.mxu0 0.0
    %2139 = vmatpush.msra.mxu0 0.0
    %2140 = vmatpush.msra.mxu0 0.0
    %2141 = vmatpush.msra.mxu0 0.0
    %2142 = vmatpush.msra.mxu0 0.0
    %2143 = vmatpush.msra.mxu0 0.0
    %2144 = vmatpush.msra.mxu0 0.0
    %2145 = vmatpush.msra.mxu0 0.0
    %2146 = vmatpush.msra.mxu0 0.0
    %2147 = vmatpush.msra.mxu0 0.0
    %2148 = vmatpush.msra.mxu0 0.0
    %2149 = vmatpush.msra.mxu0 0.0
    %2150 = vmatpush.msra.mxu0 0.0
    %2151 = vmatpush.msra.mxu0 %v2136
    %2152 = vmatpush.msra.mxu0 %v2117
    %2153 = vmatpush.msra.mxu0 %v2116
    %2154 = vmatmul.f32.gmra.mxu0 %v2124
    %v2155 = vpop.f32.mrf.mxu0
    %v2156 = vadd.f32 0.0, %v2155
    %2157 = vmatmul.f32.gmra.mxu0 %v2127
    %v2158 = vpop.f32.mrf.mxu0
    %v2159 = vadd.f32 0.0, %v2158
    %2160 = vmatmul.f32.gmra.mxu0 %v2130
    %v2161 = vpop.f32.mrf.mxu0
    %v2162 = vadd.f32 0.0, %v2161
    %2163 = vmatmul.f32.gmra.mxu0 %v2133
    %v2164 = vpop.f32.mrf.mxu0
    %v2165 = vadd.f32 0.0, %v2164
    %2166 = vdwg.mxu0
    %v2167 = vpack.c.bf16 %v2159, %v2156
    %v2168 = vpack.c.bf16 %v2165, %v2162
    %s2169 = scalar_lea.vmem %s1, 1024
    %v2170 = vld [vmem:[%s2169] sm:$0xf]
    %v2171 = vld [vmem:[%s2169 + $0x4] sm:$0xf]
    %v2172 = vld [vmem:[%s2169 + $0x8] sm:$0xf]
    %v2173 = vld [vmem:[%s2169 + $0xc] sm:$0xf]
    %v2174 = vld [vmem:[%s2169 + $0x10] sm:$0xf]
    %v2175 = vld [vmem:[%s2169 + $0x14] sm:$0xf]
    %v2176 = vld [vmem:[%s2169 + $0x18] sm:$0xf]
    %v2177 = vld [vmem:[%s2169 + $0x1c] sm:$0xf]
    %v2178 = vld [vmem:[%s2169 + $0x20] sm:$0xf]
    %v2179 = vld [vmem:[%s2169 + $0x24] sm:$0xf]
    %v2180 = vld [vmem:[%s2169 + $0x28] sm:$0xf]
    %v2181 = vld [vmem:[%s2169 + $0x2c] sm:$0xf]
    %v2182 = vld [vmem:[%s2169 + $0x30] sm:$0xf]
    %v2183 = vld [vmem:[%s2169 + $0x34] sm:$0xf]
    %v2184 = vld [vmem:[%s2169 + $0x38] sm:$0xf]
    %v2185 = vld [vmem:[%s2169 + $0x3c] sm:$0xf]
    %s2186 = scalar_lea.vmem %s8, 32
    %v2187 = vld [vmem:[%s2186] sm:$0xff]
    %v2188 = vld [vmem:[%s2186 + $0x8] sm:$0xff]
    %v2189 = vld [vmem:[%s2186 + $0x10] sm:$0xff]
    %v2190 = vld [vmem:[%s2186 + $0x18] sm:$0xff]
    %v2192 = vsel %vm628, %v2187, 0
    %v2195 = vsel %vm628, %v2188, 0
    %v2198 = vsel %vm628, %v2189, 0
    %v2201 = vsel %vm628, %v2190, 0
    %2203 = vmatpush.msra.mxu0 0.0
    %2204 = vmatpush.msra.mxu0 0.0
    %2205 = vmatpush.msra.mxu0 0.0
    %2206 = vmatpush.msra.mxu0 0.0
    %2207 = vmatpush.msra.mxu0 0.0
    %2208 = vmatpush.msra.mxu0 0.0
    %2209 = vmatpush.msra.mxu0 0.0
    %2210 = vmatpush.msra.mxu0 0.0
    %2211 = vmatpush.msra.mxu0 0.0
    %2212 = vmatpush.msra.mxu0 0.0
    %2213 = vmatpush.msra.mxu0 0.0
    %2214 = vmatpush.msra.mxu0 0.0
    %2215 = vmatpush.msra.mxu0 0.0
    %2216 = vmatpush.msra.mxu0 %v2136
    %2217 = vmatpush.msra.mxu0 %v2117
    %2218 = vmatpush.msra.mxu0 %v2116
    %2219 = vmatmul.f32.gmra.mxu0 %v2192
    %v2220 = vpop.f32.mrf.mxu0
    %v2221 = vadd.f32 0.0, %v2220
    %2222 = vmatmul.f32.gmra.mxu0 %v2195
    %v2223 = vpop.f32.mrf.mxu0
    %v2224 = vadd.f32 0.0, %v2223
    %2225 = vmatmul.f32.gmra.mxu0 %v2198
    %v2226 = vpop.f32.mrf.mxu0
    %v2227 = vadd.f32 0.0, %v2226
    %2228 = vmatmul.f32.gmra.mxu0 %v2201
    %v2229 = vpop.f32.mrf.mxu0
    %v2230 = vadd.f32 0.0, %v2229
    %2231 = vdwg.mxu0
    %v2232 = vpack.c.bf16 %v2224, %v2221
    %v2233 = vpack.c.bf16 %v2230, %v2227
    %s2234 = scalar_lea.vmem %s1, 1088
    %v2235 = vld [vmem:[%s2234] sm:$0xf]
    %v2236 = vld [vmem:[%s2234 + $0x4] sm:$0xf]
    %v2237 = vld [vmem:[%s2234 + $0x8] sm:$0xf]
    %v2238 = vld [vmem:[%s2234 + $0xc] sm:$0xf]
    %v2239 = vld [vmem:[%s2234 + $0x10] sm:$0xf]
    %v2240 = vld [vmem:[%s2234 + $0x14] sm:$0xf]
    %v2241 = vld [vmem:[%s2234 + $0x18] sm:$0xf]
    %v2242 = vld [vmem:[%s2234 + $0x1c] sm:$0xf]
    %v2243 = vld [vmem:[%s2234 + $0x20] sm:$0xf]
    %v2244 = vld [vmem:[%s2234 + $0x24] sm:$0xf]
    %v2245 = vld [vmem:[%s2234 + $0x28] sm:$0xf]
    %v2246 = vld [vmem:[%s2234 + $0x2c] sm:$0xf]
    %v2247 = vld [vmem:[%s2234 + $0x30] sm:$0xf]
    %v2248 = vld [vmem:[%s2234 + $0x34] sm:$0xf]
    %v2249 = vld [vmem:[%s2234 + $0x38] sm:$0xf]
    %v2250 = vld [vmem:[%s2234 + $0x3c] sm:$0xf]
    %v2267 = vunpack.c.l.b16 %v2235
    %v2268 = vunpack.c.l.b16 %v2236
    %v2269 = vunpack.c.l.b16 %v2237
    %v2270 = vunpack.c.l.b16 %v2238
    %v2271 = vunpack.c.l.b16 %v2239
    %v2272 = vunpack.c.l.b16 %v2240
    %v2273 = vunpack.c.l.b16 %v2241
    %v2274 = vunpack.c.l.b16 %v2242
    %v2275 = vunpack.c.l.b16 %v2243
    %v2276 = vunpack.c.l.b16 %v2244
    %v2277 = vunpack.c.l.b16 %v2245
    %v2278 = vunpack.c.l.b16 %v2246
    %v2279 = vunpack.c.l.b16 %v2247
    %v2280 = vunpack.c.l.b16 %v2248
    %v2281 = vunpack.c.l.b16 %v2249
    %v2282 = vunpack.c.l.b16 %v2250
    %v2283 = vpack.c.b16 %v2268, %v2267
    %v2284 = vpack.c.b16 %v2270, %v2269
    %v2285 = vpack.c.b16 %v2272, %v2271
    %v2286 = vpack.c.b16 %v2274, %v2273
    %v2287 = vpack.c.b16 %v2276, %v2275
    %v2288 = vpack.c.b16 %v2278, %v2277
    %v2289 = vpack.c.b16 %v2280, %v2279
    %v2290 = vpack.c.b16 %v2282, %v2281
    %2299 = vmatpush.bf16.msra.mxu0 %v2290
    %2300 = vmatpush.bf16.msra.mxu0 %v2289
    %2301 = vmatpush.bf16.msra.mxu0 %v2288
    %2302 = vmatpush.bf16.msra.mxu0 %v2287
    %2303 = vmatpush.bf16.msra.mxu0 %v2286
    %2304 = vmatpush.bf16.msra.mxu0 %v2285
    %2305 = vmatpush.bf16.msra.mxu0 %v2284
    %2306 = vmatpush.bf16.msra.mxu0 %v2283
    %2307 = vmatmul.bf16.gmra.mxu0 %v2232
    %v2308 = vpop.f32.mrf.mxu0
    %v2309 = vadd.f32 0.0, %v2308
    %v2310 = vpop.f32.mrf.mxu0
    %v2311 = vadd.f32 0.0, %v2310
    %2312 = vmatmul.bf16.gmra.mxu0 %v2233
    %v2313 = vpop.f32.mrf.mxu0
    %v2314 = vadd.f32 0.0, %v2313
    %v2315 = vpop.f32.mrf.mxu0
    %v2316 = vadd.f32 0.0, %v2315
    %2317 = vdwg.mxu0
    %v2334 = vunpack.c.l.b16 %v2170
    %v2335 = vunpack.c.l.b16 %v2171
    %v2336 = vunpack.c.l.b16 %v2172
    %v2337 = vunpack.c.l.b16 %v2173
    %v2338 = vunpack.c.l.b16 %v2174
    %v2339 = vunpack.c.l.b16 %v2175
    %v2340 = vunpack.c.l.b16 %v2176
    %v2341 = vunpack.c.l.b16 %v2177
    %v2342 = vunpack.c.l.b16 %v2178
    %v2343 = vunpack.c.l.b16 %v2179
    %v2344 = vunpack.c.l.b16 %v2180
    %v2345 = vunpack.c.l.b16 %v2181
    %v2346 = vunpack.c.l.b16 %v2182
    %v2347 = vunpack.c.l.b16 %v2183
    %v2348 = vunpack.c.l.b16 %v2184
    %v2349 = vunpack.c.l.b16 %v2185
    %v2350 = vpack.c.b16 %v2335, %v2334
    %v2351 = vpack.c.b16 %v2337, %v2336
    %v2352 = vpack.c.b16 %v2339, %v2338
    %v2353 = vpack.c.b16 %v2341, %v2340
    %v2354 = vpack.c.b16 %v2343, %v2342
    %v2355 = vpack.c.b16 %v2345, %v2344
    %v2356 = vpack.c.b16 %v2347, %v2346
    %v2357 = vpack.c.b16 %v2349, %v2348
    %2366 = vmatpush.bf16.msra.mxu0 %v2357
    %2367 = vmatpush.bf16.msra.mxu0 %v2356
    %2368 = vmatpush.bf16.msra.mxu0 %v2355
    %2369 = vmatpush.bf16.msra.mxu0 %v2354
    %2370 = vmatpush.bf16.msra.mxu0 %v2353
    %2371 = vmatpush.bf16.msra.mxu0 %v2352
    %2372 = vmatpush.bf16.msra.mxu0 %v2351
    %2373 = vmatpush.bf16.msra.mxu0 %v2350
    %2374 = vmatmul.bf16.gmra.mxu0 %v2167
    %v2375 = vpop.f32.mrf.mxu0
    %v2376 = vadd.f32 %v2309, %v2375
    %v2377 = vpop.f32.mrf.mxu0
    %v2378 = vadd.f32 %v2311, %v2377
    %2379 = vmatmul.bf16.gmra.mxu0 %v2168
    %v2380 = vpop.f32.mrf.mxu0
    %v2381 = vadd.f32 %v2314, %v2380
    %v2382 = vpop.f32.mrf.mxu0
    %v2383 = vadd.f32 %v2316, %v2382
    %2384 = vdwg.mxu0
    %s2385 = scalar_lea.vmem %s8, 64
    %v2386 = vld [vmem:[%s2385] sm:$0xff]
    %v2387 = vld [vmem:[%s2385 + $0x8] sm:$0xff]
    %v2388 = vld [vmem:[%s2385 + $0x10] sm:$0xff]
    %v2389 = vld [vmem:[%s2385 + $0x18] sm:$0xff]
    %v2391 = vsel %vm628, %v2386, 0
    %v2394 = vsel %vm628, %v2387, 0
    %v2397 = vsel %vm628, %v2388, 0
    %v2400 = vsel %vm628, %v2389, 0
    %2402 = vmatpush.msra.mxu0 0.0
    %2403 = vmatpush.msra.mxu0 0.0
    %2404 = vmatpush.msra.mxu0 0.0
    %2405 = vmatpush.msra.mxu0 0.0
    %2406 = vmatpush.msra.mxu0 0.0
    %2407 = vmatpush.msra.mxu0 0.0
    %2408 = vmatpush.msra.mxu0 0.0
    %2409 = vmatpush.msra.mxu0 0.0
    %2410 = vmatpush.msra.mxu0 0.0
    %2411 = vmatpush.msra.mxu0 0.0
    %2412 = vmatpush.msra.mxu0 0.0
    %2413 = vmatpush.msra.mxu0 0.0
    %2414 = vmatpush.msra.mxu0 0.0
    %2415 = vmatpush.msra.mxu0 %v2136
    %2416 = vmatpush.msra.mxu0 %v2117
    %2417 = vmatpush.msra.mxu0 %v2116
    %2418 = vmatmul.f32.gmra.mxu0 %v2391
    %v2419 = vpop.f32.mrf.mxu0
    %v2420 = vadd.f32 0.0, %v2419
    %2421 = vmatmul.f32.gmra.mxu0 %v2394
    %v2422 = vpop.f32.mrf.mxu0
    %v2423 = vadd.f32 0.0, %v2422
    %2424 = vmatmul.f32.gmra.mxu0 %v2397
    %v2425 = vpop.f32.mrf.mxu0
    %v2426 = vadd.f32 0.0, %v2425
    %2427 = vmatmul.f32.gmra.mxu0 %v2400
    %v2428 = vpop.f32.mrf.mxu0
    %v2429 = vadd.f32 0.0, %v2428
    %2430 = vdwg.mxu0
    %v2431 = vpack.c.bf16 %v2423, %v2420
    %v2432 = vpack.c.bf16 %v2429, %v2426
    %s2433 = scalar_lea.vmem %s1, 1152
    %v2434 = vld [vmem:[%s2433] sm:$0xf]
    %v2435 = vld [vmem:[%s2433 + $0x4] sm:$0xf]
    %v2436 = vld [vmem:[%s2433 + $0x8] sm:$0xf]
    %v2437 = vld [vmem:[%s2433 + $0xc] sm:$0xf]
    %v2438 = vld [vmem:[%s2433 + $0x10] sm:$0xf]
    %v2439 = vld [vmem:[%s2433 + $0x14] sm:$0xf]
    %v2440 = vld [vmem:[%s2433 + $0x18] sm:$0xf]
    %v2441 = vld [vmem:[%s2433 + $0x1c] sm:$0xf]
    %v2442 = vld [vmem:[%s2433 + $0x20] sm:$0xf]
    %v2443 = vld [vmem:[%s2433 + $0x24] sm:$0xf]
    %v2444 = vld [vmem:[%s2433 + $0x28] sm:$0xf]
    %v2445 = vld [vmem:[%s2433 + $0x2c] sm:$0xf]
    %v2446 = vld [vmem:[%s2433 + $0x30] sm:$0xf]
    %v2447 = vld [vmem:[%s2433 + $0x34] sm:$0xf]
    %v2448 = vld [vmem:[%s2433 + $0x38] sm:$0xf]
    %v2449 = vld [vmem:[%s2433 + $0x3c] sm:$0xf]
    %v2466 = vunpack.c.l.b16 %v2434
    %v2467 = vunpack.c.l.b16 %v2435
    %v2468 = vunpack.c.l.b16 %v2436
    %v2469 = vunpack.c.l.b16 %v2437
    %v2470 = vunpack.c.l.b16 %v2438
    %v2471 = vunpack.c.l.b16 %v2439
    %v2472 = vunpack.c.l.b16 %v2440
    %v2473 = vunpack.c.l.b16 %v2441
    %v2474 = vunpack.c.l.b16 %v2442
    %v2475 = vunpack.c.l.b16 %v2443
    %v2476 = vunpack.c.l.b16 %v2444
    %v2477 = vunpack.c.l.b16 %v2445
    %v2478 = vunpack.c.l.b16 %v2446
    %v2479 = vunpack.c.l.b16 %v2447
    %v2480 = vunpack.c.l.b16 %v2448
    %v2481 = vunpack.c.l.b16 %v2449
    %v2482 = vpack.c.b16 %v2467, %v2466
    %v2483 = vpack.c.b16 %v2469, %v2468
    %v2484 = vpack.c.b16 %v2471, %v2470
    %v2485 = vpack.c.b16 %v2473, %v2472
    %v2486 = vpack.c.b16 %v2475, %v2474
    %v2487 = vpack.c.b16 %v2477, %v2476
    %v2488 = vpack.c.b16 %v2479, %v2478
    %v2489 = vpack.c.b16 %v2481, %v2480
    %2498 = vmatpush.bf16.msra.mxu0 %v2489
    %2499 = vmatpush.bf16.msra.mxu0 %v2488
    %2500 = vmatpush.bf16.msra.mxu0 %v2487
    %2501 = vmatpush.bf16.msra.mxu0 %v2486
    %2502 = vmatpush.bf16.msra.mxu0 %v2485
    %2503 = vmatpush.bf16.msra.mxu0 %v2484
    %2504 = vmatpush.bf16.msra.mxu0 %v2483
    %2505 = vmatpush.bf16.msra.mxu0 %v2482
    %2506 = vmatmul.bf16.gmra.mxu0 %v2431
    %v2507 = vpop.f32.mrf.mxu0
    %v2508 = vadd.f32 0.0, %v2507
    %v2509 = vpop.f32.mrf.mxu0
    %v2510 = vadd.f32 0.0, %v2509
    %2511 = vmatmul.bf16.gmra.mxu0 %v2432
    %v2512 = vpop.f32.mrf.mxu0
    %v2513 = vadd.f32 0.0, %v2512
    %v2514 = vpop.f32.mrf.mxu0
    %v2515 = vadd.f32 0.0, %v2514
    %2516 = vdwg.mxu0
    %v2517 = vadd.f32 %v2376, %v2508
    %v2518 = vadd.f32 %v2378, %v2510
    %v2519 = vadd.f32 %v2381, %v2513
    %v2520 = vadd.f32 %v2383, %v2515
    %s2521 = scalar_lea.vmem %s8, 96
    %v2522 = vld [vmem:[%s2521] sm:$0xff]
    %v2523 = vld [vmem:[%s2521 + $0x8] sm:$0xff]
    %v2524 = vld [vmem:[%s2521 + $0x10] sm:$0xff]
    %v2525 = vld [vmem:[%s2521 + $0x18] sm:$0xff]
    %v2527 = vsel %vm628, %v2522, 0
    %v2530 = vsel %vm628, %v2523, 0
    %v2533 = vsel %vm628, %v2524, 0
    %v2536 = vsel %vm628, %v2525, 0
    %2538 = vmatpush.msra.mxu0 0.0
    %2539 = vmatpush.msra.mxu0 0.0
    %2540 = vmatpush.msra.mxu0 0.0
    %2541 = vmatpush.msra.mxu0 0.0
    %2542 = vmatpush.msra.mxu0 0.0
    %2543 = vmatpush.msra.mxu0 0.0
    %2544 = vmatpush.msra.mxu0 0.0
    %2545 = vmatpush.msra.mxu0 0.0
    %2546 = vmatpush.msra.mxu0 0.0
    %2547 = vmatpush.msra.mxu0 0.0
    %2548 = vmatpush.msra.mxu0 0.0
    %2549 = vmatpush.msra.mxu0 0.0
    %2550 = vmatpush.msra.mxu0 0.0
    %2551 = vmatpush.msra.mxu0 %v2136
    %2552 = vmatpush.msra.mxu0 %v2117
    %2553 = vmatpush.msra.mxu0 %v2116
    %2554 = vmatmul.f32.gmra.mxu0 %v2527
    %v2555 = vpop.f32.mrf.mxu0
    %v2556 = vadd.f32 0.0, %v2555
    %2557 = vmatmul.f32.gmra.mxu0 %v2530
    %v2558 = vpop.f32.mrf.mxu0
    %v2559 = vadd.f32 0.0, %v2558
    %2560 = vmatmul.f32.gmra.mxu0 %v2533
    %v2561 = vpop.f32.mrf.mxu0
    %v2562 = vadd.f32 0.0, %v2561
    %2563 = vmatmul.f32.gmra.mxu0 %v2536
    %v2564 = vpop.f32.mrf.mxu0
    %v2565 = vadd.f32 0.0, %v2564
    %2566 = vdwg.mxu0
    %v2567 = vpack.c.bf16 %v2559, %v2556
    %v2568 = vpack.c.bf16 %v2565, %v2562
    %s2569 = scalar_lea.vmem %s1, 1216
    %v2570 = vld [vmem:[%s2569] sm:$0xf]
    %v2571 = vld [vmem:[%s2569 + $0x4] sm:$0xf]
    %v2572 = vld [vmem:[%s2569 + $0x8] sm:$0xf]
    %v2573 = vld [vmem:[%s2569 + $0xc] sm:$0xf]
    %v2574 = vld [vmem:[%s2569 + $0x10] sm:$0xf]
    %v2575 = vld [vmem:[%s2569 + $0x14] sm:$0xf]
    %v2576 = vld [vmem:[%s2569 + $0x18] sm:$0xf]
    %v2577 = vld [vmem:[%s2569 + $0x1c] sm:$0xf]
    %v2578 = vld [vmem:[%s2569 + $0x20] sm:$0xf]
    %v2579 = vld [vmem:[%s2569 + $0x24] sm:$0xf]
    %v2580 = vld [vmem:[%s2569 + $0x28] sm:$0xf]
    %v2581 = vld [vmem:[%s2569 + $0x2c] sm:$0xf]
    %v2582 = vld [vmem:[%s2569 + $0x30] sm:$0xf]
    %v2583 = vld [vmem:[%s2569 + $0x34] sm:$0xf]
    %v2584 = vld [vmem:[%s2569 + $0x38] sm:$0xf]
    %v2585 = vld [vmem:[%s2569 + $0x3c] sm:$0xf]
    %v2602 = vunpack.c.l.b16 %v2570
    %v2603 = vunpack.c.l.b16 %v2571
    %v2604 = vunpack.c.l.b16 %v2572
    %v2605 = vunpack.c.l.b16 %v2573
    %v2606 = vunpack.c.l.b16 %v2574
    %v2607 = vunpack.c.l.b16 %v2575
    %v2608 = vunpack.c.l.b16 %v2576
    %v2609 = vunpack.c.l.b16 %v2577
    %v2610 = vunpack.c.l.b16 %v2578
    %v2611 = vunpack.c.l.b16 %v2579
    %v2612 = vunpack.c.l.b16 %v2580
    %v2613 = vunpack.c.l.b16 %v2581
    %v2614 = vunpack.c.l.b16 %v2582
    %v2615 = vunpack.c.l.b16 %v2583
    %v2616 = vunpack.c.l.b16 %v2584
    %v2617 = vunpack.c.l.b16 %v2585
    %v2618 = vpack.c.b16 %v2603, %v2602
    %v2619 = vpack.c.b16 %v2605, %v2604
    %v2620 = vpack.c.b16 %v2607, %v2606
    %v2621 = vpack.c.b16 %v2609, %v2608
    %v2622 = vpack.c.b16 %v2611, %v2610
    %v2623 = vpack.c.b16 %v2613, %v2612
    %v2624 = vpack.c.b16 %v2615, %v2614
    %v2625 = vpack.c.b16 %v2617, %v2616
    %2634 = vmatpush.bf16.msra.mxu0 %v2625
    %2635 = vmatpush.bf16.msra.mxu0 %v2624
    %2636 = vmatpush.bf16.msra.mxu0 %v2623
    %2637 = vmatpush.bf16.msra.mxu0 %v2622
    %2638 = vmatpush.bf16.msra.mxu0 %v2621
    %2639 = vmatpush.bf16.msra.mxu0 %v2620
    %2640 = vmatpush.bf16.msra.mxu0 %v2619
    %2641 = vmatpush.bf16.msra.mxu0 %v2618
    %2642 = vmatmul.bf16.gmra.mxu0 %v2567
    %v2643 = vpop.f32.mrf.mxu0
    %v2644 = vadd.f32 0.0, %v2643
    %v2645 = vpop.f32.mrf.mxu0
    %v2646 = vadd.f32 0.0, %v2645
    %2647 = vmatmul.bf16.gmra.mxu0 %v2568
    %v2648 = vpop.f32.mrf.mxu0
    %v2649 = vadd.f32 0.0, %v2648
    %v2650 = vpop.f32.mrf.mxu0
    %v2651 = vadd.f32 0.0, %v2650
    %2652 = vdwg.mxu0
    %v2653 = vadd.f32 %v2517, %v2644
    %v2654 = vadd.f32 %v2518, %v2646
    %v2655 = vadd.f32 %v2519, %v2649
    %v2656 = vadd.f32 %v2520, %v2651
    %v2657 = vadd.f32 %v2653, %v2654
    %v2658 = vadd.f32 %v2657, %v2655
    %v2659 = vadd.f32 %v2658, %v2656
    %v2660 = vrot.slane %v2659, 4
    %v2661 = vadd.f32 %v2659, %v2660
    %v2662 = vrot.slane %v2661, 2
    %v2663 = vadd.f32 %v2661, %v2662
    %v2664 = vrot.slane %v2663, 1
    %v2665 = vadd.f32 %v2663, %v2664
    %v2666 = vrcp.pop 32.0
    %v2667 = vmul.f32 32.0, %v2666
    %v2668 = vsub.f32 1.0, %v2667
    %v2669 = vmul.f32 %v2666, %v2668
    %v2670 = vadd.f32 %v2666, %v2669
    %vm2671 = vweird.f32 %v2666
    %v2672 = vsel %vm2671, %v2666, %v2670
    %v2673 = vmul.f32 %v2665, %v2672
    %v2674 = vsub.f32 %v2653, %v2673
    %v2675 = vsub.f32 %v2654, %v2673
    %v2676 = vsub.f32 %v2655, %v2673
    %v2677 = vsub.f32 %v2656, %v2673
    %v2678 = vmul.f32 %v2674, %v2674
    %v2679 = vmul.f32 %v2675, %v2675
    %v2680 = vmul.f32 %v2676, %v2676
    %v2681 = vmul.f32 %v2677, %v2677
    %v2682 = vadd.f32 %v2678, %v2679
    %v2683 = vadd.f32 %v2682, %v2680
    %v2684 = vadd.f32 %v2683, %v2681
    %v2685 = vrot.slane %v2684, 4
    %v2686 = vadd.f32 %v2684, %v2685
    %v2687 = vrot.slane %v2686, 2
    %v2688 = vadd.f32 %v2686, %v2687
    %v2689 = vrot.slane %v2688, 1
    %v2690 = vadd.f32 %v2688, %v2689
    %v2691 = vmul.f32 %v2690, %v2672
    %s2692 = scalar_lea.vmem %s2, 4
    %v2693 = vld [vmem:[%s2692] sm:$0x1]
    %v2694 = vadd.f32 %v2691, 1e-05
    %v2695 = vrsqrt.pop %v2694
    %v2696 = vmul.f32 %v2695, %v2694
    %v2697 = vmul.f32 %v2696, %v2695
    %v2698 = vmul.f32 0.5, %v2697
    %v2699 = vsub.f32 1.5, %v2698
    %v2700 = vmul.f32 %v2695, %v2699
    %vm2701 = vweird.f32 %v2694
    %vm2702 = vweird.f32 %v2695
    %vm2703 = vmor %vm2701, %vm2702
    %v2704 = vsel %vm2703, %v2695, %v2700
    %v2705 = vmul.f32 %v2693, %v2704
    %s2706 = scalar_lea.vmem %s3, 4
    %v2707 = vld [vmem:[%s2706] sm:$0x1]
    %v2708 = vmul.f32 %v2673, %v2705
    %v2709 = vsub.f32 %v2707, %v2708
    %v2711 = vperm.slane %v2705, 0
    %v2713 = vmul.f32 %v2653, %v2711
    %v2714 = vmul.f32 %v2654, %v2711
    %v2715 = vmul.f32 %v2655, %v2711
    %v2716 = vmul.f32 %v2656, %v2711
    %v2718 = vperm.slane %v2709, 0
    %v2720 = vadd.f32 %v2713, %v2718
    %v2721 = vadd.f32 %v2714, %v2718
    %v2722 = vadd.f32 %v2715, %v2718
    %v2723 = vadd.f32 %v2716, %v2718
    %v2724 = vmax.f32 %v2720, 0.0
    %v2725 = vmax.f32 %v2721, 0.0
    %v2726 = vmax.f32 %v2722, 0.0
    %v2727 = vmax.f32 %v2723, 0.0
    %v2728 = vld [vmem:[%s9] sm:$0xff]
    %v2729 = vld [vmem:[%s9 + $0x8] sm:$0xff]
    %v2730 = vld [vmem:[%s9 + $0x10] sm:$0xff]
    %v2731 = vld [vmem:[%s9 + $0x18] sm:$0xff]
    %v2732 = vld [vmem:[%s9 + $0x20] sm:$0xff]
    %v2733 = vld [vmem:[%s9 + $0x28] sm:$0xff]
    %v2734 = vld [vmem:[%s9 + $0x30] sm:$0x3]
    %v2736 = vsel %vm64, %v2728, 0
    %v2739 = vsel %vm64, %v2729, 0
    %v2742 = vsel %vm64, %v2730, 0
    %v2745 = vsel %vm64, %v2731, 0
    %v2748 = vsel %vm64, %v2732, 0
    %v2751 = vsel %vm64, %v2733, 0
    %v2754 = vsel %vm64, %v2734, 0
    %2756 = vmatpush.msra.mxu0 0.0
    %2757 = vmatpush.msra.mxu0 0.0
    %2758 = vmatpush.msra.mxu0 0.0
    %2759 = vmatpush.msra.mxu0 0.0
    %2760 = vmatpush.msra.mxu0 0.0
    %2761 = vmatpush.msra.mxu0 0.0
    %2762 = vmatpush.msra.mxu0 0.0
    %2763 = vmatpush.msra.mxu0 0.0
    %2764 = vmatpush.msra.mxu0 0.0
    %2765 = vmatpush.msra.mxu0 0.0
    %2766 = vmatpush.msra.mxu0 0.0
    %2767 = vmatpush.msra.mxu0 0.0
    %2768 = vmatpush.msra.mxu0 %v2727
    %2769 = vmatpush.msra.mxu0 %v2726
    %2770 = vmatpush.msra.mxu0 %v2725
    %2771 = vmatpush.msra.mxu0 %v2724
    %2772 = vmatmul.f32.gmra.mxu0 %v2736
    %v2773 = vpop.f32.mrf.mxu0
    %v2774 = vadd.f32 0.0, %v2773
    %2775 = vmatmul.f32.gmra.mxu0 %v2739
    %v2776 = vpop.f32.mrf.mxu0
    %v2777 = vadd.f32 0.0, %v2776
    %2778 = vmatmul.f32.gmra.mxu0 %v2742
    %v2779 = vpop.f32.mrf.mxu0
    %v2780 = vadd.f32 0.0, %v2779
    %2781 = vmatmul.f32.gmra.mxu0 %v2745
    %v2782 = vpop.f32.mrf.mxu0
    %v2783 = vadd.f32 0.0, %v2782
    %2784 = vmatmul.f32.gmra.mxu0 %v2748
    %v2785 = vpop.f32.mrf.mxu0
    %v2786 = vadd.f32 0.0, %v2785
    %2787 = vmatmul.f32.gmra.mxu0 %v2751
    %v2788 = vpop.f32.mrf.mxu0
    %v2789 = vadd.f32 0.0, %v2788
    %2790 = vmatmul.f32.gmra.mxu0 %v2754
    %v2791 = vpop.f32.mrf.mxu0
    %v2792 = vadd.f32 0.0, %v2791
    %2793 = vdwg.mxu0
    %v2794 = vpack.c.bf16 %v2777, %v2774
    %v2795 = vpack.c.bf16 %v2783, %v2780
    %v2796 = vpack.c.bf16 %v2789, %v2786
    %v2797 = vpack.c.bf16 %v2792, %v2792
    %s2798 = scalar_lea.vmem %s1, 1280
    %v2799 = vld [vmem:[%s2798] sm:$0xf]
    %v2800 = vld [vmem:[%s2798 + $0x4] sm:$0xf]
    %v2801 = vld [vmem:[%s2798 + $0x8] sm:$0xf]
    %v2802 = vld [vmem:[%s2798 + $0xc] sm:$0xf]
    %v2803 = vld [vmem:[%s2798 + $0x10] sm:$0xf]
    %v2804 = vld [vmem:[%s2798 + $0x14] sm:$0xf]
    %v2805 = vld [vmem:[%s2798 + $0x18] sm:$0xf]
    %v2806 = vld [vmem:[%s2798 + $0x1c] sm:$0xf]
    %v2807 = vld [vmem:[%s2798 + $0x20] sm:$0xf]
    %v2808 = vld [vmem:[%s2798 + $0x24] sm:$0xf]
    %v2809 = vld [vmem:[%s2798 + $0x28] sm:$0xf]
    %v2810 = vld [vmem:[%s2798 + $0x2c] sm:$0xf]
    %v2811 = vld [vmem:[%s2798 + $0x30] sm:$0xf]
    %v2812 = vld [vmem:[%s2798 + $0x34] sm:$0xf]
    %v2813 = vld [vmem:[%s2798 + $0x38] sm:$0xf]
    %v2814 = vld [vmem:[%s2798 + $0x3c] sm:$0xf]
    %s2815 = scalar_lea.vmem %s9, 56
    %v2816 = vld [vmem:[%s2815] sm:$0xff]
    %v2817 = vld [vmem:[%s2815 + $0x8] sm:$0xff]
    %v2818 = vld [vmem:[%s2815 + $0x10] sm:$0xff]
    %v2819 = vld [vmem:[%s2815 + $0x18] sm:$0xff]
    %v2820 = vld [vmem:[%s2815 + $0x20] sm:$0xff]
    %v2821 = vld [vmem:[%s2815 + $0x28] sm:$0xff]
    %v2822 = vld [vmem:[%s2815 + $0x30] sm:$0x3]
    %v2824 = vsel %vm64, %v2816, 0
    %v2827 = vsel %vm64, %v2817, 0
    %v2830 = vsel %vm64, %v2818, 0
    %v2833 = vsel %vm64, %v2819, 0
    %v2836 = vsel %vm64, %v2820, 0
    %v2839 = vsel %vm64, %v2821, 0
    %v2842 = vsel %vm64, %v2822, 0
    %2844 = vmatpush.msra.mxu0 0.0
    %2845 = vmatpush.msra.mxu0 0.0
    %2846 = vmatpush.msra.mxu0 0.0
    %2847 = vmatpush.msra.mxu0 0.0
    %2848 = vmatpush.msra.mxu0 0.0
    %2849 = vmatpush.msra.mxu0 0.0
    %2850 = vmatpush.msra.mxu0 0.0
    %2851 = vmatpush.msra.mxu0 0.0
    %2852 = vmatpush.msra.mxu0 0.0
    %2853 = vmatpush.msra.mxu0 0.0
    %2854 = vmatpush.msra.mxu0 0.0
    %2855 = vmatpush.msra.mxu0 0.0
    %2856 = vmatpush.msra.mxu0 %v2727
    %2857 = vmatpush.msra.mxu0 %v2726
    %2858 = vmatpush.msra.mxu0 %v2725
    %2859 = vmatpush.msra.mxu0 %v2724
    %2860 = vmatmul.f32.gmra.mxu0 %v2824
    %v2861 = vpop.f32.mrf.mxu0
    %v2862 = vadd.f32 0.0, %v2861
    %2863 = vmatmul.f32.gmra.mxu0 %v2827
    %v2864 = vpop.f32.mrf.mxu0
    %v2865 = vadd.f32 0.0, %v2864
    %2866 = vmatmul.f32.gmra.mxu0 %v2830
    %v2867 = vpop.f32.mrf.mxu0
    %v2868 = vadd.f32 0.0, %v2867
    %2869 = vmatmul.f32.gmra.mxu0 %v2833
    %v2870 = vpop.f32.mrf.mxu0
    %v2871 = vadd.f32 0.0, %v2870
    %2872 = vmatmul.f32.gmra.mxu0 %v2836
    %v2873 = vpop.f32.mrf.mxu0
    %v2874 = vadd.f32 0.0, %v2873
    %2875 = vmatmul.f32.gmra.mxu0 %v2839
    %v2876 = vpop.f32.mrf.mxu0
    %v2877 = vadd.f32 0.0, %v2876
    %2878 = vmatmul.f32.gmra.mxu0 %v2842
    %v2879 = vpop.f32.mrf.mxu0
    %v2880 = vadd.f32 0.0, %v2879
    %2881 = vdwg.mxu0
    %v2882 = vpack.c.bf16 %v2865, %v2862
    %v2883 = vpack.c.bf16 %v2871, %v2868
    %v2884 = vpack.c.bf16 %v2877, %v2874
    %v2885 = vpack.c.bf16 %v2880, %v2880
    %s2886 = scalar_lea.vmem %s1, 1344
    %v2887 = vld [vmem:[%s2886] sm:$0xf]
    %v2888 = vld [vmem:[%s2886 + $0x4] sm:$0xf]
    %v2889 = vld [vmem:[%s2886 + $0x8] sm:$0xf]
    %v2890 = vld [vmem:[%s2886 + $0xc] sm:$0xf]
    %v2891 = vld [vmem:[%s2886 + $0x10] sm:$0xf]
    %v2892 = vld [vmem:[%s2886 + $0x14] sm:$0xf]
    %v2893 = vld [vmem:[%s2886 + $0x18] sm:$0xf]
    %v2894 = vld [vmem:[%s2886 + $0x1c] sm:$0xf]
    %v2895 = vld [vmem:[%s2886 + $0x20] sm:$0xf]
    %v2896 = vld [vmem:[%s2886 + $0x24] sm:$0xf]
    %v2897 = vld [vmem:[%s2886 + $0x28] sm:$0xf]
    %v2898 = vld [vmem:[%s2886 + $0x2c] sm:$0xf]
    %v2899 = vld [vmem:[%s2886 + $0x30] sm:$0xf]
    %v2900 = vld [vmem:[%s2886 + $0x34] sm:$0xf]
    %v2901 = vld [vmem:[%s2886 + $0x38] sm:$0xf]
    %v2902 = vld [vmem:[%s2886 + $0x3c] sm:$0xf]
    %v2919 = vunpack.c.l.b16 %v2887
    %v2920 = vunpack.c.l.b16 %v2888
    %v2921 = vunpack.c.l.b16 %v2889
    %v2922 = vunpack.c.l.b16 %v2890
    %v2923 = vunpack.c.l.b16 %v2891
    %v2924 = vunpack.c.l.b16 %v2892
    %v2925 = vunpack.c.l.b16 %v2893
    %v2926 = vunpack.c.l.b16 %v2894
    %v2927 = vunpack.c.l.b16 %v2895
    %v2928 = vunpack.c.l.b16 %v2896
    %v2929 = vunpack.c.l.b16 %v2897
    %v2930 = vunpack.c.l.b16 %v2898
    %v2931 = vunpack.c.l.b16 %v2899
    %v2932 = vunpack.c.l.b16 %v2900
    %v2933 = vunpack.c.l.b16 %v2901
    %v2934 = vunpack.c.l.b16 %v2902
    %v2935 = vpack.c.b16 %v2920, %v2919
    %v2936 = vpack.c.b16 %v2922, %v2921
    %v2937 = vpack.c.b16 %v2924, %v2923
    %v2938 = vpack.c.b16 %v2926, %v2925
    %v2939 = vpack.c.b16 %v2928, %v2927
    %v2940 = vpack.c.b16 %v2930, %v2929
    %v2941 = vpack.c.b16 %v2932, %v2931
    %v2942 = vpack.c.b16 %v2934, %v2933
    %2951 = vmatpush.bf16.msra.mxu0 %v2942
    %2952 = vmatpush.bf16.msra.mxu0 %v2941
    %2953 = vmatpush.bf16.msra.mxu0 %v2940
    %2954 = vmatpush.bf16.msra.mxu0 %v2939
    %2955 = vmatpush.bf16.msra.mxu0 %v2938
    %2956 = vmatpush.bf16.msra.mxu0 %v2937
    %2957 = vmatpush.bf16.msra.mxu0 %v2936
    %2958 = vmatpush.bf16.msra.mxu0 %v2935
    %2959 = vmatmul.bf16.gmra.mxu0 %v2882
    %v2960 = vpop.f32.mrf.mxu0
    %v2961 = vadd.f32 0.0, %v2960
    %v2962 = vpop.f32.mrf.mxu0
    %v2963 = vadd.f32 0.0, %v2962
    %2964 = vmatmul.bf16.gmra.mxu0 %v2883
    %v2965 = vpop.f32.mrf.mxu0
    %v2966 = vadd.f32 0.0, %v2965
    %v2967 = vpop.f32.mrf.mxu0
    %v2968 = vadd.f32 0.0, %v2967
    %2969 = vmatmul.bf16.gmra.mxu0 %v2884
    %v2970 = vpop.f32.mrf.mxu0
    %v2971 = vadd.f32 0.0, %v2970
    %v2972 = vpop.f32.mrf.mxu0
    %v2973 = vadd.f32 0.0, %v2972
    %2974 = vmatmul.bf16.gmra.mxu0 %v2885
    %v2975 = vpop.f32.mrf.mxu0
    %v2976 = vadd.f32 0.0, %v2975
    %v2977 = vpop.f32.mrf.mxu0
    %2978 = vdwg.mxu0
    %v2995 = vunpack.c.l.b16 %v2799
    %v2996 = vunpack.c.l.b16 %v2800
    %v2997 = vunpack.c.l.b16 %v2801
    %v2998 = vunpack.c.l.b16 %v2802
    %v2999 = vunpack.c.l.b16 %v2803
    %v3000 = vunpack.c.l.b16 %v2804
    %v3001 = vunpack.c.l.b16 %v2805
    %v3002 = vunpack.c.l.b16 %v2806
    %v3003 = vunpack.c.l.b16 %v2807
    %v3004 = vunpack.c.l.b16 %v2808
    %v3005 = vunpack.c.l.b16 %v2809
    %v3006 = vunpack.c.l.b16 %v2810
    %v3007 = vunpack.c.l.b16 %v2811
    %v3008 = vunpack.c.l.b16 %v2812
    %v3009 = vunpack.c.l.b16 %v2813
    %v3010 = vunpack.c.l.b16 %v2814
    %v3011 = vpack.c.b16 %v2996, %v2995
    %v3012 = vpack.c.b16 %v2998, %v2997
    %v3013 = vpack.c.b16 %v3000, %v2999
    %v3014 = vpack.c.b16 %v3002, %v3001
    %v3015 = vpack.c.b16 %v3004, %v3003
    %v3016 = vpack.c.b16 %v3006, %v3005
    %v3017 = vpack.c.b16 %v3008, %v3007
    %v3018 = vpack.c.b16 %v3010, %v3009
    %3027 = vmatpush.bf16.msra.mxu0 %v3018
    %3028 = vmatpush.bf16.msra.mxu0 %v3017
    %3029 = vmatpush.bf16.msra.mxu0 %v3016
    %3030 = vmatpush.bf16.msra.mxu0 %v3015
    %3031 = vmatpush.bf16.msra.mxu0 %v3014
    %3032 = vmatpush.bf16.msra.mxu0 %v3013
    %3033 = vmatpush.bf16.msra.mxu0 %v3012
    %3034 = vmatpush.bf16.msra.mxu0 %v3011
    %3035 = vmatmul.bf16.gmra.mxu0 %v2794
    %v3036 = vpop.f32.mrf.mxu0
    %v3037 = vadd.f32 %v2961, %v3036
    %v3038 = vpop.f32.mrf.mxu0
    %v3039 = vadd.f32 %v2963, %v3038
    %3040 = vmatmul.bf16.gmra.mxu0 %v2795
    %v3041 = vpop.f32.mrf.mxu0
    %v3042 = vadd.f32 %v2966, %v3041
    %v3043 = vpop.f32.mrf.mxu0
    %v3044 = vadd.f32 %v2968, %v3043
    %3045 = vmatmul.bf16.gmra.mxu0 %v2796
    %v3046 = vpop.f32.mrf.mxu0
    %v3047 = vadd.f32 %v2971, %v3046
    %v3048 = vpop.f32.mrf.mxu0
    %v3049 = vadd.f32 %v2973, %v3048
    %3050 = vmatmul.bf16.gmra.mxu0 %v2797
    %v3051 = vpop.f32.mrf.mxu0
    %v3052 = vadd.f32 %v2976, %v3051
    %v3053 = vpop.f32.mrf.mxu0
    %3054 = vdwg.mxu0
    %s3055 = scalar_lea.vmem %s9, 112
    %v3056 = vld [vmem:[%s3055] sm:$0xff]
    %v3057 = vld [vmem:[%s3055 + $0x8] sm:$0xff]
    %v3058 = vld [vmem:[%s3055 + $0x10] sm:$0xff]
    %v3059 = vld [vmem:[%s3055 + $0x18] sm:$0xff]
    %v3060 = vld [vmem:[%s3055 + $0x20] sm:$0xff]
    %v3061 = vld [vmem:[%s3055 + $0x28] sm:$0xff]
    %v3062 = vld [vmem:[%s3055 + $0x30] sm:$0x3]
    %v3064 = vsel %vm64, %v3056, 0
    %v3067 = vsel %vm64, %v3057, 0
    %v3070 = vsel %vm64, %v3058, 0
    %v3073 = vsel %vm64, %v3059, 0
    %v3076 = vsel %vm64, %v3060, 0
    %v3079 = vsel %vm64, %v3061, 0
    %v3082 = vsel %vm64, %v3062, 0
    %3084 = vmatpush.msra.mxu0 0.0
    %3085 = vmatpush.msra.mxu0 0.0
    %3086 = vmatpush.msra.mxu0 0.0
    %3087 = vmatpush.msra.mxu0 0.0
    %3088 = vmatpush.msra.mxu0 0.0
    %3089 = vmatpush.msra.mxu0 0.0
    %3090 = vmatpush.msra.mxu0 0.0
    %3091 = vmatpush.msra.mxu0 0.0
    %3092 = vmatpush.msra.mxu0 0.0
    %3093 = vmatpush.msra.mxu0 0.0
    %3094 = vmatpush.msra.mxu0 0.0
    %3095 = vmatpush.msra.mxu0 0.0
    %3096 = vmatpush.msra.mxu0 %v2727
    %3097 = vmatpush.msra.mxu0 %v2726
    %3098 = vmatpush.msra.mxu0 %v2725
    %3099 = vmatpush.msra.mxu0 %v2724
    %3100 = vmatmul.f32.gmra.mxu0 %v3064
    %v3101 = vpop.f32.mrf.mxu0
    %v3102 = vadd.f32 0.0, %v3101
    %3103 = vmatmul.f32.gmra.mxu0 %v3067
    %v3104 = vpop.f32.mrf.mxu0
    %v3105 = vadd.f32 0.0, %v3104
    %3106 = vmatmul.f32.gmra.mxu0 %v3070
    %v3107 = vpop.f32.mrf.mxu0
    %v3108 = vadd.f32 0.0, %v3107
    %3109 = vmatmul.f32.gmra.mxu0 %v3073
    %v3110 = vpop.f32.mrf.mxu0
    %v3111 = vadd.f32 0.0, %v3110
    %3112 = vmatmul.f32.gmra.mxu0 %v3076
    %v3113 = vpop.f32.mrf.mxu0
    %v3114 = vadd.f32 0.0, %v3113
    %3115 = vmatmul.f32.gmra.mxu0 %v3079
    %v3116 = vpop.f32.mrf.mxu0
    %v3117 = vadd.f32 0.0, %v3116
    %3118 = vmatmul.f32.gmra.mxu0 %v3082
    %v3119 = vpop.f32.mrf.mxu0
    %v3120 = vadd.f32 0.0, %v3119
    %3121 = vdwg.mxu0
    %v3122 = vpack.c.bf16 %v3105, %v3102
    %v3123 = vpack.c.bf16 %v3111, %v3108
    %v3124 = vpack.c.bf16 %v3117, %v3114
    %v3125 = vpack.c.bf16 %v3120, %v3120
    %s3126 = scalar_lea.vmem %s1, 1408
    %v3127 = vld [vmem:[%s3126] sm:$0xf]
    %v3128 = vld [vmem:[%s3126 + $0x4] sm:$0xf]
    %v3129 = vld [vmem:[%s3126 + $0x8] sm:$0xf]
    %v3130 = vld [vmem:[%s3126 + $0xc] sm:$0xf]
    %v3131 = vld [vmem:[%s3126 + $0x10] sm:$0xf]
    %v3132 = vld [vmem:[%s3126 + $0x14] sm:$0xf]
    %v3133 = vld [vmem:[%s3126 + $0x18] sm:$0xf]
    %v3134 = vld [vmem:[%s3126 + $0x1c] sm:$0xf]
    %v3135 = vld [vmem:[%s3126 + $0x20] sm:$0xf]
    %v3136 = vld [vmem:[%s3126 + $0x24] sm:$0xf]
    %v3137 = vld [vmem:[%s3126 + $0x28] sm:$0xf]
    %v3138 = vld [vmem:[%s3126 + $0x2c] sm:$0xf]
    %v3139 = vld [vmem:[%s3126 + $0x30] sm:$0xf]
    %v3140 = vld [vmem:[%s3126 + $0x34] sm:$0xf]
    %v3141 = vld [vmem:[%s3126 + $0x38] sm:$0xf]
    %v3142 = vld [vmem:[%s3126 + $0x3c] sm:$0xf]
    %v3159 = vunpack.c.l.b16 %v3127
    %v3160 = vunpack.c.l.b16 %v3128
    %v3161 = vunpack.c.l.b16 %v3129
    %v3162 = vunpack.c.l.b16 %v3130
    %v3163 = vunpack.c.l.b16 %v3131
    %v3164 = vunpack.c.l.b16 %v3132
    %v3165 = vunpack.c.l.b16 %v3133
    %v3166 = vunpack.c.l.b16 %v3134
    %v3167 = vunpack.c.l.b16 %v3135
    %v3168 = vunpack.c.l.b16 %v3136
    %v3169 = vunpack.c.l.b16 %v3137
    %v3170 = vunpack.c.l.b16 %v3138
    %v3171 = vunpack.c.l.b16 %v3139
    %v3172 = vunpack.c.l.b16 %v3140
    %v3173 = vunpack.c.l.b16 %v3141
    %v3174 = vunpack.c.l.b16 %v3142
    %v3175 = vpack.c.b16 %v3160, %v3159
    %v3176 = vpack.c.b16 %v3162, %v3161
    %v3177 = vpack.c.b16 %v3164, %v3163
    %v3178 = vpack.c.b16 %v3166, %v3165
    %v3179 = vpack.c.b16 %v3168, %v3167
    %v3180 = vpack.c.b16 %v3170, %v3169
    %v3181 = vpack.c.b16 %v3172, %v3171
    %v3182 = vpack.c.b16 %v3174, %v3173
    %3191 = vmatpush.bf16.msra.mxu0 %v3182
    %3192 = vmatpush.bf16.msra.mxu0 %v3181
    %3193 = vmatpush.bf16.msra.mxu0 %v3180
    %3194 = vmatpush.bf16.msra.mxu0 %v3179
    %3195 = vmatpush.bf16.msra.mxu0 %v3178
    %3196 = vmatpush.bf16.msra.mxu0 %v3177
    %3197 = vmatpush.bf16.msra.mxu0 %v3176
    %3198 = vmatpush.bf16.msra.mxu0 %v3175
    %3199 = vmatmul.bf16.gmra.mxu0 %v3122
    %v3200 = vpop.f32.mrf.mxu0
    %v3201 = vadd.f32 0.0, %v3200
    %v3202 = vpop.f32.mrf.mxu0
    %v3203 = vadd.f32 0.0, %v3202
    %3204 = vmatmul.bf16.gmra.mxu0 %v3123
    %v3205 = vpop.f32.mrf.mxu0
    %v3206 = vadd.f32 0.0, %v3205
    %v3207 = vpop.f32.mrf.mxu0
    %v3208 = vadd.f32 0.0, %v3207
    %3209 = vmatmul.bf16.gmra.mxu0 %v3124
    %v3210 = vpop.f32.mrf.mxu0
    %v3211 = vadd.f32 0.0, %v3210
    %v3212 = vpop.f32.mrf.mxu0
    %v3213 = vadd.f32 0.0, %v3212
    %3214 = vmatmul.bf16.gmra.mxu0 %v3125
    %v3215 = vpop.f32.mrf.mxu0
    %v3216 = vadd.f32 0.0, %v3215
    %v3217 = vpop.f32.mrf.mxu0
    %3218 = vdwg.mxu0
    %v3219 = vadd.f32 %v3037, %v3201
    %v3220 = vadd.f32 %v3039, %v3203
    %v3221 = vadd.f32 %v3042, %v3206
    %v3222 = vadd.f32 %v3044, %v3208
    %v3223 = vadd.f32 %v3047, %v3211
    %v3224 = vadd.f32 %v3049, %v3213
    %v3225 = vadd.f32 %v3052, %v3216
    %s3226 = scalar_lea.vmem %s9, 168
    %v3227 = vld [vmem:[%s3226] sm:$0xff]
    %v3228 = vld [vmem:[%s3226 + $0x8] sm:$0xff]
    %v3229 = vld [vmem:[%s3226 + $0x10] sm:$0xff]
    %v3230 = vld [vmem:[%s3226 + $0x18] sm:$0xff]
    %v3231 = vld [vmem:[%s3226 + $0x20] sm:$0xff]
    %v3232 = vld [vmem:[%s3226 + $0x28] sm:$0xff]
    %v3233 = vld [vmem:[%s3226 + $0x30] sm:$0x3]
    %v3235 = vsel %vm64, %v3227, 0
    %v3238 = vsel %vm64, %v3228, 0
    %v3241 = vsel %vm64, %v3229, 0
    %v3244 = vsel %vm64, %v3230, 0
    %v3247 = vsel %vm64, %v3231, 0
    %v3250 = vsel %vm64, %v3232, 0
    %v3253 = vsel %vm64, %v3233, 0
    %3255 = vmatpush.msra.mxu0 0.0
    %3256 = vmatpush.msra.mxu0 0.0
    %3257 = vmatpush.msra.mxu0 0.0
    %3258 = vmatpush.msra.mxu0 0.0
    %3259 = vmatpush.msra.mxu0 0.0
    %3260 = vmatpush.msra.mxu0 0.0
    %3261 = vmatpush.msra.mxu0 0.0
    %3262 = vmatpush.msra.mxu0 0.0
    %3263 = vmatpush.msra.mxu0 0.0
    %3264 = vmatpush.msra.mxu0 0.0
    %3265 = vmatpush.msra.mxu0 0.0
    %3266 = vmatpush.msra.mxu0 0.0
    %3267 = vmatpush.msra.mxu0 %v2727
    %3268 = vmatpush.msra.mxu0 %v2726
    %3269 = vmatpush.msra.mxu0 %v2725
    %3270 = vmatpush.msra.mxu0 %v2724
    %3271 = vmatmul.f32.gmra.mxu0 %v3235
    %v3272 = vpop.f32.mrf.mxu0
    %v3273 = vadd.f32 0.0, %v3272
    %3274 = vmatmul.f32.gmra.mxu0 %v3238
    %v3275 = vpop.f32.mrf.mxu0
    %v3276 = vadd.f32 0.0, %v3275
    %3277 = vmatmul.f32.gmra.mxu0 %v3241
    %v3278 = vpop.f32.mrf.mxu0
    %v3279 = vadd.f32 0.0, %v3278
    %3280 = vmatmul.f32.gmra.mxu0 %v3244
    %v3281 = vpop.f32.mrf.mxu0
    %v3282 = vadd.f32 0.0, %v3281
    %3283 = vmatmul.f32.gmra.mxu0 %v3247
    %v3284 = vpop.f32.mrf.mxu0
    %v3285 = vadd.f32 0.0, %v3284
    %3286 = vmatmul.f32.gmra.mxu0 %v3250
    %v3287 = vpop.f32.mrf.mxu0
    %v3288 = vadd.f32 0.0, %v3287
    %3289 = vmatmul.f32.gmra.mxu0 %v3253
    %v3290 = vpop.f32.mrf.mxu0
    %v3291 = vadd.f32 0.0, %v3290
    %3292 = vdwg.mxu0
    %v3293 = vpack.c.bf16 %v3276, %v3273
    %v3294 = vpack.c.bf16 %v3282, %v3279
    %v3295 = vpack.c.bf16 %v3288, %v3285
    %v3296 = vpack.c.bf16 %v3291, %v3291
    %s3297 = scalar_lea.vmem %s1, 1472
    %v3298 = vld [vmem:[%s3297] sm:$0xf]
    %v3299 = vld [vmem:[%s3297 + $0x4] sm:$0xf]
    %v3300 = vld [vmem:[%s3297 + $0x8] sm:$0xf]
    %v3301 = vld [vmem:[%s3297 + $0xc] sm:$0xf]
    %v3302 = vld [vmem:[%s3297 + $0x10] sm:$0xf]
    %v3303 = vld [vmem:[%s3297 + $0x14] sm:$0xf]
    %v3304 = vld [vmem:[%s3297 + $0x18] sm:$0xf]
    %v3305 = vld [vmem:[%s3297 + $0x1c] sm:$0xf]
    %v3306 = vld [vmem:[%s3297 + $0x20] sm:$0xf]
    %v3307 = vld [vmem:[%s3297 + $0x24] sm:$0xf]
    %v3308 = vld [vmem:[%s3297 + $0x28] sm:$0xf]
    %v3309 = vld [vmem:[%s3297 + $0x2c] sm:$0xf]
    %v3310 = vld [vmem:[%s3297 + $0x30] sm:$0xf]
    %v3311 = vld [vmem:[%s3297 + $0x34] sm:$0xf]
    %v3312 = vld [vmem:[%s3297 + $0x38] sm:$0xf]
    %v3313 = vld [vmem:[%s3297 + $0x3c] sm:$0xf]
    %v3330 = vunpack.c.l.b16 %v3298
    %v3331 = vunpack.c.l.b16 %v3299
    %v3332 = vunpack.c.l.b16 %v3300
    %v3333 = vunpack.c.l.b16 %v3301
    %v3334 = vunpack.c.l.b16 %v3302
    %v3335 = vunpack.c.l.b16 %v3303
    %v3336 = vunpack.c.l.b16 %v3304
    %v3337 = vunpack.c.l.b16 %v3305
    %v3338 = vunpack.c.l.b16 %v3306
    %v3339 = vunpack.c.l.b16 %v3307
    %v3340 = vunpack.c.l.b16 %v3308
    %v3341 = vunpack.c.l.b16 %v3309
    %v3342 = vunpack.c.l.b16 %v3310
    %v3343 = vunpack.c.l.b16 %v3311
    %v3344 = vunpack.c.l.b16 %v3312
    %v3345 = vunpack.c.l.b16 %v3313
    %v3346 = vpack.c.b16 %v3331, %v3330
    %v3347 = vpack.c.b16 %v3333, %v3332
    %v3348 = vpack.c.b16 %v3335, %v3334
    %v3349 = vpack.c.b16 %v3337, %v3336
    %v3350 = vpack.c.b16 %v3339, %v3338
    %v3351 = vpack.c.b16 %v3341, %v3340
    %v3352 = vpack.c.b16 %v3343, %v3342
    %v3353 = vpack.c.b16 %v3345, %v3344
    %3362 = vmatpush.bf16.msra.mxu0 %v3353
    %3363 = vmatpush.bf16.msra.mxu0 %v3352
    %3364 = vmatpush.bf16.msra.mxu0 %v3351
    %3365 = vmatpush.bf16.msra.mxu0 %v3350
    %3366 = vmatpush.bf16.msra.mxu0 %v3349
    %3367 = vmatpush.bf16.msra.mxu0 %v3348
    %3368 = vmatpush.bf16.msra.mxu0 %v3347
    %3369 = vmatpush.bf16.msra.mxu0 %v3346
    %3370 = vmatmul.bf16.gmra.mxu0 %v3293
    %v3371 = vpop.f32.mrf.mxu0
    %v3372 = vadd.f32 0.0, %v3371
    %v3373 = vpop.f32.mrf.mxu0
    %v3374 = vadd.f32 0.0, %v3373
    %3375 = vmatmul.bf16.gmra.mxu0 %v3294
    %v3376 = vpop.f32.mrf.mxu0
    %v3377 = vadd.f32 0.0, %v3376
    %v3378 = vpop.f32.mrf.mxu0
    %v3379 = vadd.f32 0.0, %v3378
    %3380 = vmatmul.bf16.gmra.mxu0 %v3295
    %v3381 = vpop.f32.mrf.mxu0
    %v3382 = vadd.f32 0.0, %v3381
    %v3383 = vpop.f32.mrf.mxu0
    %v3384 = vadd.f32 0.0, %v3383
    %3385 = vmatmul.bf16.gmra.mxu0 %v3296
    %v3386 = vpop.f32.mrf.mxu0
    %v3387 = vadd.f32 0.0, %v3386
    %v3388 = vpop.f32.mrf.mxu0
    %3389 = vdwg.mxu0
    %v3390 = vadd.f32 %v3219, %v3372
    %v3391 = vadd.f32 %v3220, %v3374
    %v3392 = vadd.f32 %v3221, %v3377
    %v3393 = vadd.f32 %v3222, %v3379
    %v3394 = vadd.f32 %v3223, %v3382
    %v3395 = vadd.f32 %v3224, %v3384
    %v3396 = vadd.f32 %v3225, %v3387
    %v3397 = vadd.f32 %v3390, %v3391
    %v3398 = vadd.f32 %v3397, %v3392
    %v3399 = vadd.f32 %v3398, %v3393
    %v3400 = vadd.f32 %v3399, %v3394
    %v3401 = vadd.f32 %v3400, %v3395
    %v3402 = vsel %vm563, %v3396, 0.0
    %v3403 = vadd.f32 %v3401, %v3402
    %v3404 = vrot.slane %v3403, 4
    %v3405 = vadd.f32 %v3403, %v3404
    %v3406 = vrot.slane %v3405, 2
    %v3407 = vadd.f32 %v3405, %v3406
    %v3408 = vrot.slane %v3407, 1
    %v3409 = vadd.f32 %v3407, %v3408
    %v3410 = vrcp.pop 50.0
    %v3411 = vmul.f32 50.0, %v3410
    %v3412 = vsub.f32 1.0, %v3411
    %v3413 = vmul.f32 %v3410, %v3412
    %v3414 = vadd.f32 %v3410, %v3413
    %vm3415 = vweird.f32 %v3410
    %v3416 = vsel %vm3415, %v3410, %v3414
    %v3417 = vmul.f32 %v3409, %v3416
    %v3418 = vsub.f32 %v3390, %v3417
    %v3419 = vsub.f32 %v3391, %v3417
    %v3420 = vsub.f32 %v3392, %v3417
    %v3421 = vsub.f32 %v3393, %v3417
    %v3422 = vsub.f32 %v3394, %v3417
    %v3423 = vsub.f32 %v3395, %v3417
    %v3424 = vsub.f32 %v3396, %v3417
    %v3425 = vmul.f32 %v3418, %v3418
    %v3426 = vmul.f32 %v3419, %v3419
    %v3427 = vmul.f32 %v3420, %v3420
    %v3428 = vmul.f32 %v3421, %v3421
    %v3429 = vmul.f32 %v3422, %v3422
    %v3430 = vmul.f32 %v3423, %v3423
    %v3431 = vmul.f32 %v3424, %v3424
    %v3432 = vadd.f32 %v3425, %v3426
    %v3433 = vadd.f32 %v3432, %v3427
    %v3434 = vadd.f32 %v3433, %v3428
    %v3435 = vadd.f32 %v3434, %v3429
    %v3436 = vadd.f32 %v3435, %v3430
    %v3437 = vsel %vm563, %v3431, 0.0
    %v3438 = vadd.f32 %v3436, %v3437
    %v3439 = vrot.slane %v3438, 4
    %v3440 = vadd.f32 %v3438, %v3439
    %v3441 = vrot.slane %v3440, 2
    %v3442 = vadd.f32 %v3440, %v3441
    %v3443 = vrot.slane %v3442, 1
    %v3444 = vadd.f32 %v3442, %v3443
    %v3445 = vmul.f32 %v3444, %v3416
    %s3446 = scalar_lea.vmem %s2, 5
    %v3447 = vld [vmem:[%s3446] sm:$0x1]
    %v3448 = vadd.f32 %v3445, 1e-05
    %v3449 = vrsqrt.pop %v3448
    %v3450 = vmul.f32 %v3449, %v3448
    %v3451 = vmul.f32 %v3450, %v3449
    %v3452 = vmul.f32 0.5, %v3451
    %v3453 = vsub.f32 1.5, %v3452
    %v3454 = vmul.f32 %v3449, %v3453
    %vm3455 = vweird.f32 %v3448
    %vm3456 = vweird.f32 %v3449
    %vm3457 = vmor %vm3455, %vm3456
    %v3458 = vsel %vm3457, %v3449, %v3454
    %v3459 = vmul.f32 %v3447, %v3458
    %s3460 = scalar_lea.vmem %s3, 5
    %v3461 = vld [vmem:[%s3460] sm:$0x1]
    %v3462 = vmul.f32 %v3417, %v3459
    %v3463 = vsub.f32 %v3461, %v3462
    %v3465 = vperm.slane %v3459, 0
    %v3467 = vmul.f32 %v3390, %v3465
    %v3468 = vmul.f32 %v3391, %v3465
    %v3469 = vmul.f32 %v3392, %v3465
    %v3470 = vmul.f32 %v3393, %v3465
    %v3471 = vmul.f32 %v3394, %v3465
    %v3472 = vmul.f32 %v3395, %v3465
    %v3473 = vmul.f32 %v3396, %v3465
    %v3475 = vperm.slane %v3463, 0
    %v3477 = vadd.f32 %v3467, %v3475
    %v3478 = vadd.f32 %v3468, %v3475
    %v3479 = vadd.f32 %v3469, %v3475
    %v3480 = vadd.f32 %v3470, %v3475
    %v3481 = vadd.f32 %v3471, %v3475
    %v3482 = vadd.f32 %v3472, %v3475
    %v3483 = vadd.f32 %v3473, %v3475
    %v3484 = vmax.f32 %v3477, 0.0
    %v3485 = vmax.f32 %v3478, 0.0
    %v3486 = vmax.f32 %v3479, 0.0
    %v3487 = vmax.f32 %v3480, 0.0
    %v3488 = vmax.f32 %v3481, 0.0
    %v3489 = vmax.f32 %v3482, 0.0
    %v3490 = vmax.f32 %v3483, 0.0
    %v3491 = vld [vmem:[%s10] sm:$0xff]
    %v3492 = vld [vmem:[%s10 + $0x8] sm:$0xff]
    %v3493 = vld [vmem:[%s10 + $0x10] sm:$0xff]
    %v3494 = vld [vmem:[%s10 + $0x18] sm:$0xff]
    %v3495 = vld [vmem:[%s10 + $0x20] sm:$0xff]
    %v3496 = vld [vmem:[%s10 + $0x28] sm:$0xff]
    %v3497 = vld [vmem:[%s10 + $0x30] sm:$0xff]
    %v3498 = vld [vmem:[%s10 + $0x38] sm:$0xff]
    %v3499 = vld [vmem:[%s10 + $0x40] sm:$0xff]
    %v3500 = vld [vmem:[%s10 + $0x48] sm:$0xff]
    %v3501 = vld [vmem:[%s10 + $0x50] sm:$0xff]
    %v3502 = vld [vmem:[%s10 + $0x58] sm:$0xff]
    %v3503 = vld [vmem:[%s10 + $0x60] sm:$0xff]
    %v3504 = vld [vmem:[%s10 + $0x68] sm:$0xff]
    %v3505 = vld [vmem:[%s10 + $0x70] sm:$0xff]
    %v3506 = vld [vmem:[%s10 + $0x78] sm:$0xff]
    %vm3507 = vcmask 408576
    %v3509 = vsel %vm3507, %v3491, 0
    %v3512 = vsel %vm3507, %v3492, 0
    %v3515 = vsel %vm3507, %v3493, 0
    %v3518 = vsel %vm3507, %v3494, 0
    %v3521 = vsel %vm3507, %v3495, 0
    %v3524 = vsel %vm3507, %v3496, 0
    %v3527 = vsel %vm3507, %v3497, 0
    %v3530 = vsel %vm3507, %v3498, 0
    %v3533 = vsel %vm3507, %v3499, 0
    %v3536 = vsel %vm3507, %v3500, 0
    %v3539 = vsel %vm3507, %v3501, 0
    %v3542 = vsel %vm3507, %v3502, 0
    %v3545 = vsel %vm3507, %v3503, 0
    %v3548 = vsel %vm3507, %v3504, 0
    %v3551 = vsel %vm3507, %v3505, 0
    %v3554 = vsel %vm3507, %v3506, 0
    %v3557 = vsel %vm563, %v3490, 0
    %3559 = vmatpush.msra.mxu0 0.0
    %3560 = vmatpush.msra.mxu0 0.0
    %3561 = vmatpush.msra.mxu0 0.0
    %3562 = vmatpush.msra.mxu0 0.0
    %3563 = vmatpush.msra.mxu0 0.0
    %3564 = vmatpush.msra.mxu0 0.0
    %3565 = vmatpush.msra.mxu0 0.0
    %3566 = vmatpush.msra.mxu0 0.0
    %3567 = vmatpush.msra.mxu0 0.0
    %3568 = vmatpush.msra.mxu0 %v3557
    %3569 = vmatpush.msra.mxu0 %v3489
    %3570 = vmatpush.msra.mxu0 %v3488
    %3571 = vmatpush.msra.mxu0 %v3487
    %3572 = vmatpush.msra.mxu0 %v3486
    %3573 = vmatpush.msra.mxu0 %v3485
    %3574 = vmatpush.msra.mxu0 %v3484
    %3575 = vmatmul.f32.gmra.mxu0 %v3509
    %v3576 = vpop.f32.mrf.mxu0
    %v3577 = vadd.f32 0.0, %v3576
    %3578 = vmatmul.f32.gmra.mxu0 %v3512
    %v3579 = vpop.f32.mrf.mxu0
    %v3580 = vadd.f32 0.0, %v3579
    %3581 = vmatmul.f32.gmra.mxu0 %v3515
    %v3582 = vpop.f32.mrf.mxu0
    %v3583 = vadd.f32 0.0, %v3582
    %3584 = vmatmul.f32.gmra.mxu0 %v3518
    %v3585 = vpop.f32.mrf.mxu0
    %v3586 = vadd.f32 0.0, %v3585
    %3587 = vmatmul.f32.gmra.mxu0 %v3521
    %v3588 = vpop.f32.mrf.mxu0
    %v3589 = vadd.f32 0.0, %v3588
    %3590 = vmatmul.f32.gmra.mxu0 %v3524
    %v3591 = vpop.f32.mrf.mxu0
    %v3592 = vadd.f32 0.0, %v3591
    %3593 = vmatmul.f32.gmra.mxu0 %v3527
    %v3594 = vpop.f32.mrf.mxu0
    %v3595 = vadd.f32 0.0, %v3594
    %3596 = vmatmul.f32.gmra.mxu0 %v3530
    %v3597 = vpop.f32.mrf.mxu0
    %v3598 = vadd.f32 0.0, %v3597
    %3599 = vmatmul.f32.gmra.mxu0 %v3533
    %v3600 = vpop.f32.mrf.mxu0
    %v3601 = vadd.f32 0.0, %v3600
    %3602 = vmatmul.f32.gmra.mxu0 %v3536
    %v3603 = vpop.f32.mrf.mxu0
    %v3604 = vadd.f32 0.0, %v3603
    %3605 = vmatmul.f32.gmra.mxu0 %v3539
    %v3606 = vpop.f32.mrf.mxu0
    %v3607 = vadd.f32 0.0, %v3606
    %3608 = vmatmul.f32.gmra.mxu0 %v3542
    %v3609 = vpop.f32.mrf.mxu0
    %v3610 = vadd.f32 0.0, %v3609
    %3611 = vmatmul.f32.gmra.mxu0 %v3545
    %v3612 = vpop.f32.mrf.mxu0
    %v3613 = vadd.f32 0.0, %v3612
    %3614 = vmatmul.f32.gmra.mxu0 %v3548
    %v3615 = vpop.f32.mrf.mxu0
    %v3616 = vadd.f32 0.0, %v3615
    %3617 = vmatmul.f32.gmra.mxu0 %v3551
    %v3618 = vpop.f32.mrf.mxu0
    %v3619 = vadd.f32 0.0, %v3618
    %3620 = vmatmul.f32.gmra.mxu0 %v3554
    %v3621 = vpop.f32.mrf.mxu0
    %v3622 = vadd.f32 0.0, %v3621
    %3623 = vdwg.mxu0
    %v3624 = vpack.c.bf16 %v3580, %v3577
    %v3625 = vpack.c.bf16 %v3586, %v3583
    %v3626 = vpack.c.bf16 %v3592, %v3589
    %v3627 = vpack.c.bf16 %v3598, %v3595
    %v3628 = vpack.c.bf16 %v3604, %v3601
    %v3629 = vpack.c.bf16 %v3610, %v3607
    %v3630 = vpack.c.bf16 %v3616, %v3613
    %v3631 = vpack.c.bf16 %v3622, %v3619
    %s3632 = scalar_lea.vmem %s1, 1536
    %v3633 = vld [vmem:[%s3632] sm:$0xf]
    %v3634 = vld [vmem:[%s3632 + $0x4] sm:$0xf]
    %v3635 = vld [vmem:[%s3632 + $0x8] sm:$0xf]
    %v3636 = vld [vmem:[%s3632 + $0xc] sm:$0xf]
    %v3637 = vld [vmem:[%s3632 + $0x10] sm:$0xf]
    %v3638 = vld [vmem:[%s3632 + $0x14] sm:$0xf]
    %v3639 = vld [vmem:[%s3632 + $0x18] sm:$0xf]
    %v3640 = vld [vmem:[%s3632 + $0x1c] sm:$0xf]
    %v3641 = vld [vmem:[%s3632 + $0x20] sm:$0xf]
    %v3642 = vld [vmem:[%s3632 + $0x24] sm:$0xf]
    %v3643 = vld [vmem:[%s3632 + $0x28] sm:$0xf]
    %v3644 = vld [vmem:[%s3632 + $0x2c] sm:$0xf]
    %v3645 = vld [vmem:[%s3632 + $0x30] sm:$0xf]
    %v3646 = vld [vmem:[%s3632 + $0x34] sm:$0xf]
    %v3647 = vld [vmem:[%s3632 + $0x38] sm:$0xf]
    %v3648 = vld [vmem:[%s3632 + $0x3c] sm:$0xf]
    %s3649 = scalar_lea.vmem %s10, 128
    %v3650 = vld [vmem:[%s3649] sm:$0xff]
    %v3651 = vld [vmem:[%s3649 + $0x8] sm:$0xff]
    %v3652 = vld [vmem:[%s3649 + $0x10] sm:$0xff]
    %v3653 = vld [vmem:[%s3649 + $0x18] sm:$0xff]
    %v3654 = vld [vmem:[%s3649 + $0x20] sm:$0xff]
    %v3655 = vld [vmem:[%s3649 + $0x28] sm:$0xff]
    %v3656 = vld [vmem:[%s3649 + $0x30] sm:$0xff]
    %v3657 = vld [vmem:[%s3649 + $0x38] sm:$0xff]
    %v3658 = vld [vmem:[%s3649 + $0x40] sm:$0xff]
    %v3659 = vld [vmem:[%s3649 + $0x48] sm:$0xff]
    %v3660 = vld [vmem:[%s3649 + $0x50] sm:$0xff]
    %v3661 = vld [vmem:[%s3649 + $0x58] sm:$0xff]
    %v3662 = vld [vmem:[%s3649 + $0x60] sm:$0xff]
    %v3663 = vld [vmem:[%s3649 + $0x68] sm:$0xff]
    %v3664 = vld [vmem:[%s3649 + $0x70] sm:$0xff]
    %v3665 = vld [vmem:[%s3649 + $0x78] sm:$0xff]
    %v3667 = vsel %vm3507, %v3650, 0
    %v3670 = vsel %vm3507, %v3651, 0
    %v3673 = vsel %vm3507, %v3652, 0
    %v3676 = vsel %vm3507, %v3653, 0
    %v3679 = vsel %vm3507, %v3654, 0
    %v3682 = vsel %vm3507, %v3655, 0
    %v3685 = vsel %vm3507, %v3656, 0
    %v3688 = vsel %vm3507, %v3657, 0
    %v3691 = vsel %vm3507, %v3658, 0
    %v3694 = vsel %vm3507, %v3659, 0
    %v3697 = vsel %vm3507, %v3660, 0
    %v3700 = vsel %vm3507, %v3661, 0
    %v3703 = vsel %vm3507, %v3662, 0
    %v3706 = vsel %vm3507, %v3663, 0
    %v3709 = vsel %vm3507, %v3664, 0
    %v3712 = vsel %vm3507, %v3665, 0
    %3714 = vmatpush.msra.mxu0 0.0
    %3715 = vmatpush.msra.mxu0 0.0
    %3716 = vmatpush.msra.mxu0 0.0
    %3717 = vmatpush.msra.mxu0 0.0
    %3718 = vmatpush.msra.mxu0 0.0
    %3719 = vmatpush.msra.mxu0 0.0
    %3720 = vmatpush.msra.mxu0 0.0
    %3721 = vmatpush.msra.mxu0 0.0
    %3722 = vmatpush.msra.mxu0 0.0
    %3723 = vmatpush.msra.mxu0 %v3557
    %3724 = vmatpush.msra.mxu0 %v3489
    %3725 = vmatpush.msra.mxu0 %v3488
    %3726 = vmatpush.msra.mxu0 %v3487
    %3727 = vmatpush.msra.mxu0 %v3486
    %3728 = vmatpush.msra.mxu0 %v3485
    %3729 = vmatpush.msra.mxu0 %v3484
    %3730 = vmatmul.f32.gmra.mxu0 %v3667
    %v3731 = vpop.f32.mrf.mxu0
    %v3732 = vadd.f32 0.0, %v3731
    %3733 = vmatmul.f32.gmra.mxu0 %v3670
    %v3734 = vpop.f32.mrf.mxu0
    %v3735 = vadd.f32 0.0, %v3734
    %3736 = vmatmul.f32.gmra.mxu0 %v3673
    %v3737 = vpop.f32.mrf.mxu0
    %v3738 = vadd.f32 0.0, %v3737
    %3739 = vmatmul.f32.gmra.mxu0 %v3676
    %v3740 = vpop.f32.mrf.mxu0
    %v3741 = vadd.f32 0.0, %v3740
    %3742 = vmatmul.f32.gmra.mxu0 %v3679
    %v3743 = vpop.f32.mrf.mxu0
    %v3744 = vadd.f32 0.0, %v3743
    %3745 = vmatmul.f32.gmra.mxu0 %v3682
    %v3746 = vpop.f32.mrf.mxu0
    %v3747 = vadd.f32 0.0, %v3746
    %3748 = vmatmul.f32.gmra.mxu0 %v3685
    %v3749 = vpop.f32.mrf.mxu0
    %v3750 = vadd.f32 0.0, %v3749
    %3751 = vmatmul.f32.gmra.mxu0 %v3688
    %v3752 = vpop.f32.mrf.mxu0
    %v3753 = vadd.f32 0.0, %v3752
    %3754 = vmatmul.f32.gmra.mxu0 %v3691
    %v3755 = vpop.f32.mrf.mxu0
    %v3756 = vadd.f32 0.0, %v3755
    %3757 = vmatmul.f32.gmra.mxu0 %v3694
    %v3758 = vpop.f32.mrf.mxu0
    %v3759 = vadd.f32 0.0, %v3758
    %3760 = vmatmul.f32.gmra.mxu0 %v3697
    %v3761 = vpop.f32.mrf.mxu0
    %v3762 = vadd.f32 0.0, %v3761
    %3763 = vmatmul.f32.gmra.mxu0 %v3700
    %v3764 = vpop.f32.mrf.mxu0
    %v3765 = vadd.f32 0.0, %v3764
    %3766 = vmatmul.f32.gmra.mxu0 %v3703
    %v3767 = vpop.f32.mrf.mxu0
    %v3768 = vadd.f32 0.0, %v3767
    %3769 = vmatmul.f32.gmra.mxu0 %v3706
    %v3770 = vpop.f32.mrf.mxu0
    %v3771 = vadd.f32 0.0, %v3770
    %3772 = vmatmul.f32.gmra.mxu0 %v3709
    %v3773 = vpop.f32.mrf.mxu0
    %v3774 = vadd.f32 0.0, %v3773
    %3775 = vmatmul.f32.gmra.mxu0 %v3712
    %v3776 = vpop.f32.mrf.mxu0
    %v3777 = vadd.f32 0.0, %v3776
    %3778 = vdwg.mxu0
    %v3779 = vpack.c.bf16 %v3735, %v3732
    %v3780 = vpack.c.bf16 %v3741, %v3738
    %v3781 = vpack.c.bf16 %v3747, %v3744
    %v3782 = vpack.c.bf16 %v3753, %v3750
    %v3783 = vpack.c.bf16 %v3759, %v3756
    %v3784 = vpack.c.bf16 %v3765, %v3762
    %v3785 = vpack.c.bf16 %v3771, %v3768
    %v3786 = vpack.c.bf16 %v3777, %v3774
    %s3787 = scalar_lea.vmem %s1, 1600
    %v3788 = vld [vmem:[%s3787] sm:$0xf]
    %v3789 = vld [vmem:[%s3787 + $0x4] sm:$0xf]
    %v3790 = vld [vmem:[%s3787 + $0x8] sm:$0xf]
    %v3791 = vld [vmem:[%s3787 + $0xc] sm:$0xf]
    %v3792 = vld [vmem:[%s3787 + $0x10] sm:$0xf]
    %v3793 = vld [vmem:[%s3787 + $0x14] sm:$0xf]
    %v3794 = vld [vmem:[%s3787 + $0x18] sm:$0xf]
    %v3795 = vld [vmem:[%s3787 + $0x1c] sm:$0xf]
    %v3796 = vld [vmem:[%s3787 + $0x20] sm:$0xf]
    %v3797 = vld [vmem:[%s3787 + $0x24] sm:$0xf]
    %v3798 = vld [vmem:[%s3787 + $0x28] sm:$0xf]
    %v3799 = vld [vmem:[%s3787 + $0x2c] sm:$0xf]
    %v3800 = vld [vmem:[%s3787 + $0x30] sm:$0xf]
    %v3801 = vld [vmem:[%s3787 + $0x34] sm:$0xf]
    %v3802 = vld [vmem:[%s3787 + $0x38] sm:$0xf]
    %v3803 = vld [vmem:[%s3787 + $0x3c] sm:$0xf]
    %v3820 = vunpack.c.l.b16 %v3788
    %v3821 = vunpack.c.l.b16 %v3789
    %v3822 = vunpack.c.l.b16 %v3790
    %v3823 = vunpack.c.l.b16 %v3791
    %v3824 = vunpack.c.l.b16 %v3792
    %v3825 = vunpack.c.l.b16 %v3793
    %v3826 = vunpack.c.l.b16 %v3794
    %v3827 = vunpack.c.l.b16 %v3795
    %v3828 = vunpack.c.l.b16 %v3796
    %v3829 = vunpack.c.l.b16 %v3797
    %v3830 = vunpack.c.l.b16 %v3798
    %v3831 = vunpack.c.l.b16 %v3799
    %v3832 = vunpack.c.l.b16 %v3800
    %v3833 = vunpack.c.l.b16 %v3801
    %v3834 = vunpack.c.l.b16 %v3802
    %v3835 = vunpack.c.l.b16 %v3803
    %v3836 = vpack.c.b16 %v3821, %v3820
    %v3837 = vpack.c.b16 %v3823, %v3822
    %v3838 = vpack.c.b16 %v3825, %v3824
    %v3839 = vpack.c.b16 %v3827, %v3826
    %v3840 = vpack.c.b16 %v3829, %v3828
    %v3841 = vpack.c.b16 %v3831, %v3830
    %v3842 = vpack.c.b16 %v3833, %v3832
    %v3843 = vpack.c.b16 %v3835, %v3834
    %3852 = vmatpush.bf16.msra.mxu0 %v3843
    %3853 = vmatpush.bf16.msra.mxu0 %v3842
    %3854 = vmatpush.bf16.msra.mxu0 %v3841
    %3855 = vmatpush.bf16.msra.mxu0 %v3840
    %3856 = vmatpush.bf16.msra.mxu0 %v3839
    %3857 = vmatpush.bf16.msra.mxu0 %v3838
    %3858 = vmatpush.bf16.msra.mxu0 %v3837
    %3859 = vmatpush.bf16.msra.mxu0 %v3836
    %3860 = vmatmul.bf16.gmra.mxu0 %v3779
    %v3861 = vpop.f32.mrf.mxu0
    %v3862 = vadd.f32 0.0, %v3861
    %v3863 = vpop.f32.mrf.mxu0
    %v3864 = vadd.f32 0.0, %v3863
    %3865 = vmatmul.bf16.gmra.mxu0 %v3780
    %v3866 = vpop.f32.mrf.mxu0
    %v3867 = vadd.f32 0.0, %v3866
    %v3868 = vpop.f32.mrf.mxu0
    %v3869 = vadd.f32 0.0, %v3868
    %3870 = vmatmul.bf16.gmra.mxu0 %v3781
    %v3871 = vpop.f32.mrf.mxu0
    %v3872 = vadd.f32 0.0, %v3871
    %v3873 = vpop.f32.mrf.mxu0
    %v3874 = vadd.f32 0.0, %v3873
    %3875 = vmatmul.bf16.gmra.mxu0 %v3782
    %v3876 = vpop.f32.mrf.mxu0
    %v3877 = vadd.f32 0.0, %v3876
    %v3878 = vpop.f32.mrf.mxu0
    %v3879 = vadd.f32 0.0, %v3878
    %3880 = vmatmul.bf16.gmra.mxu0 %v3783
    %v3881 = vpop.f32.mrf.mxu0
    %v3882 = vadd.f32 0.0, %v3881
    %v3883 = vpop.f32.mrf.mxu0
    %v3884 = vadd.f32 0.0, %v3883
    %3885 = vmatmul.bf16.gmra.mxu0 %v3784
    %v3886 = vpop.f32.mrf.mxu0
    %v3887 = vadd.f32 0.0, %v3886
    %v3888 = vpop.f32.mrf.mxu0
    %v3889 = vadd.f32 0.0, %v3888
    %3890 = vmatmul.bf16.gmra.mxu0 %v3785
    %v3891 = vpop.f32.mrf.mxu0
    %v3892 = vadd.f32 0.0, %v3891
    %v3893 = vpop.f32.mrf.mxu0
    %v3894 = vadd.f32 0.0, %v3893
    %3895 = vmatmul.bf16.gmra.mxu0 %v3786
    %v3896 = vpop.f32.mrf.mxu0
    %v3897 = vadd.f32 0.0, %v3896
    %v3898 = vpop.f32.mrf.mxu0
    %v3899 = vadd.f32 0.0, %v3898
    %3900 = vdwg.mxu0
    %v3917 = vunpack.c.l.b16 %v3633
    %v3918 = vunpack.c.l.b16 %v3634
    %v3919 = vunpack.c.l.b16 %v3635
    %v3920 = vunpack.c.l.b16 %v3636
    %v3921 = vunpack.c.l.b16 %v3637
    %v3922 = vunpack.c.l.b16 %v3638
    %v3923 = vunpack.c.l.b16 %v3639
    %v3924 = vunpack.c.l.b16 %v3640
    %v3925 = vunpack.c.l.b16 %v3641
    %v3926 = vunpack.c.l.b16 %v3642
    %v3927 = vunpack.c.l.b16 %v3643
    %v3928 = vunpack.c.l.b16 %v3644
    %v3929 = vunpack.c.l.b16 %v3645
    %v3930 = vunpack.c.l.b16 %v3646
    %v3931 = vunpack.c.l.b16 %v3647
    %v3932 = vunpack.c.l.b16 %v3648
    %v3933 = vpack.c.b16 %v3918, %v3917
    %v3934 = vpack.c.b16 %v3920, %v3919
    %v3935 = vpack.c.b16 %v3922, %v3921
    %v3936 = vpack.c.b16 %v3924, %v3923
    %v3937 = vpack.c.b16 %v3926, %v3925
    %v3938 = vpack.c.b16 %v3928, %v3927
    %v3939 = vpack.c.b16 %v3930, %v3929
    %v3940 = vpack.c.b16 %v3932, %v3931
    %3949 = vmatpush.bf16.msra.mxu0 %v3940
    %3950 = vmatpush.bf16.msra.mxu0 %v3939
    %3951 = vmatpush.bf16.msra.mxu0 %v3938
    %3952 = vmatpush.bf16.msra.mxu0 %v3937
    %3953 = vmatpush.bf16.msra.mxu0 %v3936
    %3954 = vmatpush.bf16.msra.mxu0 %v3935
    %3955 = vmatpush.bf16.msra.mxu0 %v3934
    %3956 = vmatpush.bf16.msra.mxu0 %v3933
    %3957 = vmatmul.bf16.gmra.mxu0 %v3624
    %v3958 = vpop.f32.mrf.mxu0
    %v3959 = vadd.f32 %v3862, %v3958
    %v3960 = vpop.f32.mrf.mxu0
    %v3961 = vadd.f32 %v3864, %v3960
    %3962 = vmatmul.bf16.gmra.mxu0 %v3625
    %v3963 = vpop.f32.mrf.mxu0
    %v3964 = vadd.f32 %v3867, %v3963
    %v3965 = vpop.f32.mrf.mxu0
    %v3966 = vadd.f32 %v3869, %v3965
    %3967 = vmatmul.bf16.gmra.mxu0 %v3626
    %v3968 = vpop.f32.mrf.mxu0
    %v3969 = vadd.f32 %v3872, %v3968
    %v3970 = vpop.f32.mrf.mxu0
    %v3971 = vadd.f32 %v3874, %v3970
    %3972 = vmatmul.bf16.gmra.mxu0 %v3627
    %v3973 = vpop.f32.mrf.mxu0
    %v3974 = vadd.f32 %v3877, %v3973
    %v3975 = vpop.f32.mrf.mxu0
    %v3976 = vadd.f32 %v3879, %v3975
    %3977 = vmatmul.bf16.gmra.mxu0 %v3628
    %v3978 = vpop.f32.mrf.mxu0
    %v3979 = vadd.f32 %v3882, %v3978
    %v3980 = vpop.f32.mrf.mxu0
    %v3981 = vadd.f32 %v3884, %v3980
    %3982 = vmatmul.bf16.gmra.mxu0 %v3629
    %v3983 = vpop.f32.mrf.mxu0
    %v3984 = vadd.f32 %v3887, %v3983
    %v3985 = vpop.f32.mrf.mxu0
    %v3986 = vadd.f32 %v3889, %v3985
    %3987 = vmatmul.bf16.gmra.mxu0 %v3630
    %v3988 = vpop.f32.mrf.mxu0
    %v3989 = vadd.f32 %v3892, %v3988
    %v3990 = vpop.f32.mrf.mxu0
    %v3991 = vadd.f32 %v3894, %v3990
    %3992 = vmatmul.bf16.gmra.mxu0 %v3631
    %v3993 = vpop.f32.mrf.mxu0
    %v3994 = vadd.f32 %v3897, %v3993
    %v3995 = vpop.f32.mrf.mxu0
    %v3996 = vadd.f32 %v3899, %v3995
    %3997 = vdwg.mxu0
    %s3998 = scalar_lea.vmem %s10, 256
    %v3999 = vld [vmem:[%s3998] sm:$0xff]
    %v4000 = vld [vmem:[%s3998 + $0x8] sm:$0xff]
    %v4001 = vld [vmem:[%s3998 + $0x10] sm:$0xff]
    %v4002 = vld [vmem:[%s3998 + $0x18] sm:$0xff]
    %v4003 = vld [vmem:[%s3998 + $0x20] sm:$0xff]
    %v4004 = vld [vmem:[%s3998 + $0x28] sm:$0xff]
    %v4005 = vld [vmem:[%s3998 + $0x30] sm:$0xff]
    %v4006 = vld [vmem:[%s3998 + $0x38] sm:$0xff]
    %v4007 = vld [vmem:[%s3998 + $0x40] sm:$0xff]
    %v4008 = vld [vmem:[%s3998 + $0x48] sm:$0xff]
    %v4009 = vld [vmem:[%s3998 + $0x50] sm:$0xff]
    %v4010 = vld [vmem:[%s3998 + $0x58] sm:$0xff]
    %v4011 = vld [vmem:[%s3998 + $0x60] sm:$0xff]
    %v4012 = vld [vmem:[%s3998 + $0x68] sm:$0xff]
    %v4013 = vld [vmem:[%s3998 + $0x70] sm:$0xff]
    %v4014 = vld [vmem:[%s3998 + $0x78] sm:$0xff]
    %v4016 = vsel %vm3507, %v3999, 0
    %v4019 = vsel %vm3507, %v4000, 0
    %v4022 = vsel %vm3507, %v4001, 0
    %v4025 = vsel %vm3507, %v4002, 0
    %v4028 = vsel %vm3507, %v4003, 0
    %v4031 = vsel %vm3507, %v4004, 0
    %v4034 = vsel %vm3507, %v4005, 0
    %v4037 = vsel %vm3507, %v4006, 0
    %v4040 = vsel %vm3507, %v4007, 0
    %v4043 = vsel %vm3507, %v4008, 0
    %v4046 = vsel %vm3507, %v4009, 0
    %v4049 = vsel %vm3507, %v4010, 0
    %v4052 = vsel %vm3507, %v4011, 0
    %v4055 = vsel %vm3507, %v4012, 0
    %v4058 = vsel %vm3507, %v4013, 0
    %v4061 = vsel %vm3507, %v4014, 0
    %4063 = vmatpush.msra.mxu0 0.0
    %4064 = vmatpush.msra.mxu0 0.0
    %4065 = vmatpush.msra.mxu0 0.0
    %4066 = vmatpush.msra.mxu0 0.0
    %4067 = vmatpush.msra.mxu0 0.0
    %4068 = vmatpush.msra.mxu0 0.0
    %4069 = vmatpush.msra.mxu0 0.0
    %4070 = vmatpush.msra.mxu0 0.0
    %4071 = vmatpush.msra.mxu0 0.0
    %4072 = vmatpush.msra.mxu0 %v3557
    %4073 = vmatpush.msra.mxu0 %v3489
    %4074 = vmatpush.msra.mxu0 %v3488
    %4075 = vmatpush.msra.mxu0 %v3487
    %4076 = vmatpush.msra.mxu0 %v3486
    %4077 = vmatpush.msra.mxu0 %v3485
    %4078 = vmatpush.msra.mxu0 %v3484
    %4079 = vmatmul.f32.gmra.mxu0 %v4016
    %v4080 = vpop.f32.mrf.mxu0
    %v4081 = vadd.f32 0.0, %v4080
    %4082 = vmatmul.f32.gmra.mxu0 %v4019
    %v4083 = vpop.f32.mrf.mxu0
    %v4084 = vadd.f32 0.0, %v4083
    %4085 = vmatmul.f32.gmra.mxu0 %v4022
    %v4086 = vpop.f32.mrf.mxu0
    %v4087 = vadd.f32 0.0, %v4086
    %4088 = vmatmul.f32.gmra.mxu0 %v4025
    %v4089 = vpop.f32.mrf.mxu0
    %v4090 = vadd.f32 0.0, %v4089
    %4091 = vmatmul.f32.gmra.mxu0 %v4028
    %v4092 = vpop.f32.mrf.mxu0
    %v4093 = vadd.f32 0.0, %v4092
    %4094 = vmatmul.f32.gmra.mxu0 %v4031
    %v4095 = vpop.f32.mrf.mxu0
    %v4096 = vadd.f32 0.0, %v4095
    %4097 = vmatmul.f32.gmra.mxu0 %v4034
    %v4098 = vpop.f32.mrf.mxu0
    %v4099 = vadd.f32 0.0, %v4098
    %4100 = vmatmul.f32.gmra.mxu0 %v4037
    %v4101 = vpop.f32.mrf.mxu0
    %v4102 = vadd.f32 0.0, %v4101
    %4103 = vmatmul.f32.gmra.mxu0 %v4040
    %v4104 = vpop.f32.mrf.mxu0
    %v4105 = vadd.f32 0.0, %v4104
    %4106 = vmatmul.f32.gmra.mxu0 %v4043
    %v4107 = vpop.f32.mrf.mxu0
    %v4108 = vadd.f32 0.0, %v4107
    %4109 = vmatmul.f32.gmra.mxu0 %v4046
    %v4110 = vpop.f32.mrf.mxu0
    %v4111 = vadd.f32 0.0, %v4110
    %4112 = vmatmul.f32.gmra.mxu0 %v4049
    %v4113 = vpop.f32.mrf.mxu0
    %v4114 = vadd.f32 0.0, %v4113
    %4115 = vmatmul.f32.gmra.mxu0 %v4052
    %v4116 = vpop.f32.mrf.mxu0
    %v4117 = vadd.f32 0.0, %v4116
    %4118 = vmatmul.f32.gmra.mxu0 %v4055
    %v4119 = vpop.f32.mrf.mxu0
    %v4120 = vadd.f32 0.0, %v4119
    %4121 = vmatmul.f32.gmra.mxu0 %v4058
    %v4122 = vpop.f32.mrf.mxu0
    %v4123 = vadd.f32 0.0, %v4122
    %4124 = vmatmul.f32.gmra.mxu0 %v4061
    %v4125 = vpop.f32.mrf.mxu0
    %v4126 = vadd.f32 0.0, %v4125
    %4127 = vdwg.mxu0
    %v4128 = vpack.c.bf16 %v4084, %v4081
    %v4129 = vpack.c.bf16 %v4090, %v4087
    %v4130 = vpack.c.bf16 %v4096, %v4093
    %v4131 = vpack.c.bf16 %v4102, %v4099
    %v4132 = vpack.c.bf16 %v4108, %v4105
    %v4133 = vpack.c.bf16 %v4114, %v4111
    %v4134 = vpack.c.bf16 %v4120, %v4117
    %v4135 = vpack.c.bf16 %v4126, %v4123
    %s4136 = scalar_lea.vmem %s1, 1664
    %v4137 = vld [vmem:[%s4136] sm:$0xf]
    %v4138 = vld [vmem:[%s4136 + $0x4] sm:$0xf]
    %v4139 = vld [vmem:[%s4136 + $0x8] sm:$0xf]
    %v4140 = vld [vmem:[%s4136 + $0xc] sm:$0xf]
    %v4141 = vld [vmem:[%s4136 + $0x10] sm:$0xf]
    %v4142 = vld [vmem:[%s4136 + $0x14] sm:$0xf]
    %v4143 = vld [vmem:[%s4136 + $0x18] sm:$0xf]
    %v4144 = vld [vmem:[%s4136 + $0x1c] sm:$0xf]
    %v4145 = vld [vmem:[%s4136 + $0x20] sm:$0xf]
    %v4146 = vld [vmem:[%s4136 + $0x24] sm:$0xf]
    %v4147 = vld [vmem:[%s4136 + $0x28] sm:$0xf]
    %v4148 = vld [vmem:[%s4136 + $0x2c] sm:$0xf]
    %v4149 = vld [vmem:[%s4136 + $0x30] sm:$0xf]
    %v4150 = vld [vmem:[%s4136 + $0x34] sm:$0xf]
    %v4151 = vld [vmem:[%s4136 + $0x38] sm:$0xf]
    %v4152 = vld [vmem:[%s4136 + $0x3c] sm:$0xf]
    %v4169 = vunpack.c.l.b16 %v4137
    %v4170 = vunpack.c.l.b16 %v4138
    %v4171 = vunpack.c.l.b16 %v4139
    %v4172 = vunpack.c.l.b16 %v4140
    %v4173 = vunpack.c.l.b16 %v4141
    %v4174 = vunpack.c.l.b16 %v4142
    %v4175 = vunpack.c.l.b16 %v4143
    %v4176 = vunpack.c.l.b16 %v4144
    %v4177 = vunpack.c.l.b16 %v4145
    %v4178 = vunpack.c.l.b16 %v4146
    %v4179 = vunpack.c.l.b16 %v4147
    %v4180 = vunpack.c.l.b16 %v4148
    %v4181 = vunpack.c.l.b16 %v4149
    %v4182 = vunpack.c.l.b16 %v4150
    %v4183 = vunpack.c.l.b16 %v4151
    %v4184 = vunpack.c.l.b16 %v4152
    %v4185 = vpack.c.b16 %v4170, %v4169
    %v4186 = vpack.c.b16 %v4172, %v4171
    %v4187 = vpack.c.b16 %v4174, %v4173
    %v4188 = vpack.c.b16 %v4176, %v4175
    %v4189 = vpack.c.b16 %v4178, %v4177
    %v4190 = vpack.c.b16 %v4180, %v4179
    %v4191 = vpack.c.b16 %v4182, %v4181
    %v4192 = vpack.c.b16 %v4184, %v4183
    %4201 = vmatpush.bf16.msra.mxu0 %v4192
    %4202 = vmatpush.bf16.msra.mxu0 %v4191
    %4203 = vmatpush.bf16.msra.mxu0 %v4190
    %4204 = vmatpush.bf16.msra.mxu0 %v4189
    %4205 = vmatpush.bf16.msra.mxu0 %v4188
    %4206 = vmatpush.bf16.msra.mxu0 %v4187
    %4207 = vmatpush.bf16.msra.mxu0 %v4186
    %4208 = vmatpush.bf16.msra.mxu0 %v4185
    %4209 = vmatmul.bf16.gmra.mxu0 %v4128
    %v4210 = vpop.f32.mrf.mxu0
    %v4211 = vadd.f32 0.0, %v4210
    %v4212 = vpop.f32.mrf.mxu0
    %v4213 = vadd.f32 0.0, %v4212
    %4214 = vmatmul.bf16.gmra.mxu0 %v4129
    %v4215 = vpop.f32.mrf.mxu0
    %v4216 = vadd.f32 0.0, %v4215
    %v4217 = vpop.f32.mrf.mxu0
    %v4218 = vadd.f32 0.0, %v4217
    %4219 = vmatmul.bf16.gmra.mxu0 %v4130
    %v4220 = vpop.f32.mrf.mxu0
    %v4221 = vadd.f32 0.0, %v4220
    %v4222 = vpop.f32.mrf.mxu0
    %v4223 = vadd.f32 0.0, %v4222
    %4224 = vmatmul.bf16.gmra.mxu0 %v4131
    %v4225 = vpop.f32.mrf.mxu0
    %v4226 = vadd.f32 0.0, %v4225
    %v4227 = vpop.f32.mrf.mxu0
    %v4228 = vadd.f32 0.0, %v4227
    %4229 = vmatmul.bf16.gmra.mxu0 %v4132
    %v4230 = vpop.f32.mrf.mxu0
    %v4231 = vadd.f32 0.0, %v4230
    %v4232 = vpop.f32.mrf.mxu0
    %v4233 = vadd.f32 0.0, %v4232
    %4234 = vmatmul.bf16.gmra.mxu0 %v4133
    %v4235 = vpop.f32.mrf.mxu0
    %v4236 = vadd.f32 0.0, %v4235
    %v4237 = vpop.f32.mrf.mxu0
    %v4238 = vadd.f32 0.0, %v4237
    %4239 = vmatmul.bf16.gmra.mxu0 %v4134
    %v4240 = vpop.f32.mrf.mxu0
    %v4241 = vadd.f32 0.0, %v4240
    %v4242 = vpop.f32.mrf.mxu0
    %v4243 = vadd.f32 0.0, %v4242
    %4244 = vmatmul.bf16.gmra.mxu0 %v4135
    %v4245 = vpop.f32.mrf.mxu0
    %v4246 = vadd.f32 0.0, %v4245
    %v4247 = vpop.f32.mrf.mxu0
    %v4248 = vadd.f32 0.0, %v4247
    %4249 = vdwg.mxu0
    %v4250 = vadd.f32 %v3959, %v4211
    %v4251 = vadd.f32 %v3961, %v4213
    %v4252 = vadd.f32 %v3964, %v4216
    %v4253 = vadd.f32 %v3966, %v4218
    %v4254 = vadd.f32 %v3969, %v4221
    %v4255 = vadd.f32 %v3971, %v4223
    %v4256 = vadd.f32 %v3974, %v4226
    %v4257 = vadd.f32 %v3976, %v4228
    %v4258 = vadd.f32 %v3979, %v4231
    %v4259 = vadd.f32 %v3981, %v4233
    %v4260 = vadd.f32 %v3984, %v4236
    %v4261 = vadd.f32 %v3986, %v4238
    %v4262 = vadd.f32 %v3989, %v4241
    %v4263 = vadd.f32 %v3991, %v4243
    %v4264 = vadd.f32 %v3994, %v4246
    %v4265 = vadd.f32 %v3996, %v4248
    %s4266 = scalar_lea.vmem %s10, 384
    %v4267 = vld [vmem:[%s4266] sm:$0xff]
    %v4268 = vld [vmem:[%s4266 + $0x8] sm:$0xff]
    %v4269 = vld [vmem:[%s4266 + $0x10] sm:$0xff]
    %v4270 = vld [vmem:[%s4266 + $0x18] sm:$0xff]
    %v4271 = vld [vmem:[%s4266 + $0x20] sm:$0xff]
    %v4272 = vld [vmem:[%s4266 + $0x28] sm:$0xff]
    %v4273 = vld [vmem:[%s4266 + $0x30] sm:$0xff]
    %v4274 = vld [vmem:[%s4266 + $0x38] sm:$0xff]
    %v4275 = vld [vmem:[%s4266 + $0x40] sm:$0xff]
    %v4276 = vld [vmem:[%s4266 + $0x48] sm:$0xff]
    %v4277 = vld [vmem:[%s4266 + $0x50] sm:$0xff]
    %v4278 = vld [vmem:[%s4266 + $0x58] sm:$0xff]
    %v4279 = vld [vmem:[%s4266 + $0x60] sm:$0xff]
    %v4280 = vld [vmem:[%s4266 + $0x68] sm:$0xff]
    %v4281 = vld [vmem:[%s4266 + $0x70] sm:$0xff]
    %v4282 = vld [vmem:[%s4266 + $0x78] sm:$0xff]
    %v4284 = vsel %vm3507, %v4267, 0
    %v4287 = vsel %vm3507, %v4268, 0
    %v4290 = vsel %vm3507, %v4269, 0
    %v4293 = vsel %vm3507, %v4270, 0
    %v4296 = vsel %vm3507, %v4271, 0
    %v4299 = vsel %vm3507, %v4272, 0
    %v4302 = vsel %vm3507, %v4273, 0
    %v4305 = vsel %vm3507, %v4274, 0
    %v4308 = vsel %vm3507, %v4275, 0
    %v4311 = vsel %vm3507, %v4276, 0
    %v4314 = vsel %vm3507, %v4277, 0
    %v4317 = vsel %vm3507, %v4278, 0
    %v4320 = vsel %vm3507, %v4279, 0
    %v4323 = vsel %vm3507, %v4280, 0
    %v4326 = vsel %vm3507, %v4281, 0
    %v4329 = vsel %vm3507, %v4282, 0
    %4331 = vmatpush.msra.mxu0 0.0
    %4332 = vmatpush.msra.mxu0 0.0
    %4333 = vmatpush.msra.mxu0 0.0
    %4334 = vmatpush.msra.mxu0 0.0
    %4335 = vmatpush.msra.mxu0 0.0
    %4336 = vmatpush.msra.mxu0 0.0
    %4337 = vmatpush.msra.mxu0 0.0
    %4338 = vmatpush.msra.mxu0 0.0
    %4339 = vmatpush.msra.mxu0 0.0
    %4340 = vmatpush.msra.mxu0 %v3557
    %4341 = vmatpush.msra.mxu0 %v3489
    %4342 = vmatpush.msra.mxu0 %v3488
    %4343 = vmatpush.msra.mxu0 %v3487
    %4344 = vmatpush.msra.mxu0 %v3486
    %4345 = vmatpush.msra.mxu0 %v3485
    %4346 = vmatpush.msra.mxu0 %v3484
    %4347 = vmatmul.f32.gmra.mxu0 %v4284
    %v4348 = vpop.f32.mrf.mxu0
    %v4349 = vadd.f32 0.0, %v4348
    %4350 = vmatmul.f32.gmra.mxu0 %v4287
    %v4351 = vpop.f32.mrf.mxu0
    %v4352 = vadd.f32 0.0, %v4351
    %4353 = vmatmul.f32.gmra.mxu0 %v4290
    %v4354 = vpop.f32.mrf.mxu0
    %v4355 = vadd.f32 0.0, %v4354
    %4356 = vmatmul.f32.gmra.mxu0 %v4293
    %v4357 = vpop.f32.mrf.mxu0
    %v4358 = vadd.f32 0.0, %v4357
    %4359 = vmatmul.f32.gmra.mxu0 %v4296
    %v4360 = vpop.f32.mrf.mxu0
    %v4361 = vadd.f32 0.0, %v4360
    %4362 = vmatmul.f32.gmra.mxu0 %v4299
    %v4363 = vpop.f32.mrf.mxu0
    %v4364 = vadd.f32 0.0, %v4363
    %4365 = vmatmul.f32.gmra.mxu0 %v4302
    %v4366 = vpop.f32.mrf.mxu0
    %v4367 = vadd.f32 0.0, %v4366
    %4368 = vmatmul.f32.gmra.mxu0 %v4305
    %v4369 = vpop.f32.mrf.mxu0
    %v4370 = vadd.f32 0.0, %v4369
    %4371 = vmatmul.f32.gmra.mxu0 %v4308
    %v4372 = vpop.f32.mrf.mxu0
    %v4373 = vadd.f32 0.0, %v4372
    %4374 = vmatmul.f32.gmra.mxu0 %v4311
    %v4375 = vpop.f32.mrf.mxu0
    %v4376 = vadd.f32 0.0, %v4375
    %4377 = vmatmul.f32.gmra.mxu0 %v4314
    %v4378 = vpop.f32.mrf.mxu0
    %v4379 = vadd.f32 0.0, %v4378
    %4380 = vmatmul.f32.gmra.mxu0 %v4317
    %v4381 = vpop.f32.mrf.mxu0
    %v4382 = vadd.f32 0.0, %v4381
    %4383 = vmatmul.f32.gmra.mxu0 %v4320
    %v4384 = vpop.f32.mrf.mxu0
    %v4385 = vadd.f32 0.0, %v4384
    %4386 = vmatmul.f32.gmra.mxu0 %v4323
    %v4387 = vpop.f32.mrf.mxu0
    %v4388 = vadd.f32 0.0, %v4387
    %4389 = vmatmul.f32.gmra.mxu0 %v4326
    %v4390 = vpop.f32.mrf.mxu0
    %v4391 = vadd.f32 0.0, %v4390
    %4392 = vmatmul.f32.gmra.mxu0 %v4329
    %v4393 = vpop.f32.mrf.mxu0
    %v4394 = vadd.f32 0.0, %v4393
    %4395 = vdwg.mxu0
    %v4396 = vpack.c.bf16 %v4352, %v4349
    %v4397 = vpack.c.bf16 %v4358, %v4355
    %v4398 = vpack.c.bf16 %v4364, %v4361
    %v4399 = vpack.c.bf16 %v4370, %v4367
    %v4400 = vpack.c.bf16 %v4376, %v4373
    %v4401 = vpack.c.bf16 %v4382, %v4379
    %v4402 = vpack.c.bf16 %v4388, %v4385
    %v4403 = vpack.c.bf16 %v4394, %v4391
    %s4404 = scalar_lea.vmem %s1, 1728
    %v4405 = vld [vmem:[%s4404] sm:$0xf]
    %v4406 = vld [vmem:[%s4404 + $0x4] sm:$0xf]
    %v4407 = vld [vmem:[%s4404 + $0x8] sm:$0xf]
    %v4408 = vld [vmem:[%s4404 + $0xc] sm:$0xf]
    %v4409 = vld [vmem:[%s4404 + $0x10] sm:$0xf]
    %v4410 = vld [vmem:[%s4404 + $0x14] sm:$0xf]
    %v4411 = vld [vmem:[%s4404 + $0x18] sm:$0xf]
    %v4412 = vld [vmem:[%s4404 + $0x1c] sm:$0xf]
    %v4413 = vld [vmem:[%s4404 + $0x20] sm:$0xf]
    %v4414 = vld [vmem:[%s4404 + $0x24] sm:$0xf]
    %v4415 = vld [vmem:[%s4404 + $0x28] sm:$0xf]
    %v4416 = vld [vmem:[%s4404 + $0x2c] sm:$0xf]
    %v4417 = vld [vmem:[%s4404 + $0x30] sm:$0xf]
    %v4418 = vld [vmem:[%s4404 + $0x34] sm:$0xf]
    %v4419 = vld [vmem:[%s4404 + $0x38] sm:$0xf]
    %v4420 = vld [vmem:[%s4404 + $0x3c] sm:$0xf]
    %v4437 = vunpack.c.l.b16 %v4405
    %v4438 = vunpack.c.l.b16 %v4406
    %v4439 = vunpack.c.l.b16 %v4407
    %v4440 = vunpack.c.l.b16 %v4408
    %v4441 = vunpack.c.l.b16 %v4409
    %v4442 = vunpack.c.l.b16 %v4410
    %v4443 = vunpack.c.l.b16 %v4411
    %v4444 = vunpack.c.l.b16 %v4412
    %v4445 = vunpack.c.l.b16 %v4413
    %v4446 = vunpack.c.l.b16 %v4414
    %v4447 = vunpack.c.l.b16 %v4415
    %v4448 = vunpack.c.l.b16 %v4416
    %v4449 = vunpack.c.l.b16 %v4417
    %v4450 = vunpack.c.l.b16 %v4418
    %v4451 = vunpack.c.l.b16 %v4419
    %v4452 = vunpack.c.l.b16 %v4420
    %v4453 = vpack.c.b16 %v4438, %v4437
    %v4454 = vpack.c.b16 %v4440, %v4439
    %v4455 = vpack.c.b16 %v4442, %v4441
    %v4456 = vpack.c.b16 %v4444, %v4443
    %v4457 = vpack.c.b16 %v4446, %v4445
    %v4458 = vpack.c.b16 %v4448, %v4447
    %v4459 = vpack.c.b16 %v4450, %v4449
    %v4460 = vpack.c.b16 %v4452, %v4451
    %4469 = vmatpush.bf16.msra.mxu0 %v4460
    %4470 = vmatpush.bf16.msra.mxu0 %v4459
    %4471 = vmatpush.bf16.msra.mxu0 %v4458
    %4472 = vmatpush.bf16.msra.mxu0 %v4457
    %4473 = vmatpush.bf16.msra.mxu0 %v4456
    %4474 = vmatpush.bf16.msra.mxu0 %v4455
    %4475 = vmatpush.bf16.msra.mxu0 %v4454
    %4476 = vmatpush.bf16.msra.mxu0 %v4453
    %4477 = vmatmul.bf16.gmra.mxu0 %v4396
    %v4478 = vpop.f32.mrf.mxu0
    %v4479 = vadd.f32 0.0, %v4478
    %v4480 = vpop.f32.mrf.mxu0
    %v4481 = vadd.f32 0.0, %v4480
    %4482 = vmatmul.bf16.gmra.mxu0 %v4397
    %v4483 = vpop.f32.mrf.mxu0
    %v4484 = vadd.f32 0.0, %v4483
    %v4485 = vpop.f32.mrf.mxu0
    %v4486 = vadd.f32 0.0, %v4485
    %4487 = vmatmul.bf16.gmra.mxu0 %v4398
    %v4488 = vpop.f32.mrf.mxu0
    %v4489 = vadd.f32 0.0, %v4488
    %v4490 = vpop.f32.mrf.mxu0
    %v4491 = vadd.f32 0.0, %v4490
    %4492 = vmatmul.bf16.gmra.mxu0 %v4399
    %v4493 = vpop.f32.mrf.mxu0
    %v4494 = vadd.f32 0.0, %v4493
    %v4495 = vpop.f32.mrf.mxu0
    %v4496 = vadd.f32 0.0, %v4495
    %4497 = vmatmul.bf16.gmra.mxu0 %v4400
    %v4498 = vpop.f32.mrf.mxu0
    %v4499 = vadd.f32 0.0, %v4498
    %v4500 = vpop.f32.mrf.mxu0
    %v4501 = vadd.f32 0.0, %v4500
    %4502 = vmatmul.bf16.gmra.mxu0 %v4401
    %v4503 = vpop.f32.mrf.mxu0
    %v4504 = vadd.f32 0.0, %v4503
    %v4505 = vpop.f32.mrf.mxu0
    %v4506 = vadd.f32 0.0, %v4505
    %4507 = vmatmul.bf16.gmra.mxu0 %v4402
    %v4508 = vpop.f32.mrf.mxu0
    %v4509 = vadd.f32 0.0, %v4508
    %v4510 = vpop.f32.mrf.mxu0
    %v4511 = vadd.f32 0.0, %v4510
    %4512 = vmatmul.bf16.gmra.mxu0 %v4403
    %v4513 = vpop.f32.mrf.mxu0
    %v4514 = vadd.f32 0.0, %v4513
    %v4515 = vpop.f32.mrf.mxu0
    %v4516 = vadd.f32 0.0, %v4515
    %4517 = vdwg.mxu0
    %v4518 = vadd.f32 %v4250, %v4479
    %v4519 = vadd.f32 %v4251, %v4481
    %v4520 = vadd.f32 %v4252, %v4484
    %v4521 = vadd.f32 %v4253, %v4486
    %v4522 = vadd.f32 %v4254, %v4489
    %v4523 = vadd.f32 %v4255, %v4491
    %v4524 = vadd.f32 %v4256, %v4494
    %v4525 = vadd.f32 %v4257, %v4496
    %v4526 = vadd.f32 %v4258, %v4499
    %v4527 = vadd.f32 %v4259, %v4501
    %v4528 = vadd.f32 %v4260, %v4504
    %v4529 = vadd.f32 %v4261, %v4506
    %v4530 = vadd.f32 %v4262, %v4509
    %v4531 = vadd.f32 %v4263, %v4511
    %v4532 = vadd.f32 %v4264, %v4514
    %v4533 = vadd.f32 %v4265, %v4516
    %v4534 = vadd.f32 %v4518, %v4519
    %v4535 = vadd.f32 %v4534, %v4520
    %v4536 = vadd.f32 %v4535, %v4521
    %v4537 = vadd.f32 %v4536, %v4522
    %v4538 = vadd.f32 %v4537, %v4523
    %v4539 = vadd.f32 %v4538, %v4524
    %v4540 = vadd.f32 %v4539, %v4525
    %v4541 = vadd.f32 %v4540, %v4526
    %v4542 = vadd.f32 %v4541, %v4527
    %v4543 = vadd.f32 %v4542, %v4528
    %v4544 = vadd.f32 %v4543, %v4529
    %v4545 = vadd.f32 %v4544, %v4530
    %v4546 = vadd.f32 %v4545, %v4531
    %v4547 = vadd.f32 %v4546, %v4532
    %v4548 = vadd.f32 %v4547, %v4533
    %v4549 = vrot.slane %v4548, 4
    %v4550 = vadd.f32 %v4548, %v4549
    %v4551 = vrot.slane %v4550, 2
    %v4552 = vadd.f32 %v4550, %v4551
    %v4553 = vrot.slane %v4552, 1
    %v4554 = vadd.f32 %v4552, %v4553
    %v4555 = vrcp.pop 128.0
    %v4556 = vmul.f32 128.0, %v4555
    %v4557 = vsub.f32 1.0, %v4556
    %v4558 = vmul.f32 %v4555, %v4557
    %v4559 = vadd.f32 %v4555, %v4558
    %vm4560 = vweird.f32 %v4555
    %v4561 = vsel %vm4560, %v4555, %v4559
    %v4562 = vmul.f32 %v4554, %v4561
    %v4563 = vsub.f32 %v4518, %v4562
    %v4564 = vsub.f32 %v4519, %v4562
    %v4565 = vsub.f32 %v4520, %v4562
    %v4566 = vsub.f32 %v4521, %v4562
    %v4567 = vsub.f32 %v4522, %v4562
    %v4568 = vsub.f32 %v4523, %v4562
    %v4569 = vsub.f32 %v4524, %v4562
    %v4570 = vsub.f32 %v4525, %v4562
    %v4571 = vsub.f32 %v4526, %v4562
    %v4572 = vsub.f32 %v4527, %v4562
    %v4573 = vsub.f32 %v4528, %v4562
    %v4574 = vsub.f32 %v4529, %v4562
    %v4575 = vsub.f32 %v4530, %v4562
    %v4576 = vsub.f32 %v4531, %v4562
    %v4577 = vsub.f32 %v4532, %v4562
    %v4578 = vsub.f32 %v4533, %v4562
    %v4579 = vmul.f32 %v4563, %v4563
    %v4580 = vmul.f32 %v4564, %v4564
    %v4581 = vmul.f32 %v4565, %v4565
    %v4582 = vmul.f32 %v4566, %v4566
    %v4583 = vmul.f32 %v4567, %v4567
    %v4584 = vmul.f32 %v4568, %v4568
    %v4585 = vmul.f32 %v4569, %v4569
    %v4586 = vmul.f32 %v4570, %v4570
    %v4587 = vmul.f32 %v4571, %v4571
    %v4588 = vmul.f32 %v4572, %v4572
    %v4589 = vmul.f32 %v4573, %v4573
    %v4590 = vmul.f32 %v4574, %v4574
    %v4591 = vmul.f32 %v4575, %v4575
    %v4592 = vmul.f32 %v4576, %v4576
    %v4593 = vmul.f32 %v4577, %v4577
    %v4594 = vmul.f32 %v4578, %v4578
    %v4595 = vadd.f32 %v4579, %v4580
    %v4596 = vadd.f32 %v4595, %v4581
    %v4597 = vadd.f32 %v4596, %v4582
    %v4598 = vadd.f32 %v4597, %v4583
    %v4599 = vadd.f32 %v4598, %v4584
    %v4600 = vadd.f32 %v4599, %v4585
    %v4601 = vadd.f32 %v4600, %v4586
    %v4602 = vadd.f32 %v4601, %v4587
    %v4603 = vadd.f32 %v4602, %v4588
    %v4604 = vadd.f32 %v4603, %v4589
    %v4605 = vadd.f32 %v4604, %v4590
    %v4606 = vadd.f32 %v4605, %v4591
    %v4607 = vadd.f32 %v4606, %v4592
    %v4608 = vadd.f32 %v4607, %v4593
    %v4609 = vadd.f32 %v4608, %v4594
    %v4610 = vrot.slane %v4609, 4
    %v4611 = vadd.f32 %v4609, %v4610
    %v4612 = vrot.slane %v4611, 2
    %v4613 = vadd.f32 %v4611, %v4612
    %v4614 = vrot.slane %v4613, 1
    %v4615 = vadd.f32 %v4613, %v4614
    %v4616 = vmul.f32 %v4615, %v4561
    %s4617 = scalar_lea.vmem %s2, 6
    %v4618 = vld [vmem:[%s4617] sm:$0x1]
    %v4619 = vadd.f32 %v4616, 1e-05
    %v4620 = vrsqrt.pop %v4619
    %v4621 = vmul.f32 %v4620, %v4619
    %v4622 = vmul.f32 %v4621, %v4620
    %v4623 = vmul.f32 0.5, %v4622
    %v4624 = vsub.f32 1.5, %v4623
    %v4625 = vmul.f32 %v4620, %v4624
    %vm4626 = vweird.f32 %v4619
    %vm4627 = vweird.f32 %v4620
    %vm4628 = vmor %vm4626, %vm4627
    %v4629 = vsel %vm4628, %v4620, %v4625
    %v4630 = vmul.f32 %v4618, %v4629
    %s4631 = scalar_lea.vmem %s3, 6
    %v4632 = vld [vmem:[%s4631] sm:$0x1]
    %v4633 = vmul.f32 %v4562, %v4630
    %v4634 = vsub.f32 %v4632, %v4633
    %v4636 = vperm.slane %v4630, 0
    %v4638 = vmul.f32 %v4518, %v4636
    %v4639 = vmul.f32 %v4519, %v4636
    %v4640 = vmul.f32 %v4520, %v4636
    %v4641 = vmul.f32 %v4521, %v4636
    %v4642 = vmul.f32 %v4522, %v4636
    %v4643 = vmul.f32 %v4523, %v4636
    %v4644 = vmul.f32 %v4524, %v4636
    %v4645 = vmul.f32 %v4525, %v4636
    %v4646 = vmul.f32 %v4526, %v4636
    %v4647 = vmul.f32 %v4527, %v4636
    %v4648 = vmul.f32 %v4528, %v4636
    %v4649 = vmul.f32 %v4529, %v4636
    %v4650 = vmul.f32 %v4530, %v4636
    %v4651 = vmul.f32 %v4531, %v4636
    %v4652 = vmul.f32 %v4532, %v4636
    %v4653 = vmul.f32 %v4533, %v4636
    %v4655 = vperm.slane %v4634, 0
    %v4657 = vadd.f32 %v4638, %v4655
    %v4658 = vadd.f32 %v4639, %v4655
    %v4659 = vadd.f32 %v4640, %v4655
    %v4660 = vadd.f32 %v4641, %v4655
    %v4661 = vadd.f32 %v4642, %v4655
    %v4662 = vadd.f32 %v4643, %v4655
    %v4663 = vadd.f32 %v4644, %v4655
    %v4664 = vadd.f32 %v4645, %v4655
    %v4665 = vadd.f32 %v4646, %v4655
    %v4666 = vadd.f32 %v4647, %v4655
    %v4667 = vadd.f32 %v4648, %v4655
    %v4668 = vadd.f32 %v4649, %v4655
    %v4669 = vadd.f32 %v4650, %v4655
    %v4670 = vadd.f32 %v4651, %v4655
    %v4671 = vadd.f32 %v4652, %v4655
    %v4672 = vadd.f32 %v4653, %v4655
    %v4673 = vmax.f32 %v4657, 0.0
    %v4674 = vmax.f32 %v4658, 0.0
    %v4675 = vmax.f32 %v4659, 0.0
    %v4676 = vmax.f32 %v4660, 0.0
    %v4677 = vmax.f32 %v4661, 0.0
    %v4678 = vmax.f32 %v4662, 0.0
    %v4679 = vmax.f32 %v4663, 0.0
    %v4680 = vmax.f32 %v4664, 0.0
    %v4681 = vmax.f32 %v4665, 0.0
    %v4682 = vmax.f32 %v4666, 0.0
    %v4683 = vmax.f32 %v4667, 0.0
    %v4684 = vmax.f32 %v4668, 0.0
    %v4685 = vmax.f32 %v4669, 0.0
    %v4686 = vmax.f32 %v4670, 0.0
    %v4687 = vmax.f32 %v4671, 0.0
    %v4688 = vmax.f32 %v4672, 0.0
    %v4689 = vld [vmem:[#allocation2] sm:$0xff]
    %v4690 = vld [vmem:[#allocation2 + $0x8] sm:$0xff]
    %v4691 = vld [vmem:[#allocation2 + $0x10] sm:$0xff]
    %v4692 = vld [vmem:[#allocation2 + $0x18] sm:$0xff]
    %v4693 = vld [vmem:[#allocation2 + $0x20] sm:$0xff]
    %v4694 = vld [vmem:[#allocation2 + $0x28] sm:$0xff]
    %v4695 = vld [vmem:[#allocation2 + $0x30] sm:$0xff]
    %v4696 = vld [vmem:[#allocation2 + $0x38] sm:$0xff]
    %v4697 = vld [vmem:[#allocation2 + $0x40] sm:$0xff]
    %v4698 = vld [vmem:[#allocation2 + $0x48] sm:$0xff]
    %v4699 = vld [vmem:[#allocation2 + $0x50] sm:$0xff]
    %v4700 = vld [vmem:[#allocation2 + $0x58] sm:$0xff]
    %v4701 = vld [vmem:[#allocation2 + $0x60] sm:$0xff]
    %v4702 = vld [vmem:[#allocation2 + $0x68] sm:$0xff]
    %v4703 = vld [vmem:[#allocation2 + $0x70] sm:$0xff]
    %v4704 = vld [vmem:[#allocation2 + $0x78] sm:$0xff]
    %v4705 = vld [vmem:[#allocation2 + $0x80] sm:$0xff]
    %v4706 = vld [vmem:[#allocation2 + $0x88] sm:$0xff]
    %v4707 = vld [vmem:[#allocation2 + $0x90] sm:$0xff]
    %v4708 = vld [vmem:[#allocation2 + $0x98] sm:$0xff]
    %v4709 = vld [vmem:[#allocation2 + $0xa0] sm:$0xff]
    %v4710 = vld [vmem:[#allocation2 + $0xa8] sm:$0xff]
    %v4711 = vld [vmem:[#allocation2 + $0xb0] sm:$0xff]
    %v4712 = vld [vmem:[#allocation2 + $0xb8] sm:$0xff]
    %v4713 = vld [vmem:[#allocation2 + $0xc0] sm:$0xff]
    %v4714 = vld [vmem:[#allocation2 + $0xc8] sm:$0xff]
    %v4715 = vld [vmem:[#allocation2 + $0xd0] sm:$0xff]
    %v4716 = vld [vmem:[#allocation2 + $0xd8] sm:$0xff]
    %v4717 = vld [vmem:[#allocation2 + $0xe0] sm:$0xff]
    %v4718 = vld [vmem:[#allocation2 + $0xe8] sm:$0xff]
    %v4719 = vld [vmem:[#allocation2 + $0xf0] sm:$0xff]
    %v4720 = vld [vmem:[#allocation2 + $0xf8] sm:$0xff]
    %v4721 = vld [vmem:[#allocation2 + $0x100] sm:$0xff]
    %v4722 = vld [vmem:[#allocation2 + $0x108] sm:$0xff]
    %v4723 = vld [vmem:[#allocation2 + $0x110] sm:$0xff]
    %v4724 = vld [vmem:[#allocation2 + $0x118] sm:$0xff]
    %v4725 = vld [vmem:[#allocation2 + $0x120] sm:$0xff]
    %v4726 = vld [vmem:[#allocation2 + $0x128] sm:$0xff]
    %v4727 = vld [vmem:[#allocation2 + $0x130] sm:$0xff]
    %v4728 = vld [vmem:[#allocation2 + $0x138] sm:$0xff]
    %v4729 = vld [vmem:[#allocation2 + $0x140] sm:$0xff]
    %v4730 = vld [vmem:[#allocation2 + $0x148] sm:$0xff]
    %v4731 = vld [vmem:[#allocation2 + $0x150] sm:$0xff]
    %v4732 = vld [vmem:[#allocation2 + $0x158] sm:$0xff]
    %v4733 = vld [vmem:[#allocation2 + $0x160] sm:$0xff]
    %v4734 = vld [vmem:[#allocation2 + $0x168] sm:$0xff]
    %v4735 = vld [vmem:[#allocation2 + $0x170] sm:$0xff]
    %v4736 = vld [vmem:[#allocation2 + $0x178] sm:$0xff]
    %v4737 = vld [vmem:[#allocation2 + $0x180] sm:$0xff]
    %4738 = vmatpush.msra.mxu0 %v4688
    %4739 = vmatpush.msra.mxu0 %v4687
    %4740 = vmatpush.msra.mxu0 %v4686
    %4741 = vmatpush.msra.mxu0 %v4685
    %4742 = vmatpush.msra.mxu0 %v4684
    %4743 = vmatpush.msra.mxu0 %v4683
    %4744 = vmatpush.msra.mxu0 %v4682
    %4745 = vmatpush.msra.mxu0 %v4681
    %4746 = vmatpush.msra.mxu0 %v4680
    %4747 = vmatpush.msra.mxu0 %v4679
    %4748 = vmatpush.msra.mxu0 %v4678
    %4749 = vmatpush.msra.mxu0 %v4677
    %4750 = vmatpush.msra.mxu0 %v4676
    %4751 = vmatpush.msra.mxu0 %v4675
    %4752 = vmatpush.msra.mxu0 %v4674
    %4753 = vmatpush.msra.mxu0 %v4673
    %4754 = vmatmul.f32.gmra.mxu0 %v4689
    %v4755 = vpop.f32.mrf.mxu0
    %v4756 = vadd.f32 0.0, %v4755
    %4757 = vmatmul.f32.gmra.mxu0 %v4690
    %v4758 = vpop.f32.mrf.mxu0
    %v4759 = vadd.f32 0.0, %v4758
    %4760 = vmatmul.f32.gmra.mxu0 %v4691
    %v4761 = vpop.f32.mrf.mxu0
    %v4762 = vadd.f32 0.0, %v4761
    %4763 = vmatmul.f32.gmra.mxu0 %v4692
    %v4764 = vpop.f32.mrf.mxu0
    %v4765 = vadd.f32 0.0, %v4764
    %4766 = vmatmul.f32.gmra.mxu0 %v4693
    %v4767 = vpop.f32.mrf.mxu0
    %v4768 = vadd.f32 0.0, %v4767
    %4769 = vmatmul.f32.gmra.mxu0 %v4694
    %v4770 = vpop.f32.mrf.mxu0
    %v4771 = vadd.f32 0.0, %v4770
    %4772 = vmatmul.f32.gmra.mxu0 %v4695
    %v4773 = vpop.f32.mrf.mxu0
    %v4774 = vadd.f32 0.0, %v4773
    %4775 = vmatmul.f32.gmra.mxu0 %v4696
    %v4776 = vpop.f32.mrf.mxu0
    %v4777 = vadd.f32 0.0, %v4776
    %4778 = vmatmul.f32.gmra.mxu0 %v4697
    %v4779 = vpop.f32.mrf.mxu0
    %v4780 = vadd.f32 0.0, %v4779
    %4781 = vmatmul.f32.gmra.mxu0 %v4698
    %v4782 = vpop.f32.mrf.mxu0
    %v4783 = vadd.f32 0.0, %v4782
    %4784 = vmatmul.f32.gmra.mxu0 %v4699
    %v4785 = vpop.f32.mrf.mxu0
    %v4786 = vadd.f32 0.0, %v4785
    %4787 = vmatmul.f32.gmra.mxu0 %v4700
    %v4788 = vpop.f32.mrf.mxu0
    %v4789 = vadd.f32 0.0, %v4788
    %4790 = vmatmul.f32.gmra.mxu0 %v4701
    %v4791 = vpop.f32.mrf.mxu0
    %v4792 = vadd.f32 0.0, %v4791
    %4793 = vmatmul.f32.gmra.mxu0 %v4702
    %v4794 = vpop.f32.mrf.mxu0
    %v4795 = vadd.f32 0.0, %v4794
    %4796 = vmatmul.f32.gmra.mxu0 %v4703
    %v4797 = vpop.f32.mrf.mxu0
    %v4798 = vadd.f32 0.0, %v4797
    %4799 = vmatmul.f32.gmra.mxu0 %v4704
    %v4800 = vpop.f32.mrf.mxu0
    %v4801 = vadd.f32 0.0, %v4800
    %4802 = vmatmul.f32.gmra.mxu0 %v4705
    %v4803 = vpop.f32.mrf.mxu0
    %v4804 = vadd.f32 0.0, %v4803
    %4805 = vmatmul.f32.gmra.mxu0 %v4706
    %v4806 = vpop.f32.mrf.mxu0
    %v4807 = vadd.f32 0.0, %v4806
    %4808 = vmatmul.f32.gmra.mxu0 %v4707
    %v4809 = vpop.f32.mrf.mxu0
    %v4810 = vadd.f32 0.0, %v4809
    %4811 = vmatmul.f32.gmra.mxu0 %v4708
    %v4812 = vpop.f32.mrf.mxu0
    %v4813 = vadd.f32 0.0, %v4812
    %4814 = vmatmul.f32.gmra.mxu0 %v4709
    %v4815 = vpop.f32.mrf.mxu0
    %v4816 = vadd.f32 0.0, %v4815
    %4817 = vmatmul.f32.gmra.mxu0 %v4710
    %v4818 = vpop.f32.mrf.mxu0
    %v4819 = vadd.f32 0.0, %v4818
    %4820 = vmatmul.f32.gmra.mxu0 %v4711
    %v4821 = vpop.f32.mrf.mxu0
    %v4822 = vadd.f32 0.0, %v4821
    %4823 = vmatmul.f32.gmra.mxu0 %v4712
    %v4824 = vpop.f32.mrf.mxu0
    %v4825 = vadd.f32 0.0, %v4824
    %4826 = vmatmul.f32.gmra.mxu0 %v4713
    %v4827 = vpop.f32.mrf.mxu0
    %v4828 = vadd.f32 0.0, %v4827
    %4829 = vmatmul.f32.gmra.mxu0 %v4714
    %v4830 = vpop.f32.mrf.mxu0
    %v4831 = vadd.f32 0.0, %v4830
    %4832 = vmatmul.f32.gmra.mxu0 %v4715
    %v4833 = vpop.f32.mrf.mxu0
    %v4834 = vadd.f32 0.0, %v4833
    %4835 = vmatmul.f32.gmra.mxu0 %v4716
    %v4836 = vpop.f32.mrf.mxu0
    %v4837 = vadd.f32 0.0, %v4836
    %4838 = vmatmul.f32.gmra.mxu0 %v4717
    %v4839 = vpop.f32.mrf.mxu0
    %v4840 = vadd.f32 0.0, %v4839
    %4841 = vmatmul.f32.gmra.mxu0 %v4718
    %v4842 = vpop.f32.mrf.mxu0
    %v4843 = vadd.f32 0.0, %v4842
    %4844 = vmatmul.f32.gmra.mxu0 %v4719
    %v4845 = vpop.f32.mrf.mxu0
    %v4846 = vadd.f32 0.0, %v4845
    %4847 = vmatmul.f32.gmra.mxu0 %v4720
    %v4848 = vpop.f32.mrf.mxu0
    %v4849 = vadd.f32 0.0, %v4848
    %4850 = vmatmul.f32.gmra.mxu0 %v4721
    %v4851 = vpop.f32.mrf.mxu0
    %v4852 = vadd.f32 0.0, %v4851
    %4853 = vmatmul.f32.gmra.mxu0 %v4722
    %v4854 = vpop.f32.mrf.mxu0
    %v4855 = vadd.f32 0.0, %v4854
    %4856 = vmatmul.f32.gmra.mxu0 %v4723
    %v4857 = vpop.f32.mrf.mxu0
    %v4858 = vadd.f32 0.0, %v4857
    %4859 = vmatmul.f32.gmra.mxu0 %v4724
    %v4860 = vpop.f32.mrf.mxu0
    %v4861 = vadd.f32 0.0, %v4860
    %4862 = vmatmul.f32.gmra.mxu0 %v4725
    %v4863 = vpop.f32.mrf.mxu0
    %v4864 = vadd.f32 0.0, %v4863
    %4865 = vmatmul.f32.gmra.mxu0 %v4726
    %v4866 = vpop.f32.mrf.mxu0
    %v4867 = vadd.f32 0.0, %v4866
    %4868 = vmatmul.f32.gmra.mxu0 %v4727
    %v4869 = vpop.f32.mrf.mxu0
    %v4870 = vadd.f32 0.0, %v4869
    %4871 = vmatmul.f32.gmra.mxu0 %v4728
    %v4872 = vpop.f32.mrf.mxu0
    %v4873 = vadd.f32 0.0, %v4872
    %4874 = vmatmul.f32.gmra.mxu0 %v4729
    %v4875 = vpop.f32.mrf.mxu0
    %v4876 = vadd.f32 0.0, %v4875
    %4877 = vmatmul.f32.gmra.mxu0 %v4730
    %v4878 = vpop.f32.mrf.mxu0
    %v4879 = vadd.f32 0.0, %v4878
    %4880 = vmatmul.f32.gmra.mxu0 %v4731
    %v4881 = vpop.f32.mrf.mxu0
    %v4882 = vadd.f32 0.0, %v4881
    %4883 = vmatmul.f32.gmra.mxu0 %v4732
    %v4884 = vpop.f32.mrf.mxu0
    %v4885 = vadd.f32 0.0, %v4884
    %4886 = vmatmul.f32.gmra.mxu0 %v4733
    %v4887 = vpop.f32.mrf.mxu0
    %v4888 = vadd.f32 0.0, %v4887
    %4889 = vmatmul.f32.gmra.mxu0 %v4734
    %v4890 = vpop.f32.mrf.mxu0
    %v4891 = vadd.f32 0.0, %v4890
    %4892 = vmatmul.f32.gmra.mxu0 %v4735
    %v4893 = vpop.f32.mrf.mxu0
    %v4894 = vadd.f32 0.0, %v4893
    %4895 = vmatmul.f32.gmra.mxu0 %v4736
    %v4896 = vpop.f32.mrf.mxu0
    %v4897 = vadd.f32 0.0, %v4896
    %4898 = vmatmul.f32.gmra.mxu0 %v4737
    %v4899 = vpop.f32.mrf.mxu0
    %v4900 = vadd.f32 0.0, %v4899
    %4901 = vdwg.mxu0
    %v4902 = vpack.c.bf16 %v4759, %v4756
    %v4903 = vpack.c.bf16 %v4765, %v4762
    %v4904 = vpack.c.bf16 %v4771, %v4768
    %v4905 = vpack.c.bf16 %v4777, %v4774
    %v4906 = vpack.c.bf16 %v4783, %v4780
    %v4907 = vpack.c.bf16 %v4789, %v4786
    %v4908 = vpack.c.bf16 %v4795, %v4792
    %v4909 = vpack.c.bf16 %v4801, %v4798
    %v4910 = vpack.c.bf16 %v4807, %v4804
    %v4911 = vpack.c.bf16 %v4813, %v4810
    %v4912 = vpack.c.bf16 %v4819, %v4816
    %v4913 = vpack.c.bf16 %v4825, %v4822
    %v4914 = vpack.c.bf16 %v4831, %v4828
    %v4915 = vpack.c.bf16 %v4837, %v4834
    %v4916 = vpack.c.bf16 %v4843, %v4840
    %v4917 = vpack.c.bf16 %v4849, %v4846
    %v4918 = vpack.c.bf16 %v4855, %v4852
    %v4919 = vpack.c.bf16 %v4861, %v4858
    %v4920 = vpack.c.bf16 %v4867, %v4864
    %v4921 = vpack.c.bf16 %v4873, %v4870
    %v4922 = vpack.c.bf16 %v4879, %v4876
    %v4923 = vpack.c.bf16 %v4885, %v4882
    %v4924 = vpack.c.bf16 %v4891, %v4888
    %v4925 = vpack.c.bf16 %v4897, %v4894
    %v4926 = vpack.c.bf16 %v4900, %v4900
    %s4927 = scalar_lea.vmem %s1, 1792
    %v4928 = vld [vmem:[%s4927] sm:$0xf]
    %v4929 = vld [vmem:[%s4927 + $0x4] sm:$0xf]
    %v4930 = vld [vmem:[%s4927 + $0x8] sm:$0xf]
    %v4931 = vld [vmem:[%s4927 + $0xc] sm:$0xf]
    %v4932 = vld [vmem:[%s4927 + $0x10] sm:$0xf]
    %v4933 = vld [vmem:[%s4927 + $0x14] sm:$0xf]
    %v4934 = vld [vmem:[%s4927 + $0x18] sm:$0xf]
    %v4935 = vld [vmem:[%s4927 + $0x1c] sm:$0xf]
    %v4936 = vld [vmem:[%s4927 + $0x20] sm:$0xf]
    %v4937 = vld [vmem:[%s4927 + $0x24] sm:$0xf]
    %v4938 = vld [vmem:[%s4927 + $0x28] sm:$0xf]
    %v4939 = vld [vmem:[%s4927 + $0x2c] sm:$0xf]
    %v4940 = vld [vmem:[%s4927 + $0x30] sm:$0xf]
    %v4941 = vld [vmem:[%s4927 + $0x34] sm:$0xf]
    %v4942 = vld [vmem:[%s4927 + $0x38] sm:$0xf]
    %v4943 = vld [vmem:[%s4927 + $0x3c] sm:$0xf]
    %s4944 = scalar_lea.vmem [#allocation2], 392
    %v4945 = vld [vmem:[%s4944] sm:$0xff]
    %v4946 = vld [vmem:[%s4944 + $0x8] sm:$0xff]
    %v4947 = vld [vmem:[%s4944 + $0x10] sm:$0xff]
    %v4948 = vld [vmem:[%s4944 + $0x18] sm:$0xff]
    %v4949 = vld [vmem:[%s4944 + $0x20] sm:$0xff]
    %v4950 = vld [vmem:[%s4944 + $0x28] sm:$0xff]
    %v4951 = vld [vmem:[%s4944 + $0x30] sm:$0xff]
    %v4952 = vld [vmem:[%s4944 + $0x38] sm:$0xff]
    %v4953 = vld [vmem:[%s4944 + $0x40] sm:$0xff]
    %v4954 = vld [vmem:[%s4944 + $0x48] sm:$0xff]
    %v4955 = vld [vmem:[%s4944 + $0x50] sm:$0xff]
    %v4956 = vld [vmem:[%s4944 + $0x58] sm:$0xff]
    %v4957 = vld [vmem:[%s4944 + $0x60] sm:$0xff]
    %v4958 = vld [vmem:[%s4944 + $0x68] sm:$0xff]
    %v4959 = vld [vmem:[%s4944 + $0x70] sm:$0xff]
    %v4960 = vld [vmem:[%s4944 + $0x78] sm:$0xff]
    %v4961 = vld [vmem:[%s4944 + $0x80] sm:$0xff]
    %v4962 = vld [vmem:[%s4944 + $0x88] sm:$0xff]
    %v4963 = vld [vmem:[%s4944 + $0x90] sm:$0xff]
    %v4964 = vld [vmem:[%s4944 + $0x98] sm:$0xff]
    %v4965 = vld [vmem:[%s4944 + $0xa0] sm:$0xff]
    %v4966 = vld [vmem:[%s4944 + $0xa8] sm:$0xff]
    %v4967 = vld [vmem:[%s4944 + $0xb0] sm:$0xff]
    %v4968 = vld [vmem:[%s4944 + $0xb8] sm:$0xff]
    %v4969 = vld [vmem:[%s4944 + $0xc0] sm:$0xff]
    %v4970 = vld [vmem:[%s4944 + $0xc8] sm:$0xff]
    %v4971 = vld [vmem:[%s4944 + $0xd0] sm:$0xff]
    %v4972 = vld [vmem:[%s4944 + $0xd8] sm:$0xff]
    %v4973 = vld [vmem:[%s4944 + $0xe0] sm:$0xff]
    %v4974 = vld [vmem:[%s4944 + $0xe8] sm:$0xff]
    %v4975 = vld [vmem:[%s4944 + $0xf0] sm:$0xff]
    %v4976 = vld [vmem:[%s4944 + $0xf8] sm:$0xff]
    %v4977 = vld [vmem:[%s4944 + $0x100] sm:$0xff]
    %v4978 = vld [vmem:[%s4944 + $0x108] sm:$0xff]
    %v4979 = vld [vmem:[%s4944 + $0x110] sm:$0xff]
    %v4980 = vld [vmem:[%s4944 + $0x118] sm:$0xff]
    %v4981 = vld [vmem:[%s4944 + $0x120] sm:$0xff]
    %v4982 = vld [vmem:[%s4944 + $0x128] sm:$0xff]
    %v4983 = vld [vmem:[%s4944 + $0x130] sm:$0xff]
    %v4984 = vld [vmem:[%s4944 + $0x138] sm:$0xff]
    %v4985 = vld [vmem:[%s4944 + $0x140] sm:$0xff]
    %v4986 = vld [vmem:[%s4944 + $0x148] sm:$0xff]
    %v4987 = vld [vmem:[%s4944 + $0x150] sm:$0xff]
    %v4988 = vld [vmem:[%s4944 + $0x158] sm:$0xff]
    %v4989 = vld [vmem:[%s4944 + $0x160] sm:$0xff]
    %v4990 = vld [vmem:[%s4944 + $0x168] sm:$0xff]
    %v4991 = vld [vmem:[%s4944 + $0x170] sm:$0xff]
    %v4992 = vld [vmem:[%s4944 + $0x178] sm:$0xff]
    %v4993 = vld [vmem:[%s4944 + $0x180] sm:$0xff]
    %4994 = vmatpush.msra.mxu0 %v4688
    %4995 = vmatpush.msra.mxu0 %v4687
    %4996 = vmatpush.msra.mxu0 %v4686
    %4997 = vmatpush.msra.mxu0 %v4685
    %4998 = vmatpush.msra.mxu0 %v4684
    %4999 = vmatpush.msra.mxu0 %v4683
    %5000 = vmatpush.msra.mxu0 %v4682
    %5001 = vmatpush.msra.mxu0 %v4681
    %5002 = vmatpush.msra.mxu0 %v4680
    %5003 = vmatpush.msra.mxu0 %v4679
    %5004 = vmatpush.msra.mxu0 %v4678
    %5005 = vmatpush.msra.mxu0 %v4677
    %5006 = vmatpush.msra.mxu0 %v4676
    %5007 = vmatpush.msra.mxu0 %v4675
    %5008 = vmatpush.msra.mxu0 %v4674
    %5009 = vmatpush.msra.mxu0 %v4673
    %5010 = vmatmul.f32.gmra.mxu0 %v4945
    %v5011 = vpop.f32.mrf.mxu0
    %v5012 = vadd.f32 0.0, %v5011
    %5013 = vmatmul.f32.gmra.mxu0 %v4946
    %v5014 = vpop.f32.mrf.mxu0
    %v5015 = vadd.f32 0.0, %v5014
    %5016 = vmatmul.f32.gmra.mxu0 %v4947
    %v5017 = vpop.f32.mrf.mxu0
    %v5018 = vadd.f32 0.0, %v5017
    %5019 = vmatmul.f32.gmra.mxu0 %v4948
    %v5020 = vpop.f32.mrf.mxu0
    %v5021 = vadd.f32 0.0, %v5020
    %5022 = vmatmul.f32.gmra.mxu0 %v4949
    %v5023 = vpop.f32.mrf.mxu0
    %v5024 = vadd.f32 0.0, %v5023
    %5025 = vmatmul.f32.gmra.mxu0 %v4950
    %v5026 = vpop.f32.mrf.mxu0
    %v5027 = vadd.f32 0.0, %v5026
    %5028 = vmatmul.f32.gmra.mxu0 %v4951
    %v5029 = vpop.f32.mrf.mxu0
    %v5030 = vadd.f32 0.0, %v5029
    %5031 = vmatmul.f32.gmra.mxu0 %v4952
    %v5032 = vpop.f32.mrf.mxu0
    %v5033 = vadd.f32 0.0, %v5032
    %5034 = vmatmul.f32.gmra.mxu0 %v4953
    %v5035 = vpop.f32.mrf.mxu0
    %v5036 = vadd.f32 0.0, %v5035
    %5037 = vmatmul.f32.gmra.mxu0 %v4954
    %v5038 = vpop.f32.mrf.mxu0
    %v5039 = vadd.f32 0.0, %v5038
    %5040 = vmatmul.f32.gmra.mxu0 %v4955
    %v5041 = vpop.f32.mrf.mxu0
    %v5042 = vadd.f32 0.0, %v5041
    %5043 = vmatmul.f32.gmra.mxu0 %v4956
    %v5044 = vpop.f32.mrf.mxu0
    %v5045 = vadd.f32 0.0, %v5044
    %5046 = vmatmul.f32.gmra.mxu0 %v4957
    %v5047 = vpop.f32.mrf.mxu0
    %v5048 = vadd.f32 0.0, %v5047
    %5049 = vmatmul.f32.gmra.mxu0 %v4958
    %v5050 = vpop.f32.mrf.mxu0
    %v5051 = vadd.f32 0.0, %v5050
    %5052 = vmatmul.f32.gmra.mxu0 %v4959
    %v5053 = vpop.f32.mrf.mxu0
    %v5054 = vadd.f32 0.0, %v5053
    %5055 = vmatmul.f32.gmra.mxu0 %v4960
    %v5056 = vpop.f32.mrf.mxu0
    %v5057 = vadd.f32 0.0, %v5056
    %5058 = vmatmul.f32.gmra.mxu0 %v4961
    %v5059 = vpop.f32.mrf.mxu0
    %v5060 = vadd.f32 0.0, %v5059
    %5061 = vmatmul.f32.gmra.mxu0 %v4962
    %v5062 = vpop.f32.mrf.mxu0
    %v5063 = vadd.f32 0.0, %v5062
    %5064 = vmatmul.f32.gmra.mxu0 %v4963
    %v5065 = vpop.f32.mrf.mxu0
    %v5066 = vadd.f32 0.0, %v5065
    %5067 = vmatmul.f32.gmra.mxu0 %v4964
    %v5068 = vpop.f32.mrf.mxu0
    %v5069 = vadd.f32 0.0, %v5068
    %5070 = vmatmul.f32.gmra.mxu0 %v4965
    %v5071 = vpop.f32.mrf.mxu0
    %v5072 = vadd.f32 0.0, %v5071
    %5073 = vmatmul.f32.gmra.mxu0 %v4966
    %v5074 = vpop.f32.mrf.mxu0
    %v5075 = vadd.f32 0.0, %v5074
    %5076 = vmatmul.f32.gmra.mxu0 %v4967
    %v5077 = vpop.f32.mrf.mxu0
    %v5078 = vadd.f32 0.0, %v5077
    %5079 = vmatmul.f32.gmra.mxu0 %v4968
    %v5080 = vpop.f32.mrf.mxu0
    %v5081 = vadd.f32 0.0, %v5080
    %5082 = vmatmul.f32.gmra.mxu0 %v4969
    %v5083 = vpop.f32.mrf.mxu0
    %v5084 = vadd.f32 0.0, %v5083
    %5085 = vmatmul.f32.gmra.mxu0 %v4970
    %v5086 = vpop.f32.mrf.mxu0
    %v5087 = vadd.f32 0.0, %v5086
    %5088 = vmatmul.f32.gmra.mxu0 %v4971
    %v5089 = vpop.f32.mrf.mxu0
    %v5090 = vadd.f32 0.0, %v5089
    %5091 = vmatmul.f32.gmra.mxu0 %v4972
    %v5092 = vpop.f32.mrf.mxu0
    %v5093 = vadd.f32 0.0, %v5092
    %5094 = vmatmul.f32.gmra.mxu0 %v4973
    %v5095 = vpop.f32.mrf.mxu0
    %v5096 = vadd.f32 0.0, %v5095
    %5097 = vmatmul.f32.gmra.mxu0 %v4974
    %v5098 = vpop.f32.mrf.mxu0
    %v5099 = vadd.f32 0.0, %v5098
    %5100 = vmatmul.f32.gmra.mxu0 %v4975
    %v5101 = vpop.f32.mrf.mxu0
    %v5102 = vadd.f32 0.0, %v5101
    %5103 = vmatmul.f32.gmra.mxu0 %v4976
    %v5104 = vpop.f32.mrf.mxu0
    %v5105 = vadd.f32 0.0, %v5104
    %5106 = vmatmul.f32.gmra.mxu0 %v4977
    %v5107 = vpop.f32.mrf.mxu0
    %v5108 = vadd.f32 0.0, %v5107
    %5109 = vmatmul.f32.gmra.mxu0 %v4978
    %v5110 = vpop.f32.mrf.mxu0
    %v5111 = vadd.f32 0.0, %v5110
    %5112 = vmatmul.f32.gmra.mxu0 %v4979
    %v5113 = vpop.f32.mrf.mxu0
    %v5114 = vadd.f32 0.0, %v5113
    %5115 = vmatmul.f32.gmra.mxu0 %v4980
    %v5116 = vpop.f32.mrf.mxu0
    %v5117 = vadd.f32 0.0, %v5116
    %5118 = vmatmul.f32.gmra.mxu0 %v4981
    %v5119 = vpop.f32.mrf.mxu0
    %v5120 = vadd.f32 0.0, %v5119
    %5121 = vmatmul.f32.gmra.mxu0 %v4982
    %v5122 = vpop.f32.mrf.mxu0
    %v5123 = vadd.f32 0.0, %v5122
    %5124 = vmatmul.f32.gmra.mxu0 %v4983
    %v5125 = vpop.f32.mrf.mxu0
    %v5126 = vadd.f32 0.0, %v5125
    %5127 = vmatmul.f32.gmra.mxu0 %v4984
    %v5128 = vpop.f32.mrf.mxu0
    %v5129 = vadd.f32 0.0, %v5128
    %5130 = vmatmul.f32.gmra.mxu0 %v4985
    %v5131 = vpop.f32.mrf.mxu0
    %v5132 = vadd.f32 0.0, %v5131
    %5133 = vmatmul.f32.gmra.mxu0 %v4986
    %v5134 = vpop.f32.mrf.mxu0
    %v5135 = vadd.f32 0.0, %v5134
    %5136 = vmatmul.f32.gmra.mxu0 %v4987
    %v5137 = vpop.f32.mrf.mxu0
    %v5138 = vadd.f32 0.0, %v5137
    %5139 = vmatmul.f32.gmra.mxu0 %v4988
    %v5140 = vpop.f32.mrf.mxu0
    %v5141 = vadd.f32 0.0, %v5140
    %5142 = vmatmul.f32.gmra.mxu0 %v4989
    %v5143 = vpop.f32.mrf.mxu0
    %v5144 = vadd.f32 0.0, %v5143
    %5145 = vmatmul.f32.gmra.mxu0 %v4990
    %v5146 = vpop.f32.mrf.mxu0
    %v5147 = vadd.f32 0.0, %v5146
    %5148 = vmatmul.f32.gmra.mxu0 %v4991
    %v5149 = vpop.f32.mrf.mxu0
    %v5150 = vadd.f32 0.0, %v5149
    %5151 = vmatmul.f32.gmra.mxu0 %v4992
    %v5152 = vpop.f32.mrf.mxu0
    %v5153 = vadd.f32 0.0, %v5152
    %5154 = vmatmul.f32.gmra.mxu0 %v4993
    %v5155 = vpop.f32.mrf.mxu0
    %v5156 = vadd.f32 0.0, %v5155
    %5157 = vdwg.mxu0
    %v5158 = vpack.c.bf16 %v5015, %v5012
    %v5159 = vpack.c.bf16 %v5021, %v5018
    %v5160 = vpack.c.bf16 %v5027, %v5024
    %v5161 = vpack.c.bf16 %v5033, %v5030
    %v5162 = vpack.c.bf16 %v5039, %v5036
    %v5163 = vpack.c.bf16 %v5045, %v5042
    %v5164 = vpack.c.bf16 %v5051, %v5048
    %v5165 = vpack.c.bf16 %v5057, %v5054
    %v5166 = vpack.c.bf16 %v5063, %v5060
    %v5167 = vpack.c.bf16 %v5069, %v5066
    %v5168 = vpack.c.bf16 %v5075, %v5072
    %v5169 = vpack.c.bf16 %v5081, %v5078
    %v5170 = vpack.c.bf16 %v5087, %v5084
    %v5171 = vpack.c.bf16 %v5093, %v5090
    %v5172 = vpack.c.bf16 %v5099, %v5096
    %v5173 = vpack.c.bf16 %v5105, %v5102
    %v5174 = vpack.c.bf16 %v5111, %v5108
    %v5175 = vpack.c.bf16 %v5117, %v5114
    %v5176 = vpack.c.bf16 %v5123, %v5120
    %v5177 = vpack.c.bf16 %v5129, %v5126
    %v5178 = vpack.c.bf16 %v5135, %v5132
    %v5179 = vpack.c.bf16 %v5141, %v5138
    %v5180 = vpack.c.bf16 %v5147, %v5144
    %v5181 = vpack.c.bf16 %v5153, %v5150
    %v5182 = vpack.c.bf16 %v5156, %v5156
    %s5183 = scalar_lea.vmem %s1, 1856
    %v5184 = vld [vmem:[%s5183] sm:$0xf]
    %v5185 = vld [vmem:[%s5183 + $0x4] sm:$0xf]
    %v5186 = vld [vmem:[%s5183 + $0x8] sm:$0xf]
    %v5187 = vld [vmem:[%s5183 + $0xc] sm:$0xf]
    %v5188 = vld [vmem:[%s5183 + $0x10] sm:$0xf]
    %v5189 = vld [vmem:[%s5183 + $0x14] sm:$0xf]
    %v5190 = vld [vmem:[%s5183 + $0x18] sm:$0xf]
    %v5191 = vld [vmem:[%s5183 + $0x1c] sm:$0xf]
    %v5192 = vld [vmem:[%s5183 + $0x20] sm:$0xf]
    %v5193 = vld [vmem:[%s5183 + $0x24] sm:$0xf]
    %v5194 = vld [vmem:[%s5183 + $0x28] sm:$0xf]
    %v5195 = vld [vmem:[%s5183 + $0x2c] sm:$0xf]
    %v5196 = vld [vmem:[%s5183 + $0x30] sm:$0xf]
    %v5197 = vld [vmem:[%s5183 + $0x34] sm:$0xf]
    %v5198 = vld [vmem:[%s5183 + $0x38] sm:$0xf]
    %v5199 = vld [vmem:[%s5183 + $0x3c] sm:$0xf]
    %v5216 = vunpack.c.l.b16 %v5184
    %v5217 = vunpack.c.l.b16 %v5185
    %v5218 = vunpack.c.l.b16 %v5186
    %v5219 = vunpack.c.l.b16 %v5187
    %v5220 = vunpack.c.l.b16 %v5188
    %v5221 = vunpack.c.l.b16 %v5189
    %v5222 = vunpack.c.l.b16 %v5190
    %v5223 = vunpack.c.l.b16 %v5191
    %v5224 = vunpack.c.l.b16 %v5192
    %v5225 = vunpack.c.l.b16 %v5193
    %v5226 = vunpack.c.l.b16 %v5194
    %v5227 = vunpack.c.l.b16 %v5195
    %v5228 = vunpack.c.l.b16 %v5196
    %v5229 = vunpack.c.l.b16 %v5197
    %v5230 = vunpack.c.l.b16 %v5198
    %v5231 = vunpack.c.l.b16 %v5199
    %v5232 = vpack.c.b16 %v5217, %v5216
    %v5233 = vpack.c.b16 %v5219, %v5218
    %v5234 = vpack.c.b16 %v5221, %v5220
    %v5235 = vpack.c.b16 %v5223, %v5222
    %v5236 = vpack.c.b16 %v5225, %v5224
    %v5237 = vpack.c.b16 %v5227, %v5226
    %v5238 = vpack.c.b16 %v5229, %v5228
    %v5239 = vpack.c.b16 %v5231, %v5230
    %5248 = vmatpush.bf16.msra.mxu0 %v5239
    %5249 = vmatpush.bf16.msra.mxu0 %v5238
    %5250 = vmatpush.bf16.msra.mxu0 %v5237
    %5251 = vmatpush.bf16.msra.mxu0 %v5236
    %5252 = vmatpush.bf16.msra.mxu0 %v5235
    %5253 = vmatpush.bf16.msra.mxu0 %v5234
    %5254 = vmatpush.bf16.msra.mxu0 %v5233
    %5255 = vmatpush.bf16.msra.mxu0 %v5232
    %5256 = vmatmul.bf16.gmra.mxu0 %v5158
    %v5257 = vpop.f32.mrf.mxu0
    %v5258 = vadd.f32 0.0, %v5257
    %v5259 = vpop.f32.mrf.mxu0
    %v5260 = vadd.f32 0.0, %v5259
    %5261 = vmatmul.bf16.gmra.mxu0 %v5159
    %v5262 = vpop.f32.mrf.mxu0
    %v5263 = vadd.f32 0.0, %v5262
    %v5264 = vpop.f32.mrf.mxu0
    %v5265 = vadd.f32 0.0, %v5264
    %5266 = vmatmul.bf16.gmra.mxu0 %v5160
    %v5267 = vpop.f32.mrf.mxu0
    %v5268 = vadd.f32 0.0, %v5267
    %v5269 = vpop.f32.mrf.mxu0
    %v5270 = vadd.f32 0.0, %v5269
    %5271 = vmatmul.bf16.gmra.mxu0 %v5161
    %v5272 = vpop.f32.mrf.mxu0
    %v5273 = vadd.f32 0.0, %v5272
    %v5274 = vpop.f32.mrf.mxu0
    %v5275 = vadd.f32 0.0, %v5274
    %5276 = vmatmul.bf16.gmra.mxu0 %v5162
    %v5277 = vpop.f32.mrf.mxu0
    %v5278 = vadd.f32 0.0, %v5277
    %v5279 = vpop.f32.mrf.mxu0
    %v5280 = vadd.f32 0.0, %v5279
    %5281 = vmatmul.bf16.gmra.mxu0 %v5163
    %v5282 = vpop.f32.mrf.mxu0
    %v5283 = vadd.f32 0.0, %v5282
    %v5284 = vpop.f32.mrf.mxu0
    %v5285 = vadd.f32 0.0, %v5284
    %5286 = vmatmul.bf16.gmra.mxu0 %v5164
    %v5287 = vpop.f32.mrf.mxu0
    %v5288 = vadd.f32 0.0, %v5287
    %v5289 = vpop.f32.mrf.mxu0
    %v5290 = vadd.f32 0.0, %v5289
    %5291 = vmatmul.bf16.gmra.mxu0 %v5165
    %v5292 = vpop.f32.mrf.mxu0
    %v5293 = vadd.f32 0.0, %v5292
    %v5294 = vpop.f32.mrf.mxu0
    %v5295 = vadd.f32 0.0, %v5294
    %5296 = vmatmul.bf16.gmra.mxu0 %v5166
    %v5297 = vpop.f32.mrf.mxu0
    %v5298 = vadd.f32 0.0, %v5297
    %v5299 = vpop.f32.mrf.mxu0
    %v5300 = vadd.f32 0.0, %v5299
    %5301 = vmatmul.bf16.gmra.mxu0 %v5167
    %v5302 = vpop.f32.mrf.mxu0
    %v5303 = vadd.f32 0.0, %v5302
    %v5304 = vpop.f32.mrf.mxu0
    %v5305 = vadd.f32 0.0, %v5304
    %5306 = vmatmul.bf16.gmra.mxu0 %v5168
    %v5307 = vpop.f32.mrf.mxu0
    %v5308 = vadd.f32 0.0, %v5307
    %v5309 = vpop.f32.mrf.mxu0
    %v5310 = vadd.f32 0.0, %v5309
    %5311 = vmatmul.bf16.gmra.mxu0 %v5169
    %v5312 = vpop.f32.mrf.mxu0
    %v5313 = vadd.f32 0.0, %v5312
    %v5314 = vpop.f32.mrf.mxu0
    %v5315 = vadd.f32 0.0, %v5314
    %5316 = vmatmul.bf16.gmra.mxu0 %v5170
    %v5317 = vpop.f32.mrf.mxu0
    %v5318 = vadd.f32 0.0, %v5317
    %v5319 = vpop.f32.mrf.mxu0
    %v5320 = vadd.f32 0.0, %v5319
    %5321 = vmatmul.bf16.gmra.mxu0 %v5171
    %v5322 = vpop.f32.mrf.mxu0
    %v5323 = vadd.f32 0.0, %v5322
    %v5324 = vpop.f32.mrf.mxu0
    %v5325 = vadd.f32 0.0, %v5324
    %5326 = vmatmul.bf16.gmra.mxu0 %v5172
    %v5327 = vpop.f32.mrf.mxu0
    %v5328 = vadd.f32 0.0, %v5327
    %v5329 = vpop.f32.mrf.mxu0
    %v5330 = vadd.f32 0.0, %v5329
    %5331 = vmatmul.bf16.gmra.mxu0 %v5173
    %v5332 = vpop.f32.mrf.mxu0
    %v5333 = vadd.f32 0.0, %v5332
    %v5334 = vpop.f32.mrf.mxu0
    %v5335 = vadd.f32 0.0, %v5334
    %5336 = vmatmul.bf16.gmra.mxu0 %v5174
    %v5337 = vpop.f32.mrf.mxu0
    %v5338 = vadd.f32 0.0, %v5337
    %v5339 = vpop.f32.mrf.mxu0
    %v5340 = vadd.f32 0.0, %v5339
    %5341 = vmatmul.bf16.gmra.mxu0 %v5175
    %v5342 = vpop.f32.mrf.mxu0
    %v5343 = vadd.f32 0.0, %v5342
    %v5344 = vpop.f32.mrf.mxu0
    %v5345 = vadd.f32 0.0, %v5344
    %5346 = vmatmul.bf16.gmra.mxu0 %v5176
    %v5347 = vpop.f32.mrf.mxu0
    %v5348 = vadd.f32 0.0, %v5347
    %v5349 = vpop.f32.mrf.mxu0
    %v5350 = vadd.f32 0.0, %v5349
    %5351 = vmatmul.bf16.gmra.mxu0 %v5177
    %v5352 = vpop.f32.mrf.mxu0
    %v5353 = vadd.f32 0.0, %v5352
    %v5354 = vpop.f32.mrf.mxu0
    %v5355 = vadd.f32 0.0, %v5354
    %5356 = vmatmul.bf16.gmra.mxu0 %v5178
    %v5357 = vpop.f32.mrf.mxu0
    %v5358 = vadd.f32 0.0, %v5357
    %v5359 = vpop.f32.mrf.mxu0
    %v5360 = vadd.f32 0.0, %v5359
    %5361 = vmatmul.bf16.gmra.mxu0 %v5179
    %v5362 = vpop.f32.mrf.mxu0
    %v5363 = vadd.f32 0.0, %v5362
    %v5364 = vpop.f32.mrf.mxu0
    %v5365 = vadd.f32 0.0, %v5364
    %5366 = vmatmul.bf16.gmra.mxu0 %v5180
    %v5367 = vpop.f32.mrf.mxu0
    %v5368 = vadd.f32 0.0, %v5367
    %v5369 = vpop.f32.mrf.mxu0
    %v5370 = vadd.f32 0.0, %v5369
    %5371 = vmatmul.bf16.gmra.mxu0 %v5181
    %v5372 = vpop.f32.mrf.mxu0
    %v5373 = vadd.f32 0.0, %v5372
    %v5374 = vpop.f32.mrf.mxu0
    %v5375 = vadd.f32 0.0, %v5374
    %5376 = vmatmul.bf16.gmra.mxu0 %v5182
    %v5377 = vpop.f32.mrf.mxu0
    %v5378 = vadd.f32 0.0, %v5377
    %v5379 = vpop.f32.mrf.mxu0
    %5380 = vdwg.mxu0
    %v5397 = vunpack.c.l.b16 %v4928
    %v5398 = vunpack.c.l.b16 %v4929
    %v5399 = vunpack.c.l.b16 %v4930
    %v5400 = vunpack.c.l.b16 %v4931
    %v5401 = vunpack.c.l.b16 %v4932
    %v5402 = vunpack.c.l.b16 %v4933
    %v5403 = vunpack.c.l.b16 %v4934
    %v5404 = vunpack.c.l.b16 %v4935
    %v5405 = vunpack.c.l.b16 %v4936
    %v5406 = vunpack.c.l.b16 %v4937
    %v5407 = vunpack.c.l.b16 %v4938
    %v5408 = vunpack.c.l.b16 %v4939
    %v5409 = vunpack.c.l.b16 %v4940
    %v5410 = vunpack.c.l.b16 %v4941
    %v5411 = vunpack.c.l.b16 %v4942
    %v5412 = vunpack.c.l.b16 %v4943
    %v5413 = vpack.c.b16 %v5398, %v5397
    %v5414 = vpack.c.b16 %v5400, %v5399
    %v5415 = vpack.c.b16 %v5402, %v5401
    %v5416 = vpack.c.b16 %v5404, %v5403
    %v5417 = vpack.c.b16 %v5406, %v5405
    %v5418 = vpack.c.b16 %v5408, %v5407
    %v5419 = vpack.c.b16 %v5410, %v5409
    %v5420 = vpack.c.b16 %v5412, %v5411
    %5429 = vmatpush.bf16.msra.mxu0 %v5420
    %5430 = vmatpush.bf16.msra.mxu0 %v5419
    %5431 = vmatpush.bf16.msra.mxu0 %v5418
    %5432 = vmatpush.bf16.msra.mxu0 %v5417
    %5433 = vmatpush.bf16.msra.mxu0 %v5416
    %5434 = vmatpush.bf16.msra.mxu0 %v5415
    %5435 = vmatpush.bf16.msra.mxu0 %v5414
    %5436 = vmatpush.bf16.msra.mxu0 %v5413
    %5437 = vmatmul.bf16.gmra.mxu0 %v4902
    %v5438 = vpop.f32.mrf.mxu0
    %v5439 = vadd.f32 %v5258, %v5438
    %v5440 = vpop.f32.mrf.mxu0
    %v5441 = vadd.f32 %v5260, %v5440
    %5442 = vmatmul.bf16.gmra.mxu0 %v4903
    %v5443 = vpop.f32.mrf.mxu0
    %v5444 = vadd.f32 %v5263, %v5443
    %v5445 = vpop.f32.mrf.mxu0
    %v5446 = vadd.f32 %v5265, %v5445
    %5447 = vmatmul.bf16.gmra.mxu0 %v4904
    %v5448 = vpop.f32.mrf.mxu0
    %v5449 = vadd.f32 %v5268, %v5448
    %v5450 = vpop.f32.mrf.mxu0
    %v5451 = vadd.f32 %v5270, %v5450
    %5452 = vmatmul.bf16.gmra.mxu0 %v4905
    %v5453 = vpop.f32.mrf.mxu0
    %v5454 = vadd.f32 %v5273, %v5453
    %v5455 = vpop.f32.mrf.mxu0
    %v5456 = vadd.f32 %v5275, %v5455
    %5457 = vmatmul.bf16.gmra.mxu0 %v4906
    %v5458 = vpop.f32.mrf.mxu0
    %v5459 = vadd.f32 %v5278, %v5458
    %v5460 = vpop.f32.mrf.mxu0
    %v5461 = vadd.f32 %v5280, %v5460
    %5462 = vmatmul.bf16.gmra.mxu0 %v4907
    %v5463 = vpop.f32.mrf.mxu0
    %v5464 = vadd.f32 %v5283, %v5463
    %v5465 = vpop.f32.mrf.mxu0
    %v5466 = vadd.f32 %v5285, %v5465
    %5467 = vmatmul.bf16.gmra.mxu0 %v4908
    %v5468 = vpop.f32.mrf.mxu0
    %v5469 = vadd.f32 %v5288, %v5468
    %v5470 = vpop.f32.mrf.mxu0
    %v5471 = vadd.f32 %v5290, %v5470
    %5472 = vmatmul.bf16.gmra.mxu0 %v4909
    %v5473 = vpop.f32.mrf.mxu0
    %v5474 = vadd.f32 %v5293, %v5473
    %v5475 = vpop.f32.mrf.mxu0
    %v5476 = vadd.f32 %v5295, %v5475
    %5477 = vmatmul.bf16.gmra.mxu0 %v4910
    %v5478 = vpop.f32.mrf.mxu0
    %v5479 = vadd.f32 %v5298, %v5478
    %v5480 = vpop.f32.mrf.mxu0
    %v5481 = vadd.f32 %v5300, %v5480
    %5482 = vmatmul.bf16.gmra.mxu0 %v4911
    %v5483 = vpop.f32.mrf.mxu0
    %v5484 = vadd.f32 %v5303, %v5483
    %v5485 = vpop.f32.mrf.mxu0
    %v5486 = vadd.f32 %v5305, %v5485
    %5487 = vmatmul.bf16.gmra.mxu0 %v4912
    %v5488 = vpop.f32.mrf.mxu0
    %v5489 = vadd.f32 %v5308, %v5488
    %v5490 = vpop.f32.mrf.mxu0
    %v5491 = vadd.f32 %v5310, %v5490
    %5492 = vmatmul.bf16.gmra.mxu0 %v4913
    %v5493 = vpop.f32.mrf.mxu0
    %v5494 = vadd.f32 %v5313, %v5493
    %v5495 = vpop.f32.mrf.mxu0
    %v5496 = vadd.f32 %v5315, %v5495
    %5497 = vmatmul.bf16.gmra.mxu0 %v4914
    %v5498 = vpop.f32.mrf.mxu0
    %v5499 = vadd.f32 %v5318, %v5498
    %v5500 = vpop.f32.mrf.mxu0
    %v5501 = vadd.f32 %v5320, %v5500
    %5502 = vmatmul.bf16.gmra.mxu0 %v4915
    %v5503 = vpop.f32.mrf.mxu0
    %v5504 = vadd.f32 %v5323, %v5503
    %v5505 = vpop.f32.mrf.mxu0
    %v5506 = vadd.f32 %v5325, %v5505
    %5507 = vmatmul.bf16.gmra.mxu0 %v4916
    %v5508 = vpop.f32.mrf.mxu0
    %v5509 = vadd.f32 %v5328, %v5508
    %v5510 = vpop.f32.mrf.mxu0
    %v5511 = vadd.f32 %v5330, %v5510
    %5512 = vmatmul.bf16.gmra.mxu0 %v4917
    %v5513 = vpop.f32.mrf.mxu0
    %v5514 = vadd.f32 %v5333, %v5513
    %v5515 = vpop.f32.mrf.mxu0
    %v5516 = vadd.f32 %v5335, %v5515
    %5517 = vmatmul.bf16.gmra.mxu0 %v4918
    %v5518 = vpop.f32.mrf.mxu0
    %v5519 = vadd.f32 %v5338, %v5518
    %v5520 = vpop.f32.mrf.mxu0
    %v5521 = vadd.f32 %v5340, %v5520
    %5522 = vmatmul.bf16.gmra.mxu0 %v4919
    %v5523 = vpop.f32.mrf.mxu0
    %v5524 = vadd.f32 %v5343, %v5523
    %v5525 = vpop.f32.mrf.mxu0
    %v5526 = vadd.f32 %v5345, %v5525
    %5527 = vmatmul.bf16.gmra.mxu0 %v4920
    %v5528 = vpop.f32.mrf.mxu0
    %v5529 = vadd.f32 %v5348, %v5528
    %v5530 = vpop.f32.mrf.mxu0
    %v5531 = vadd.f32 %v5350, %v5530
    %5532 = vmatmul.bf16.gmra.mxu0 %v4921
    %v5533 = vpop.f32.mrf.mxu0
    %v5534 = vadd.f32 %v5353, %v5533
    %v5535 = vpop.f32.mrf.mxu0
    %v5536 = vadd.f32 %v5355, %v5535
    %5537 = vmatmul.bf16.gmra.mxu0 %v4922
    %v5538 = vpop.f32.mrf.mxu0
    %v5539 = vadd.f32 %v5358, %v5538
    %v5540 = vpop.f32.mrf.mxu0
    %v5541 = vadd.f32 %v5360, %v5540
    %5542 = vmatmul.bf16.gmra.mxu0 %v4923
    %v5543 = vpop.f32.mrf.mxu0
    %v5544 = vadd.f32 %v5363, %v5543
    %v5545 = vpop.f32.mrf.mxu0
    %v5546 = vadd.f32 %v5365, %v5545
    %5547 = vmatmul.bf16.gmra.mxu0 %v4924
    %v5548 = vpop.f32.mrf.mxu0
    %v5549 = vadd.f32 %v5368, %v5548
    %v5550 = vpop.f32.mrf.mxu0
    %v5551 = vadd.f32 %v5370, %v5550
    %5552 = vmatmul.bf16.gmra.mxu0 %v4925
    %v5553 = vpop.f32.mrf.mxu0
    %v5554 = vadd.f32 %v5373, %v5553
    %v5555 = vpop.f32.mrf.mxu0
    %v5556 = vadd.f32 %v5375, %v5555
    %5557 = vmatmul.bf16.gmra.mxu0 %v4926
    %v5558 = vpop.f32.mrf.mxu0
    %v5559 = vadd.f32 %v5378, %v5558
    %v5560 = vpop.f32.mrf.mxu0
    %5561 = vdwg.mxu0
    %s5562 = scalar_lea.vmem [#allocation2], 784
    %v5563 = vld [vmem:[%s5562] sm:$0xff]
    %v5564 = vld [vmem:[%s5562 + $0x8] sm:$0xff]
    %v5565 = vld [vmem:[%s5562 + $0x10] sm:$0xff]
    %v5566 = vld [vmem:[%s5562 + $0x18] sm:$0xff]
    %v5567 = vld [vmem:[%s5562 + $0x20] sm:$0xff]
    %v5568 = vld [vmem:[%s5562 + $0x28] sm:$0xff]
    %v5569 = vld [vmem:[%s5562 + $0x30] sm:$0xff]
    %v5570 = vld [vmem:[%s5562 + $0x38] sm:$0xff]
    %v5571 = vld [vmem:[%s5562 + $0x40] sm:$0xff]
    %v5572 = vld [vmem:[%s5562 + $0x48] sm:$0xff]
    %v5573 = vld [vmem:[%s5562 + $0x50] sm:$0xff]
    %v5574 = vld [vmem:[%s5562 + $0x58] sm:$0xff]
    %v5575 = vld [vmem:[%s5562 + $0x60] sm:$0xff]
    %v5576 = vld [vmem:[%s5562 + $0x68] sm:$0xff]
    %v5577 = vld [vmem:[%s5562 + $0x70] sm:$0xff]
    %v5578 = vld [vmem:[%s5562 + $0x78] sm:$0xff]
    %v5579 = vld [vmem:[%s5562 + $0x80] sm:$0xff]
    %v5580 = vld [vmem:[%s5562 + $0x88] sm:$0xff]
    %v5581 = vld [vmem:[%s5562 + $0x90] sm:$0xff]
    %v5582 = vld [vmem:[%s5562 + $0x98] sm:$0xff]
    %v5583 = vld [vmem:[%s5562 + $0xa0] sm:$0xff]
    %v5584 = vld [vmem:[%s5562 + $0xa8] sm:$0xff]
    %v5585 = vld [vmem:[%s5562 + $0xb0] sm:$0xff]
    %v5586 = vld [vmem:[%s5562 + $0xb8] sm:$0xff]
    %v5587 = vld [vmem:[%s5562 + $0xc0] sm:$0xff]
    %v5588 = vld [vmem:[%s5562 + $0xc8] sm:$0xff]
    %v5589 = vld [vmem:[%s5562 + $0xd0] sm:$0xff]
    %v5590 = vld [vmem:[%s5562 + $0xd8] sm:$0xff]
    %v5591 = vld [vmem:[%s5562 + $0xe0] sm:$0xff]
    %v5592 = vld [vmem:[%s5562 + $0xe8] sm:$0xff]
    %v5593 = vld [vmem:[%s5562 + $0xf0] sm:$0xff]
    %v5594 = vld [vmem:[%s5562 + $0xf8] sm:$0xff]
    %v5595 = vld [vmem:[%s5562 + $0x100] sm:$0xff]
    %v5596 = vld [vmem:[%s5562 + $0x108] sm:$0xff]
    %v5597 = vld [vmem:[%s5562 + $0x110] sm:$0xff]
    %v5598 = vld [vmem:[%s5562 + $0x118] sm:$0xff]
    %v5599 = vld [vmem:[%s5562 + $0x120] sm:$0xff]
    %v5600 = vld [vmem:[%s5562 + $0x128] sm:$0xff]
    %v5601 = vld [vmem:[%s5562 + $0x130] sm:$0xff]
    %v5602 = vld [vmem:[%s5562 + $0x138] sm:$0xff]
    %v5603 = vld [vmem:[%s5562 + $0x140] sm:$0xff]
    %v5604 = vld [vmem:[%s5562 + $0x148] sm:$0xff]
    %v5605 = vld [vmem:[%s5562 + $0x150] sm:$0xff]
    %v5606 = vld [vmem:[%s5562 + $0x158] sm:$0xff]
    %v5607 = vld [vmem:[%s5562 + $0x160] sm:$0xff]
    %v5608 = vld [vmem:[%s5562 + $0x168] sm:$0xff]
    %v5609 = vld [vmem:[%s5562 + $0x170] sm:$0xff]
    %v5610 = vld [vmem:[%s5562 + $0x178] sm:$0xff]
    %v5611 = vld [vmem:[%s5562 + $0x180] sm:$0xff]
    %5612 = vmatpush.msra.mxu0 %v4688
    %5613 = vmatpush.msra.mxu0 %v4687
    %5614 = vmatpush.msra.mxu0 %v4686
    %5615 = vmatpush.msra.mxu0 %v4685
    %5616 = vmatpush.msra.mxu0 %v4684
    %5617 = vmatpush.msra.mxu0 %v4683
    %5618 = vmatpush.msra.mxu0 %v4682
    %5619 = vmatpush.msra.mxu0 %v4681
    %5620 = vmatpush.msra.mxu0 %v4680
    %5621 = vmatpush.msra.mxu0 %v4679
    %5622 = vmatpush.msra.mxu0 %v4678
    %5623 = vmatpush.msra.mxu0 %v4677
    %5624 = vmatpush.msra.mxu0 %v4676
    %5625 = vmatpush.msra.mxu0 %v4675
    %5626 = vmatpush.msra.mxu0 %v4674
    %5627 = vmatpush.msra.mxu0 %v4673
    %5628 = vmatmul.f32.gmra.mxu0 %v5563
    %v5629 = vpop.f32.mrf.mxu0
    %v5630 = vadd.f32 0.0, %v5629
    %5631 = vmatmul.f32.gmra.mxu0 %v5564
    %v5632 = vpop.f32.mrf.mxu0
    %v5633 = vadd.f32 0.0, %v5632
    %5634 = vmatmul.f32.gmra.mxu0 %v5565
    %v5635 = vpop.f32.mrf.mxu0
    %v5636 = vadd.f32 0.0, %v5635
    %5637 = vmatmul.f32.gmra.mxu0 %v5566
    %v5638 = vpop.f32.mrf.mxu0
    %v5639 = vadd.f32 0.0, %v5638
    %5640 = vmatmul.f32.gmra.mxu0 %v5567
    %v5641 = vpop.f32.mrf.mxu0
    %v5642 = vadd.f32 0.0, %v5641
    %5643 = vmatmul.f32.gmra.mxu0 %v5568
    %v5644 = vpop.f32.mrf.mxu0
    %v5645 = vadd.f32 0.0, %v5644
    %5646 = vmatmul.f32.gmra.mxu0 %v5569
    %v5647 = vpop.f32.mrf.mxu0
    %v5648 = vadd.f32 0.0, %v5647
    %5649 = vmatmul.f32.gmra.mxu0 %v5570
    %v5650 = vpop.f32.mrf.mxu0
    %v5651 = vadd.f32 0.0, %v5650
    %5652 = vmatmul.f32.gmra.mxu0 %v5571
    %v5653 = vpop.f32.mrf.mxu0
    %v5654 = vadd.f32 0.0, %v5653
    %5655 = vmatmul.f32.gmra.mxu0 %v5572
    %v5656 = vpop.f32.mrf.mxu0
    %v5657 = vadd.f32 0.0, %v5656
    %5658 = vmatmul.f32.gmra.mxu0 %v5573
    %v5659 = vpop.f32.mrf.mxu0
    %v5660 = vadd.f32 0.0, %v5659
    %5661 = vmatmul.f32.gmra.mxu0 %v5574
    %v5662 = vpop.f32.mrf.mxu0
    %v5663 = vadd.f32 0.0, %v5662
    %5664 = vmatmul.f32.gmra.mxu0 %v5575
    %v5665 = vpop.f32.mrf.mxu0
    %v5666 = vadd.f32 0.0, %v5665
    %5667 = vmatmul.f32.gmra.mxu0 %v5576
    %v5668 = vpop.f32.mrf.mxu0
    %v5669 = vadd.f32 0.0, %v5668
    %5670 = vmatmul.f32.gmra.mxu0 %v5577
    %v5671 = vpop.f32.mrf.mxu0
    %v5672 = vadd.f32 0.0, %v5671
    %5673 = vmatmul.f32.gmra.mxu0 %v5578
    %v5674 = vpop.f32.mrf.mxu0
    %v5675 = vadd.f32 0.0, %v5674
    %5676 = vmatmul.f32.gmra.mxu0 %v5579
    %v5677 = vpop.f32.mrf.mxu0
    %v5678 = vadd.f32 0.0, %v5677
    %5679 = vmatmul.f32.gmra.mxu0 %v5580
    %v5680 = vpop.f32.mrf.mxu0
    %v5681 = vadd.f32 0.0, %v5680
    %5682 = vmatmul.f32.gmra.mxu0 %v5581
    %v5683 = vpop.f32.mrf.mxu0
    %v5684 = vadd.f32 0.0, %v5683
    %5685 = vmatmul.f32.gmra.mxu0 %v5582
    %v5686 = vpop.f32.mrf.mxu0
    %v5687 = vadd.f32 0.0, %v5686
    %5688 = vmatmul.f32.gmra.mxu0 %v5583
    %v5689 = vpop.f32.mrf.mxu0
    %v5690 = vadd.f32 0.0, %v5689
    %5691 = vmatmul.f32.gmra.mxu0 %v5584
    %v5692 = vpop.f32.mrf.mxu0
    %v5693 = vadd.f32 0.0, %v5692
    %5694 = vmatmul.f32.gmra.mxu0 %v5585
    %v5695 = vpop.f32.mrf.mxu0
    %v5696 = vadd.f32 0.0, %v5695
    %5697 = vmatmul.f32.gmra.mxu0 %v5586
    %v5698 = vpop.f32.mrf.mxu0
    %v5699 = vadd.f32 0.0, %v5698
    %5700 = vmatmul.f32.gmra.mxu0 %v5587
    %v5701 = vpop.f32.mrf.mxu0
    %v5702 = vadd.f32 0.0, %v5701
    %5703 = vmatmul.f32.gmra.mxu0 %v5588
    %v5704 = vpop.f32.mrf.mxu0
    %v5705 = vadd.f32 0.0, %v5704
    %5706 = vmatmul.f32.gmra.mxu0 %v5589
    %v5707 = vpop.f32.mrf.mxu0
    %v5708 = vadd.f32 0.0, %v5707
    %5709 = vmatmul.f32.gmra.mxu0 %v5590
    %v5710 = vpop.f32.mrf.mxu0
    %v5711 = vadd.f32 0.0, %v5710
    %5712 = vmatmul.f32.gmra.mxu0 %v5591
    %v5713 = vpop.f32.mrf.mxu0
    %v5714 = vadd.f32 0.0, %v5713
    %5715 = vmatmul.f32.gmra.mxu0 %v5592
    %v5716 = vpop.f32.mrf.mxu0
    %v5717 = vadd.f32 0.0, %v5716
    %5718 = vmatmul.f32.gmra.mxu0 %v5593
    %v5719 = vpop.f32.mrf.mxu0
    %v5720 = vadd.f32 0.0, %v5719
    %5721 = vmatmul.f32.gmra.mxu0 %v5594
    %v5722 = vpop.f32.mrf.mxu0
    %v5723 = vadd.f32 0.0, %v5722
    %5724 = vmatmul.f32.gmra.mxu0 %v5595
    %v5725 = vpop.f32.mrf.mxu0
    %v5726 = vadd.f32 0.0, %v5725
    %5727 = vmatmul.f32.gmra.mxu0 %v5596
    %v5728 = vpop.f32.mrf.mxu0
    %v5729 = vadd.f32 0.0, %v5728
    %5730 = vmatmul.f32.gmra.mxu0 %v5597
    %v5731 = vpop.f32.mrf.mxu0
    %v5732 = vadd.f32 0.0, %v5731
    %5733 = vmatmul.f32.gmra.mxu0 %v5598
    %v5734 = vpop.f32.mrf.mxu0
    %v5735 = vadd.f32 0.0, %v5734
    %5736 = vmatmul.f32.gmra.mxu0 %v5599
    %v5737 = vpop.f32.mrf.mxu0
    %v5738 = vadd.f32 0.0, %v5737
    %5739 = vmatmul.f32.gmra.mxu0 %v5600
    %v5740 = vpop.f32.mrf.mxu0
    %v5741 = vadd.f32 0.0, %v5740
    %5742 = vmatmul.f32.gmra.mxu0 %v5601
    %v5743 = vpop.f32.mrf.mxu0
    %v5744 = vadd.f32 0.0, %v5743
    %5745 = vmatmul.f32.gmra.mxu0 %v5602
    %v5746 = vpop.f32.mrf.mxu0
    %v5747 = vadd.f32 0.0, %v5746
    %5748 = vmatmul.f32.gmra.mxu0 %v5603
    %v5749 = vpop.f32.mrf.mxu0
    %v5750 = vadd.f32 0.0, %v5749
    %5751 = vmatmul.f32.gmra.mxu0 %v5604
    %v5752 = vpop.f32.mrf.mxu0
    %v5753 = vadd.f32 0.0, %v5752
    %5754 = vmatmul.f32.gmra.mxu0 %v5605
    %v5755 = vpop.f32.mrf.mxu0
    %v5756 = vadd.f32 0.0, %v5755
    %5757 = vmatmul.f32.gmra.mxu0 %v5606
    %v5758 = vpop.f32.mrf.mxu0
    %v5759 = vadd.f32 0.0, %v5758
    %5760 = vmatmul.f32.gmra.mxu0 %v5607
    %v5761 = vpop.f32.mrf.mxu0
    %v5762 = vadd.f32 0.0, %v5761
    %5763 = vmatmul.f32.gmra.mxu0 %v5608
    %v5764 = vpop.f32.mrf.mxu0
    %v5765 = vadd.f32 0.0, %v5764
    %5766 = vmatmul.f32.gmra.mxu0 %v5609
    %v5767 = vpop.f32.mrf.mxu0
    %v5768 = vadd.f32 0.0, %v5767
    %5769 = vmatmul.f32.gmra.mxu0 %v5610
    %v5770 = vpop.f32.mrf.mxu0
    %v5771 = vadd.f32 0.0, %v5770
    %5772 = vmatmul.f32.gmra.mxu0 %v5611
    %v5773 = vpop.f32.mrf.mxu0
    %v5774 = vadd.f32 0.0, %v5773
    %5775 = vdwg.mxu0
    %v5776 = vpack.c.bf16 %v5633, %v5630
    %v5777 = vpack.c.bf16 %v5639, %v5636
    %v5778 = vpack.c.bf16 %v5645, %v5642
    %v5779 = vpack.c.bf16 %v5651, %v5648
    %v5780 = vpack.c.bf16 %v5657, %v5654
    %v5781 = vpack.c.bf16 %v5663, %v5660
    %v5782 = vpack.c.bf16 %v5669, %v5666
    %v5783 = vpack.c.bf16 %v5675, %v5672
    %v5784 = vpack.c.bf16 %v5681, %v5678
    %v5785 = vpack.c.bf16 %v5687, %v5684
    %v5786 = vpack.c.bf16 %v5693, %v5690
    %v5787 = vpack.c.bf16 %v5699, %v5696
    %v5788 = vpack.c.bf16 %v5705, %v5702
    %v5789 = vpack.c.bf16 %v5711, %v5708
    %v5790 = vpack.c.bf16 %v5717, %v5714
    %v5791 = vpack.c.bf16 %v5723, %v5720
    %v5792 = vpack.c.bf16 %v5729, %v5726
    %v5793 = vpack.c.bf16 %v5735, %v5732
    %v5794 = vpack.c.bf16 %v5741, %v5738
    %v5795 = vpack.c.bf16 %v5747, %v5744
    %v5796 = vpack.c.bf16 %v5753, %v5750
    %v5797 = vpack.c.bf16 %v5759, %v5756
    %v5798 = vpack.c.bf16 %v5765, %v5762
    %v5799 = vpack.c.bf16 %v5771, %v5768
    %v5800 = vpack.c.bf16 %v5774, %v5774
    %s5801 = scalar_lea.vmem %s1, 1920
    %v5802 = vld [vmem:[%s5801] sm:$0xf]
    %v5803 = vld [vmem:[%s5801 + $0x4] sm:$0xf]
    %v5804 = vld [vmem:[%s5801 + $0x8] sm:$0xf]
    %v5805 = vld [vmem:[%s5801 + $0xc] sm:$0xf]
    %v5806 = vld [vmem:[%s5801 + $0x10] sm:$0xf]
    %v5807 = vld [vmem:[%s5801 + $0x14] sm:$0xf]
    %v5808 = vld [vmem:[%s5801 + $0x18] sm:$0xf]
    %v5809 = vld [vmem:[%s5801 + $0x1c] sm:$0xf]
    %v5810 = vld [vmem:[%s5801 + $0x20] sm:$0xf]
    %v5811 = vld [vmem:[%s5801 + $0x24] sm:$0xf]
    %v5812 = vld [vmem:[%s5801 + $0x28] sm:$0xf]
    %v5813 = vld [vmem:[%s5801 + $0x2c] sm:$0xf]
    %v5814 = vld [vmem:[%s5801 + $0x30] sm:$0xf]
    %v5815 = vld [vmem:[%s5801 + $0x34] sm:$0xf]
    %v5816 = vld [vmem:[%s5801 + $0x38] sm:$0xf]
    %v5817 = vld [vmem:[%s5801 + $0x3c] sm:$0xf]
    %v5834 = vunpack.c.l.b16 %v5802
    %v5835 = vunpack.c.l.b16 %v5803
    %v5836 = vunpack.c.l.b16 %v5804
    %v5837 = vunpack.c.l.b16 %v5805
    %v5838 = vunpack.c.l.b16 %v5806
    %v5839 = vunpack.c.l.b16 %v5807
    %v5840 = vunpack.c.l.b16 %v5808
    %v5841 = vunpack.c.l.b16 %v5809
    %v5842 = vunpack.c.l.b16 %v5810
    %v5843 = vunpack.c.l.b16 %v5811
    %v5844 = vunpack.c.l.b16 %v5812
    %v5845 = vunpack.c.l.b16 %v5813
    %v5846 = vunpack.c.l.b16 %v5814
    %v5847 = vunpack.c.l.b16 %v5815
    %v5848 = vunpack.c.l.b16 %v5816
    %v5849 = vunpack.c.l.b16 %v5817
    %v5850 = vpack.c.b16 %v5835, %v5834
    %v5851 = vpack.c.b16 %v5837, %v5836
    %v5852 = vpack.c.b16 %v5839, %v5838
    %v5853 = vpack.c.b16 %v5841, %v5840
    %v5854 = vpack.c.b16 %v5843, %v5842
    %v5855 = vpack.c.b16 %v5845, %v5844
    %v5856 = vpack.c.b16 %v5847, %v5846
    %v5857 = vpack.c.b16 %v5849, %v5848
    %5866 = vmatpush.bf16.msra.mxu0 %v5857
    %5867 = vmatpush.bf16.msra.mxu0 %v5856
    %5868 = vmatpush.bf16.msra.mxu0 %v5855
    %5869 = vmatpush.bf16.msra.mxu0 %v5854
    %5870 = vmatpush.bf16.msra.mxu0 %v5853
    %5871 = vmatpush.bf16.msra.mxu0 %v5852
    %5872 = vmatpush.bf16.msra.mxu0 %v5851
    %5873 = vmatpush.bf16.msra.mxu0 %v5850
    %5874 = vmatmul.bf16.gmra.mxu0 %v5776
    %v5875 = vpop.f32.mrf.mxu0
    %v5876 = vadd.f32 0.0, %v5875
    %v5877 = vpop.f32.mrf.mxu0
    %v5878 = vadd.f32 0.0, %v5877
    %5879 = vmatmul.bf16.gmra.mxu0 %v5777
    %v5880 = vpop.f32.mrf.mxu0
    %v5881 = vadd.f32 0.0, %v5880
    %v5882 = vpop.f32.mrf.mxu0
    %v5883 = vadd.f32 0.0, %v5882
    %5884 = vmatmul.bf16.gmra.mxu0 %v5778
    %v5885 = vpop.f32.mrf.mxu0
    %v5886 = vadd.f32 0.0, %v5885
    %v5887 = vpop.f32.mrf.mxu0
    %v5888 = vadd.f32 0.0, %v5887
    %5889 = vmatmul.bf16.gmra.mxu0 %v5779
    %v5890 = vpop.f32.mrf.mxu0
    %v5891 = vadd.f32 0.0, %v5890
    %v5892 = vpop.f32.mrf.mxu0
    %v5893 = vadd.f32 0.0, %v5892
    %5894 = vmatmul.bf16.gmra.mxu0 %v5780
    %v5895 = vpop.f32.mrf.mxu0
    %v5896 = vadd.f32 0.0, %v5895
    %v5897 = vpop.f32.mrf.mxu0
    %v5898 = vadd.f32 0.0, %v5897
    %5899 = vmatmul.bf16.gmra.mxu0 %v5781
    %v5900 = vpop.f32.mrf.mxu0
    %v5901 = vadd.f32 0.0, %v5900
    %v5902 = vpop.f32.mrf.mxu0
    %v5903 = vadd.f32 0.0, %v5902
    %5904 = vmatmul.bf16.gmra.mxu0 %v5782
    %v5905 = vpop.f32.mrf.mxu0
    %v5906 = vadd.f32 0.0, %v5905
    %v5907 = vpop.f32.mrf.mxu0
    %v5908 = vadd.f32 0.0, %v5907
    %5909 = vmatmul.bf16.gmra.mxu0 %v5783
    %v5910 = vpop.f32.mrf.mxu0
    %v5911 = vadd.f32 0.0, %v5910
    %v5912 = vpop.f32.mrf.mxu0
    %v5913 = vadd.f32 0.0, %v5912
    %5914 = vmatmul.bf16.gmra.mxu0 %v5784
    %v5915 = vpop.f32.mrf.mxu0
    %v5916 = vadd.f32 0.0, %v5915
    %v5917 = vpop.f32.mrf.mxu0
    %v5918 = vadd.f32 0.0, %v5917
    %5919 = vmatmul.bf16.gmra.mxu0 %v5785
    %v5920 = vpop.f32.mrf.mxu0
    %v5921 = vadd.f32 0.0, %v5920
    %v5922 = vpop.f32.mrf.mxu0
    %v5923 = vadd.f32 0.0, %v5922
    %5924 = vmatmul.bf16.gmra.mxu0 %v5786
    %v5925 = vpop.f32.mrf.mxu0
    %v5926 = vadd.f32 0.0, %v5925
    %v5927 = vpop.f32.mrf.mxu0
    %v5928 = vadd.f32 0.0, %v5927
    %5929 = vmatmul.bf16.gmra.mxu0 %v5787
    %v5930 = vpop.f32.mrf.mxu0
    %v5931 = vadd.f32 0.0, %v5930
    %v5932 = vpop.f32.mrf.mxu0
    %v5933 = vadd.f32 0.0, %v5932
    %5934 = vmatmul.bf16.gmra.mxu0 %v5788
    %v5935 = vpop.f32.mrf.mxu0
    %v5936 = vadd.f32 0.0, %v5935
    %v5937 = vpop.f32.mrf.mxu0
    %v5938 = vadd.f32 0.0, %v5937
    %5939 = vmatmul.bf16.gmra.mxu0 %v5789
    %v5940 = vpop.f32.mrf.mxu0
    %v5941 = vadd.f32 0.0, %v5940
    %v5942 = vpop.f32.mrf.mxu0
    %v5943 = vadd.f32 0.0, %v5942
    %5944 = vmatmul.bf16.gmra.mxu0 %v5790
    %v5945 = vpop.f32.mrf.mxu0
    %v5946 = vadd.f32 0.0, %v5945
    %v5947 = vpop.f32.mrf.mxu0
    %v5948 = vadd.f32 0.0, %v5947
    %5949 = vmatmul.bf16.gmra.mxu0 %v5791
    %v5950 = vpop.f32.mrf.mxu0
    %v5951 = vadd.f32 0.0, %v5950
    %v5952 = vpop.f32.mrf.mxu0
    %v5953 = vadd.f32 0.0, %v5952
    %5954 = vmatmul.bf16.gmra.mxu0 %v5792
    %v5955 = vpop.f32.mrf.mxu0
    %v5956 = vadd.f32 0.0, %v5955
    %v5957 = vpop.f32.mrf.mxu0
    %v5958 = vadd.f32 0.0, %v5957
    %5959 = vmatmul.bf16.gmra.mxu0 %v5793
    %v5960 = vpop.f32.mrf.mxu0
    %v5961 = vadd.f32 0.0, %v5960
    %v5962 = vpop.f32.mrf.mxu0
    %v5963 = vadd.f32 0.0, %v5962
    %5964 = vmatmul.bf16.gmra.mxu0 %v5794
    %v5965 = vpop.f32.mrf.mxu0
    %v5966 = vadd.f32 0.0, %v5965
    %v5967 = vpop.f32.mrf.mxu0
    %v5968 = vadd.f32 0.0, %v5967
    %5969 = vmatmul.bf16.gmra.mxu0 %v5795
    %v5970 = vpop.f32.mrf.mxu0
    %v5971 = vadd.f32 0.0, %v5970
    %v5972 = vpop.f32.mrf.mxu0
    %v5973 = vadd.f32 0.0, %v5972
    %5974 = vmatmul.bf16.gmra.mxu0 %v5796
    %v5975 = vpop.f32.mrf.mxu0
    %v5976 = vadd.f32 0.0, %v5975
    %v5977 = vpop.f32.mrf.mxu0
    %v5978 = vadd.f32 0.0, %v5977
    %5979 = vmatmul.bf16.gmra.mxu0 %v5797
    %v5980 = vpop.f32.mrf.mxu0
    %v5981 = vadd.f32 0.0, %v5980
    %v5982 = vpop.f32.mrf.mxu0
    %v5983 = vadd.f32 0.0, %v5982
    %5984 = vmatmul.bf16.gmra.mxu0 %v5798
    %v5985 = vpop.f32.mrf.mxu0
    %v5986 = vadd.f32 0.0, %v5985
    %v5987 = vpop.f32.mrf.mxu0
    %v5988 = vadd.f32 0.0, %v5987
    %5989 = vmatmul.bf16.gmra.mxu0 %v5799
    %v5990 = vpop.f32.mrf.mxu0
    %v5991 = vadd.f32 0.0, %v5990
    %v5992 = vpop.f32.mrf.mxu0
    %v5993 = vadd.f32 0.0, %v5992
    %5994 = vmatmul.bf16.gmra.mxu0 %v5800
    %v5995 = vpop.f32.mrf.mxu0
    %v5996 = vadd.f32 0.0, %v5995
    %v5997 = vpop.f32.mrf.mxu0
    %5998 = vdwg.mxu0
    %v5999 = vadd.f32 %v5439, %v5876
    %v6000 = vadd.f32 %v5441, %v5878
    %v6001 = vadd.f32 %v5444, %v5881
    %v6002 = vadd.f32 %v5446, %v5883
    %v6003 = vadd.f32 %v5449, %v5886
    %v6004 = vadd.f32 %v5451, %v5888
    %v6005 = vadd.f32 %v5454, %v5891
    %v6006 = vadd.f32 %v5456, %v5893
    %v6007 = vadd.f32 %v5459, %v5896
    %v6008 = vadd.f32 %v5461, %v5898
    %v6009 = vadd.f32 %v5464, %v5901
    %v6010 = vadd.f32 %v5466, %v5903
    %v6011 = vadd.f32 %v5469, %v5906
    %v6012 = vadd.f32 %v5471, %v5908
    %v6013 = vadd.f32 %v5474, %v5911
    %v6014 = vadd.f32 %v5476, %v5913
    %v6015 = vadd.f32 %v5479, %v5916
    %v6016 = vadd.f32 %v5481, %v5918
    %v6017 = vadd.f32 %v5484, %v5921
    %v6018 = vadd.f32 %v5486, %v5923
    %v6019 = vadd.f32 %v5489, %v5926
    %v6020 = vadd.f32 %v5491, %v5928
    %v6021 = vadd.f32 %v5494, %v5931
    %v6022 = vadd.f32 %v5496, %v5933
    %v6023 = vadd.f32 %v5499, %v5936
    %v6024 = vadd.f32 %v5501, %v5938
    %v6025 = vadd.f32 %v5504, %v5941
    %v6026 = vadd.f32 %v5506, %v5943
    %v6027 = vadd.f32 %v5509, %v5946
    %v6028 = vadd.f32 %v5511, %v5948
    %v6029 = vadd.f32 %v5514, %v5951
    %v6030 = vadd.f32 %v5516, %v5953
    %v6031 = vadd.f32 %v5519, %v5956
    %v6032 = vadd.f32 %v5521, %v5958
    %v6033 = vadd.f32 %v5524, %v5961
    %v6034 = vadd.f32 %v5526, %v5963
    %v6035 = vadd.f32 %v5529, %v5966
    %v6036 = vadd.f32 %v5531, %v5968
    %v6037 = vadd.f32 %v5534, %v5971
    %v6038 = vadd.f32 %v5536, %v5973
    %v6039 = vadd.f32 %v5539, %v5976
    %v6040 = vadd.f32 %v5541, %v5978
    %v6041 = vadd.f32 %v5544, %v5981
    %v6042 = vadd.f32 %v5546, %v5983
    %v6043 = vadd.f32 %v5549, %v5986
    %v6044 = vadd.f32 %v5551, %v5988
    %v6045 = vadd.f32 %v5554, %v5991
    %v6046 = vadd.f32 %v5556, %v5993
    %v6047 = vadd.f32 %v5559, %v5996
    %s6048 = scalar_lea.vmem [#allocation2], 1176
    %v6049 = vld [vmem:[%s6048] sm:$0xff]
    %v6050 = vld [vmem:[%s6048 + $0x8] sm:$0xff]
    %v6051 = vld [vmem:[%s6048 + $0x10] sm:$0xff]
    %v6052 = vld [vmem:[%s6048 + $0x18] sm:$0xff]
    %v6053 = vld [vmem:[%s6048 + $0x20] sm:$0xff]
    %v6054 = vld [vmem:[%s6048 + $0x28] sm:$0xff]
    %v6055 = vld [vmem:[%s6048 + $0x30] sm:$0xff]
    %v6056 = vld [vmem:[%s6048 + $0x38] sm:$0xff]
    %v6057 = vld [vmem:[%s6048 + $0x40] sm:$0xff]
    %v6058 = vld [vmem:[%s6048 + $0x48] sm:$0xff]
    %v6059 = vld [vmem:[%s6048 + $0x50] sm:$0xff]
    %v6060 = vld [vmem:[%s6048 + $0x58] sm:$0xff]
    %v6061 = vld [vmem:[%s6048 + $0x60] sm:$0xff]
    %v6062 = vld [vmem:[%s6048 + $0x68] sm:$0xff]
    %v6063 = vld [vmem:[%s6048 + $0x70] sm:$0xff]
    %v6064 = vld [vmem:[%s6048 + $0x78] sm:$0xff]
    %v6065 = vld [vmem:[%s6048 + $0x80] sm:$0xff]
    %v6066 = vld [vmem:[%s6048 + $0x88] sm:$0xff]
    %v6067 = vld [vmem:[%s6048 + $0x90] sm:$0xff]
    %v6068 = vld [vmem:[%s6048 + $0x98] sm:$0xff]
    %v6069 = vld [vmem:[%s6048 + $0xa0] sm:$0xff]
    %v6070 = vld [vmem:[%s6048 + $0xa8] sm:$0xff]
    %v6071 = vld [vmem:[%s6048 + $0xb0] sm:$0xff]
    %v6072 = vld [vmem:[%s6048 + $0xb8] sm:$0xff]
    %v6073 = vld [vmem:[%s6048 + $0xc0] sm:$0xff]
    %v6074 = vld [vmem:[%s6048 + $0xc8] sm:$0xff]
    %v6075 = vld [vmem:[%s6048 + $0xd0] sm:$0xff]
    %v6076 = vld [vmem:[%s6048 + $0xd8] sm:$0xff]
    %v6077 = vld [vmem:[%s6048 + $0xe0] sm:$0xff]
    %v6078 = vld [vmem:[%s6048 + $0xe8] sm:$0xff]
    %v6079 = vld [vmem:[%s6048 + $0xf0] sm:$0xff]
    %v6080 = vld [vmem:[%s6048 + $0xf8] sm:$0xff]
    %v6081 = vld [vmem:[%s6048 + $0x100] sm:$0xff]
    %v6082 = vld [vmem:[%s6048 + $0x108] sm:$0xff]
    %v6083 = vld [vmem:[%s6048 + $0x110] sm:$0xff]
    %v6084 = vld [vmem:[%s6048 + $0x118] sm:$0xff]
    %v6085 = vld [vmem:[%s6048 + $0x120] sm:$0xff]
    %v6086 = vld [vmem:[%s6048 + $0x128] sm:$0xff]
    %v6087 = vld [vmem:[%s6048 + $0x130] sm:$0xff]
    %v6088 = vld [vmem:[%s6048 + $0x138] sm:$0xff]
    %v6089 = vld [vmem:[%s6048 + $0x140] sm:$0xff]
    %v6090 = vld [vmem:[%s6048 + $0x148] sm:$0xff]
    %v6091 = vld [vmem:[%s6048 + $0x150] sm:$0xff]
    %v6092 = vld [vmem:[%s6048 + $0x158] sm:$0xff]
    %v6093 = vld [vmem:[%s6048 + $0x160] sm:$0xff]
    %v6094 = vld [vmem:[%s6048 + $0x168] sm:$0xff]
    %v6095 = vld [vmem:[%s6048 + $0x170] sm:$0xff]
    %v6096 = vld [vmem:[%s6048 + $0x178] sm:$0xff]
    %v6097 = vld [vmem:[%s6048 + $0x180] sm:$0xff]
    %6098 = vmatpush.msra.mxu0 %v4688
    %6099 = vmatpush.msra.mxu0 %v4687
    %6100 = vmatpush.msra.mxu0 %v4686
    %6101 = vmatpush.msra.mxu0 %v4685
    %6102 = vmatpush.msra.mxu0 %v4684
    %6103 = vmatpush.msra.mxu0 %v4683
    %6104 = vmatpush.msra.mxu0 %v4682
    %6105 = vmatpush.msra.mxu0 %v4681
    %6106 = vmatpush.msra.mxu0 %v4680
    %6107 = vmatpush.msra.mxu0 %v4679
    %6108 = vmatpush.msra.mxu0 %v4678
    %6109 = vmatpush.msra.mxu0 %v4677
    %6110 = vmatpush.msra.mxu0 %v4676
    %6111 = vmatpush.msra.mxu0 %v4675
    %6112 = vmatpush.msra.mxu0 %v4674
    %6113 = vmatpush.msra.mxu0 %v4673
    %6114 = vmatmul.f32.gmra.mxu0 %v6049
    %v6115 = vpop.f32.mrf.mxu0
    %v6116 = vadd.f32 0.0, %v6115
    %6117 = vmatmul.f32.gmra.mxu0 %v6050
    %v6118 = vpop.f32.mrf.mxu0
    %v6119 = vadd.f32 0.0, %v6118
    %6120 = vmatmul.f32.gmra.mxu0 %v6051
    %v6121 = vpop.f32.mrf.mxu0
    %v6122 = vadd.f32 0.0, %v6121
    %6123 = vmatmul.f32.gmra.mxu0 %v6052
    %v6124 = vpop.f32.mrf.mxu0
    %v6125 = vadd.f32 0.0, %v6124
    %6126 = vmatmul.f32.gmra.mxu0 %v6053
    %v6127 = vpop.f32.mrf.mxu0
    %v6128 = vadd.f32 0.0, %v6127
    %6129 = vmatmul.f32.gmra.mxu0 %v6054
    %v6130 = vpop.f32.mrf.mxu0
    %v6131 = vadd.f32 0.0, %v6130
    %6132 = vmatmul.f32.gmra.mxu0 %v6055
    %v6133 = vpop.f32.mrf.mxu0
    %v6134 = vadd.f32 0.0, %v6133
    %6135 = vmatmul.f32.gmra.mxu0 %v6056
    %v6136 = vpop.f32.mrf.mxu0
    %v6137 = vadd.f32 0.0, %v6136
    %6138 = vmatmul.f32.gmra.mxu0 %v6057
    %v6139 = vpop.f32.mrf.mxu0
    %v6140 = vadd.f32 0.0, %v6139
    %6141 = vmatmul.f32.gmra.mxu0 %v6058
    %v6142 = vpop.f32.mrf.mxu0
    %v6143 = vadd.f32 0.0, %v6142
    %6144 = vmatmul.f32.gmra.mxu0 %v6059
    %v6145 = vpop.f32.mrf.mxu0
    %v6146 = vadd.f32 0.0, %v6145
    %6147 = vmatmul.f32.gmra.mxu0 %v6060
    %v6148 = vpop.f32.mrf.mxu0
    %v6149 = vadd.f32 0.0, %v6148
    %6150 = vmatmul.f32.gmra.mxu0 %v6061
    %v6151 = vpop.f32.mrf.mxu0
    %v6152 = vadd.f32 0.0, %v6151
    %6153 = vmatmul.f32.gmra.mxu0 %v6062
    %v6154 = vpop.f32.mrf.mxu0
    %v6155 = vadd.f32 0.0, %v6154
    %6156 = vmatmul.f32.gmra.mxu0 %v6063
    %v6157 = vpop.f32.mrf.mxu0
    %v6158 = vadd.f32 0.0, %v6157
    %6159 = vmatmul.f32.gmra.mxu0 %v6064
    %v6160 = vpop.f32.mrf.mxu0
    %v6161 = vadd.f32 0.0, %v6160
    %6162 = vmatmul.f32.gmra.mxu0 %v6065
    %v6163 = vpop.f32.mrf.mxu0
    %v6164 = vadd.f32 0.0, %v6163
    %6165 = vmatmul.f32.gmra.mxu0 %v6066
    %v6166 = vpop.f32.mrf.mxu0
    %v6167 = vadd.f32 0.0, %v6166
    %6168 = vmatmul.f32.gmra.mxu0 %v6067
    %v6169 = vpop.f32.mrf.mxu0
    %v6170 = vadd.f32 0.0, %v6169
    %6171 = vmatmul.f32.gmra.mxu0 %v6068
    %v6172 = vpop.f32.mrf.mxu0
    %v6173 = vadd.f32 0.0, %v6172
    %6174 = vmatmul.f32.gmra.mxu0 %v6069
    %v6175 = vpop.f32.mrf.mxu0
    %v6176 = vadd.f32 0.0, %v6175
    %6177 = vmatmul.f32.gmra.mxu0 %v6070
    %v6178 = vpop.f32.mrf.mxu0
    %v6179 = vadd.f32 0.0, %v6178
    %6180 = vmatmul.f32.gmra.mxu0 %v6071
    %v6181 = vpop.f32.mrf.mxu0
    %v6182 = vadd.f32 0.0, %v6181
    %6183 = vmatmul.f32.gmra.mxu0 %v6072
    %v6184 = vpop.f32.mrf.mxu0
    %v6185 = vadd.f32 0.0, %v6184
    %6186 = vmatmul.f32.gmra.mxu0 %v6073
    %v6187 = vpop.f32.mrf.mxu0
    %v6188 = vadd.f32 0.0, %v6187
    %6189 = vmatmul.f32.gmra.mxu0 %v6074
    %v6190 = vpop.f32.mrf.mxu0
    %v6191 = vadd.f32 0.0, %v6190
    %6192 = vmatmul.f32.gmra.mxu0 %v6075
    %v6193 = vpop.f32.mrf.mxu0
    %v6194 = vadd.f32 0.0, %v6193
    %6195 = vmatmul.f32.gmra.mxu0 %v6076
    %v6196 = vpop.f32.mrf.mxu0
    %v6197 = vadd.f32 0.0, %v6196
    %6198 = vmatmul.f32.gmra.mxu0 %v6077
    %v6199 = vpop.f32.mrf.mxu0
    %v6200 = vadd.f32 0.0, %v6199
    %6201 = vmatmul.f32.gmra.mxu0 %v6078
    %v6202 = vpop.f32.mrf.mxu0
    %v6203 = vadd.f32 0.0, %v6202
    %6204 = vmatmul.f32.gmra.mxu0 %v6079
    %v6205 = vpop.f32.mrf.mxu0
    %v6206 = vadd.f32 0.0, %v6205
    %6207 = vmatmul.f32.gmra.mxu0 %v6080
    %v6208 = vpop.f32.mrf.mxu0
    %v6209 = vadd.f32 0.0, %v6208
    %6210 = vmatmul.f32.gmra.mxu0 %v6081
    %v6211 = vpop.f32.mrf.mxu0
    %v6212 = vadd.f32 0.0, %v6211
    %6213 = vmatmul.f32.gmra.mxu0 %v6082
    %v6214 = vpop.f32.mrf.mxu0
    %v6215 = vadd.f32 0.0, %v6214
    %6216 = vmatmul.f32.gmra.mxu0 %v6083
    %v6217 = vpop.f32.mrf.mxu0
    %v6218 = vadd.f32 0.0, %v6217
    %6219 = vmatmul.f32.gmra.mxu0 %v6084
    %v6220 = vpop.f32.mrf.mxu0
    %v6221 = vadd.f32 0.0, %v6220
    %6222 = vmatmul.f32.gmra.mxu0 %v6085
    %v6223 = vpop.f32.mrf.mxu0
    %v6224 = vadd.f32 0.0, %v6223
    %6225 = vmatmul.f32.gmra.mxu0 %v6086
    %v6226 = vpop.f32.mrf.mxu0
    %v6227 = vadd.f32 0.0, %v6226
    %6228 = vmatmul.f32.gmra.mxu0 %v6087
    %v6229 = vpop.f32.mrf.mxu0
    %v6230 = vadd.f32 0.0, %v6229
    %6231 = vmatmul.f32.gmra.mxu0 %v6088
    %v6232 = vpop.f32.mrf.mxu0
    %v6233 = vadd.f32 0.0, %v6232
    %6234 = vmatmul.f32.gmra.mxu0 %v6089
    %v6235 = vpop.f32.mrf.mxu0
    %v6236 = vadd.f32 0.0, %v6235
    %6237 = vmatmul.f32.gmra.mxu0 %v6090
    %v6238 = vpop.f32.mrf.mxu0
    %v6239 = vadd.f32 0.0, %v6238
    %6240 = vmatmul.f32.gmra.mxu0 %v6091
    %v6241 = vpop.f32.mrf.mxu0
    %v6242 = vadd.f32 0.0, %v6241
    %6243 = vmatmul.f32.gmra.mxu0 %v6092
    %v6244 = vpop.f32.mrf.mxu0
    %v6245 = vadd.f32 0.0, %v6244
    %6246 = vmatmul.f32.gmra.mxu0 %v6093
    %v6247 = vpop.f32.mrf.mxu0
    %v6248 = vadd.f32 0.0, %v6247
    %6249 = vmatmul.f32.gmra.mxu0 %v6094
    %v6250 = vpop.f32.mrf.mxu0
    %v6251 = vadd.f32 0.0, %v6250
    %6252 = vmatmul.f32.gmra.mxu0 %v6095
    %v6253 = vpop.f32.mrf.mxu0
    %v6254 = vadd.f32 0.0, %v6253
    %6255 = vmatmul.f32.gmra.mxu0 %v6096
    %v6256 = vpop.f32.mrf.mxu0
    %v6257 = vadd.f32 0.0, %v6256
    %6258 = vmatmul.f32.gmra.mxu0 %v6097
    %v6259 = vpop.f32.mrf.mxu0
    %v6260 = vadd.f32 0.0, %v6259
    %6261 = vdwg.mxu0
    %v6262 = vpack.c.bf16 %v6119, %v6116
    %v6263 = vpack.c.bf16 %v6125, %v6122
    %v6264 = vpack.c.bf16 %v6131, %v6128
    %v6265 = vpack.c.bf16 %v6137, %v6134
    %v6266 = vpack.c.bf16 %v6143, %v6140
    %v6267 = vpack.c.bf16 %v6149, %v6146
    %v6268 = vpack.c.bf16 %v6155, %v6152
    %v6269 = vpack.c.bf16 %v6161, %v6158
    %v6270 = vpack.c.bf16 %v6167, %v6164
    %v6271 = vpack.c.bf16 %v6173, %v6170
    %v6272 = vpack.c.bf16 %v6179, %v6176
    %v6273 = vpack.c.bf16 %v6185, %v6182
    %v6274 = vpack.c.bf16 %v6191, %v6188
    %v6275 = vpack.c.bf16 %v6197, %v6194
    %v6276 = vpack.c.bf16 %v6203, %v6200
    %v6277 = vpack.c.bf16 %v6209, %v6206
    %v6278 = vpack.c.bf16 %v6215, %v6212
    %v6279 = vpack.c.bf16 %v6221, %v6218
    %v6280 = vpack.c.bf16 %v6227, %v6224
    %v6281 = vpack.c.bf16 %v6233, %v6230
    %v6282 = vpack.c.bf16 %v6239, %v6236
    %v6283 = vpack.c.bf16 %v6245, %v6242
    %v6284 = vpack.c.bf16 %v6251, %v6248
    %v6285 = vpack.c.bf16 %v6257, %v6254
    %v6286 = vpack.c.bf16 %v6260, %v6260
    %s6287 = scalar_lea.vmem %s1, 1984
    %v6288 = vld [vmem:[%s6287] sm:$0xf]
    %v6289 = vld [vmem:[%s6287 + $0x4] sm:$0xf]
    %v6290 = vld [vmem:[%s6287 + $0x8] sm:$0xf]
    %v6291 = vld [vmem:[%s6287 + $0xc] sm:$0xf]
    %v6292 = vld [vmem:[%s6287 + $0x10] sm:$0xf]
    %v6293 = vld [vmem:[%s6287 + $0x14] sm:$0xf]
    %v6294 = vld [vmem:[%s6287 + $0x18] sm:$0xf]
    %v6295 = vld [vmem:[%s6287 + $0x1c] sm:$0xf]
    %v6296 = vld [vmem:[%s6287 + $0x20] sm:$0xf]
    %v6297 = vld [vmem:[%s6287 + $0x24] sm:$0xf]
    %v6298 = vld [vmem:[%s6287 + $0x28] sm:$0xf]
    %v6299 = vld [vmem:[%s6287 + $0x2c] sm:$0xf]
    %v6300 = vld [vmem:[%s6287 + $0x30] sm:$0xf]
    %v6301 = vld [vmem:[%s6287 + $0x34] sm:$0xf]
    %v6302 = vld [vmem:[%s6287 + $0x38] sm:$0xf]
    %v6303 = vld [vmem:[%s6287 + $0x3c] sm:$0xf]
    %v6320 = vunpack.c.l.b16 %v6288
    %v6321 = vunpack.c.l.b16 %v6289
    %v6322 = vunpack.c.l.b16 %v6290
    %v6323 = vunpack.c.l.b16 %v6291
    %v6324 = vunpack.c.l.b16 %v6292
    %v6325 = vunpack.c.l.b16 %v6293
    %v6326 = vunpack.c.l.b16 %v6294
    %v6327 = vunpack.c.l.b16 %v6295
    %v6328 = vunpack.c.l.b16 %v6296
    %v6329 = vunpack.c.l.b16 %v6297
    %v6330 = vunpack.c.l.b16 %v6298
    %v6331 = vunpack.c.l.b16 %v6299
    %v6332 = vunpack.c.l.b16 %v6300
    %v6333 = vunpack.c.l.b16 %v6301
    %v6334 = vunpack.c.l.b16 %v6302
    %v6335 = vunpack.c.l.b16 %v6303
    %v6336 = vpack.c.b16 %v6321, %v6320
    %v6337 = vpack.c.b16 %v6323, %v6322
    %v6338 = vpack.c.b16 %v6325, %v6324
    %v6339 = vpack.c.b16 %v6327, %v6326
    %v6340 = vpack.c.b16 %v6329, %v6328
    %v6341 = vpack.c.b16 %v6331, %v6330
    %v6342 = vpack.c.b16 %v6333, %v6332
    %v6343 = vpack.c.b16 %v6335, %v6334
    %6352 = vmatpush.bf16.msra.mxu0 %v6343
    %6353 = vmatpush.bf16.msra.mxu0 %v6342
    %6354 = vmatpush.bf16.msra.mxu0 %v6341
    %6355 = vmatpush.bf16.msra.mxu0 %v6340
    %6356 = vmatpush.bf16.msra.mxu0 %v6339
    %6357 = vmatpush.bf16.msra.mxu0 %v6338
    %6358 = vmatpush.bf16.msra.mxu0 %v6337
    %6359 = vmatpush.bf16.msra.mxu0 %v6336
    %6360 = vmatmul.bf16.gmra.mxu0 %v6262
    %v6361 = vpop.f32.mrf.mxu0
    %v6362 = vadd.f32 0.0, %v6361
    %v6363 = vpop.f32.mrf.mxu0
    %v6364 = vadd.f32 0.0, %v6363
    %6365 = vmatmul.bf16.gmra.mxu0 %v6263
    %v6366 = vpop.f32.mrf.mxu0
    %v6367 = vadd.f32 0.0, %v6366
    %v6368 = vpop.f32.mrf.mxu0
    %v6369 = vadd.f32 0.0, %v6368
    %6370 = vmatmul.bf16.gmra.mxu0 %v6264
    %v6371 = vpop.f32.mrf.mxu0
    %v6372 = vadd.f32 0.0, %v6371
    %v6373 = vpop.f32.mrf.mxu0
    %v6374 = vadd.f32 0.0, %v6373
    %6375 = vmatmul.bf16.gmra.mxu0 %v6265
    %v6376 = vpop.f32.mrf.mxu0
    %v6377 = vadd.f32 0.0, %v6376
    %v6378 = vpop.f32.mrf.mxu0
    %v6379 = vadd.f32 0.0, %v6378
    %6380 = vmatmul.bf16.gmra.mxu0 %v6266
    %v6381 = vpop.f32.mrf.mxu0
    %v6382 = vadd.f32 0.0, %v6381
    %v6383 = vpop.f32.mrf.mxu0
    %v6384 = vadd.f32 0.0, %v6383
    %6385 = vmatmul.bf16.gmra.mxu0 %v6267
    %v6386 = vpop.f32.mrf.mxu0
    %v6387 = vadd.f32 0.0, %v6386
    %v6388 = vpop.f32.mrf.mxu0
    %v6389 = vadd.f32 0.0, %v6388
    %6390 = vmatmul.bf16.gmra.mxu0 %v6268
    %v6391 = vpop.f32.mrf.mxu0
    %v6392 = vadd.f32 0.0, %v6391
    %v6393 = vpop.f32.mrf.mxu0
    %v6394 = vadd.f32 0.0, %v6393
    %6395 = vmatmul.bf16.gmra.mxu0 %v6269
    %v6396 = vpop.f32.mrf.mxu0
    %v6397 = vadd.f32 0.0, %v6396
    %v6398 = vpop.f32.mrf.mxu0
    %v6399 = vadd.f32 0.0, %v6398
    %6400 = vmatmul.bf16.gmra.mxu0 %v6270
    %v6401 = vpop.f32.mrf.mxu0
    %v6402 = vadd.f32 0.0, %v6401
    %v6403 = vpop.f32.mrf.mxu0
    %v6404 = vadd.f32 0.0, %v6403
    %6405 = vmatmul.bf16.gmra.mxu0 %v6271
    %v6406 = vpop.f32.mrf.mxu0
    %v6407 = vadd.f32 0.0, %v6406
    %v6408 = vpop.f32.mrf.mxu0
    %v6409 = vadd.f32 0.0, %v6408
    %6410 = vmatmul.bf16.gmra.mxu0 %v6272
    %v6411 = vpop.f32.mrf.mxu0
    %v6412 = vadd.f32 0.0, %v6411
    %v6413 = vpop.f32.mrf.mxu0
    %v6414 = vadd.f32 0.0, %v6413
    %6415 = vmatmul.bf16.gmra.mxu0 %v6273
    %v6416 = vpop.f32.mrf.mxu0
    %v6417 = vadd.f32 0.0, %v6416
    %v6418 = vpop.f32.mrf.mxu0
    %v6419 = vadd.f32 0.0, %v6418
    %6420 = vmatmul.bf16.gmra.mxu0 %v6274
    %v6421 = vpop.f32.mrf.mxu0
    %v6422 = vadd.f32 0.0, %v6421
    %v6423 = vpop.f32.mrf.mxu0
    %v6424 = vadd.f32 0.0, %v6423
    %6425 = vmatmul.bf16.gmra.mxu0 %v6275
    %v6426 = vpop.f32.mrf.mxu0
    %v6427 = vadd.f32 0.0, %v6426
    %v6428 = vpop.f32.mrf.mxu0
    %v6429 = vadd.f32 0.0, %v6428
    %6430 = vmatmul.bf16.gmra.mxu0 %v6276
    %v6431 = vpop.f32.mrf.mxu0
    %v6432 = vadd.f32 0.0, %v6431
    %v6433 = vpop.f32.mrf.mxu0
    %v6434 = vadd.f32 0.0, %v6433
    %6435 = vmatmul.bf16.gmra.mxu0 %v6277
    %v6436 = vpop.f32.mrf.mxu0
    %v6437 = vadd.f32 0.0, %v6436
    %v6438 = vpop.f32.mrf.mxu0
    %v6439 = vadd.f32 0.0, %v6438
    %6440 = vmatmul.bf16.gmra.mxu0 %v6278
    %v6441 = vpop.f32.mrf.mxu0
    %v6442 = vadd.f32 0.0, %v6441
    %v6443 = vpop.f32.mrf.mxu0
    %v6444 = vadd.f32 0.0, %v6443
    %6445 = vmatmul.bf16.gmra.mxu0 %v6279
    %v6446 = vpop.f32.mrf.mxu0
    %v6447 = vadd.f32 0.0, %v6446
    %v6448 = vpop.f32.mrf.mxu0
    %v6449 = vadd.f32 0.0, %v6448
    %6450 = vmatmul.bf16.gmra.mxu0 %v6280
    %v6451 = vpop.f32.mrf.mxu0
    %v6452 = vadd.f32 0.0, %v6451
    %v6453 = vpop.f32.mrf.mxu0
    %v6454 = vadd.f32 0.0, %v6453
    %6455 = vmatmul.bf16.gmra.mxu0 %v6281
    %v6456 = vpop.f32.mrf.mxu0
    %v6457 = vadd.f32 0.0, %v6456
    %v6458 = vpop.f32.mrf.mxu0
    %v6459 = vadd.f32 0.0, %v6458
    %6460 = vmatmul.bf16.gmra.mxu0 %v6282
    %v6461 = vpop.f32.mrf.mxu0
    %v6462 = vadd.f32 0.0, %v6461
    %v6463 = vpop.f32.mrf.mxu0
    %v6464 = vadd.f32 0.0, %v6463
    %6465 = vmatmul.bf16.gmra.mxu0 %v6283
    %v6466 = vpop.f32.mrf.mxu0
    %v6467 = vadd.f32 0.0, %v6466
    %v6468 = vpop.f32.mrf.mxu0
    %v6469 = vadd.f32 0.0, %v6468
    %6470 = vmatmul.bf16.gmra.mxu0 %v6284
    %v6471 = vpop.f32.mrf.mxu0
    %v6472 = vadd.f32 0.0, %v6471
    %v6473 = vpop.f32.mrf.mxu0
    %v6474 = vadd.f32 0.0, %v6473
    %6475 = vmatmul.bf16.gmra.mxu0 %v6285
    %v6476 = vpop.f32.mrf.mxu0
    %v6477 = vadd.f32 0.0, %v6476
    %v6478 = vpop.f32.mrf.mxu0
    %v6479 = vadd.f32 0.0, %v6478
    %6480 = vmatmul.bf16.gmra.mxu0 %v6286
    %v6481 = vpop.f32.mrf.mxu0
    %v6482 = vadd.f32 0.0, %v6481
    %v6483 = vpop.f32.mrf.mxu0
    %6484 = vdwg.mxu0
    %v6485 = vadd.f32 %v5999, %v6362
    %v6486 = vadd.f32 %v6000, %v6364
    %v6487 = vadd.f32 %v6001, %v6367
    %v6488 = vadd.f32 %v6002, %v6369
    %v6489 = vadd.f32 %v6003, %v6372
    %v6490 = vadd.f32 %v6004, %v6374
    %v6491 = vadd.f32 %v6005, %v6377
    %v6492 = vadd.f32 %v6006, %v6379
    %v6493 = vadd.f32 %v6007, %v6382
    %v6494 = vadd.f32 %v6008, %v6384
    %v6495 = vadd.f32 %v6009, %v6387
    %v6496 = vadd.f32 %v6010, %v6389
    %v6497 = vadd.f32 %v6011, %v6392
    %v6498 = vadd.f32 %v6012, %v6394
    %v6499 = vadd.f32 %v6013, %v6397
    %v6500 = vadd.f32 %v6014, %v6399
    %v6501 = vadd.f32 %v6015, %v6402
    %v6502 = vadd.f32 %v6016, %v6404
    %v6503 = vadd.f32 %v6017, %v6407
    %v6504 = vadd.f32 %v6018, %v6409
    %v6505 = vadd.f32 %v6019, %v6412
    %v6506 = vadd.f32 %v6020, %v6414
    %v6507 = vadd.f32 %v6021, %v6417
    %v6508 = vadd.f32 %v6022, %v6419
    %v6509 = vadd.f32 %v6023, %v6422
    %v6510 = vadd.f32 %v6024, %v6424
    %v6511 = vadd.f32 %v6025, %v6427
    %v6512 = vadd.f32 %v6026, %v6429
    %v6513 = vadd.f32 %v6027, %v6432
    %v6514 = vadd.f32 %v6028, %v6434
    %v6515 = vadd.f32 %v6029, %v6437
    %v6516 = vadd.f32 %v6030, %v6439
    %v6517 = vadd.f32 %v6031, %v6442
    %v6518 = vadd.f32 %v6032, %v6444
    %v6519 = vadd.f32 %v6033, %v6447
    %v6520 = vadd.f32 %v6034, %v6449
    %v6521 = vadd.f32 %v6035, %v6452
    %v6522 = vadd.f32 %v6036, %v6454
    %v6523 = vadd.f32 %v6037, %v6457
    %v6524 = vadd.f32 %v6038, %v6459
    %v6525 = vadd.f32 %v6039, %v6462
    %v6526 = vadd.f32 %v6040, %v6464
    %v6527 = vadd.f32 %v6041, %v6467
    %v6528 = vadd.f32 %v6042, %v6469
    %v6529 = vadd.f32 %v6043, %v6472
    %v6530 = vadd.f32 %v6044, %v6474
    %v6531 = vadd.f32 %v6045, %v6477
    %v6532 = vadd.f32 %v6046, %v6479
    %v6533 = vadd.f32 %v6047, %v6482
    %v6534 = vtanh.pop %v6485
    %v6535 = vtanh.pop %v6486
    %v6536 = vtanh.pop %v6487
    %v6537 = vtanh.pop %v6488
    %v6538 = vtanh.pop %v6489
    %v6539 = vtanh.pop %v6490
    %v6540 = vtanh.pop %v6491
    %v6541 = vtanh.pop %v6492
    %v6542 = vtanh.pop %v6493
    %v6543 = vtanh.pop %v6494
    %v6544 = vtanh.pop %v6495
    %v6545 = vtanh.pop %v6496
    %v6546 = vtanh.pop %v6497
    %v6547 = vtanh.pop %v6498
    %v6548 = vtanh.pop %v6499
    %v6549 = vtanh.pop %v6500
    %v6550 = vtanh.pop %v6501
    %v6551 = vtanh.pop %v6502
    %v6552 = vtanh.pop %v6503
    %v6553 = vtanh.pop %v6504
    %v6554 = vtanh.pop %v6505
    %v6555 = vtanh.pop %v6506
    %v6556 = vtanh.pop %v6507
    %v6557 = vtanh.pop %v6508
    %v6558 = vtanh.pop %v6509
    %v6559 = vtanh.pop %v6510
    %v6560 = vtanh.pop %v6511
    %v6561 = vtanh.pop %v6512
    %v6562 = vtanh.pop %v6513
    %v6563 = vtanh.pop %v6514
    %v6564 = vtanh.pop %v6515
    %v6565 = vtanh.pop %v6516
    %v6566 = vtanh.pop %v6517
    %v6567 = vtanh.pop %v6518
    %v6568 = vtanh.pop %v6519
    %v6569 = vtanh.pop %v6520
    %v6570 = vtanh.pop %v6521
    %v6571 = vtanh.pop %v6522
    %v6572 = vtanh.pop %v6523
    %v6573 = vtanh.pop %v6524
    %v6574 = vtanh.pop %v6525
    %v6575 = vtanh.pop %v6526
    %v6576 = vtanh.pop %v6527
    %v6577 = vtanh.pop %v6528
    %v6578 = vtanh.pop %v6529
    %v6579 = vtanh.pop %v6530
    %v6580 = vtanh.pop %v6531
    %v6581 = vtanh.pop %v6532
    %v6582 = vtanh.pop %v6533
    %6583 = vst [vmem:[%s12] sm:$0xff] %v6534
    %6584 = vst [vmem:[%s12 + $0x8] sm:$0xff] %v6535
    %6585 = vst [vmem:[%s12 + $0x10] sm:$0xff] %v6536
    %6586 = vst [vmem:[%s12 + $0x18] sm:$0xff] %v6537
    %6587 = vst [vmem:[%s12 + $0x20] sm:$0xff] %v6538
    %6588 = vst [vmem:[%s12 + $0x28] sm:$0xff] %v6539
    %6589 = vst [vmem:[%s12 + $0x30] sm:$0xff] %v6540
    %6590 = vst [vmem:[%s12 + $0x38] sm:$0xff] %v6541
    %6591 = vst [vmem:[%s12 + $0x40] sm:$0xff] %v6542
    %6592 = vst [vmem:[%s12 + $0x48] sm:$0xff] %v6543
    %6593 = vst [vmem:[%s12 + $0x50] sm:$0xff] %v6544
    %6594 = vst [vmem:[%s12 + $0x58] sm:$0xff] %v6545
    %6595 = vst [vmem:[%s12 + $0x60] sm:$0xff] %v6546
    %6596 = vst [vmem:[%s12 + $0x68] sm:$0xff] %v6547
    %6597 = vst [vmem:[%s12 + $0x70] sm:$0xff] %v6548
    %6598 = vst [vmem:[%s12 + $0x78] sm:$0xff] %v6549
    %6599 = vst [vmem:[%s12 + $0x80] sm:$0xff] %v6550
    %6600 = vst [vmem:[%s12 + $0x88] sm:$0xff] %v6551
    %6601 = vst [vmem:[%s12 + $0x90] sm:$0xff] %v6552
    %6602 = vst [vmem:[%s12 + $0x98] sm:$0xff] %v6553
    %6603 = vst [vmem:[%s12 + $0xa0] sm:$0xff] %v6554
    %6604 = vst [vmem:[%s12 + $0xa8] sm:$0xff] %v6555
    %6605 = vst [vmem:[%s12 + $0xb0] sm:$0xff] %v6556
    %6606 = vst [vmem:[%s12 + $0xb8] sm:$0xff] %v6557
    %6607 = vst [vmem:[%s12 + $0xc0] sm:$0xff] %v6558
    %6608 = vst [vmem:[%s12 + $0xc8] sm:$0xff] %v6559
    %6609 = vst [vmem:[%s12 + $0xd0] sm:$0xff] %v6560
    %6610 = vst [vmem:[%s12 + $0xd8] sm:$0xff] %v6561
    %6611 = vst [vmem:[%s12 + $0xe0] sm:$0xff] %v6562
    %6612 = vst [vmem:[%s12 + $0xe8] sm:$0xff] %v6563
    %6613 = vst [vmem:[%s12 + $0xf0] sm:$0xff] %v6564
    %6614 = vst [vmem:[%s12 + $0xf8] sm:$0xff] %v6565
    %6615 = vst [vmem:[%s12 + $0x100] sm:$0xff] %v6566
    %6616 = vst [vmem:[%s12 + $0x108] sm:$0xff] %v6567
    %6617 = vst [vmem:[%s12 + $0x110] sm:$0xff] %v6568
    %6618 = vst [vmem:[%s12 + $0x118] sm:$0xff] %v6569
    %6619 = vst [vmem:[%s12 + $0x120] sm:$0xff] %v6570
    %6620 = vst [vmem:[%s12 + $0x128] sm:$0xff] %v6571
    %6621 = vst [vmem:[%s12 + $0x130] sm:$0xff] %v6572
    %6622 = vst [vmem:[%s12 + $0x138] sm:$0xff] %v6573
    %6623 = vst [vmem:[%s12 + $0x140] sm:$0xff] %v6574
    %6624 = vst [vmem:[%s12 + $0x148] sm:$0xff] %v6575
    %6625 = vst [vmem:[%s12 + $0x150] sm:$0xff] %v6576
    %6626 = vst [vmem:[%s12 + $0x158] sm:$0xff] %v6577
    %6627 = vst [vmem:[%s12 + $0x160] sm:$0xff] %v6578
    %6628 = vst [vmem:[%s12 + $0x168] sm:$0xff] %v6579
    %6629 = vst [vmem:[%s12 + $0x170] sm:$0xff] %v6580
    %6630 = vst [vmem:[%s12 + $0x178] sm:$0xff] %v6581
    %6631 = vst [vmem:[%s12 + $0x180] sm:$0xff] %v6582
    // Predicated region
    $region54: #{_lambda_.1} parent=1 // pred_check
      _
    $region55: #{_lambda_.1} parent=1 // pred_check_branch
      %6633 = sbr.rel (0) target = $region57
    $region56: #{_lambda_.1} parent=1 // pred_region
      _
    $region57: #{_lambda_.1} parent=1 // pred_fallthru
      _
    // Predicated region
    $region58: #{_lambda_.1} parent=1 // pred_check
      _
    $region59: #{_lambda_.1} parent=1 // pred_check_branch
      %6635 = sbr.rel (0) target = $region61
    $region60: #{_lambda_.1} parent=1 // pred_region
      _
    $region61: #{_lambda_.1} parent=1 // pred_fallthru
      _
    %6636 = vsyncpa [#allocation3], 1

</llo_original>
